<compile_context>
chip_gen: v7x
topology: tpu7x:2x2x1
jax: 0.10.0
libtpu: 0.0.40
codegen_flags: <defaults>
</compile_context>

<pallas_src>
import functools

import jax
import jax.numpy as jnp
from jax.experimental import pallas as pl
from jax.experimental.pallas import tpu as pltpu

NEG_INF = -1e9
VMEM_LIMIT = 48 * 1024 * 1024   # explicit scoped-VMEM cap (v5e default is 16 MiB)


def _pick_tile(dim, desired, align):
    """Largest divisor of `dim` that is <= desired and a multiple of `align`.

    Falls back to the full dimension only when no aligned divisor exists
    (a full-dim block is always a legal Mosaic block shape)."""
    if dim <= desired:
        return dim
    t = (desired // align) * align
    while t >= align:
        if dim % t == 0:
            return t
        t -= align
    return dim


# ----------------------------- Pallas kernels -----------------------------

def _ln_kernel(x_ref, g_ref, b_ref, o_ref, *, eps):
    x = x_ref[...].astype(jnp.float32)
    mean = jnp.mean(x, axis=-1, keepdims=True)
    var = jnp.mean(jnp.square(x - mean), axis=-1, keepdims=True)
    y = (x - mean) * jax.lax.rsqrt(var + eps)
    o_ref[...] = (y * g_ref[...] + b_ref[...]).astype(o_ref.dtype)


def layernorm(x2d, gamma, beta, *, eps=1e-5, out_dtype=None, tm=256):
    m, d = x2d.shape
    tm = _pick_tile(m, tm, 8)
    out_dtype = out_dtype or x2d.dtype
    return pl.pallas_call(
        functools.partial(_ln_kernel, eps=eps),
        out_shape=jax.ShapeDtypeStruct((m, d), out_dtype),
        grid=(m // tm,),
        in_specs=[pl.BlockSpec((tm, d), lambda i: (i, 0)),
                  pl.BlockSpec((1, d), lambda i: (0, 0)),
                  pl.BlockSpec((1, d), lambda i: (0, 0))],
        out_specs=pl.BlockSpec((tm, d), lambda i: (i, 0)),
        compiler_params=pltpu.CompilerParams(
            dimension_semantics=("parallel",),
            vmem_limit_bytes=VMEM_LIMIT),
    )(x2d, gamma, beta)


def _mm_bias_act_kernel(x_ref, w_ref, b_ref, o_ref, acc_ref, *, activation):
    @pl.when(pl.program_id(2) == 0)
    def _():
        acc_ref[...] = jnp.zeros_like(acc_ref)

    acc_ref[...] += jnp.dot(x_ref[...], w_ref[...],
                            preferred_element_type=jnp.float32)

    @pl.when(pl.program_id(2) == pl.num_programs(2) - 1)
    def _():
        y = acc_ref[...] + b_ref[...]                     # f32 epilogue
        if activation == "gelu":
            # tanh-gelu: lowers to the EUP slot (idle while the MXU drains).
            y = jax.nn.gelu(y, approximate=True)
        o_ref[...] = y.astype(o_ref.dtype)


def matmul_bias_act(x2d, w, b, *, activation=None, out_dtype=None,
                    tm=512, tn=256, tk=1024):
    """y = act(x @ w + b); bf16 operands, f32 accumulate, tiled M/N/K."""
    m, k = x2d.shape
    n = w.shape[1]
    tm = _pick_tile(m, tm, 8)
    tn = _pick_tile(n, tn, 128)
    tk = _pick_tile(k, tk, 128)
    out_dtype = out_dtype or x2d.dtype
    return pl.pallas_call(
        functools.partial(_mm_bias_act_kernel, activation=activation),
        out_shape=jax.ShapeDtypeStruct((m, n), out_dtype),
        grid=(m // tm, n // tn, k // tk),
        in_specs=[pl.BlockSpec((tm, tk), lambda i, j, kk: (i, kk)),
                  pl.BlockSpec((tk, tn), lambda i, j, kk: (kk, j)),
                  pl.BlockSpec((1, tn), lambda i, j, kk: (0, j))],
        out_specs=pl.BlockSpec((tm, tn), lambda i, j, kk: (i, j)),
        scratch_shapes=[pltpu.VMEM((tm, tn), jnp.float32)],
        compiler_params=pltpu.CompilerParams(
            dimension_semantics=("parallel", "parallel", "arbitrary"),
            vmem_limit_bytes=VMEM_LIMIT),
    )(x2d, w, b.reshape(1, n))


def _mm_res_ln_kernel(x_ref, w_ref, b_ref, res_ref, g_ref, be_ref, o_ref,
                      acc_ref, *, eps):
    @pl.when(pl.program_id(1) == 0)
    def _():
        acc_ref[...] = jnp.zeros_like(acc_ref)

    acc_ref[...] += jnp.dot(x_ref[...], w_ref[...],
                            preferred_element_type=jnp.float32)

    @pl.when(pl.program_id(1) == pl.num_programs(1) - 1)
    def _():
        y = acc_ref[...] + b_ref[...] + res_ref[...].astype(jnp.float32)
        mean = jnp.mean(y, axis=-1, keepdims=True)
        var = jnp.mean(jnp.square(y - mean), axis=-1, keepdims=True)
        y = (y - mean) * jax.lax.rsqrt(var + eps)
        o_ref[...] = (y * g_ref[...] + be_ref[...]).astype(o_ref.dtype)


def matmul_residual_ln(x2d, w, b, residual2d, gamma, beta, *, eps=1e-5,
                       out_dtype=None, tm=256, tk=1024):
    """layernorm(residual + x @ w + b); full-D rows kept resident for LN."""
    m, k = x2d.shape
    n = w.shape[1]
    tm = _pick_tile(m, tm, 8)
    tk = _pick_tile(k, tk, 128)
    out_dtype = out_dtype or residual2d.dtype
    return pl.pallas_call(
        functools.partial(_mm_res_ln_kernel, eps=eps),
        out_shape=jax.ShapeDtypeStruct((m, n), out_dtype),
        grid=(m // tm, k // tk),
        in_specs=[pl.BlockSpec((tm, tk), lambda i, kk: (i, kk)),
                  pl.BlockSpec((tk, n), lambda i, kk: (kk, 0)),
                  pl.BlockSpec((1, n), lambda i, kk: (0, 0)),
                  pl.BlockSpec((tm, n), lambda i, kk: (i, 0)),
                  pl.BlockSpec((1, n), lambda i, kk: (0, 0)),
                  pl.BlockSpec((1, n), lambda i, kk: (0, 0))],
        out_specs=pl.BlockSpec((tm, n), lambda i, kk: (i, 0)),
        scratch_shapes=[pltpu.VMEM((tm, n), jnp.float32)],
        compiler_params=pltpu.CompilerParams(
            dimension_semantics=("parallel", "arbitrary"),
            vmem_limit_bytes=VMEM_LIMIT),
    )(x2d, w, b, residual2d, gamma, beta)


def _flash_attn_kernel(q_ref, k_ref, v_ref, pad_ref, o_ref,
                       m_scr, l_scr, acc_scr, *,
                       heads_per_slab, head_dim, causal, blk_q, blk_k):
    qi = pl.program_id(2)
    ki = pl.program_id(3)

    @pl.when(ki == 0)
    def _init():
        m_scr[...] = jnp.full_like(m_scr, -jnp.inf)
        l_scr[...] = jnp.zeros_like(l_scr)
        acc_scr[...] = jnp.zeros_like(acc_scr)

    def _compute():
        q = q_ref[0]                                   # (blk_q, slab) bf16
        k = k_ref[0]                                   # (blk_k, slab) bf16
        v = v_ref[0]                                   # (blk_k, slab) bf16
        mask = pad_ref[0]                              # (1, blk_k) additive f32
        if causal:
            row = qi * blk_q + jax.lax.broadcasted_iota(
                jnp.int32, (blk_q, blk_k), 0)
            col = ki * blk_k + jax.lax.broadcasted_iota(
                jnp.int32, (blk_q, blk_k), 1)
            mask = mask + jnp.where(col > row, NEG_INF, 0.0)
        for h in range(heads_per_slab):                # <= 4 heads live at once
            sl = slice(h * head_dim, (h + 1) * head_dim)
            s = jax.lax.dot_general(q[:, sl], k[:, sl],
                                    (((1,), (1,)), ((), ())),
                                    preferred_element_type=jnp.float32)
            s = s + mask
            m_prev = m_scr[h]                          # (blk_q, 1)
            m_new = jnp.maximum(m_prev, jnp.max(s, axis=-1, keepdims=True))
            alpha = jnp.exp(m_prev - m_new)
            p = jnp.exp(s - m_new)
            l_scr[h] = alpha * l_scr[h] + jnp.sum(p, axis=-1, keepdims=True)
            acc_scr[h] = alpha * acc_scr[h] + jax.lax.dot_general(
                p.astype(v.dtype), v[:, sl], (((1,), (0,)), ((), ())),
                preferred_element_type=jnp.float32)
            m_scr[h] = m_new

    if causal:
        # Skip k tiles that lie entirely above this q tile's diagonal.
        pl.when(ki * blk_k <= (qi + 1) * blk_q - 1)(_compute)
    else:
        _compute()

    @pl.when(ki == pl.num_programs(3) - 1)
    def _finalize():
        for h in range(heads_per_slab):
            sl = slice(h * head_dim, (h + 1) * head_dim)
            # approx reciprocal -> EUP slot; exact softmax requires approx=False.
            inv = pl.reciprocal(l_scr[h], approx=True)
            o_ref[0, :, sl] = (acc_scr[h] * inv).astype(o_ref.dtype)


def attention(q_src, q_lane_off, kv_src, k_lane_off, v_lane_off, pad_add, *,
              num_heads, d_model, causal, out_dtype,
              blk_q_desired=256, blk_k_desired=512):
    """Flash-style attention over 128-lane head slabs.

    q/k/v tiles are selected out of fused projection outputs (lane offsets in
    elements) purely via BlockSpec index maps; the causal + key-padding mask
    is built in-kernel from iota + a tiny (B,1,Tk) additive padding row."""
    B, Tq = q_src.shape[0], q_src.shape[1]
    Tk = kv_src.shape[1]
    head_dim = d_model // num_heads
    slab = head_dim if head_dim >= 128 else 128
    assert slab % 128 == 0 or slab == head_dim
    assert slab % head_dim == 0 and d_model % slab == 0
    heads_per_slab = slab // head_dim
    n_slabs = d_model // slab
    blk_q = _pick_tile(Tq, blk_q_desired, 8)
    blk_k = _pick_tile(Tk, blk_k_desired, 128)
    qb, kb, vb = q_lane_off // slab, k_lane_off // slab, v_lane_off // slab

    kern = functools.partial(_flash_attn_kernel, heads_per_slab=heads_per_slab,
                             head_dim=head_dim, causal=causal,
                             blk_q=blk_q, blk_k=blk_k)
    return pl.pallas_call(
        kern,
        out_shape=jax.ShapeDtypeStruct((B, Tq, d_model), out_dtype),
        grid=(B, n_slabs, Tq // blk_q, Tk // blk_k),
        in_specs=[
            pl.BlockSpec((1, blk_q, slab),
                         lambda b, s, qi, ki, qb=qb: (b, qi, qb + s)),
            pl.BlockSpec((1, blk_k, slab),
                         lambda b, s, qi, ki, kb=kb: (b, ki, kb + s)),
            pl.BlockSpec((1, blk_k, slab),
                         lambda b, s, qi, ki, vb=vb: (b, ki, vb + s)),
            pl.BlockSpec((1, 1, blk_k),
                         lambda b, s, qi, ki: (b, 0, ki)),
        ],
        out_specs=pl.BlockSpec((1, blk_q, slab),
                               lambda b, s, qi, ki: (b, qi, s)),
        scratch_shapes=[pltpu.VMEM((heads_per_slab, blk_q, 1), jnp.float32),
                        pltpu.VMEM((heads_per_slab, blk_q, 1), jnp.float32),
                        pltpu.VMEM((heads_per_slab, blk_q, head_dim),
                                   jnp.float32)],
        compiler_params=pltpu.CompilerParams(
            dimension_semantics=("parallel", "parallel", "parallel",
                                 "arbitrary"),
            vmem_limit_bytes=VMEM_LIMIT),
    )(q_src, kv_src, kv_src, pad_add)


# ----------------------------- Model glue (JAX) -----------------------------

def bart_decoder_forward(params, inputs_embeds, attention_mask,
                         encoder_hidden_states, encoder_attention_mask,
                         num_heads):
    B, T, D = inputs_embeds.shape
    S = encoder_hidden_states.shape[1]
    cdt = jnp.bfloat16

    # layernorm_embedding + dropout(inference => identity)
    h2d = layernorm(inputs_embeds.reshape(B * T, D),
                    params["ln_emb_g"], params["ln_emb_b"], out_dtype=cdt)
    enc2d = encoder_hidden_states.reshape(B * S, D).astype(cdt)

    # Additive key-padding rows only; the causal part is built inside the kernel.
    self_pad = ((1.0 - attention_mask.astype(jnp.float32)) * NEG_INF
                ).reshape(B, 1, T)
    cross_pad = ((1.0 - encoder_attention_mask.astype(jnp.float32)) * NEG_INF
                 ).reshape(B, 1, S)

    for p in params["layers"]:
        # --- self attention (causal), fused QKV projection ---
        qkv = matmul_bias_act(h2d, p["self_qkv_w"], p["self_qkv_b"]
                              ).reshape(B, T, 3 * D)
        attn = attention(qkv, 0, qkv, D, 2 * D, self_pad, num_heads=num_heads,
                         d_model=D, causal=True, out_dtype=cdt)
        h2d = matmul_residual_ln(attn.reshape(B * T, D), p["self_o_w"],
                                 p["self_o_b"], h2d,
                                 p["self_ln_g"], p["self_ln_b"])

        # --- cross attention with encoder states, fused KV projection ---
        q = matmul_bias_act(h2d, p["cross_q_w"], p["cross_q_b"]
                            ).reshape(B, T, D)
        kv = matmul_bias_act(enc2d, p["cross_kv_w"], p["cross_kv_b"]
                             ).reshape(B, S, 2 * D)
        attn = attention(q, 0, kv, 0, D, cross_pad, num_heads=num_heads,
                         d_model=D, causal=False, out_dtype=cdt)
        h2d = matmul_residual_ln(attn.reshape(B * T, D), p["cross_o_w"],
                                 p["cross_o_b"], h2d,
                                 p["cross_ln_g"], p["cross_ln_b"])

        # --- feed forward (gelu fc1, fc2 fused with residual + LN) ---
        f = matmul_bias_act(h2d, p["fc1_w"], p["fc1_b"], activation="gelu")
        h2d = matmul_residual_ln(f, p["fc2_w"], p["fc2_b"], h2d,
                                 p["final_ln_g"], p["final_ln_b"])

    return h2d.reshape(B, T, D).astype(jnp.float32)


# ----------------------------- Parameter init -----------------------------

def init_params(key, d_model, ffn_dim, num_heads, num_layers, std=0.02,
                wdtype=jnp.bfloat16):
    head_dim = d_model // num_heads
    scale = head_dim ** -0.5

    def dense(k, din, dout):
        return std * jax.random.normal(k, (din, dout), jnp.float32)

    params = {
        "ln_emb_g": jnp.ones((1, d_model), jnp.float32),
        "ln_emb_b": jnp.zeros((1, d_model), jnp.float32),
        "layers": [],
    }
    for l in range(num_layers):
        keys = jax.random.split(jax.random.fold_in(key, l), 10)
        # q scale (1/sqrt(head_dim)) folded into q weights (biases are zero).
        wq = dense(keys[0], d_model, d_model) * scale
        wk = dense(keys[1], d_model, d_model)
        wv = dense(keys[2], d_model, d_model)
        wo = dense(keys[3], d_model, d_model)
        cwq = dense(keys[4], d_model, d_model) * scale
        cwk = dense(keys[5], d_model, d_model)
        cwv = dense(keys[6], d_model, d_model)
        cwo = dense(keys[7], d_model, d_model)
        w1 = dense(keys[8], d_model, ffn_dim)
        w2 = dense(keys[9], ffn_dim, d_model)
        layer = {
            "self_qkv_w": jnp.concatenate([wq, wk, wv], axis=1).astype(wdtype),
            "self_qkv_b": jnp.zeros((1, 3 * d_model), jnp.float32),
            "self_o_w": wo.astype(wdtype),
            "self_o_b": jnp.zeros((1, d_model), jnp.float32),
            "cross_q_w": cwq.astype(wdtype),
            "cross_q_b": jnp.zeros((1, d_model), jnp.float32),
            "cross_kv_w": jnp.concatenate([cwk, cwv], axis=1).astype(wdtype),
            "cross_kv_b": jnp.zeros((1, 2 * d_model), jnp.float32),
            "cross_o_w": cwo.astype(wdtype),
            "cross_o_b": jnp.zeros((1, d_model), jnp.float32),
            "fc1_w": w1.astype(wdtype),
            "fc1_b": jnp.zeros((1, ffn_dim), jnp.float32),
            "fc2_w": w2.astype(wdtype),
            "fc2_b": jnp.zeros((1, d_model), jnp.float32),
        }
        for ln in ["self_ln", "cross_ln", "final_ln"]:
            layer[ln + "_g"] = jnp.ones((1, d_model), jnp.float32)
            layer[ln + "_b"] = jnp.zeros((1, d_model), jnp.float32)
        params["layers"].append(layer)
    return params


# ----------------------------- Main -----------------------------

if __name__ == "__main__":
    # Small config: d_model=128, heads=4 (head_dim=32), ffn=256, layers=2
    B, T, S, D, H, FFN, L = 2, 8, 16, 128, 4, 256, 2

    key = jax.random.PRNGKey(0)
    k_in, k_enc, k_par = jax.random.split(key, 3)
    inputs_embeds = jax.random.normal(k_in, (B, T, D), jnp.float32)
    encoder_hidden_states = jax.random.normal(k_enc, (B, S, D), jnp.float32)
    attention_mask = jnp.ones((B, T), jnp.int32).at[1, T - 2:].set(0)
    encoder_attention_mask = jnp.ones((B, S), jnp.int32).at[0, S - 3:].set(0)

    params = init_params(k_par, D, FFN, H, L)

    fwd = jax.jit(bart_decoder_forward, static_argnames=("num_heads",))
    out = fwd(params, inputs_embeds, attention_mask,
              encoder_hidden_states, encoder_attention_mask, num_heads=H)
    out = jax.block_until_ready(out)

    assert out.shape == (B, T, D), out.shape
    assert bool(jnp.all(jnp.isfinite(out)))
    print("KERNEL_OK")
</pallas_src>

<mosaic_0001>
module attributes {stable_mosaic.version = 11 : i64} {
  func.func @_ln_kernel(%arg0: i32, %arg1: memref<16x128xf32, #tpu.memory_space<vmem>>, %arg2: memref<1x128xf32, #tpu.memory_space<vmem>>, %arg3: memref<1x128xf32, #tpu.memory_space<vmem>>, %arg4: memref<16x128xbf16, #tpu.memory_space<vmem>>) attributes {dimension_semantics = [#tpu.dimension_semantics<parallel>], iteration_bounds = array<i64: 1>, scalar_prefetch = 0 : i64, scratch_operands = 0 : i64, tpu.core_type = #tpu.core_type<tc>, window_params = [{transform_indices = @transform_0, window_bounds = array<i64: 16, 128>}, {pipeline_mode = #tpu.pipeline_mode<synchronous>, transform_indices = @transform_1, window_bounds = array<i64: 1, 128>}, {pipeline_mode = #tpu.pipeline_mode<synchronous>, transform_indices = @transform_2, window_bounds = array<i64: 1, 128>}, {transform_indices = @transform_3, window_bounds = array<i64: 16, 128>}]} {
    %c0 = arith.constant 0 : index
    %c0_0 = arith.constant 0 : index
    %0 = vector.load %arg1[%c0, %c0_0] : memref<16x128xf32, #tpu.memory_space<vmem>>, vector<16x128xf32>
    %cst = arith.constant dense<0.000000e+00> : vector<16xf32>
    %1 = vector.multi_reduction <add>, %0, %cst [1] : vector<16x128xf32> to vector<16xf32>
    %2 = vector.shape_cast %1 : vector<16xf32> to vector<16x1xf32>
    %cst_1 = arith.constant 1.280000e+02 : f32
    %3 = vector.broadcast %cst_1 : f32 to vector<16x1xf32>
    %4 = arith.divf %2, %3 : vector<16x1xf32>
    %5 = vector.broadcast %4 : vector<16x1xf32> to vector<16x128xf32>
    %6 = arith.subf %0, %5 : vector<16x128xf32>
    %7 = arith.mulf %6, %6 : vector<16x128xf32>
    %cst_2 = arith.constant dense<0.000000e+00> : vector<16xf32>
    %8 = vector.multi_reduction <add>, %7, %cst_2 [1] : vector<16x128xf32> to vector<16xf32>
    %9 = vector.shape_cast %8 : vector<16xf32> to vector<16x1xf32>
    %cst_3 = arith.constant 1.280000e+02 : f32
    %10 = vector.broadcast %cst_3 : f32 to vector<16x1xf32>
    %11 = arith.divf %9, %10 : vector<16x1xf32>
    %12 = vector.broadcast %4 : vector<16x1xf32> to vector<16x128xf32>
    %13 = arith.subf %0, %12 : vector<16x128xf32>
    %cst_4 = arith.constant 9.99999974E-6 : f32
    %14 = vector.broadcast %cst_4 : f32 to vector<16x1xf32>
    %15 = arith.addf %11, %14 : vector<16x1xf32>
    %16 = math.rsqrt %15 : vector<16x1xf32>
    %17 = vector.broadcast %16 : vector<16x1xf32> to vector<16x128xf32>
    %18 = arith.mulf %13, %17 : vector<16x128xf32>
    %c0_5 = arith.constant 0 : index
    %c0_6 = arith.constant 0 : index
    %19 = vector.load %arg2[%c0_5, %c0_6] : memref<1x128xf32, #tpu.memory_space<vmem>>, vector<1x128xf32>
    %20 = vector.broadcast %19 : vector<1x128xf32> to vector<16x128xf32>
    %21 = arith.mulf %18, %20 : vector<16x128xf32>
    %c0_7 = arith.constant 0 : index
    %c0_8 = arith.constant 0 : index
    %22 = vector.load %arg3[%c0_7, %c0_8] : memref<1x128xf32, #tpu.memory_space<vmem>>, vector<1x128xf32>
    %23 = vector.broadcast %22 : vector<1x128xf32> to vector<16x128xf32>
    %24 = arith.addf %21, %23 : vector<16x128xf32>
    %25 = arith.truncf %24 : vector<16x128xf32> to vector<16x128xbf16>
    %c0_9 = arith.constant 0 : index
    %c0_10 = arith.constant 0 : index
    %26 = vector.load %arg4[%c0_9, %c0_10] : memref<16x128xbf16, #tpu.memory_space<vmem>>, vector<16x128xbf16>
    tpu.vector_store %arg4[%c0_9, %c0_10], %25 {strides = array<i32>} : memref<16x128xbf16, #tpu.memory_space<vmem>>, vector<16x128xbf16>,
    return
  }
  func.func @transform_0(%arg0: i32) -> (i32, i32) {
    %c0_i32 = arith.constant 0 : i32
    %c0_i32_0 = arith.constant 0 : i32
    return %arg0, %c0_i32 : i32, i32
  }
  func.func @transform_1(%arg0: i32) -> (i32, i32) {
    %c0_i32 = arith.constant 0 : i32
    %c0_i32_0 = arith.constant 0 : i32
    %c0_i32_1 = arith.constant 0 : i32
    return %c0_i32, %c0_i32_0 : i32, i32
  }
  func.func @transform_2(%arg0: i32) -> (i32, i32) {
    %c0_i32 = arith.constant 0 : i32
    %c0_i32_0 = arith.constant 0 : i32
    %c0_i32_1 = arith.constant 0 : i32
    return %c0_i32, %c0_i32_0 : i32, i32
  }
  func.func @transform_3(%arg0: i32) -> (i32, i32) {
    %c0_i32 = arith.constant 0 : i32
    %c0_i32_0 = arith.constant 0 : i32
    return %arg0, %c0_i32 : i32, i32
  }
}

module attributes {stable_mosaic.version = 11 : i64} {
  func.func @_flash_attn_kernel(%arg0: i32, %arg1: i32, %arg2: i32, %arg3: i32, %arg4: memref<1x8x128xbf16, #tpu.memory_space<vmem>>, %arg5: memref<1x8x128xbf16, #tpu.memory_space<vmem>>, %arg6: memref<1x8x128xbf16, #tpu.memory_space<vmem>>, %arg7: memref<1x1x8xf32, #tpu.memory_space<vmem>>, %arg8: memref<1x8x128xbf16, #tpu.memory_space<vmem>>, %arg9: memref<4x8x1xf32, #tpu.memory_space<vmem>>, %arg10: memref<4x8x1xf32, #tpu.memory_space<vmem>>, %arg11: memref<4x8x32xf32, #tpu.memory_space<vmem>>) attributes {dimension_semantics = [#tpu.dimension_semantics<parallel>, #tpu.dimension_semantics<parallel>, #tpu.dimension_semantics<parallel>, #tpu.dimension_semantics<arbitrary>], iteration_bounds = array<i64: 2, 1, 1, 1>, scalar_prefetch = 0 : i64, scratch_operands = 3 : i64, tpu.core_type = #tpu.core_type<tc>, window_params = [{transform_indices = @transform_0, window_bounds = array<i64: 1, 8, 128>}, {transform_indices = @transform_1, window_bounds = array<i64: 1, 8, 128>}, {transform_indices = @transform_2, window_bounds = array<i64: 1, 8, 128>}, {transform_indices = @transform_3, window_bounds = array<i64: 1, 1, 8>}, {transform_indices = @transform_4, window_bounds = array<i64: 1, 8, 128>}]} {
    %c0_i32 = arith.constant 0 : i32
    %0 = arith.cmpi eq, %arg3, %c0_i32 : i32
    %1 = arith.extui %0 : i1 to i32
    %c0_i32_0 = arith.constant 0 : i32
    %2 = arith.cmpi ne, %1, %c0_i32_0 : i32
    scf.if %2 {
      %cst = arith.constant 0xFF800000 : f32
      %13 = vector.broadcast %cst : f32 to vector<4x8x1xf32>
      %c0 = arith.constant 0 : index
      %c0_6 = arith.constant 0 : index
      %c0_7 = arith.constant 0 : index
      %14 = vector.load %arg9[%c0, %c0_6, %c0_7] : memref<4x8x1xf32, #tpu.memory_space<vmem>>, vector<4x8x1xf32>
      tpu.vector_store %arg9[%c0, %c0_6, %c0_7], %13 {strides = array<i32>} : memref<4x8x1xf32, #tpu.memory_space<vmem>>, vector<4x8x1xf32>,
      %cst_8 = arith.constant 0.000000e+00 : f32
      %15 = vector.broadcast %cst_8 : f32 to vector<4x8x1xf32>
      %c0_9 = arith.constant 0 : index
      %c0_10 = arith.constant 0 : index
      %c0_11 = arith.constant 0 : index
      %16 = vector.load %arg10[%c0_9, %c0_10, %c0_11] : memref<4x8x1xf32, #tpu.memory_space<vmem>>, vector<4x8x1xf32>
      tpu.vector_store %arg10[%c0_9, %c0_10, %c0_11], %15 {strides = array<i32>} : memref<4x8x1xf32, #tpu.memory_space<vmem>>, vector<4x8x1xf32>,
      %cst_12 = arith.constant 0.000000e+00 : f32
      %17 = vector.broadcast %cst_12 : f32 to vector<4x8x32xf32>
      %c0_13 = arith.constant 0 : index
      %c0_14 = arith.constant 0 : index
      %c0_15 = arith.constant 0 : index
      %18 = vector.load %arg11[%c0_13, %c0_14, %c0_15] : memref<4x8x32xf32, #tpu.memory_space<vmem>>, vector<4x8x32xf32>
      tpu.vector_store %arg11[%c0_13, %c0_14, %c0_15], %17 {strides = array<i32>} : memref<4x8x32xf32, #tpu.memory_space<vmem>>, vector<4x8x32xf32>,
    } else {
    }
    %c8_i32 = arith.constant 8 : i32
    %3 = arith.muli %arg3, %c8_i32 : i32
    %c1_i32 = arith.constant 1 : i32
    %4 = arith.addi %arg2, %c1_i32 : i32
    %c8_i32_1 = arith.constant 8 : i32
    %5 = arith.muli %4, %c8_i32_1 : i32
    %c1_i32_2 = arith.constant 1 : i32
    %6 = arith.subi %5, %c1_i32_2 : i32
    %7 = arith.cmpi sle, %3, %6 : i32
    %8 = arith.extui %7 : i1 to i32
    %c0_i32_3 = arith.constant 0 : i32
    %9 = arith.cmpi ne, %8, %c0_i32_3 : i32
    scf.if %9 {
      %c0 = arith.constant 0 : index
      %c0_6 = arith.constant 0 : index
      %c0_7 = arith.constant 0 : index
      %13 = vector.load %arg4[%c0, %c0_6, %c0_7] : memref<1x8x128xbf16, #tpu.memory_space<vmem>>, vector<1x8x128xbf16>
      %14 = vector.shape_cast %13 : vector<1x8x128xbf16> to vector<8x128xbf16>
      %c0_8 = arith.constant 0 : index
      %c0_9 = arith.constant 0 : index
      %c0_10 = arith.constant 0 : index
      %15 = vector.load %arg5[%c0_8, %c0_9, %c0_10] : memref<1x8x128xbf16, #tpu.memory_space<vmem>>, vector<1x8x128xbf16>
      %16 = vector.shape_cast %15 : vector<1x8x128xbf16> to vector<8x128xbf16>
      %c0_11 = arith.constant 0 : index
      %c0_12 = arith.constant 0 : index
      %c0_13 = arith.constant 0 : index
      %17 = vector.load %arg6[%c0_11, %c0_12, %c0_13] : memref<1x8x128xbf16, #tpu.memory_space<vmem>>, vector<1x8x128xbf16>
      %18 = vector.shape_cast %17 : vector<1x8x128xbf16> to vector<8x128xbf16>
      %c0_14 = arith.constant 0 : index
      %c0_15 = arith.constant 0 : index
      %c0_16 = arith.constant 0 : index
      %19 = vector.load %arg7[%c0_14, %c0_15, %c0_16] : memref<1x1x8xf32, #tpu.memory_space<vmem>>, vector<1x1x8xf32>
      %20 = vector.shape_cast %19 : vector<1x1x8xf32> to vector<1x8xf32>
      %c8_i32_17 = arith.constant 8 : i32
      %21 = arith.muli %arg2, %c8_i32_17 : i32
      %22 = tpu.iota {dimensions = array<i32: 0>} : vector<8x8xi32>
      %23 = vector.broadcast %21 : i32 to vector<8x8xi32>
      %24 = arith.addi %23, %22 : vector<8x8xi32>
      %c8_i32_18 = arith.constant 8 : i32
      %25 = arith.muli %arg3, %c8_i32_18 : i32
      %26 = tpu.iota {dimensions = array<i32: 1>} : vector<8x8xi32>
      %27 = vector.broadcast %25 : i32 to vector<8x8xi32>
      %28 = arith.addi %27, %26 : vector<8x8xi32>
      %29 = arith.cmpi sgt, %28, %24 : vector<8x8xi32>
      %cst = arith.constant -1.000000e+09 : f32
      %cst_19 = arith.constant 0.000000e+00 : f32
      %30 = vector.broadcast %cst : f32 to vector<8x8xf32>
      %31 = vector.broadcast %cst_19 : f32 to vector<8x8xf32>
      %32 = arith.select %29, %30, %31 : vector<8x8xi1>, vector<8x8xf32>
      %33 = vector.broadcast %20 : vector<1x8xf32> to vector<8x8xf32>
      %34 = arith.addf %33, %32 : vector<8x8xf32>
      %35 = vector.extract_strided_slice %14 {offsets = [0, 0], sizes = [8, 32], strides = [1, 1]} : vector<8x128xbf16> to vector<8x32xbf16>
      %36 = vector.extract_strided_slice %16 {offsets = [0, 0], sizes = [8, 32], strides = [1, 1]} : vector<8x128xbf16> to vector<8x32xbf16>
      %cst_20 = arith.constant dense<0.000000e+00> : vector<8x8xf32>
      %37 = tpu.matmul %35, %36, %cst_20 {dimension_numbers = #tpu.dot_dimension_numbers<[1], [1], [0], [0], [0, 0, 1, 0], [], []>} : vector<8x32xbf16>, vector<8x32xbf16>, vector<8x8xf32> -> vector<8x8xf32>
      %38 = arith.addf %37, %34 : vector<8x8xf32>
      %c0_21 = arith.constant 0 : index
      %c0_22 = arith.constant 0 : index
      %c0_23 = arith.constant 0 : index
      %39 = vector.load %arg9[%c0_21, %c0_22, %c0_23] : memref<4x8x1xf32, #tpu.memory_space<vmem>>, vector<1x8x1xf32>
      %40 = vector.shape_cast %39 : vector<1x8x1xf32> to vector<8x1xf32>
      %cst_24 = arith.constant dense<0xFF800000> : vector<8xf32>
      %41 = vector.multi_reduction <maximumf>, %38, %cst_24 [1] : vector<8x8xf32> to vector<8xf32>
      %42 = vector.shape_cast %41 : vector<8xf32> to vector<8x1xf32>
      %43 = arith.maximumf %40, %42 : vector<8x1xf32>
      %44 = arith.subf %40, %43 : vector<8x1xf32>
      %45 = math.exp %44 : vector<8x1xf32>
      %46 = vector.broadcast %43 : vector<8x1xf32> to vector<8x8xf32>
      %47 = arith.subf %38, %46 : vector<8x8xf32>
      %48 = math.exp %47 : vector<8x8xf32>
      %c0_25 = arith.constant 0 : index
      %c0_26 = arith.constant 0 : index
      %c0_27 = arith.constant 0 : index
      %49 = vector.load %arg10[%c0_25, %c0_26, %c0_27] : memref<4x8x1xf32, #tpu.memory_space<vmem>>, vector<1x8x1xf32>
      %50 = vector.shape_cast %49 : vector<1x8x1xf32> to vector<8x1xf32>
      %51 = arith.mulf %45, %50 : vector<8x1xf32>
      %cst_28 = arith.constant dense<0.000000e+00> : vector<8xf32>
      %52 = vector.multi_reduction <add>, %48, %cst_28 [1] : vector<8x8xf32> to vector<8xf32>
      %53 = vector.shape_cast %52 : vector<8xf32> to vector<8x1xf32>
      %54 = arith.addf %51, %53 : vector<8x1xf32>
      %c0_29 = arith.constant 0 : index
      %c0_30 = arith.constant 0 : index
      %c0_31 = arith.constant 0 : index
      %55 = vector.load %arg10[%c0_29, %c0_30, %c0_31] : memref<4x8x1xf32, #tpu.memory_space<vmem>>, vector<1x8x1xf32>
      %56 = vector.shape_cast %55 : vector<1x8x1xf32> to vector<8x1xf32>
      %57 = vector.shape_cast %54 : vector<8x1xf32> to vector<1x8x1xf32>
      tpu.vector_store %arg10[%c0_29, %c0_30, %c0_31], %57 {strides = array<i32>} : memref<4x8x1xf32, #tpu.memory_space<vmem>>, vector<1x8x1xf32>,
      %c0_32 = arith.constant 0 : index
      %c0_33 = arith.constant 0 : index
      %c0_34 = arith.constant 0 : index
      %58 = vector.load %arg11[%c0_32, %c0_33, %c0_34] : memref<4x8x32xf32, #tpu.memory_space<vmem>>, vector<1x8x32xf32>
      %59 = vector.shape_cast %58 : vector<1x8x32xf32> to vector<8x32xf32>
      %60 = vector.broadcast %45 : vector<8x1xf32> to vector<8x32xf32>
      %61 = arith.mulf %60, %59 : vector<8x32xf32>
      %62 = arith.truncf %48 : vector<8x8xf32> to vector<8x8xbf16>
      %63 = vector.extract_strided_slice %18 {offsets = [0, 0], sizes = [8, 32], strides = [1, 1]} : vector<8x128xbf16> to vector<8x32xbf16>
      %cst_35 = arith.constant dense<0.000000e+00> : vector<8x32xf32>
      %64 = tpu.matmul %62, %63, %cst_35 {dimension_numbers = #tpu.dot_dimension_numbers<[1], [0], [0], [1], [0, 0, 1, 1], [], []>} : vector<8x8xbf16>, vector<8x32xbf16>, vector<8x32xf32> -> vector<8x32xf32>
      %65 = arith.addf %61, %64 : vector<8x32xf32>
      %c0_36 = arith.constant 0 : index
      %c0_37 = arith.constant 0 : index
      %c0_38 = arith.constant 0 : index
      %66 = vector.load %arg11[%c0_36, %c0_37, %c0_38] : memref<4x8x32xf32, #tpu.memory_space<vmem>>, vector<1x8x32xf32>
      %67 = vector.shape_cast %66 : vector<1x8x32xf32> to vector<8x32xf32>
      %68 = vector.shape_cast %65 : vector<8x32xf32> to vector<1x8x32xf32>
      tpu.vector_store %arg11[%c0_36, %c0_37, %c0_38], %68 {strides = array<i32>} : memref<4x8x32xf32, #tpu.memory_space<vmem>>, vector<1x8x32xf32>,
      %c0_39 = arith.constant 0 : index
      %c0_40 = arith.constant 0 : index
      %c0_41 = arith.constant 0 : index
      %69 = vector.load %arg9[%c0_39, %c0_40, %c0_41] : memref<4x8x1xf32, #tpu.memory_space<vmem>>, vector<1x8x1xf32>
      %70 = vector.shape_cast %69 : vector<1x8x1xf32> to vector<8x1xf32>
      %71 = vector.shape_cast %43 : vector<8x1xf32> to vector<1x8x1xf32>
      tpu.vector_store %arg9[%c0_39, %c0_40, %c0_41], %71 {strides = array<i32>} : memref<4x8x1xf32, #tpu.memory_space<vmem>>, vector<1x8x1xf32>,
      %72 = vector.extract_strided_slice %14 {offsets = [0, 32], sizes = [8, 32], strides = [1, 1]} : vector<8x128xbf16> to vector<8x32xbf16>
      %73 = vector.extract_strided_slice %16 {offsets = [0, 32], sizes = [8, 32], strides = [1, 1]} : vector<8x128xbf16> to vector<8x32xbf16>
      %cst_42 = arith.constant dense<0.000000e+00> : vector<8x8xf32>
      %74 = tpu.matmul %72, %73, %cst_42 {dimension_numbers = #tpu.dot_dimension_numbers<[1], [1], [0], [0], [0, 0, 1, 0], [], []>} : vector<8x32xbf16>, vector<8x32xbf16>, vector<8x8xf32> -> vector<8x8xf32>
      %75 = arith.addf %74, %34 : vector<8x8xf32>
      %c1 = arith.constant 1 : index
      %c0_43 = arith.constant 0 : index
      %c0_44 = arith.constant 0 : index
      %76 = vector.load %arg9[%c1, %c0_43, %c0_44] : memref<4x8x1xf32, #tpu.memory_space<vmem>>, vector<1x8x1xf32>
      %77 = vector.shape_cast %76 : vector<1x8x1xf32> to vector<8x1xf32>
      %cst_45 = arith.constant dense<0xFF800000> : vector<8xf32>
      %78 = vector.multi_reduction <maximumf>, %75, %cst_45 [1] : vector<8x8xf32> to vector<8xf32>
      %79 = vector.shape_cast %78 : vector<8xf32> to vector<8x1xf32>
      %80 = arith.maximumf %77, %79 : vector<8x1xf32>
      %81 = arith.subf %77, %80 : vector<8x1xf32>
      %82 = math.exp %81 : vector<8x1xf32>
      %83 = vector.broadcast %80 : vector<8x1xf32> to vector<8x8xf32>
      %84 = arith.subf %75, %83 : vector<8x8xf32>
      %85 = math.exp %84 : vector<8x8xf32>
      %c1_46 = arith.constant 1 : index
      %c0_47 = arith.constant 0 : index
      %c0_48 = arith.constant 0 : index
      %86 = vector.load %arg10[%c1_46, %c0_47, %c0_48] : memref<4x8x1xf32, #tpu.memory_space<vmem>>, vector<1x8x1xf32>
      %87 = vector.shape_cast %86 : vector<1x8x1xf32> to vector<8x1xf32>
      %88 = arith.mulf %82, %87 : vector<8x1xf32>
      %cst_49 = arith.constant dense<0.000000e+00> : vector<8xf32>
      %89 = vector.multi_reduction <add>, %85, %cst_49 [1] : vector<8x8xf32> to vector<8xf32>
      %90 = vector.shape_cast %89 : vector<8xf32> to vector<8x1xf32>
      %91 = arith.addf %88, %90 : vector<8x1xf32>
      %c1_50 = arith.constant 1 : index
      %c0_51 = arith.constant 0 : index
      %c0_52 = arith.constant 0 : index
      %92 = vector.load %arg10[%c1_50, %c0_51, %c0_52] : memref<4x8x1xf32, #tpu.memory_space<vmem>>, vector<1x8x1xf32>
      %93 = vector.shape_cast %92 : vector<1x8x1xf32> to vector<8x1xf32>
      %94 = vector.shape_cast %91 : vector<8x1xf32> to vector<1x8x1xf32>
      tpu.vector_store %arg10[%c1_50, %c0_51, %c0_52], %94 {strides = array<i32>} : memref<4x8x1xf32, #tpu.memory_space<vmem>>, vector<1x8x1xf32>,
      %c1_53 = arith.constant 1 : index
      %c0_54 = arith.constant 0 : index
      %c0_55 = arith.constant 0 : index
      %95 = vector.load %arg11[%c1_53, %c0_54, %c0_55] : memref<4x8x32xf32, #tpu.memory_space<vmem>>, vector<1x8x32xf32>
      %96 = vector.shape_cast %95 : vector<1x8x32xf32> to vector<8x32xf32>
      %97 = vector.broadcast %82 : vector<8x1xf32> to vector<8x32xf32>
      %98 = arith.mulf %97, %96 : vector<8x32xf32>
      %99 = arith.truncf %85 : vector<8x8xf32> to vector<8x8xbf16>
      %100 = vector.extract_strided_slice %18 {offsets = [0, 32], sizes = [8, 32], strides = [1, 1]} : vector<8x128xbf16> to vector<8x32xbf16>
      %cst_56 = arith.constant dense<0.000000e+00> : vector<8x32xf32>
      %101 = tpu.matmul %99, %100, %cst_56 {dimension_numbers = #tpu.dot_dimension_numbers<[1], [0], [0], [1], [0, 0, 1, 1], [], []>} : vector<8x8xbf16>, vector<8x32xbf16>, vector<8x32xf32> -> vector<8x32xf32>
      %102 = arith.addf %98, %101 : vector<8x32xf32>
      %c1_57 = arith.constant 1 : index
      %c0_58 = arith.constant 0 : index
      %c0_59 = arith.constant 0 : index
      %103 = vector.load %arg11[%c1_57, %c0_58, %c0_59] : memref<4x8x32xf32, #tpu.memory_space<vmem>>, vector<1x8x32xf32>
      %104 = vector.shape_cast %103 : vector<1x8x32xf32> to vector<8x32xf32>
      %105 = vector.shape_cast %102 : vector<8x32xf32> to vector<1x8x32xf32>
      tpu.vector_store %arg11[%c1_57, %c0_58, %c0_59], %105 {strides = array<i32>} : memref<4x8x32xf32, #tpu.memory_space<vmem>>, vector<1x8x32xf32>,
      %c1_60 = arith.constant 1 : index
      %c0_61 = arith.constant 0 : index
      %c0_62 = arith.constant 0 : index
      %106 = vector.load %arg9[%c1_60, %c0_61, %c0_62] : memref<4x8x1xf32, #tpu.memory_space<vmem>>, vector<1x8x1xf32>
      %107 = vector.shape_cast %106 : vector<1x8x1xf32> to vector<8x1xf32>
      %108 = vector.shape_cast %80 : vector<8x1xf32> to vector<1x8x1xf32>
      tpu.vector_store %arg9[%c1_60, %c0_61, %c0_62], %108 {strides = array<i32>} : memref<4x8x1xf32, #tpu.memory_space<vmem>>, vector<1x8x1xf32>,
      %109 = vector.extract_strided_slice %14 {offsets = [0, 64], sizes = [8, 32], strides = [1, 1]} : vector<8x128xbf16> to vector<8x32xbf16>
      %110 = vector.extract_strided_slice %16 {offsets = [0, 64], sizes = [8, 32], strides = [1, 1]} : vector<8x128xbf16> to vector<8x32xbf16>
      %cst_63 = arith.constant dense<0.000000e+00> : vector<8x8xf32>
      %111 = tpu.matmul %109, %110, %cst_63 {dimension_numbers = #tpu.dot_dimension_numbers<[1], [1], [0], [0], [0, 0, 1, 0], [], []>} : vector<8x32xbf16>, vector<8x32xbf16>, vector<8x8xf32> -> vector<8x8xf32>
      %112 = arith.addf %111, %34 : vector<8x8xf32>
      %c2 = arith.constant 2 : index
      %c0_64 = arith.constant 0 : index
      %c0_65 = arith.constant 0 : index
      %113 = vector.load %arg9[%c2, %c0_64, %c0_65] : memref<4x8x1xf32, #tpu.memory_space<vmem>>, vector<1x8x1xf32>
      %114 = vector.shape_cast %113 : vector<1x8x1xf32> to vector<8x1xf32>
      %cst_66 = arith.constant dense<0xFF800000> : vector<8xf32>
      %115 = vector.multi_reduction <maximumf>, %112, %cst_66 [1] : vector<8x8xf32> to vector<8xf32>
      %116 = vector.shape_cast %115 : vector<8xf32> to vector<8x1xf32>
      %117 = arith.maximumf %114, %116 : vector<8x1xf32>
      %118 = arith.subf %114, %117 : vector<8x1xf32>
      %119 = math.exp %118 : vector<8x1xf32>
      %120 = vector.broadcast %117 : vector<8x1xf32> to vector<8x8xf32>
      %121 = arith.subf %112, %120 : vector<8x8xf32>
      %122 = math.exp %121 : vector<8x8xf32>
      %c2_67 = arith.constant 2 : index
      %c0_68 = arith.constant 0 : index
      %c0_69 = arith.constant 0 : index
      %123 = vector.load %arg10[%c2_67, %c0_68, %c0_69] : memref<4x8x1xf32, #tpu.memory_space<vmem>>, vector<1x8x1xf32>
      %124 = vector.shape_cast %123 : vector<1x8x1xf32> to vector<8x1xf32>
      %125 = arith.mulf %119, %124 : vector<8x1xf32>
      %cst_70 = arith.constant dense<0.000000e+00> : vector<8xf32>
      %126 = vector.multi_reduction <add>, %122, %cst_70 [1] : vector<8x8xf32> to vector<8xf32>
      %127 = vector.shape_cast %126 : vector<8xf32> to vector<8x1xf32>
      %128 = arith.addf %125, %127 : vector<8x1xf32>
      %c2_71 = arith.constant 2 : index
      %c0_72 = arith.constant 0 : index
      %c0_73 = arith.constant 0 : index
      %129 = vector.load %arg10[%c2_71, %c0_72, %c0_73] : memref<4x8x1xf32, #tpu.memory_space<vmem>>, vector<1x8x1xf32>
      %130 = vector.shape_cast %129 : vector<1x8x1xf32> to vector<8x1xf32>
      %131 = vector.shape_cast %128 : vector<8x1xf32> to vector<1x8x1xf32>
      tpu.vector_store %arg10[%c2_71, %c0_72, %c0_73], %131 {strides = array<i32>} : memref<4x8x1xf32, #tpu.memory_space<vmem>>, vector<1x8x1xf32>,
      %c2_74 = arith.constant 2 : index
      %c0_75 = arith.constant 0 : index
      %c0_76 = arith.constant 0 : index
      %132 = vector.load %arg11[%c2_74, %c0_75, %c0_76] : memref<4x8x32xf32, #tpu.memory_space<vmem>>, vector<1x8x32xf32>
      %133 = vector.shape_cast %132 : vector<1x8x32xf32> to vector<8x32xf32>
      %134 = vector.broadcast %119 : vector<8x1xf32> to vector<8x32xf32>
      %135 = arith.mulf %134, %133 : vector<8x32xf32>
      %136 = arith.truncf %122 : vector<8x8xf32> to vector<8x8xbf16>
      %137 = vector.extract_strided_slice %18 {offsets = [0, 64], sizes = [8, 32], strides = [1, 1]} : vector<8x128xbf16> to vector<8x32xbf16>
      %cst_77 = arith.constant dense<0.000000e+00> : vector<8x32xf32>
      %138 = tpu.matmul %136, %137, %cst_77 {dimension_numbers = #tpu.dot_dimension_numbers<[1], [0], [0], [1], [0, 0, 1, 1], [], []>} : vector<8x8xbf16>, vector<8x32xbf16>, vector<8x32xf32> -> vector<8x32xf32>
      %139 = arith.addf %135, %138 : vector<8x32xf32>
      %c2_78 = arith.constant 2 : index
      %c0_79 = arith.constant 0 : index
      %c0_80 = arith.constant 0 : index
      %140 = vector.load %arg11[%c2_78, %c0_79, %c0_80] : memref<4x8x32xf32, #tpu.memory_space<vmem>>, vector<1x8x32xf32>
      %141 = vector.shape_cast %140 : vector<1x8x32xf32> to vector<8x32xf32>
      %142 = vector.shape_cast %139 : vector<8x32xf32> to vector<1x8x32xf32>
      tpu.vector_store %arg11[%c2_78, %c0_79, %c0_80], %142 {strides = array<i32>} : memref<4x8x32xf32, #tpu.memory_space<vmem>>, vector<1x8x32xf32>,
      %c2_81 = arith.constant 2 : index
      %c0_82 = arith.constant 0 : index
      %c0_83 = arith.constant 0 : index
      %143 = vector.load %arg9[%c2_81, %c0_82, %c0_83] : memref<4x8x1xf32, #tpu.memory_space<vmem>>, vector<1x8x1xf32>
      %144 = vector.shape_cast %143 : vector<1x8x1xf32> to vector<8x1xf32>
      %145 = vector.shape_cast %117 : vector<8x1xf32> to vector<1x8x1xf32>
      tpu.vector_store %arg9[%c2_81, %c0_82, %c0_83], %145 {strides = array<i32>} : memref<4x8x1xf32, #tpu.memory_space<vmem>>, vector<1x8x1xf32>,
      %146 = vector.extract_strided_slice %14 {offsets = [0, 96], sizes = [8, 32], strides = [1, 1]} : vector<8x128xbf16> to vector<8x32xbf16>
      %147 = vector.extract_strided_slice %16 {offsets = [0, 96], sizes = [8, 32], strides = [1, 1]} : vector<8x128xbf16> to vector<8x32xbf16>
      %cst_84 = arith.constant dense<0.000000e+00> : vector<8x8xf32>
      %148 = tpu.matmul %146, %147, %cst_84 {dimension_numbers = #tpu.dot_dimension_numbers<[1], [1], [0], [0], [0, 0, 1, 0], [], []>} : vector<8x32xbf16>, vector<8x32xbf16>, vector<8x8xf32> -> vector<8x8xf32>
      %149 = arith.addf %148, %34 : vector<8x8xf32>
      %c3 = arith.constant 3 : index
      %c0_85 = arith.constant 0 : index
      %c0_86 = arith.constant 0 : index
      %150 = vector.load %arg9[%c3, %c0_85, %c0_86] : memref<4x8x1xf32, #tpu.memory_space<vmem>>, vector<1x8x1xf32>
      %151 = vector.shape_cast %150 : vector<1x8x1xf32> to vector<8x1xf32>
      %cst_87 = arith.constant dense<0xFF800000> : vector<8xf32>
      %152 = vector.multi_reduction <maximumf>, %149, %cst_87 [1] : vector<8x8xf32> to vector<8xf32>
      %153 = vector.shape_cast %152 : vector<8xf32> to vector<8x1xf32>
      %154 = arith.maximumf %151, %153 : vector<8x1xf32>
      %155 = arith.subf %151, %154 : vector<8x1xf32>
      %156 = math.exp %155 : vector<8x1xf32>
      %157 = vector.broadcast %154 : vector<8x1xf32> to vector<8x8xf32>
      %158 = arith.subf %149, %157 : vector<8x8xf32>
      %159 = math.exp %158 : vector<8x8xf32>
      %c3_88 = arith.constant 3 : index
      %c0_89 = arith.constant 0 : index
      %c0_90 = arith.constant 0 : index
      %160 = vector.load %arg10[%c3_88, %c0_89, %c0_90] : memref<4x8x1xf32, #tpu.memory_space<vmem>>, vector<1x8x1xf32>
      %161 = vector.shape_cast %160 : vector<1x8x1xf32> to vector<8x1xf32>
      %162 = arith.mulf %156, %161 : vector<8x1xf32>
      %cst_91 = arith.constant dense<0.000000e+00> : vector<8xf32>
      %163 = vector.multi_reduction <add>, %159, %cst_91 [1] : vector<8x8xf32> to vector<8xf32>
      %164 = vector.shape_cast %163 : vector<8xf32> to vector<8x1xf32>
      %165 = arith.addf %162, %164 : vector<8x1xf32>
      %c3_92 = arith.constant 3 : index
      %c0_93 = arith.constant 0 : index
      %c0_94 = arith.constant 0 : index
      %166 = vector.load %arg10[%c3_92, %c0_93, %c0_94] : memref<4x8x1xf32, #tpu.memory_space<vmem>>, vector<1x8x1xf32>
      %167 = vector.shape_cast %166 : vector<1x8x1xf32> to vector<8x1xf32>
      %168 = vector.shape_cast %165 : vector<8x1xf32> to vector<1x8x1xf32>
      tpu.vector_store %arg10[%c3_92, %c0_93, %c0_94], %168 {strides = array<i32>} : memref<4x8x1xf32, #tpu.memory_space<vmem>>, vector<1x8x1xf32>,
      %c3_95 = arith.constant 3 : index
      %c0_96 = arith.constant 0 : index
      %c0_97 = arith.constant 0 : index
      %169 = vector.load %arg11[%c3_95, %c0_96, %c0_97] : memref<4x8x32xf32, #tpu.memory_space<vmem>>, vector<1x8x32xf32>
      %170 = vector.shape_cast %169 : vector<1x8x32xf32> to vector<8x32xf32>
      %171 = vector.broadcast %156 : vector<8x1xf32> to vector<8x32xf32>
      %172 = arith.mulf %171, %170 : vector<8x32xf32>
      %173 = arith.truncf %159 : vector<8x8xf32> to vector<8x8xbf16>
      %174 = vector.extract_strided_slice %18 {offsets = [0, 96], sizes = [8, 32], strides = [1, 1]} : vector<8x128xbf16> to vector<8x32xbf16>
      %cst_98 = arith.constant dense<0.000000e+00> : vector<8x32xf32>
      %175 = tpu.matmul %173, %174, %cst_98 {dimension_numbers = #tpu.dot_dimension_numbers<[1], [0], [0], [1], [0, 0, 1, 1], [], []>} : vector<8x8xbf16>, vector<8x32xbf16>, vector<8x32xf32> -> vector<8x32xf32>
      %176 = arith.addf %172, %175 : vector<8x32xf32>
      %c3_99 = arith.constant 3 : index
      %c0_100 = arith.constant 0 : index
      %c0_101 = arith.constant 0 : index
      %177 = vector.load %arg11[%c3_99, %c0_100, %c0_101] : memref<4x8x32xf32, #tpu.memory_space<vmem>>, vector<1x8x32xf32>
      %178 = vector.shape_cast %177 : vector<1x8x32xf32> to vector<8x32xf32>
      %179 = vector.shape_cast %176 : vector<8x32xf32> to vector<1x8x32xf32>
      tpu.vector_store %arg11[%c3_99, %c0_100, %c0_101], %179 {strides = array<i32>} : memref<4x8x32xf32, #tpu.memory_space<vmem>>, vector<1x8x32xf32>,
      %c3_102 = arith.constant 3 : index
      %c0_103 = arith.constant 0 : index
      %c0_104 = arith.constant 0 : index
      %180 = vector.load %arg9[%c3_102, %c0_103, %c0_104] : memref<4x8x1xf32, #tpu.memory_space<vmem>>, vector<1x8x1xf32>
      %181 = vector.shape_cast %180 : vector<1x8x1xf32> to vector<8x1xf32>
      %182 = vector.shape_cast %154 : vector<8x1xf32> to vector<1x8x1xf32>
      tpu.vector_store %arg9[%c3_102, %c0_103, %c0_104], %182 {strides = array<i32>} : memref<4x8x1xf32, #tpu.memory_space<vmem>>, vector<1x8x1xf32>,
    } else {
    }
    %c0_i32_4 = arith.constant 0 : i32
    %10 = arith.cmpi eq, %arg3, %c0_i32_4 : i32
    %11 = arith.extui %10 : i1 to i32
    %c0_i32_5 = arith.constant 0 : i32
    %12 = arith.cmpi ne, %11, %c0_i32_5 : i32
    scf.if %12 {
      %c0 = arith.constant 0 : index
      %c0_6 = arith.constant 0 : index
      %c0_7 = arith.constant 0 : index
      %13 = vector.load %arg10[%c0, %c0_6, %c0_7] : memref<4x8x1xf32, #tpu.memory_space<vmem>>, vector<1x8x1xf32>
      %14 = vector.shape_cast %13 : vector<1x8x1xf32> to vector<8x1xf32>
      %15 = tpu.reciprocal %14 {approx = true} : vector<8x1xf32> -> vector<8x1xf32>
      %c0_8 = arith.constant 0 : index
      %c0_9 = arith.constant 0 : index
      %c0_10 = arith.constant 0 : index
      %16 = vector.load %arg11[%c0_8, %c0_9, %c0_10] : memref<4x8x32xf32, #tpu.memory_space<vmem>>, vector<1x8x32xf32>
      %17 = vector.shape_cast %16 : vector<1x8x32xf32> to vector<8x32xf32>
      %18 = vector.broadcast %15 : vector<8x1xf32> to vector<8x32xf32>
      %19 = arith.mulf %17, %18 : vector<8x32xf32>
      %20 = arith.truncf %19 : vector<8x32xf32> to vector<8x32xbf16>
      %c0_11 = arith.constant 0 : index
      %c0_12 = arith.constant 0 : index
      %c0_13 = arith.constant 0 : index
      %21 = vector.load %arg8[%c0_11, %c0_12, %c0_13] : memref<1x8x128xbf16, #tpu.memory_space<vmem>>, vector<1x8x32xbf16>
      %22 = vector.shape_cast %21 : vector<1x8x32xbf16> to vector<8x32xbf16>
      %23 = vector.shape_cast %20 : vector<8x32xbf16> to vector<1x8x32xbf16>
      tpu.vector_store %arg8[%c0_11, %c0_12, %c0_13], %23 {strides = array<i32>} : memref<1x8x128xbf16, #tpu.memory_space<vmem>>, vector<1x8x32xbf16>,
      %c1 = arith.constant 1 : index
      %c0_14 = arith.constant 0 : index
      %c0_15 = arith.constant 0 : index
      %24 = vector.load %arg10[%c1, %c0_14, %c0_15] : memref<4x8x1xf32, #tpu.memory_space<vmem>>, vector<1x8x1xf32>
      %25 = vector.shape_cast %24 : vector<1x8x1xf32> to vector<8x1xf32>
      %26 = tpu.reciprocal %25 {approx = true} : vector<8x1xf32> -> vector<8x1xf32>
      %c1_16 = arith.constant 1 : index
      %c0_17 = arith.constant 0 : index
      %c0_18 = arith.constant 0 : index
      %27 = vector.load %arg11[%c1_16, %c0_17, %c0_18] : memref<4x8x32xf32, #tpu.memory_space<vmem>>, vector<1x8x32xf32>
      %28 = vector.shape_cast %27 : vector<1x8x32xf32> to vector<8x32xf32>
      %29 = vector.broadcast %26 : vector<8x1xf32> to vector<8x32xf32>
      %30 = arith.mulf %28, %29 : vector<8x32xf32>
      %31 = arith.truncf %30 : vector<8x32xf32> to vector<8x32xbf16>
      %c0_19 = arith.constant 0 : index
      %c0_20 = arith.constant 0 : index
      %c32 = arith.constant 32 : index
      %32 = vector.load %arg8[%c0_19, %c0_20, %c32] : memref<1x8x128xbf16, #tpu.memory_space<vmem>>, vector<1x8x32xbf16>
      %33 = vector.shape_cast %32 : vector<1x8x32xbf16> to vector<8x32xbf16>
      %34 = vector.shape_cast %31 : vector<8x32xbf16> to vector<1x8x32xbf16>
      tpu.vector_store %arg8[%c0_19, %c0_20, %c32], %34 {strides = array<i32>} : memref<1x8x128xbf16, #tpu.memory_space<vmem>>, vector<1x8x32xbf16>,
      %c2 = arith.constant 2 : index
      %c0_21 = arith.constant 0 : index
      %c0_22 = arith.constant 0 : index
      %35 = vector.load %arg10[%c2, %c0_21, %c0_22] : memref<4x8x1xf32, #tpu.memory_space<vmem>>, vector<1x8x1xf32>
      %36 = vector.shape_cast %35 : vector<1x8x1xf32> to vector<8x1xf32>
      %37 = tpu.reciprocal %36 {approx = true} : vector<8x1xf32> -> vector<8x1xf32>
      %c2_23 = arith.constant 2 : index
      %c0_24 = arith.constant 0 : index
      %c0_25 = arith.constant 0 : index
      %38 = vector.load %arg11[%c2_23, %c0_24, %c0_25] : memref<4x8x32xf32, #tpu.memory_space<vmem>>, vector<1x8x32xf32>
      %39 = vector.shape_cast %38 : vector<1x8x32xf32> to vector<8x32xf32>
      %40 = vector.broadcast %37 : vector<8x1xf32> to vector<8x32xf32>
      %41 = arith.mulf %39, %40 : vector<8x32xf32>
      %42 = arith.truncf %41 : vector<8x32xf32> to vector<8x32xbf16>
      %c0_26 = arith.constant 0 : index
      %c0_27 = arith.constant 0 : index
      %c64 = arith.constant 64 : index
      %43 = vector.load %arg8[%c0_26, %c0_27, %c64] : memref<1x8x128xbf16, #tpu.memory_space<vmem>>, vector<1x8x32xbf16>
      %44 = vector.shape_cast %43 : vector<1x8x32xbf16> to vector<8x32xbf16>
      %45 = vector.shape_cast %42 : vector<8x32xbf16> to vector<1x8x32xbf16>
      tpu.vector_store %arg8[%c0_26, %c0_27, %c64], %45 {strides = array<i32>} : memref<1x8x128xbf16, #tpu.memory_space<vmem>>, vector<1x8x32xbf16>,
      %c3 = arith.constant 3 : index
      %c0_28 = arith.constant 0 : index
      %c0_29 = arith.constant 0 : index
      %46 = vector.load %arg10[%c3, %c0_28, %c0_29] : memref<4x8x1xf32, #tpu.memory_space<vmem>>, vector<1x8x1xf32>
      %47 = vector.shape_cast %46 : vector<1x8x1xf32> to vector<8x1xf32>
      %48 = tpu.reciprocal %47 {approx = true} : vector<8x1xf32> -> vector<8x1xf32>
      %c3_30 = arith.constant 3 : index
      %c0_31 = arith.constant 0 : index
      %c0_32 = arith.constant 0 : index
      %49 = vector.load %arg11[%c3_30, %c0_31, %c0_32] : memref<4x8x32xf32, #tpu.memory_space<vmem>>, vector<1x8x32xf32>
      %50 = vector.shape_cast %49 : vector<1x8x32xf32> to vector<8x32xf32>
      %51 = vector.broadcast %48 : vector<8x1xf32> to vector<8x32xf32>
      %52 = arith.mulf %50, %51 : vector<8x32xf32>
      %53 = arith.truncf %52 : vector<8x32xf32> to vector<8x32xbf16>
      %c0_33 = arith.constant 0 : index
      %c0_34 = arith.constant 0 : index
      %c96 = arith.constant 96 : index
      %54 = vector.load %arg8[%c0_33, %c0_34, %c96] : memref<1x8x128xbf16, #tpu.memory_space<vmem>>, vector<1x8x32xbf16>
      %55 = vector.shape_cast %54 : vector<1x8x32xbf16> to vector<8x32xbf16>
      %56 = vector.shape_cast %53 : vector<8x32xbf16> to vector<1x8x32xbf16>
      tpu.vector_store %arg8[%c0_33, %c0_34, %c96], %56 {strides = array<i32>} : memref<1x8x128xbf16, #tpu.memory_space<vmem>>, vector<1x8x32xbf16>,
    } else {
    }
    return
  }
  func.func @transform_0(%arg0: i32, %arg1: i32, %arg2: i32, %arg3: i32) -> (i32, i32, i32) {
    %c0_i32 = arith.constant 0 : i32
    %0 = arith.addi %c0_i32, %arg1 : i32
    %c0_i32_0 = arith.constant 0 : i32
    return %arg0, %arg2, %0 : i32, i32, i32
  }
  func.func @transform_1(%arg0: i32, %arg1: i32, %arg2: i32, %arg3: i32) -> (i32, i32, i32) {
    %c1_i32 = arith.constant 1 : i32
    %0 = arith.addi %c1_i32, %arg1 : i32
    %c0_i32 = arith.constant 0 : i32
    return %arg0, %arg3, %0 : i32, i32, i32
  }
  func.func @transform_2(%arg0: i32, %arg1: i32, %arg2: i32, %arg3: i32) -> (i32, i32, i32) {
    %c2_i32 = arith.constant 2 : i32
    %0 = arith.addi %c2_i32, %arg1 : i32
    %c0_i32 = arith.constant 0 : i32
    return %arg0, %arg3, %0 : i32, i32, i32
  }
  func.func @transform_3(%arg0: i32, %arg1: i32, %arg2: i32, %arg3: i32) -> (i32, i32, i32) {
    %c0_i32 = arith.constant 0 : i32
    %c0_i32_0 = arith.constant 0 : i32
    return %arg0, %c0_i32, %arg3 : i32, i32, i32
  }
  func.func @transform_4(%arg0: i32, %arg1: i32, %arg2: i32, %arg3: i32) -> (i32, i32, i32) {
    %c0_i32 = arith.constant 0 : i32
    return %arg0, %arg2, %arg1 : i32, i32, i32
  }
}

module attributes {stable_mosaic.version = 11 : i64} {
  func.func @_mm_bias_act_kernel(%arg0: i32, %arg1: i32, %arg2: i32, %arg3: memref<16x128xbf16, #tpu.memory_space<vmem>>, %arg4: memref<128x128xbf16, #tpu.memory_space<vmem>>, %arg5: memref<1x128xf32, #tpu.memory_space<vmem>>, %arg6: memref<16x128xbf16, #tpu.memory_space<vmem>>, %arg7: memref<16x128xf32, #tpu.memory_space<vmem>>) attributes {dimension_semantics = [#tpu.dimension_semantics<parallel>, #tpu.dimension_semantics<parallel>, #tpu.dimension_semantics<arbitrary>], iteration_bounds = array<i64: 1, 3, 1>, scalar_prefetch = 0 : i64, scratch_operands = 1 : i64, tpu.core_type = #tpu.core_type<tc>, window_params = [{transform_indices = @transform_0, window_bounds = array<i64: 16, 128>}, {transform_indices = @transform_1, window_bounds = array<i64: 128, 128>}, {transform_indices = @transform_2, window_bounds = array<i64: 1, 128>}, {transform_indices = @transform_3, window_bounds = array<i64: 16, 128>}]} {
    %c0_i32 = arith.constant 0 : i32
    %0 = arith.cmpi eq, %arg2, %c0_i32 : i32
    %1 = arith.extui %0 : i1 to i32
    %c0_i32_0 = arith.constant 0 : i32
    %2 = arith.cmpi ne, %1, %c0_i32_0 : i32
    scf.if %2 {
      %cst_10 = arith.constant 0.000000e+00 : f32
      %12 = vector.broadcast %cst_10 : f32 to vector<16x128xf32>
      %c0_11 = arith.constant 0 : index
      %c0_12 = arith.constant 0 : index
      %13 = vector.load %arg7[%c0_11, %c0_12] : memref<16x128xf32, #tpu.memory_space<vmem>>, vector<16x128xf32>
      tpu.vector_store %arg7[%c0_11, %c0_12], %12 {strides = array<i32>} : memref<16x128xf32, #tpu.memory_space<vmem>>, vector<16x128xf32>,
    } else {
    }
    %c0 = arith.constant 0 : index
    %c0_1 = arith.constant 0 : index
    %3 = vector.load %arg7[%c0, %c0_1] : memref<16x128xf32, #tpu.memory_space<vmem>>, vector<16x128xf32>
    %c0_2 = arith.constant 0 : index
    %c0_3 = arith.constant 0 : index
    %4 = vector.load %arg3[%c0_2, %c0_3] : memref<16x128xbf16, #tpu.memory_space<vmem>>, vector<16x128xbf16>
    %c0_4 = arith.constant 0 : index
    %c0_5 = arith.constant 0 : index
    %5 = vector.load %arg4[%c0_4, %c0_5] : memref<128x128xbf16, #tpu.memory_space<vmem>>, vector<128x128xbf16>
    %cst = arith.constant dense<0.000000e+00> : vector<16x128xf32>
    %6 = tpu.matmul %4, %5, %cst {dimension_numbers = #tpu.dot_dimension_numbers<[1], [0], [0], [1], [0, 0, 1, 1], [], []>} : vector<16x128xbf16>, vector<128x128xbf16>, vector<16x128xf32> -> vector<16x128xf32>
    %7 = arith.addf %3, %6 : vector<16x128xf32>
    %c0_6 = arith.constant 0 : index
    %c0_7 = arith.constant 0 : index
    %8 = vector.load %arg7[%c0_6, %c0_7] : memref<16x128xf32, #tpu.memory_space<vmem>>, vector<16x128xf32>
    tpu.vector_store %arg7[%c0_6, %c0_7], %7 {strides = array<i32>} : memref<16x128xf32, #tpu.memory_space<vmem>>, vector<16x128xf32>,
    %c0_i32_8 = arith.constant 0 : i32
    %9 = arith.cmpi eq, %arg2, %c0_i32_8 : i32
    %10 = arith.extui %9 : i1 to i32
    %c0_i32_9 = arith.constant 0 : i32
    %11 = arith.cmpi ne, %10, %c0_i32_9 : i32
    scf.if %11 {
      %c0_10 = arith.constant 0 : index
      %c0_11 = arith.constant 0 : index
      %12 = vector.load %arg7[%c0_10, %c0_11] : memref<16x128xf32, #tpu.memory_space<vmem>>, vector<16x128xf32>
      %c0_12 = arith.constant 0 : index
      %c0_13 = arith.constant 0 : index
      %13 = vector.load %arg5[%c0_12, %c0_13] : memref<1x128xf32, #tpu.memory_space<vmem>>, vector<1x128xf32>
      %14 = vector.broadcast %13 : vector<1x128xf32> to vector<16x128xf32>
      %15 = arith.addf %12, %14 : vector<16x128xf32>
      %16 = arith.truncf %15 : vector<16x128xf32> to vector<16x128xbf16>
      %c0_14 = arith.constant 0 : index
      %c0_15 = arith.constant 0 : index
      %17 = vector.load %arg6[%c0_14, %c0_15] : memref<16x128xbf16, #tpu.memory_space<vmem>>, vector<16x128xbf16>
      tpu.vector_store %arg6[%c0_14, %c0_15], %16 {strides = array<i32>} : memref<16x128xbf16, #tpu.memory_space<vmem>>, vector<16x128xbf16>,
    } else {
    }
    return
  }
  func.func @transform_0(%arg0: i32, %arg1: i32, %arg2: i32) -> (i32, i32) {
    %c0_i32 = arith.constant 0 : i32
    return %arg0, %arg2 : i32, i32
  }
  func.func @transform_1(%arg0: i32, %arg1: i32, %arg2: i32) -> (i32, i32) {
    %c0_i32 = arith.constant 0 : i32
    return %arg2, %arg1 : i32, i32
  }
  func.func @transform_2(%arg0: i32, %arg1: i32, %arg2: i32) -> (i32, i32) {
    %c0_i32 = arith.constant 0 : i32
    %c0_i32_0 = arith.constant 0 : i32
    return %c0_i32, %arg1 : i32, i32
  }
  func.func @transform_3(%arg0: i32, %arg1: i32, %arg2: i32) -> (i32, i32) {
    %c0_i32 = arith.constant 0 : i32
    return %arg0, %arg1 : i32, i32
  }
}

module attributes {stable_mosaic.version = 11 : i64} {
  func.func @_mm_res_ln_kernel(%arg0: i32, %arg1: i32, %arg2: memref<16x128xbf16, #tpu.memory_space<vmem>>, %arg3: memref<128x128xbf16, #tpu.memory_space<vmem>>, %arg4: memref<1x128xf32, #tpu.memory_space<vmem>>, %arg5: memref<16x128xbf16, #tpu.memory_space<vmem>>, %arg6: memref<1x128xf32, #tpu.memory_space<vmem>>, %arg7: memref<1x128xf32, #tpu.memory_space<vmem>>, %arg8: memref<16x128xbf16, #tpu.memory_space<vmem>>, %arg9: memref<16x128xf32, #tpu.memory_space<vmem>>) attributes {dimension_semantics = [#tpu.dimension_semantics<parallel>, #tpu.dimension_semantics<arbitrary>], iteration_bounds = array<i64: 1, 1>, scalar_prefetch = 0 : i64, scratch_operands = 1 : i64, tpu.core_type = #tpu.core_type<tc>, window_params = [{transform_indices = @transform_0, window_bounds = array<i64: 16, 128>}, {transform_indices = @transform_1, window_bounds = array<i64: 128, 128>}, {pipeline_mode = #tpu.pipeline_mode<synchronous>, transform_indices = @transform_2, window_bounds = array<i64: 1, 128>}, {transform_indices = @transform_3, window_bounds = array<i64: 16, 128>}, {pipeline_mode = #tpu.pipeline_mode<synchronous>, transform_indices = @transform_4, window_bounds = array<i64: 1, 128>}, {pipeline_mode = #tpu.pipeline_mode<synchronous>, transform_indices = @transform_5, window_bounds = array<i64: 1, 128>}, {transform_indices = @transform_6, window_bounds = array<i64: 16, 128>}]} {
    %c0_i32 = arith.constant 0 : i32
    %0 = arith.cmpi eq, %arg1, %c0_i32 : i32
    %1 = arith.extui %0 : i1 to i32
    %c0_i32_0 = arith.constant 0 : i32
    %2 = arith.cmpi ne, %1, %c0_i32_0 : i32
    scf.if %2 {
      %cst_10 = arith.constant 0.000000e+00 : f32
      %12 = vector.broadcast %cst_10 : f32 to vector<16x128xf32>
      %c0_11 = arith.constant 0 : index
      %c0_12 = arith.constant 0 : index
      %13 = vector.load %arg9[%c0_11, %c0_12] : memref<16x128xf32, #tpu.memory_space<vmem>>, vector<16x128xf32>
      tpu.vector_store %arg9[%c0_11, %c0_12], %12 {strides = array<i32>} : memref<16x128xf32, #tpu.memory_space<vmem>>, vector<16x128xf32>,
    } else {
    }
    %c0 = arith.constant 0 : index
    %c0_1 = arith.constant 0 : index
    %3 = vector.load %arg9[%c0, %c0_1] : memref<16x128xf32, #tpu.memory_space<vmem>>, vector<16x128xf32>
    %c0_2 = arith.constant 0 : index
    %c0_3 = arith.constant 0 : index
    %4 = vector.load %arg2[%c0_2, %c0_3] : memref<16x128xbf16, #tpu.memory_space<vmem>>, vector<16x128xbf16>
    %c0_4 = arith.constant 0 : index
    %c0_5 = arith.constant 0 : index
    %5 = vector.load %arg3[%c0_4, %c0_5] : memref<128x128xbf16, #tpu.memory_space<vmem>>, vector<128x128xbf16>
    %cst = arith.constant dense<0.000000e+00> : vector<16x128xf32>
    %6 = tpu.matmul %4, %5, %cst {dimension_numbers = #tpu.dot_dimension_numbers<[1], [0], [0], [1], [0, 0, 1, 1], [], []>} : vector<16x128xbf16>, vector<128x128xbf16>, vector<16x128xf32> -> vector<16x128xf32>
    %7 = arith.addf %3, %6 : vector<16x128xf32>
    %c0_6 = arith.constant 0 : index
    %c0_7 = arith.constant 0 : index
    %8 = vector.load %arg9[%c0_6, %c0_7] : memref<16x128xf32, #tpu.memory_space<vmem>>, vector<16x128xf32>
    tpu.vector_store %arg9[%c0_6, %c0_7], %7 {strides = array<i32>} : memref<16x128xf32, #tpu.memory_space<vmem>>, vector<16x128xf32>,
    %c0_i32_8 = arith.constant 0 : i32
    %9 = arith.cmpi eq, %arg1, %c0_i32_8 : i32
    %10 = arith.extui %9 : i1 to i32
    %c0_i32_9 = arith.constant 0 : i32
    %11 = arith.cmpi ne, %10, %c0_i32_9 : i32
    scf.if %11 {
      %c0_10 = arith.constant 0 : index
      %c0_11 = arith.constant 0 : index
      %12 = vector.load %arg9[%c0_10, %c0_11] : memref<16x128xf32, #tpu.memory_space<vmem>>, vector<16x128xf32>
      %c0_12 = arith.constant 0 : index
      %c0_13 = arith.constant 0 : index
      %13 = vector.load %arg4[%c0_12, %c0_13] : memref<1x128xf32, #tpu.memory_space<vmem>>, vector<1x128xf32>
      %14 = vector.broadcast %13 : vector<1x128xf32> to vector<16x128xf32>
      %15 = arith.addf %12, %14 : vector<16x128xf32>
      %c0_14 = arith.constant 0 : index
      %c0_15 = arith.constant 0 : index
      %16 = vector.load %arg5[%c0_14, %c0_15] : memref<16x128xbf16, #tpu.memory_space<vmem>>, vector<16x128xbf16>
      %17 = arith.extf %16 : vector<16x128xbf16> to vector<16x128xf32>
      %18 = arith.addf %15, %17 : vector<16x128xf32>
      %cst_16 = arith.constant dense<0.000000e+00> : vector<16xf32>
      %19 = vector.multi_reduction <add>, %18, %cst_16 [1] : vector<16x128xf32> to vector<16xf32>
      %20 = vector.shape_cast %19 : vector<16xf32> to vector<16x1xf32>
      %cst_17 = arith.constant 1.280000e+02 : f32
      %21 = vector.broadcast %cst_17 : f32 to vector<16x1xf32>
      %22 = arith.divf %20, %21 : vector<16x1xf32>
      %23 = vector.broadcast %22 : vector<16x1xf32> to vector<16x128xf32>
      %24 = arith.subf %18, %23 : vector<16x128xf32>
      %25 = arith.mulf %24, %24 : vector<16x128xf32>
      %cst_18 = arith.constant dense<0.000000e+00> : vector<16xf32>
      %26 = vector.multi_reduction <add>, %25, %cst_18 [1] : vector<16x128xf32> to vector<16xf32>
      %27 = vector.shape_cast %26 : vector<16xf32> to vector<16x1xf32>
      %cst_19 = arith.constant 1.280000e+02 : f32
      %28 = vector.broadcast %cst_19 : f32 to vector<16x1xf32>
      %29 = arith.divf %27, %28 : vector<16x1xf32>
      %30 = vector.broadcast %22 : vector<16x1xf32> to vector<16x128xf32>
      %31 = arith.subf %18, %30 : vector<16x128xf32>
      %cst_20 = arith.constant 9.99999974E-6 : f32
      %32 = vector.broadcast %cst_20 : f32 to vector<16x1xf32>
      %33 = arith.addf %29, %32 : vector<16x1xf32>
      %34 = math.rsqrt %33 : vector<16x1xf32>
      %35 = vector.broadcast %34 : vector<16x1xf32> to vector<16x128xf32>
      %36 = arith.mulf %31, %35 : vector<16x128xf32>
      %c0_21 = arith.constant 0 : index
      %c0_22 = arith.constant 0 : index
      %37 = vector.load %arg6[%c0_21, %c0_22] : memref<1x128xf32, #tpu.memory_space<vmem>>, vector<1x128xf32>
      %38 = vector.broadcast %37 : vector<1x128xf32> to vector<16x128xf32>
      %39 = arith.mulf %36, %38 : vector<16x128xf32>
      %c0_23 = arith.constant 0 : index
      %c0_24 = arith.constant 0 : index
      %40 = vector.load %arg7[%c0_23, %c0_24] : memref<1x128xf32, #tpu.memory_space<vmem>>, vector<1x128xf32>
      %41 = vector.broadcast %40 : vector<1x128xf32> to vector<16x128xf32>
      %42 = arith.addf %39, %41 : vector<16x128xf32>
      %43 = arith.truncf %42 : vector<16x128xf32> to vector<16x128xbf16>
      %c0_25 = arith.constant 0 : index
      %c0_26 = arith.constant 0 : index
      %44 = vector.load %arg8[%c0_25, %c0_26] : memref<16x128xbf16, #tpu.memory_space<vmem>>, vector<16x128xbf16>
      tpu.vector_store %arg8[%c0_25, %c0_26], %43 {strides = array<i32>} : memref<16x128xbf16, #tpu.memory_space<vmem>>, vector<16x128xbf16>,
    } else {
    }
    return
  }
  func.func @transform_0(%arg0: i32, %arg1: i32) -> (i32, i32) {
    %c0_i32 = arith.constant 0 : i32
    return %arg0, %arg1 : i32, i32
  }
  func.func @transform_1(%arg0: i32, %arg1: i32) -> (i32, i32) {
    %c0_i32 = arith.constant 0 : i32
    %c0_i32_0 = arith.constant 0 : i32
    return %arg1, %c0_i32 : i32, i32
  }
  func.func @transform_2(%arg0: i32, %arg1: i32) -> (i32, i32) {
    %c0_i32 = arith.constant 0 : i32
    %c0_i32_0 = arith.constant 0 : i32
    %c0_i32_1 = arith.constant 0 : i32
    return %c0_i32, %c0_i32_0 : i32, i32
  }
  func.func @transform_3(%arg0: i32, %arg1: i32) -> (i32, i32) {
    %c0_i32 = arith.constant 0 : i32
    %c0_i32_0 = arith.constant 0 : i32
    return %arg0, %c0_i32 : i32, i32
  }
  func.func @transform_4(%arg0: i32, %arg1: i32) -> (i32, i32) {
    %c0_i32 = arith.constant 0 : i32
    %c0_i32_0 = arith.constant 0 : i32
    %c0_i32_1 = arith.constant 0 : i32
    return %c0_i32, %c0_i32_0 : i32, i32
  }
  func.func @transform_5(%arg0: i32, %arg1: i32) -> (i32, i32) {
    %c0_i32 = arith.constant 0 : i32
    %c0_i32_0 = arith.constant 0 : i32
    %c0_i32_1 = arith.constant 0 : i32
    return %c0_i32, %c0_i32_0 : i32, i32
  }
  func.func @transform_6(%arg0: i32, %arg1: i32) -> (i32, i32) {
    %c0_i32 = arith.constant 0 : i32
    %c0_i32_0 = arith.constant 0 : i32
    return %arg0, %c0_i32 : i32, i32
  }
}

module attributes {stable_mosaic.version = 11 : i64} {
  func.func @_mm_bias_act_kernel(%arg0: i32, %arg1: i32, %arg2: i32, %arg3: memref<16x128xbf16, #tpu.memory_space<vmem>>, %arg4: memref<128x128xbf16, #tpu.memory_space<vmem>>, %arg5: memref<1x128xf32, #tpu.memory_space<vmem>>, %arg6: memref<16x128xbf16, #tpu.memory_space<vmem>>, %arg7: memref<16x128xf32, #tpu.memory_space<vmem>>) attributes {dimension_semantics = [#tpu.dimension_semantics<parallel>, #tpu.dimension_semantics<parallel>, #tpu.dimension_semantics<arbitrary>], iteration_bounds = array<i64: 1, 1, 1>, scalar_prefetch = 0 : i64, scratch_operands = 1 : i64, tpu.core_type = #tpu.core_type<tc>, window_params = [{transform_indices = @transform_0, window_bounds = array<i64: 16, 128>}, {transform_indices = @transform_1, window_bounds = array<i64: 128, 128>}, {transform_indices = @transform_2, window_bounds = array<i64: 1, 128>}, {transform_indices = @transform_3, window_bounds = array<i64: 16, 128>}]} {
    %c0_i32 = arith.constant 0 : i32
    %0 = arith.cmpi eq, %arg2, %c0_i32 : i32
    %1 = arith.extui %0 : i1 to i32
    %c0_i32_0 = arith.constant 0 : i32
    %2 = arith.cmpi ne, %1, %c0_i32_0 : i32
    scf.if %2 {
      %cst_10 = arith.constant 0.000000e+00 : f32
      %12 = vector.broadcast %cst_10 : f32 to vector<16x128xf32>
      %c0_11 = arith.constant 0 : index
      %c0_12 = arith.constant 0 : index
      %13 = vector.load %arg7[%c0_11, %c0_12] : memref<16x128xf32, #tpu.memory_space<vmem>>, vector<16x128xf32>
      tpu.vector_store %arg7[%c0_11, %c0_12], %12 {strides = array<i32>} : memref<16x128xf32, #tpu.memory_space<vmem>>, vector<16x128xf32>,
    } else {
    }
    %c0 = arith.constant 0 : index
    %c0_1 = arith.constant 0 : index
    %3 = vector.load %arg7[%c0, %c0_1] : memref<16x128xf32, #tpu.memory_space<vmem>>, vector<16x128xf32>
    %c0_2 = arith.constant 0 : index
    %c0_3 = arith.constant 0 : index
    %4 = vector.load %arg3[%c0_2, %c0_3] : memref<16x128xbf16, #tpu.memory_space<vmem>>, vector<16x128xbf16>
    %c0_4 = arith.constant 0 : index
    %c0_5 = arith.constant 0 : index
    %5 = vector.load %arg4[%c0_4, %c0_5] : memref<128x128xbf16, #tpu.memory_space<vmem>>, vector<128x128xbf16>
    %cst = arith.constant dense<0.000000e+00> : vector<16x128xf32>
    %6 = tpu.matmul %4, %5, %cst {dimension_numbers = #tpu.dot_dimension_numbers<[1], [0], [0], [1], [0, 0, 1, 1], [], []>} : vector<16x128xbf16>, vector<128x128xbf16>, vector<16x128xf32> -> vector<16x128xf32>
    %7 = arith.addf %3, %6 : vector<16x128xf32>
    %c0_6 = arith.constant 0 : index
    %c0_7 = arith.constant 0 : index
    %8 = vector.load %arg7[%c0_6, %c0_7] : memref<16x128xf32, #tpu.memory_space<vmem>>, vector<16x128xf32>
    tpu.vector_store %arg7[%c0_6, %c0_7], %7 {strides = array<i32>} : memref<16x128xf32, #tpu.memory_space<vmem>>, vector<16x128xf32>,
    %c0_i32_8 = arith.constant 0 : i32
    %9 = arith.cmpi eq, %arg2, %c0_i32_8 : i32
    %10 = arith.extui %9 : i1 to i32
    %c0_i32_9 = arith.constant 0 : i32
    %11 = arith.cmpi ne, %10, %c0_i32_9 : i32
    scf.if %11 {
      %c0_10 = arith.constant 0 : index
      %c0_11 = arith.constant 0 : index
      %12 = vector.load %arg7[%c0_10, %c0_11] : memref<16x128xf32, #tpu.memory_space<vmem>>, vector<16x128xf32>
      %c0_12 = arith.constant 0 : index
      %c0_13 = arith.constant 0 : index
      %13 = vector.load %arg5[%c0_12, %c0_13] : memref<1x128xf32, #tpu.memory_space<vmem>>, vector<1x128xf32>
      %14 = vector.broadcast %13 : vector<1x128xf32> to vector<16x128xf32>
      %15 = arith.addf %12, %14 : vector<16x128xf32>
      %16 = arith.truncf %15 : vector<16x128xf32> to vector<16x128xbf16>
      %c0_14 = arith.constant 0 : index
      %c0_15 = arith.constant 0 : index
      %17 = vector.load %arg6[%c0_14, %c0_15] : memref<16x128xbf16, #tpu.memory_space<vmem>>, vector<16x128xbf16>
      tpu.vector_store %arg6[%c0_14, %c0_15], %16 {strides = array<i32>} : memref<16x128xbf16, #tpu.memory_space<vmem>>, vector<16x128xbf16>,
    } else {
    }
    return
  }
  func.func @transform_0(%arg0: i32, %arg1: i32, %arg2: i32) -> (i32, i32) {
    %c0_i32 = arith.constant 0 : i32
    return %arg0, %arg2 : i32, i32
  }
  func.func @transform_1(%arg0: i32, %arg1: i32, %arg2: i32) -> (i32, i32) {
    %c0_i32 = arith.constant 0 : i32
    return %arg2, %arg1 : i32, i32
  }
  func.func @transform_2(%arg0: i32, %arg1: i32, %arg2: i32) -> (i32, i32) {
    %c0_i32 = arith.constant 0 : i32
    %c0_i32_0 = arith.constant 0 : i32
    return %c0_i32, %arg1 : i32, i32
  }
  func.func @transform_3(%arg0: i32, %arg1: i32, %arg2: i32) -> (i32, i32) {
    %c0_i32 = arith.constant 0 : i32
    return %arg0, %arg1 : i32, i32
  }
}

module attributes {stable_mosaic.version = 11 : i64} {
  func.func @_mm_bias_act_kernel(%arg0: i32, %arg1: i32, %arg2: i32, %arg3: memref<32x128xbf16, #tpu.memory_space<vmem>>, %arg4: memref<128x256xbf16, #tpu.memory_space<vmem>>, %arg5: memref<1x256xf32, #tpu.memory_space<vmem>>, %arg6: memref<32x256xbf16, #tpu.memory_space<vmem>>, %arg7: memref<32x256xf32, #tpu.memory_space<vmem>>) attributes {dimension_semantics = [#tpu.dimension_semantics<parallel>, #tpu.dimension_semantics<parallel>, #tpu.dimension_semantics<arbitrary>], iteration_bounds = array<i64: 1, 1, 1>, scalar_prefetch = 0 : i64, scratch_operands = 1 : i64, tpu.core_type = #tpu.core_type<tc>, window_params = [{transform_indices = @transform_0, window_bounds = array<i64: 32, 128>}, {transform_indices = @transform_1, window_bounds = array<i64: 128, 256>}, {transform_indices = @transform_2, window_bounds = array<i64: 1, 256>}, {transform_indices = @transform_3, window_bounds = array<i64: 32, 256>}]} {
    %c0_i32 = arith.constant 0 : i32
    %0 = arith.cmpi eq, %arg2, %c0_i32 : i32
    %1 = arith.extui %0 : i1 to i32
    %c0_i32_0 = arith.constant 0 : i32
    %2 = arith.cmpi ne, %1, %c0_i32_0 : i32
    scf.if %2 {
      %cst_10 = arith.constant 0.000000e+00 : f32
      %12 = vector.broadcast %cst_10 : f32 to vector<32x256xf32>
      %c0_11 = arith.constant 0 : index
      %c0_12 = arith.constant 0 : index
      %13 = vector.load %arg7[%c0_11, %c0_12] : memref<32x256xf32, #tpu.memory_space<vmem>>, vector<32x256xf32>
      tpu.vector_store %arg7[%c0_11, %c0_12], %12 {strides = array<i32>} : memref<32x256xf32, #tpu.memory_space<vmem>>, vector<32x256xf32>,
    } else {
    }
    %c0 = arith.constant 0 : index
    %c0_1 = arith.constant 0 : index
    %3 = vector.load %arg7[%c0, %c0_1] : memref<32x256xf32, #tpu.memory_space<vmem>>, vector<32x256xf32>
    %c0_2 = arith.constant 0 : index
    %c0_3 = arith.constant 0 : index
    %4 = vector.load %arg3[%c0_2, %c0_3] : memref<32x128xbf16, #tpu.memory_space<vmem>>, vector<32x128xbf16>
    %c0_4 = arith.constant 0 : index
    %c0_5 = arith.constant 0 : index
    %5 = vector.load %arg4[%c0_4, %c0_5] : memref<128x256xbf16, #tpu.memory_space<vmem>>, vector<128x256xbf16>
    %cst = arith.constant dense<0.000000e+00> : vector<32x256xf32>
    %6 = tpu.matmul %4, %5, %cst {dimension_numbers = #tpu.dot_dimension_numbers<[1], [0], [0], [1], [0, 0, 1, 1], [], []>} : vector<32x128xbf16>, vector<128x256xbf16>, vector<32x256xf32> -> vector<32x256xf32>
    %7 = arith.addf %3, %6 : vector<32x256xf32>
    %c0_6 = arith.constant 0 : index
    %c0_7 = arith.constant 0 : index
    %8 = vector.load %arg7[%c0_6, %c0_7] : memref<32x256xf32, #tpu.memory_space<vmem>>, vector<32x256xf32>
    tpu.vector_store %arg7[%c0_6, %c0_7], %7 {strides = array<i32>} : memref<32x256xf32, #tpu.memory_space<vmem>>, vector<32x256xf32>,
    %c0_i32_8 = arith.constant 0 : i32
    %9 = arith.cmpi eq, %arg2, %c0_i32_8 : i32
    %10 = arith.extui %9 : i1 to i32
    %c0_i32_9 = arith.constant 0 : i32
    %11 = arith.cmpi ne, %10, %c0_i32_9 : i32
    scf.if %11 {
      %c0_10 = arith.constant 0 : index
      %c0_11 = arith.constant 0 : index
      %12 = vector.load %arg7[%c0_10, %c0_11] : memref<32x256xf32, #tpu.memory_space<vmem>>, vector<32x256xf32>
      %c0_12 = arith.constant 0 : index
      %c0_13 = arith.constant 0 : index
      %13 = vector.load %arg5[%c0_12, %c0_13] : memref<1x256xf32, #tpu.memory_space<vmem>>, vector<1x256xf32>
      %14 = vector.broadcast %13 : vector<1x256xf32> to vector<32x256xf32>
      %15 = arith.addf %12, %14 : vector<32x256xf32>
      %16 = arith.truncf %15 : vector<32x256xf32> to vector<32x256xbf16>
      %c0_14 = arith.constant 0 : index
      %c0_15 = arith.constant 0 : index
      %17 = vector.load %arg6[%c0_14, %c0_15] : memref<32x256xbf16, #tpu.memory_space<vmem>>, vector<32x256xbf16>
      tpu.vector_store %arg6[%c0_14, %c0_15], %16 {strides = array<i32>} : memref<32x256xbf16, #tpu.memory_space<vmem>>, vector<32x256xbf16>,
    } else {
    }
    return
  }
  func.func @transform_0(%arg0: i32, %arg1: i32, %arg2: i32) -> (i32, i32) {
    %c0_i32 = arith.constant 0 : i32
    return %arg0, %arg2 : i32, i32
  }
  func.func @transform_1(%arg0: i32, %arg1: i32, %arg2: i32) -> (i32, i32) {
    %c0_i32 = arith.constant 0 : i32
    return %arg2, %arg1 : i32, i32
  }
  func.func @transform_2(%arg0: i32, %arg1: i32, %arg2: i32) -> (i32, i32) {
    %c0_i32 = arith.constant 0 : i32
    %c0_i32_0 = arith.constant 0 : i32
    return %c0_i32, %arg1 : i32, i32
  }
  func.func @transform_3(%arg0: i32, %arg1: i32, %arg2: i32) -> (i32, i32) {
    %c0_i32 = arith.constant 0 : i32
    return %arg0, %arg1 : i32, i32
  }
}

module attributes {stable_mosaic.version = 11 : i64} {
  func.func @_mm_res_ln_kernel(%arg0: i32, %arg1: i32, %arg2: memref<16x256xbf16, #tpu.memory_space<vmem>>, %arg3: memref<256x128xbf16, #tpu.memory_space<vmem>>, %arg4: memref<1x128xf32, #tpu.memory_space<vmem>>, %arg5: memref<16x128xbf16, #tpu.memory_space<vmem>>, %arg6: memref<1x128xf32, #tpu.memory_space<vmem>>, %arg7: memref<1x128xf32, #tpu.memory_space<vmem>>, %arg8: memref<16x128xbf16, #tpu.memory_space<vmem>>, %arg9: memref<16x128xf32, #tpu.memory_space<vmem>>) attributes {dimension_semantics = [#tpu.dimension_semantics<parallel>, #tpu.dimension_semantics<arbitrary>], iteration_bounds = array<i64: 1, 1>, scalar_prefetch = 0 : i64, scratch_operands = 1 : i64, tpu.core_type = #tpu.core_type<tc>, window_params = [{transform_indices = @transform_0, window_bounds = array<i64: 16, 256>}, {transform_indices = @transform_1, window_bounds = array<i64: 256, 128>}, {pipeline_mode = #tpu.pipeline_mode<synchronous>, transform_indices = @transform_2, window_bounds = array<i64: 1, 128>}, {transform_indices = @transform_3, window_bounds = array<i64: 16, 128>}, {pipeline_mode = #tpu.pipeline_mode<synchronous>, transform_indices = @transform_4, window_bounds = array<i64: 1, 128>}, {pipeline_mode = #tpu.pipeline_mode<synchronous>, transform_indices = @transform_5, window_bounds = array<i64: 1, 128>}, {transform_indices = @transform_6, window_bounds = array<i64: 16, 128>}]} {
    %c0_i32 = arith.constant 0 : i32
    %0 = arith.cmpi eq, %arg1, %c0_i32 : i32
    %1 = arith.extui %0 : i1 to i32
    %c0_i32_0 = arith.constant 0 : i32
    %2 = arith.cmpi ne, %1, %c0_i32_0 : i32
    scf.if %2 {
      %cst_10 = arith.constant 0.000000e+00 : f32
      %12 = vector.broadcast %cst_10 : f32 to vector<16x128xf32>
      %c0_11 = arith.constant 0 : index
      %c0_12 = arith.constant 0 : index
      %13 = vector.load %arg9[%c0_11, %c0_12] : memref<16x128xf32, #tpu.memory_space<vmem>>, vector<16x128xf32>
      tpu.vector_store %arg9[%c0_11, %c0_12], %12 {strides = array<i32>} : memref<16x128xf32, #tpu.memory_space<vmem>>, vector<16x128xf32>,
    } else {
    }
    %c0 = arith.constant 0 : index
    %c0_1 = arith.constant 0 : index
    %3 = vector.load %arg9[%c0, %c0_1] : memref<16x128xf32, #tpu.memory_space<vmem>>, vector<16x128xf32>
    %c0_2 = arith.constant 0 : index
    %c0_3 = arith.constant 0 : index
    %4 = vector.load %arg2[%c0_2, %c0_3] : memref<16x256xbf16, #tpu.memory_space<vmem>>, vector<16x256xbf16>
    %c0_4 = arith.constant 0 : index
    %c0_5 = arith.constant 0 : index
    %5 = vector.load %arg3[%c0_4, %c0_5] : memref<256x128xbf16, #tpu.memory_space<vmem>>, vector<256x128xbf16>
    %cst = arith.constant dense<0.000000e+00> : vector<16x128xf32>
    %6 = tpu.matmul %4, %5, %cst {dimension_numbers = #tpu.dot_dimension_numbers<[1], [0], [0], [1], [0, 0, 1, 1], [], []>} : vector<16x256xbf16>, vector<256x128xbf16>, vector<16x128xf32> -> vector<16x128xf32>
    %7 = arith.addf %3, %6 : vector<16x128xf32>
    %c0_6 = arith.constant 0 : index
    %c0_7 = arith.constant 0 : index
    %8 = vector.load %arg9[%c0_6, %c0_7] : memref<16x128xf32, #tpu.memory_space<vmem>>, vector<16x128xf32>
    tpu.vector_store %arg9[%c0_6, %c0_7], %7 {strides = array<i32>} : memref<16x128xf32, #tpu.memory_space<vmem>>, vector<16x128xf32>,
    %c0_i32_8 = arith.constant 0 : i32
    %9 = arith.cmpi eq, %arg1, %c0_i32_8 : i32
    %10 = arith.extui %9 : i1 to i32
    %c0_i32_9 = arith.constant 0 : i32
    %11 = arith.cmpi ne, %10, %c0_i32_9 : i32
    scf.if %11 {
      %c0_10 = arith.constant 0 : index
      %c0_11 = arith.constant 0 : index
      %12 = vector.load %arg9[%c0_10, %c0_11] : memref<16x128xf32, #tpu.memory_space<vmem>>, vector<16x128xf32>
      %c0_12 = arith.constant 0 : index
      %c0_13 = arith.constant 0 : index
      %13 = vector.load %arg4[%c0_12, %c0_13] : memref<1x128xf32, #tpu.memory_space<vmem>>, vector<1x128xf32>
      %14 = vector.broadcast %13 : vector<1x128xf32> to vector<16x128xf32>
      %15 = arith.addf %12, %14 : vector<16x128xf32>
      %c0_14 = arith.constant 0 : index
      %c0_15 = arith.constant 0 : index
      %16 = vector.load %arg5[%c0_14, %c0_15] : memref<16x128xbf16, #tpu.memory_space<vmem>>, vector<16x128xbf16>
      %17 = arith.extf %16 : vector<16x128xbf16> to vector<16x128xf32>
      %18 = arith.addf %15, %17 : vector<16x128xf32>
      %cst_16 = arith.constant dense<0.000000e+00> : vector<16xf32>
      %19 = vector.multi_reduction <add>, %18, %cst_16 [1] : vector<16x128xf32> to vector<16xf32>
      %20 = vector.shape_cast %19 : vector<16xf32> to vector<16x1xf32>
      %cst_17 = arith.constant 1.280000e+02 : f32
      %21 = vector.broadcast %cst_17 : f32 to vector<16x1xf32>
      %22 = arith.divf %20, %21 : vector<16x1xf32>
      %23 = vector.broadcast %22 : vector<16x1xf32> to vector<16x128xf32>
      %24 = arith.subf %18, %23 : vector<16x128xf32>
      %25 = arith.mulf %24, %24 : vector<16x128xf32>
      %cst_18 = arith.constant dense<0.000000e+00> : vector<16xf32>
      %26 = vector.multi_reduction <add>, %25, %cst_18 [1] : vector<16x128xf32> to vector<16xf32>
      %27 = vector.shape_cast %26 : vector<16xf32> to vector<16x1xf32>
      %cst_19 = arith.constant 1.280000e+02 : f32
      %28 = vector.broadcast %cst_19 : f32 to vector<16x1xf32>
      %29 = arith.divf %27, %28 : vector<16x1xf32>
      %30 = vector.broadcast %22 : vector<16x1xf32> to vector<16x128xf32>
      %31 = arith.subf %18, %30 : vector<16x128xf32>
      %cst_20 = arith.constant 9.99999974E-6 : f32
      %32 = vector.broadcast %cst_20 : f32 to vector<16x1xf32>
      %33 = arith.addf %29, %32 : vector<16x1xf32>
      %34 = math.rsqrt %33 : vector<16x1xf32>
      %35 = vector.broadcast %34 : vector<16x1xf32> to vector<16x128xf32>
      %36 = arith.mulf %31, %35 : vector<16x128xf32>
      %c0_21 = arith.constant 0 : index
      %c0_22 = arith.constant 0 : index
      %37 = vector.load %arg6[%c0_21, %c0_22] : memref<1x128xf32, #tpu.memory_space<vmem>>, vector<1x128xf32>
      %38 = vector.broadcast %37 : vector<1x128xf32> to vector<16x128xf32>
      %39 = arith.mulf %36, %38 : vector<16x128xf32>
      %c0_23 = arith.constant 0 : index
      %c0_24 = arith.constant 0 : index
      %40 = vector.load %arg7[%c0_23, %c0_24] : memref<1x128xf32, #tpu.memory_space<vmem>>, vector<1x128xf32>
      %41 = vector.broadcast %40 : vector<1x128xf32> to vector<16x128xf32>
      %42 = arith.addf %39, %41 : vector<16x128xf32>
      %43 = arith.truncf %42 : vector<16x128xf32> to vector<16x128xbf16>
      %c0_25 = arith.constant 0 : index
      %c0_26 = arith.constant 0 : index
      %44 = vector.load %arg8[%c0_25, %c0_26] : memref<16x128xbf16, #tpu.memory_space<vmem>>, vector<16x128xbf16>
      tpu.vector_store %arg8[%c0_25, %c0_26], %43 {strides = array<i32>} : memref<16x128xbf16, #tpu.memory_space<vmem>>, vector<16x128xbf16>,
    } else {
    }
    return
  }
  func.func @transform_0(%arg0: i32, %arg1: i32) -> (i32, i32) {
    %c0_i32 = arith.constant 0 : i32
    return %arg0, %arg1 : i32, i32
  }
  func.func @transform_1(%arg0: i32, %arg1: i32) -> (i32, i32) {
    %c0_i32 = arith.constant 0 : i32
    %c0_i32_0 = arith.constant 0 : i32
    return %arg1, %c0_i32 : i32, i32
  }
  func.func @transform_2(%arg0: i32, %arg1: i32) -> (i32, i32) {
    %c0_i32 = arith.constant 0 : i32
    %c0_i32_0 = arith.constant 0 : i32
    %c0_i32_1 = arith.constant 0 : i32
    return %c0_i32, %c0_i32_0 : i32, i32
  }
  func.func @transform_3(%arg0: i32, %arg1: i32) -> (i32, i32) {
    %c0_i32 = arith.constant 0 : i32
    %c0_i32_0 = arith.constant 0 : i32
    return %arg0, %c0_i32 : i32, i32
  }
  func.func @transform_4(%arg0: i32, %arg1: i32) -> (i32, i32) {
    %c0_i32 = arith.constant 0 : i32
    %c0_i32_0 = arith.constant 0 : i32
    %c0_i32_1 = arith.constant 0 : i32
    return %c0_i32, %c0_i32_0 : i32, i32
  }
  func.func @transform_5(%arg0: i32, %arg1: i32) -> (i32, i32) {
    %c0_i32 = arith.constant 0 : i32
    %c0_i32_0 = arith.constant 0 : i32
    %c0_i32_1 = arith.constant 0 : i32
    return %c0_i32, %c0_i32_0 : i32, i32
  }
  func.func @transform_6(%arg0: i32, %arg1: i32) -> (i32, i32) {
    %c0_i32 = arith.constant 0 : i32
    %c0_i32_0 = arith.constant 0 : i32
    return %arg0, %c0_i32 : i32, i32
  }
}

module attributes {stable_mosaic.version = 11 : i64} {
  func.func @_mm_bias_act_kernel(%arg0: i32, %arg1: i32, %arg2: i32, %arg3: memref<16x128xbf16, #tpu.memory_space<vmem>>, %arg4: memref<128x256xbf16, #tpu.memory_space<vmem>>, %arg5: memref<1x256xf32, #tpu.memory_space<vmem>>, %arg6: memref<16x256xbf16, #tpu.memory_space<vmem>>, %arg7: memref<16x256xf32, #tpu.memory_space<vmem>>) attributes {dimension_semantics = [#tpu.dimension_semantics<parallel>, #tpu.dimension_semantics<parallel>, #tpu.dimension_semantics<arbitrary>], iteration_bounds = array<i64: 1, 1, 1>, scalar_prefetch = 0 : i64, scratch_operands = 1 : i64, tpu.core_type = #tpu.core_type<tc>, window_params = [{transform_indices = @transform_0, window_bounds = array<i64: 16, 128>}, {transform_indices = @transform_1, window_bounds = array<i64: 128, 256>}, {transform_indices = @transform_2, window_bounds = array<i64: 1, 256>}, {transform_indices = @transform_3, window_bounds = array<i64: 16, 256>}]} {
    %c0_i32 = arith.constant 0 : i32
    %0 = arith.cmpi eq, %arg2, %c0_i32 : i32
    %1 = arith.extui %0 : i1 to i32
    %c0_i32_0 = arith.constant 0 : i32
    %2 = arith.cmpi ne, %1, %c0_i32_0 : i32
    scf.if %2 {
      %cst_10 = arith.constant 0.000000e+00 : f32
      %12 = vector.broadcast %cst_10 : f32 to vector<16x256xf32>
      %c0_11 = arith.constant 0 : index
      %c0_12 = arith.constant 0 : index
      %13 = vector.load %arg7[%c0_11, %c0_12] : memref<16x256xf32, #tpu.memory_space<vmem>>, vector<16x256xf32>
      tpu.vector_store %arg7[%c0_11, %c0_12], %12 {strides = array<i32>} : memref<16x256xf32, #tpu.memory_space<vmem>>, vector<16x256xf32>,
    } else {
    }
    %c0 = arith.constant 0 : index
    %c0_1 = arith.constant 0 : index
    %3 = vector.load %arg7[%c0, %c0_1] : memref<16x256xf32, #tpu.memory_space<vmem>>, vector<16x256xf32>
    %c0_2 = arith.constant 0 : index
    %c0_3 = arith.constant 0 : index
    %4 = vector.load %arg3[%c0_2, %c0_3] : memref<16x128xbf16, #tpu.memory_space<vmem>>, vector<16x128xbf16>
    %c0_4 = arith.constant 0 : index
    %c0_5 = arith.constant 0 : index
    %5 = vector.load %arg4[%c0_4, %c0_5] : memref<128x256xbf16, #tpu.memory_space<vmem>>, vector<128x256xbf16>
    %cst = arith.constant dense<0.000000e+00> : vector<16x256xf32>
    %6 = tpu.matmul %4, %5, %cst {dimension_numbers = #tpu.dot_dimension_numbers<[1], [0], [0], [1], [0, 0, 1, 1], [], []>} : vector<16x128xbf16>, vector<128x256xbf16>, vector<16x256xf32> -> vector<16x256xf32>
    %7 = arith.addf %3, %6 : vector<16x256xf32>
    %c0_6 = arith.constant 0 : index
    %c0_7 = arith.constant 0 : index
    %8 = vector.load %arg7[%c0_6, %c0_7] : memref<16x256xf32, #tpu.memory_space<vmem>>, vector<16x256xf32>
    tpu.vector_store %arg7[%c0_6, %c0_7], %7 {strides = array<i32>} : memref<16x256xf32, #tpu.memory_space<vmem>>, vector<16x256xf32>,
    %c0_i32_8 = arith.constant 0 : i32
    %9 = arith.cmpi eq, %arg2, %c0_i32_8 : i32
    %10 = arith.extui %9 : i1 to i32
    %c0_i32_9 = arith.constant 0 : i32
    %11 = arith.cmpi ne, %10, %c0_i32_9 : i32
    scf.if %11 {
      %c0_10 = arith.constant 0 : index
      %c0_11 = arith.constant 0 : index
      %12 = vector.load %arg7[%c0_10, %c0_11] : memref<16x256xf32, #tpu.memory_space<vmem>>, vector<16x256xf32>
      %c0_12 = arith.constant 0 : index
      %c0_13 = arith.constant 0 : index
      %13 = vector.load %arg5[%c0_12, %c0_13] : memref<1x256xf32, #tpu.memory_space<vmem>>, vector<1x256xf32>
      %14 = vector.broadcast %13 : vector<1x256xf32> to vector<16x256xf32>
      %15 = arith.addf %12, %14 : vector<16x256xf32>
      %16 = arith.mulf %15, %15 : vector<16x256xf32>
      %17 = arith.mulf %15, %16 : vector<16x256xf32>
      %cst_14 = arith.constant 4.471500e-02 : f32
      %18 = vector.broadcast %cst_14 : f32 to vector<16x256xf32>
      %19 = arith.mulf %18, %17 : vector<16x256xf32>
      %20 = arith.addf %15, %19 : vector<16x256xf32>
      %cst_15 = arith.constant 0.797884583 : f32
      %21 = vector.broadcast %cst_15 : f32 to vector<16x256xf32>
      %22 = arith.mulf %21, %20 : vector<16x256xf32>
      %23 = math.tanh %22 : vector<16x256xf32>
      %cst_16 = arith.constant 1.000000e+00 : f32
      %24 = vector.broadcast %cst_16 : f32 to vector<16x256xf32>
      %25 = arith.addf %24, %23 : vector<16x256xf32>
      %cst_17 = arith.constant 5.000000e-01 : f32
      %26 = vector.broadcast %cst_17 : f32 to vector<16x256xf32>
      %27 = arith.mulf %26, %25 : vector<16x256xf32>
      %28 = arith.mulf %15, %27 : vector<16x256xf32>
      %29 = arith.truncf %28 : vector<16x256xf32> to vector<16x256xbf16>
      %c0_18 = arith.constant 0 : index
      %c0_19 = arith.constant 0 : index
      %30 = vector.load %arg6[%c0_18, %c0_19] : memref<16x256xbf16, #tpu.memory_space<vmem>>, vector<16x256xbf16>
      tpu.vector_store %arg6[%c0_18, %c0_19], %29 {strides = array<i32>} : memref<16x256xbf16, #tpu.memory_space<vmem>>, vector<16x256xbf16>,
    } else {
    }
    return
  }
  func.func @transform_0(%arg0: i32, %arg1: i32, %arg2: i32) -> (i32, i32) {
    %c0_i32 = arith.constant 0 : i32
    return %arg0, %arg2 : i32, i32
  }
  func.func @transform_1(%arg0: i32, %arg1: i32, %arg2: i32) -> (i32, i32) {
    %c0_i32 = arith.constant 0 : i32
    return %arg2, %arg1 : i32, i32
  }
  func.func @transform_2(%arg0: i32, %arg1: i32, %arg2: i32) -> (i32, i32) {
    %c0_i32 = arith.constant 0 : i32
    %c0_i32_0 = arith.constant 0 : i32
    return %c0_i32, %arg1 : i32, i32
  }
  func.func @transform_3(%arg0: i32, %arg1: i32, %arg2: i32) -> (i32, i32) {
    %c0_i32 = arith.constant 0 : i32
    return %arg0, %arg1 : i32, i32
  }
}

module attributes {stable_mosaic.version = 11 : i64} {
  func.func @_flash_attn_kernel(%arg0: i32, %arg1: i32, %arg2: i32, %arg3: i32, %arg4: memref<1x8x128xbf16, #tpu.memory_space<vmem>>, %arg5: memref<1x16x128xbf16, #tpu.memory_space<vmem>>, %arg6: memref<1x16x128xbf16, #tpu.memory_space<vmem>>, %arg7: memref<1x1x16xf32, #tpu.memory_space<vmem>>, %arg8: memref<1x8x128xbf16, #tpu.memory_space<vmem>>, %arg9: memref<4x8x1xf32, #tpu.memory_space<vmem>>, %arg10: memref<4x8x1xf32, #tpu.memory_space<vmem>>, %arg11: memref<4x8x32xf32, #tpu.memory_space<vmem>>) attributes {dimension_semantics = [#tpu.dimension_semantics<parallel>, #tpu.dimension_semantics<parallel>, #tpu.dimension_semantics<parallel>, #tpu.dimension_semantics<arbitrary>], iteration_bounds = array<i64: 2, 1, 1, 1>, scalar_prefetch = 0 : i64, scratch_operands = 3 : i64, tpu.core_type = #tpu.core_type<tc>, window_params = [{transform_indices = @transform_0, window_bounds = array<i64: 1, 8, 128>}, {transform_indices = @transform_1, window_bounds = array<i64: 1, 16, 128>}, {transform_indices = @transform_2, window_bounds = array<i64: 1, 16, 128>}, {transform_indices = @transform_3, window_bounds = array<i64: 1, 1, 16>}, {transform_indices = @transform_4, window_bounds = array<i64: 1, 8, 128>}]} {
    %c0_i32 = arith.constant 0 : i32
    %0 = arith.cmpi eq, %arg3, %c0_i32 : i32
    %1 = arith.extui %0 : i1 to i32
    %c0_i32_0 = arith.constant 0 : i32
    %2 = arith.cmpi ne, %1, %c0_i32_0 : i32
    scf.if %2 {
      %cst_98 = arith.constant 0xFF800000 : f32
      %166 = vector.broadcast %cst_98 : f32 to vector<4x8x1xf32>
      %c0_99 = arith.constant 0 : index
      %c0_100 = arith.constant 0 : index
      %c0_101 = arith.constant 0 : index
      %167 = vector.load %arg9[%c0_99, %c0_100, %c0_101] : memref<4x8x1xf32, #tpu.memory_space<vmem>>, vector<4x8x1xf32>
      tpu.vector_store %arg9[%c0_99, %c0_100, %c0_101], %166 {strides = array<i32>} : memref<4x8x1xf32, #tpu.memory_space<vmem>>, vector<4x8x1xf32>,
      %cst_102 = arith.constant 0.000000e+00 : f32
      %168 = vector.broadcast %cst_102 : f32 to vector<4x8x1xf32>
      %c0_103 = arith.constant 0 : index
      %c0_104 = arith.constant 0 : index
      %c0_105 = arith.constant 0 : index
      %169 = vector.load %arg10[%c0_103, %c0_104, %c0_105] : memref<4x8x1xf32, #tpu.memory_space<vmem>>, vector<4x8x1xf32>
      tpu.vector_store %arg10[%c0_103, %c0_104, %c0_105], %168 {strides = array<i32>} : memref<4x8x1xf32, #tpu.memory_space<vmem>>, vector<4x8x1xf32>,
      %cst_106 = arith.constant 0.000000e+00 : f32
      %170 = vector.broadcast %cst_106 : f32 to vector<4x8x32xf32>
      %c0_107 = arith.constant 0 : index
      %c0_108 = arith.constant 0 : index
      %c0_109 = arith.constant 0 : index
      %171 = vector.load %arg11[%c0_107, %c0_108, %c0_109] : memref<4x8x32xf32, #tpu.memory_space<vmem>>, vector<4x8x32xf32>
      tpu.vector_store %arg11[%c0_107, %c0_108, %c0_109], %170 {strides = array<i32>} : memref<4x8x32xf32, #tpu.memory_space<vmem>>, vector<4x8x32xf32>,
    } else {
    }
    %c0 = arith.constant 0 : index
    %c0_1 = arith.constant 0 : index
    %c0_2 = arith.constant 0 : index
    %3 = vector.load %arg4[%c0, %c0_1, %c0_2] : memref<1x8x128xbf16, #tpu.memory_space<vmem>>, vector<1x8x128xbf16>
    %4 = vector.shape_cast %3 : vector<1x8x128xbf16> to vector<8x128xbf16>
    %c0_3 = arith.constant 0 : index
    %c0_4 = arith.constant 0 : index
    %c0_5 = arith.constant 0 : index
    %5 = vector.load %arg5[%c0_3, %c0_4, %c0_5] : memref<1x16x128xbf16, #tpu.memory_space<vmem>>, vector<1x16x128xbf16>
    %6 = vector.shape_cast %5 : vector<1x16x128xbf16> to vector<16x128xbf16>
    %c0_6 = arith.constant 0 : index
    %c0_7 = arith.constant 0 : index
    %c0_8 = arith.constant 0 : index
    %7 = vector.load %arg6[%c0_6, %c0_7, %c0_8] : memref<1x16x128xbf16, #tpu.memory_space<vmem>>, vector<1x16x128xbf16>
    %8 = vector.shape_cast %7 : vector<1x16x128xbf16> to vector<16x128xbf16>
    %c0_9 = arith.constant 0 : index
    %c0_10 = arith.constant 0 : index
    %c0_11 = arith.constant 0 : index
    %9 = vector.load %arg7[%c0_9, %c0_10, %c0_11] : memref<1x1x16xf32, #tpu.memory_space<vmem>>, vector<1x1x16xf32>
    %10 = vector.shape_cast %9 : vector<1x1x16xf32> to vector<1x16xf32>
    %11 = vector.extract_strided_slice %4 {offsets = [0, 0], sizes = [8, 32], strides = [1, 1]} : vector<8x128xbf16> to vector<8x32xbf16>
    %12 = vector.extract_strided_slice %6 {offsets = [0, 0], sizes = [16, 32], strides = [1, 1]} : vector<16x128xbf16> to vector<16x32xbf16>
    %cst = arith.constant dense<0.000000e+00> : vector<8x16xf32>
    %13 = tpu.matmul %11, %12, %cst {dimension_numbers = #tpu.dot_dimension_numbers<[1], [1], [0], [0], [0, 0, 1, 0], [], []>} : vector<8x32xbf16>, vector<16x32xbf16>, vector<8x16xf32> -> vector<8x16xf32>
    %14 = vector.broadcast %10 : vector<1x16xf32> to vector<8x16xf32>
    %15 = arith.addf %13, %14 : vector<8x16xf32>
    %c0_12 = arith.constant 0 : index
    %c0_13 = arith.constant 0 : index
    %c0_14 = arith.constant 0 : index
    %16 = vector.load %arg9[%c0_12, %c0_13, %c0_14] : memref<4x8x1xf32, #tpu.memory_space<vmem>>, vector<1x8x1xf32>
    %17 = vector.shape_cast %16 : vector<1x8x1xf32> to vector<8x1xf32>
    %cst_15 = arith.constant dense<0xFF800000> : vector<8xf32>
    %18 = vector.multi_reduction <maximumf>, %15, %cst_15 [1] : vector<8x16xf32> to vector<8xf32>
    %19 = vector.shape_cast %18 : vector<8xf32> to vector<8x1xf32>
    %20 = arith.maximumf %17, %19 : vector<8x1xf32>
    %21 = arith.subf %17, %20 : vector<8x1xf32>
    %22 = math.exp %21 : vector<8x1xf32>
    %23 = vector.broadcast %20 : vector<8x1xf32> to vector<8x16xf32>
    %24 = arith.subf %15, %23 : vector<8x16xf32>
    %25 = math.exp %24 : vector<8x16xf32>
    %c0_16 = arith.constant 0 : index
    %c0_17 = arith.constant 0 : index
    %c0_18 = arith.constant 0 : index
    %26 = vector.load %arg10[%c0_16, %c0_17, %c0_18] : memref<4x8x1xf32, #tpu.memory_space<vmem>>, vector<1x8x1xf32>
    %27 = vector.shape_cast %26 : vector<1x8x1xf32> to vector<8x1xf32>
    %28 = arith.mulf %22, %27 : vector<8x1xf32>
    %cst_19 = arith.constant dense<0.000000e+00> : vector<8xf32>
    %29 = vector.multi_reduction <add>, %25, %cst_19 [1] : vector<8x16xf32> to vector<8xf32>
    %30 = vector.shape_cast %29 : vector<8xf32> to vector<8x1xf32>
    %31 = arith.addf %28, %30 : vector<8x1xf32>
    %c0_20 = arith.constant 0 : index
    %c0_21 = arith.constant 0 : index
    %c0_22 = arith.constant 0 : index
    %32 = vector.load %arg10[%c0_20, %c0_21, %c0_22] : memref<4x8x1xf32, #tpu.memory_space<vmem>>, vector<1x8x1xf32>
    %33 = vector.shape_cast %32 : vector<1x8x1xf32> to vector<8x1xf32>
    %34 = vector.shape_cast %31 : vector<8x1xf32> to vector<1x8x1xf32>
    tpu.vector_store %arg10[%c0_20, %c0_21, %c0_22], %34 {strides = array<i32>} : memref<4x8x1xf32, #tpu.memory_space<vmem>>, vector<1x8x1xf32>,
    %c0_23 = arith.constant 0 : index
    %c0_24 = arith.constant 0 : index
    %c0_25 = arith.constant 0 : index
    %35 = vector.load %arg11[%c0_23, %c0_24, %c0_25] : memref<4x8x32xf32, #tpu.memory_space<vmem>>, vector<1x8x32xf32>
    %36 = vector.shape_cast %35 : vector<1x8x32xf32> to vector<8x32xf32>
    %37 = vector.broadcast %22 : vector<8x1xf32> to vector<8x32xf32>
    %38 = arith.mulf %37, %36 : vector<8x32xf32>
    %39 = arith.truncf %25 : vector<8x16xf32> to vector<8x16xbf16>
    %40 = vector.extract_strided_slice %8 {offsets = [0, 0], sizes = [16, 32], strides = [1, 1]} : vector<16x128xbf16> to vector<16x32xbf16>
    %cst_26 = arith.constant dense<0.000000e+00> : vector<8x32xf32>
    %41 = tpu.matmul %39, %40, %cst_26 {dimension_numbers = #tpu.dot_dimension_numbers<[1], [0], [0], [1], [0, 0, 1, 1], [], []>} : vector<8x16xbf16>, vector<16x32xbf16>, vector<8x32xf32> -> vector<8x32xf32>
    %42 = arith.addf %38, %41 : vector<8x32xf32>
    %c0_27 = arith.constant 0 : index
    %c0_28 = arith.constant 0 : index
    %c0_29 = arith.constant 0 : index
    %43 = vector.load %arg11[%c0_27, %c0_28, %c0_29] : memref<4x8x32xf32, #tpu.memory_space<vmem>>, vector<1x8x32xf32>
    %44 = vector.shape_cast %43 : vector<1x8x32xf32> to vector<8x32xf32>
    %45 = vector.shape_cast %42 : vector<8x32xf32> to vector<1x8x32xf32>
    tpu.vector_store %arg11[%c0_27, %c0_28, %c0_29], %45 {strides = array<i32>} : memref<4x8x32xf32, #tpu.memory_space<vmem>>, vector<1x8x32xf32>,
    %c0_30 = arith.constant 0 : index
    %c0_31 = arith.constant 0 : index
    %c0_32 = arith.constant 0 : index
    %46 = vector.load %arg9[%c0_30, %c0_31, %c0_32] : memref<4x8x1xf32, #tpu.memory_space<vmem>>, vector<1x8x1xf32>
    %47 = vector.shape_cast %46 : vector<1x8x1xf32> to vector<8x1xf32>
    %48 = vector.shape_cast %20 : vector<8x1xf32> to vector<1x8x1xf32>
    tpu.vector_store %arg9[%c0_30, %c0_31, %c0_32], %48 {strides = array<i32>} : memref<4x8x1xf32, #tpu.memory_space<vmem>>, vector<1x8x1xf32>,
    %49 = vector.extract_strided_slice %4 {offsets = [0, 32], sizes = [8, 32], strides = [1, 1]} : vector<8x128xbf16> to vector<8x32xbf16>
    %50 = vector.extract_strided_slice %6 {offsets = [0, 32], sizes = [16, 32], strides = [1, 1]} : vector<16x128xbf16> to vector<16x32xbf16>
    %cst_33 = arith.constant dense<0.000000e+00> : vector<8x16xf32>
    %51 = tpu.matmul %49, %50, %cst_33 {dimension_numbers = #tpu.dot_dimension_numbers<[1], [1], [0], [0], [0, 0, 1, 0], [], []>} : vector<8x32xbf16>, vector<16x32xbf16>, vector<8x16xf32> -> vector<8x16xf32>
    %52 = vector.broadcast %10 : vector<1x16xf32> to vector<8x16xf32>
    %53 = arith.addf %51, %52 : vector<8x16xf32>
    %c1 = arith.constant 1 : index
    %c0_34 = arith.constant 0 : index
    %c0_35 = arith.constant 0 : index
    %54 = vector.load %arg9[%c1, %c0_34, %c0_35] : memref<4x8x1xf32, #tpu.memory_space<vmem>>, vector<1x8x1xf32>
    %55 = vector.shape_cast %54 : vector<1x8x1xf32> to vector<8x1xf32>
    %cst_36 = arith.constant dense<0xFF800000> : vector<8xf32>
    %56 = vector.multi_reduction <maximumf>, %53, %cst_36 [1] : vector<8x16xf32> to vector<8xf32>
    %57 = vector.shape_cast %56 : vector<8xf32> to vector<8x1xf32>
    %58 = arith.maximumf %55, %57 : vector<8x1xf32>
    %59 = arith.subf %55, %58 : vector<8x1xf32>
    %60 = math.exp %59 : vector<8x1xf32>
    %61 = vector.broadcast %58 : vector<8x1xf32> to vector<8x16xf32>
    %62 = arith.subf %53, %61 : vector<8x16xf32>
    %63 = math.exp %62 : vector<8x16xf32>
    %c1_37 = arith.constant 1 : index
    %c0_38 = arith.constant 0 : index
    %c0_39 = arith.constant 0 : index
    %64 = vector.load %arg10[%c1_37, %c0_38, %c0_39] : memref<4x8x1xf32, #tpu.memory_space<vmem>>, vector<1x8x1xf32>
    %65 = vector.shape_cast %64 : vector<1x8x1xf32> to vector<8x1xf32>
    %66 = arith.mulf %60, %65 : vector<8x1xf32>
    %cst_40 = arith.constant dense<0.000000e+00> : vector<8xf32>
    %67 = vector.multi_reduction <add>, %63, %cst_40 [1] : vector<8x16xf32> to vector<8xf32>
    %68 = vector.shape_cast %67 : vector<8xf32> to vector<8x1xf32>
    %69 = arith.addf %66, %68 : vector<8x1xf32>
    %c1_41 = arith.constant 1 : index
    %c0_42 = arith.constant 0 : index
    %c0_43 = arith.constant 0 : index
    %70 = vector.load %arg10[%c1_41, %c0_42, %c0_43] : memref<4x8x1xf32, #tpu.memory_space<vmem>>, vector<1x8x1xf32>
    %71 = vector.shape_cast %70 : vector<1x8x1xf32> to vector<8x1xf32>
    %72 = vector.shape_cast %69 : vector<8x1xf32> to vector<1x8x1xf32>
    tpu.vector_store %arg10[%c1_41, %c0_42, %c0_43], %72 {strides = array<i32>} : memref<4x8x1xf32, #tpu.memory_space<vmem>>, vector<1x8x1xf32>,
    %c1_44 = arith.constant 1 : index
    %c0_45 = arith.constant 0 : index
    %c0_46 = arith.constant 0 : index
    %73 = vector.load %arg11[%c1_44, %c0_45, %c0_46] : memref<4x8x32xf32, #tpu.memory_space<vmem>>, vector<1x8x32xf32>
    %74 = vector.shape_cast %73 : vector<1x8x32xf32> to vector<8x32xf32>
    %75 = vector.broadcast %60 : vector<8x1xf32> to vector<8x32xf32>
    %76 = arith.mulf %75, %74 : vector<8x32xf32>
    %77 = arith.truncf %63 : vector<8x16xf32> to vector<8x16xbf16>
    %78 = vector.extract_strided_slice %8 {offsets = [0, 32], sizes = [16, 32], strides = [1, 1]} : vector<16x128xbf16> to vector<16x32xbf16>
    %cst_47 = arith.constant dense<0.000000e+00> : vector<8x32xf32>
    %79 = tpu.matmul %77, %78, %cst_47 {dimension_numbers = #tpu.dot_dimension_numbers<[1], [0], [0], [1], [0, 0, 1, 1], [], []>} : vector<8x16xbf16>, vector<16x32xbf16>, vector<8x32xf32> -> vector<8x32xf32>
    %80 = arith.addf %76, %79 : vector<8x32xf32>
    %c1_48 = arith.constant 1 : index
    %c0_49 = arith.constant 0 : index
    %c0_50 = arith.constant 0 : index
    %81 = vector.load %arg11[%c1_48, %c0_49, %c0_50] : memref<4x8x32xf32, #tpu.memory_space<vmem>>, vector<1x8x32xf32>
    %82 = vector.shape_cast %81 : vector<1x8x32xf32> to vector<8x32xf32>
    %83 = vector.shape_cast %80 : vector<8x32xf32> to vector<1x8x32xf32>
    tpu.vector_store %arg11[%c1_48, %c0_49, %c0_50], %83 {strides = array<i32>} : memref<4x8x32xf32, #tpu.memory_space<vmem>>, vector<1x8x32xf32>,
    %c1_51 = arith.constant 1 : index
    %c0_52 = arith.constant 0 : index
    %c0_53 = arith.constant 0 : index
    %84 = vector.load %arg9[%c1_51, %c0_52, %c0_53] : memref<4x8x1xf32, #tpu.memory_space<vmem>>, vector<1x8x1xf32>
    %85 = vector.shape_cast %84 : vector<1x8x1xf32> to vector<8x1xf32>
    %86 = vector.shape_cast %58 : vector<8x1xf32> to vector<1x8x1xf32>
    tpu.vector_store %arg9[%c1_51, %c0_52, %c0_53], %86 {strides = array<i32>} : memref<4x8x1xf32, #tpu.memory_space<vmem>>, vector<1x8x1xf32>,
    %87 = vector.extract_strided_slice %4 {offsets = [0, 64], sizes = [8, 32], strides = [1, 1]} : vector<8x128xbf16> to vector<8x32xbf16>
    %88 = vector.extract_strided_slice %6 {offsets = [0, 64], sizes = [16, 32], strides = [1, 1]} : vector<16x128xbf16> to vector<16x32xbf16>
    %cst_54 = arith.constant dense<0.000000e+00> : vector<8x16xf32>
    %89 = tpu.matmul %87, %88, %cst_54 {dimension_numbers = #tpu.dot_dimension_numbers<[1], [1], [0], [0], [0, 0, 1, 0], [], []>} : vector<8x32xbf16>, vector<16x32xbf16>, vector<8x16xf32> -> vector<8x16xf32>
    %90 = vector.broadcast %10 : vector<1x16xf32> to vector<8x16xf32>
    %91 = arith.addf %89, %90 : vector<8x16xf32>
    %c2 = arith.constant 2 : index
    %c0_55 = arith.constant 0 : index
    %c0_56 = arith.constant 0 : index
    %92 = vector.load %arg9[%c2, %c0_55, %c0_56] : memref<4x8x1xf32, #tpu.memory_space<vmem>>, vector<1x8x1xf32>
    %93 = vector.shape_cast %92 : vector<1x8x1xf32> to vector<8x1xf32>
    %cst_57 = arith.constant dense<0xFF800000> : vector<8xf32>
    %94 = vector.multi_reduction <maximumf>, %91, %cst_57 [1] : vector<8x16xf32> to vector<8xf32>
    %95 = vector.shape_cast %94 : vector<8xf32> to vector<8x1xf32>
    %96 = arith.maximumf %93, %95 : vector<8x1xf32>
    %97 = arith.subf %93, %96 : vector<8x1xf32>
    %98 = math.exp %97 : vector<8x1xf32>
    %99 = vector.broadcast %96 : vector<8x1xf32> to vector<8x16xf32>
    %100 = arith.subf %91, %99 : vector<8x16xf32>
    %101 = math.exp %100 : vector<8x16xf32>
    %c2_58 = arith.constant 2 : index
    %c0_59 = arith.constant 0 : index
    %c0_60 = arith.constant 0 : index
    %102 = vector.load %arg10[%c2_58, %c0_59, %c0_60] : memref<4x8x1xf32, #tpu.memory_space<vmem>>, vector<1x8x1xf32>
    %103 = vector.shape_cast %102 : vector<1x8x1xf32> to vector<8x1xf32>
    %104 = arith.mulf %98, %103 : vector<8x1xf32>
    %cst_61 = arith.constant dense<0.000000e+00> : vector<8xf32>
    %105 = vector.multi_reduction <add>, %101, %cst_61 [1] : vector<8x16xf32> to vector<8xf32>
    %106 = vector.shape_cast %105 : vector<8xf32> to vector<8x1xf32>
    %107 = arith.addf %104, %106 : vector<8x1xf32>
    %c2_62 = arith.constant 2 : index
    %c0_63 = arith.constant 0 : index
    %c0_64 = arith.constant 0 : index
    %108 = vector.load %arg10[%c2_62, %c0_63, %c0_64] : memref<4x8x1xf32, #tpu.memory_space<vmem>>, vector<1x8x1xf32>
    %109 = vector.shape_cast %108 : vector<1x8x1xf32> to vector<8x1xf32>
    %110 = vector.shape_cast %107 : vector<8x1xf32> to vector<1x8x1xf32>
    tpu.vector_store %arg10[%c2_62, %c0_63, %c0_64], %110 {strides = array<i32>} : memref<4x8x1xf32, #tpu.memory_space<vmem>>, vector<1x8x1xf32>,
    %c2_65 = arith.constant 2 : index
    %c0_66 = arith.constant 0 : index
    %c0_67 = arith.constant 0 : index
    %111 = vector.load %arg11[%c2_65, %c0_66, %c0_67] : memref<4x8x32xf32, #tpu.memory_space<vmem>>, vector<1x8x32xf32>
    %112 = vector.shape_cast %111 : vector<1x8x32xf32> to vector<8x32xf32>
    %113 = vector.broadcast %98 : vector<8x1xf32> to vector<8x32xf32>
    %114 = arith.mulf %113, %112 : vector<8x32xf32>
    %115 = arith.truncf %101 : vector<8x16xf32> to vector<8x16xbf16>
    %116 = vector.extract_strided_slice %8 {offsets = [0, 64], sizes = [16, 32], strides = [1, 1]} : vector<16x128xbf16> to vector<16x32xbf16>
    %cst_68 = arith.constant dense<0.000000e+00> : vector<8x32xf32>
    %117 = tpu.matmul %115, %116, %cst_68 {dimension_numbers = #tpu.dot_dimension_numbers<[1], [0], [0], [1], [0, 0, 1, 1], [], []>} : vector<8x16xbf16>, vector<16x32xbf16>, vector<8x32xf32> -> vector<8x32xf32>
    %118 = arith.addf %114, %117 : vector<8x32xf32>
    %c2_69 = arith.constant 2 : index
    %c0_70 = arith.constant 0 : index
    %c0_71 = arith.constant 0 : index
    %119 = vector.load %arg11[%c2_69, %c0_70, %c0_71] : memref<4x8x32xf32, #tpu.memory_space<vmem>>, vector<1x8x32xf32>
    %120 = vector.shape_cast %119 : vector<1x8x32xf32> to vector<8x32xf32>
    %121 = vector.shape_cast %118 : vector<8x32xf32> to vector<1x8x32xf32>
    tpu.vector_store %arg11[%c2_69, %c0_70, %c0_71], %121 {strides = array<i32>} : memref<4x8x32xf32, #tpu.memory_space<vmem>>, vector<1x8x32xf32>,
    %c2_72 = arith.constant 2 : index
    %c0_73 = arith.constant 0 : index
    %c0_74 = arith.constant 0 : index
    %122 = vector.load %arg9[%c2_72, %c0_73, %c0_74] : memref<4x8x1xf32, #tpu.memory_space<vmem>>, vector<1x8x1xf32>
    %123 = vector.shape_cast %122 : vector<1x8x1xf32> to vector<8x1xf32>
    %124 = vector.shape_cast %96 : vector<8x1xf32> to vector<1x8x1xf32>
    tpu.vector_store %arg9[%c2_72, %c0_73, %c0_74], %124 {strides = array<i32>} : memref<4x8x1xf32, #tpu.memory_space<vmem>>, vector<1x8x1xf32>,
    %125 = vector.extract_strided_slice %4 {offsets = [0, 96], sizes = [8, 32], strides = [1, 1]} : vector<8x128xbf16> to vector<8x32xbf16>
    %126 = vector.extract_strided_slice %6 {offsets = [0, 96], sizes = [16, 32], strides = [1, 1]} : vector<16x128xbf16> to vector<16x32xbf16>
    %cst_75 = arith.constant dense<0.000000e+00> : vector<8x16xf32>
    %127 = tpu.matmul %125, %126, %cst_75 {dimension_numbers = #tpu.dot_dimension_numbers<[1], [1], [0], [0], [0, 0, 1, 0], [], []>} : vector<8x32xbf16>, vector<16x32xbf16>, vector<8x16xf32> -> vector<8x16xf32>
    %128 = vector.broadcast %10 : vector<1x16xf32> to vector<8x16xf32>
    %129 = arith.addf %127, %128 : vector<8x16xf32>
    %c3 = arith.constant 3 : index
    %c0_76 = arith.constant 0 : index
    %c0_77 = arith.constant 0 : index
    %130 = vector.load %arg9[%c3, %c0_76, %c0_77] : memref<4x8x1xf32, #tpu.memory_space<vmem>>, vector<1x8x1xf32>
    %131 = vector.shape_cast %130 : vector<1x8x1xf32> to vector<8x1xf32>
    %cst_78 = arith.constant dense<0xFF800000> : vector<8xf32>
    %132 = vector.multi_reduction <maximumf>, %129, %cst_78 [1] : vector<8x16xf32> to vector<8xf32>
    %133 = vector.shape_cast %132 : vector<8xf32> to vector<8x1xf32>
    %134 = arith.maximumf %131, %133 : vector<8x1xf32>
    %135 = arith.subf %131, %134 : vector<8x1xf32>
    %136 = math.exp %135 : vector<8x1xf32>
    %137 = vector.broadcast %134 : vector<8x1xf32> to vector<8x16xf32>
    %138 = arith.subf %129, %137 : vector<8x16xf32>
    %139 = math.exp %138 : vector<8x16xf32>
    %c3_79 = arith.constant 3 : index
    %c0_80 = arith.constant 0 : index
    %c0_81 = arith.constant 0 : index
    %140 = vector.load %arg10[%c3_79, %c0_80, %c0_81] : memref<4x8x1xf32, #tpu.memory_space<vmem>>, vector<1x8x1xf32>
    %141 = vector.shape_cast %140 : vector<1x8x1xf32> to vector<8x1xf32>
    %142 = arith.mulf %136, %141 : vector<8x1xf32>
    %cst_82 = arith.constant dense<0.000000e+00> : vector<8xf32>
    %143 = vector.multi_reduction <add>, %139, %cst_82 [1] : vector<8x16xf32> to vector<8xf32>
    %144 = vector.shape_cast %143 : vector<8xf32> to vector<8x1xf32>
    %145 = arith.addf %142, %144 : vector<8x1xf32>
    %c3_83 = arith.constant 3 : index
    %c0_84 = arith.constant 0 : index
    %c0_85 = arith.constant 0 : index
    %146 = vector.load %arg10[%c3_83, %c0_84, %c0_85] : memref<4x8x1xf32, #tpu.memory_space<vmem>>, vector<1x8x1xf32>
    %147 = vector.shape_cast %146 : vector<1x8x1xf32> to vector<8x1xf32>
    %148 = vector.shape_cast %145 : vector<8x1xf32> to vector<1x8x1xf32>
    tpu.vector_store %arg10[%c3_83, %c0_84, %c0_85], %148 {strides = array<i32>} : memref<4x8x1xf32, #tpu.memory_space<vmem>>, vector<1x8x1xf32>,
    %c3_86 = arith.constant 3 : index
    %c0_87 = arith.constant 0 : index
    %c0_88 = arith.constant 0 : index
    %149 = vector.load %arg11[%c3_86, %c0_87, %c0_88] : memref<4x8x32xf32, #tpu.memory_space<vmem>>, vector<1x8x32xf32>
    %150 = vector.shape_cast %149 : vector<1x8x32xf32> to vector<8x32xf32>
    %151 = vector.broadcast %136 : vector<8x1xf32> to vector<8x32xf32>
    %152 = arith.mulf %151, %150 : vector<8x32xf32>
    %153 = arith.truncf %139 : vector<8x16xf32> to vector<8x16xbf16>
    %154 = vector.extract_strided_slice %8 {offsets = [0, 96], sizes = [16, 32], strides = [1, 1]} : vector<16x128xbf16> to vector<16x32xbf16>
    %cst_89 = arith.constant dense<0.000000e+00> : vector<8x32xf32>
    %155 = tpu.matmul %153, %154, %cst_89 {dimension_numbers = #tpu.dot_dimension_numbers<[1], [0], [0], [1], [0, 0, 1, 1], [], []>} : vector<8x16xbf16>, vector<16x32xbf16>, vector<8x32xf32> -> vector<8x32xf32>
    %156 = arith.addf %152, %155 : vector<8x32xf32>
    %c3_90 = arith.constant 3 : index
    %c0_91 = arith.constant 0 : index
    %c0_92 = arith.constant 0 : index
    %157 = vector.load %arg11[%c3_90, %c0_91, %c0_92] : memref<4x8x32xf32, #tpu.memory_space<vmem>>, vector<1x8x32xf32>
    %158 = vector.shape_cast %157 : vector<1x8x32xf32> to vector<8x32xf32>
    %159 = vector.shape_cast %156 : vector<8x32xf32> to vector<1x8x32xf32>
    tpu.vector_store %arg11[%c3_90, %c0_91, %c0_92], %159 {strides = array<i32>} : memref<4x8x32xf32, #tpu.memory_space<vmem>>, vector<1x8x32xf32>,
    %c3_93 = arith.constant 3 : index
    %c0_94 = arith.constant 0 : index
    %c0_95 = arith.constant 0 : index
    %160 = vector.load %arg9[%c3_93, %c0_94, %c0_95] : memref<4x8x1xf32, #tpu.memory_space<vmem>>, vector<1x8x1xf32>
    %161 = vector.shape_cast %160 : vector<1x8x1xf32> to vector<8x1xf32>
    %162 = vector.shape_cast %134 : vector<8x1xf32> to vector<1x8x1xf32>
    tpu.vector_store %arg9[%c3_93, %c0_94, %c0_95], %162 {strides = array<i32>} : memref<4x8x1xf32, #tpu.memory_space<vmem>>, vector<1x8x1xf32>,
    %c0_i32_96 = arith.constant 0 : i32
    %163 = arith.cmpi eq, %arg3, %c0_i32_96 : i32
    %164 = arith.extui %163 : i1 to i32
    %c0_i32_97 = arith.constant 0 : i32
    %165 = arith.cmpi ne, %164, %c0_i32_97 : i32
    scf.if %165 {
      %c0_98 = arith.constant 0 : index
      %c0_99 = arith.constant 0 : index
      %c0_100 = arith.constant 0 : index
      %166 = vector.load %arg10[%c0_98, %c0_99, %c0_100] : memref<4x8x1xf32, #tpu.memory_space<vmem>>, vector<1x8x1xf32>
      %167 = vector.shape_cast %166 : vector<1x8x1xf32> to vector<8x1xf32>
      %168 = tpu.reciprocal %167 {approx = true} : vector<8x1xf32> -> vector<8x1xf32>
      %c0_101 = arith.constant 0 : index
      %c0_102 = arith.constant 0 : index
      %c0_103 = arith.constant 0 : index
      %169 = vector.load %arg11[%c0_101, %c0_102, %c0_103] : memref<4x8x32xf32, #tpu.memory_space<vmem>>, vector<1x8x32xf32>
      %170 = vector.shape_cast %169 : vector<1x8x32xf32> to vector<8x32xf32>
      %171 = vector.broadcast %168 : vector<8x1xf32> to vector<8x32xf32>
      %172 = arith.mulf %170, %171 : vector<8x32xf32>
      %173 = arith.truncf %172 : vector<8x32xf32> to vector<8x32xbf16>
      %c0_104 = arith.constant 0 : index
      %c0_105 = arith.constant 0 : index
      %c0_106 = arith.constant 0 : index
      %174 = vector.load %arg8[%c0_104, %c0_105, %c0_106] : memref<1x8x128xbf16, #tpu.memory_space<vmem>>, vector<1x8x32xbf16>
      %175 = vector.shape_cast %174 : vector<1x8x32xbf16> to vector<8x32xbf16>
      %176 = vector.shape_cast %173 : vector<8x32xbf16> to vector<1x8x32xbf16>
      tpu.vector_store %arg8[%c0_104, %c0_105, %c0_106], %176 {strides = array<i32>} : memref<1x8x128xbf16, #tpu.memory_space<vmem>>, vector<1x8x32xbf16>,
      %c1_107 = arith.constant 1 : index
      %c0_108 = arith.constant 0 : index
      %c0_109 = arith.constant 0 : index
      %177 = vector.load %arg10[%c1_107, %c0_108, %c0_109] : memref<4x8x1xf32, #tpu.memory_space<vmem>>, vector<1x8x1xf32>
      %178 = vector.shape_cast %177 : vector<1x8x1xf32> to vector<8x1xf32>
      %179 = tpu.reciprocal %178 {approx = true} : vector<8x1xf32> -> vector<8x1xf32>
      %c1_110 = arith.constant 1 : index
      %c0_111 = arith.constant 0 : index
      %c0_112 = arith.constant 0 : index
      %180 = vector.load %arg11[%c1_110, %c0_111, %c0_112] : memref<4x8x32xf32, #tpu.memory_space<vmem>>, vector<1x8x32xf32>
      %181 = vector.shape_cast %180 : vector<1x8x32xf32> to vector<8x32xf32>
      %182 = vector.broadcast %179 : vector<8x1xf32> to vector<8x32xf32>
      %183 = arith.mulf %181, %182 : vector<8x32xf32>
      %184 = arith.truncf %183 : vector<8x32xf32> to vector<8x32xbf16>
      %c0_113 = arith.constant 0 : index
      %c0_114 = arith.constant 0 : index
      %c32 = arith.constant 32 : index
      %185 = vector.load %arg8[%c0_113, %c0_114, %c32] : memref<1x8x128xbf16, #tpu.memory_space<vmem>>, vector<1x8x32xbf16>
      %186 = vector.shape_cast %185 : vector<1x8x32xbf16> to vector<8x32xbf16>
      %187 = vector.shape_cast %184 : vector<8x32xbf16> to vector<1x8x32xbf16>
      tpu.vector_store %arg8[%c0_113, %c0_114, %c32], %187 {strides = array<i32>} : memref<1x8x128xbf16, #tpu.memory_space<vmem>>, vector<1x8x32xbf16>,
      %c2_115 = arith.constant 2 : index
      %c0_116 = arith.constant 0 : index
      %c0_117 = arith.constant 0 : index
      %188 = vector.load %arg10[%c2_115, %c0_116, %c0_117] : memref<4x8x1xf32, #tpu.memory_space<vmem>>, vector<1x8x1xf32>
      %189 = vector.shape_cast %188 : vector<1x8x1xf32> to vector<8x1xf32>
      %190 = tpu.reciprocal %189 {approx = true} : vector<8x1xf32> -> vector<8x1xf32>
      %c2_118 = arith.constant 2 : index
      %c0_119 = arith.constant 0 : index
      %c0_120 = arith.constant 0 : index
      %191 = vector.load %arg11[%c2_118, %c0_119, %c0_120] : memref<4x8x32xf32, #tpu.memory_space<vmem>>, vector<1x8x32xf32>
      %192 = vector.shape_cast %191 : vector<1x8x32xf32> to vector<8x32xf32>
      %193 = vector.broadcast %190 : vector<8x1xf32> to vector<8x32xf32>
      %194 = arith.mulf %192, %193 : vector<8x32xf32>
      %195 = arith.truncf %194 : vector<8x32xf32> to vector<8x32xbf16>
      %c0_121 = arith.constant 0 : index
      %c0_122 = arith.constant 0 : index
      %c64 = arith.constant 64 : index
      %196 = vector.load %arg8[%c0_121, %c0_122, %c64] : memref<1x8x128xbf16, #tpu.memory_space<vmem>>, vector<1x8x32xbf16>
      %197 = vector.shape_cast %196 : vector<1x8x32xbf16> to vector<8x32xbf16>
      %198 = vector.shape_cast %195 : vector<8x32xbf16> to vector<1x8x32xbf16>
      tpu.vector_store %arg8[%c0_121, %c0_122, %c64], %198 {strides = array<i32>} : memref<1x8x128xbf16, #tpu.memory_space<vmem>>, vector<1x8x32xbf16>,
      %c3_123 = arith.constant 3 : index
      %c0_124 = arith.constant 0 : index
      %c0_125 = arith.constant 0 : index
      %199 = vector.load %arg10[%c3_123, %c0_124, %c0_125] : memref<4x8x1xf32, #tpu.memory_space<vmem>>, vector<1x8x1xf32>
      %200 = vector.shape_cast %199 : vector<1x8x1xf32> to vector<8x1xf32>
      %201 = tpu.reciprocal %200 {approx = true} : vector<8x1xf32> -> vector<8x1xf32>
      %c3_126 = arith.constant 3 : index
      %c0_127 = arith.constant 0 : index
      %c0_128 = arith.constant 0 : index
      %202 = vector.load %arg11[%c3_126, %c0_127, %c0_128] : memref<4x8x32xf32, #tpu.memory_space<vmem>>, vector<1x8x32xf32>
      %203 = vector.shape_cast %202 : vector<1x8x32xf32> to vector<8x32xf32>
      %204 = vector.broadcast %201 : vector<8x1xf32> to vector<8x32xf32>
      %205 = arith.mulf %203, %204 : vector<8x32xf32>
      %206 = arith.truncf %205 : vector<8x32xf32> to vector<8x32xbf16>
      %c0_129 = arith.constant 0 : index
      %c0_130 = arith.constant 0 : index
      %c96 = arith.constant 96 : index
      %207 = vector.load %arg8[%c0_129, %c0_130, %c96] : memref<1x8x128xbf16, #tpu.memory_space<vmem>>, vector<1x8x32xbf16>
      %208 = vector.shape_cast %207 : vector<1x8x32xbf16> to vector<8x32xbf16>
      %209 = vector.shape_cast %206 : vector<8x32xbf16> to vector<1x8x32xbf16>
      tpu.vector_store %arg8[%c0_129, %c0_130, %c96], %209 {strides = array<i32>} : memref<1x8x128xbf16, #tpu.memory_space<vmem>>, vector<1x8x32xbf16>,
    } else {
    }
    return
  }
  func.func @transform_0(%arg0: i32, %arg1: i32, %arg2: i32, %arg3: i32) -> (i32, i32, i32) {
    %c0_i32 = arith.constant 0 : i32
    %0 = arith.addi %c0_i32, %arg1 : i32
    %c0_i32_0 = arith.constant 0 : i32
    return %arg0, %arg2, %0 : i32, i32, i32
  }
  func.func @transform_1(%arg0: i32, %arg1: i32, %arg2: i32, %arg3: i32) -> (i32, i32, i32) {
    %c0_i32 = arith.constant 0 : i32
    %0 = arith.addi %c0_i32, %arg1 : i32
    %c0_i32_0 = arith.constant 0 : i32
    return %arg0, %arg3, %0 : i32, i32, i32
  }
  func.func @transform_2(%arg0: i32, %arg1: i32, %arg2: i32, %arg3: i32) -> (i32, i32, i32) {
    %c1_i32 = arith.constant 1 : i32
    %0 = arith.addi %c1_i32, %arg1 : i32
    %c0_i32 = arith.constant 0 : i32
    return %arg0, %arg3, %0 : i32, i32, i32
  }
  func.func @transform_3(%arg0: i32, %arg1: i32, %arg2: i32, %arg3: i32) -> (i32, i32, i32) {
    %c0_i32 = arith.constant 0 : i32
    %c0_i32_0 = arith.constant 0 : i32
    return %arg0, %c0_i32, %arg3 : i32, i32, i32
  }
  func.func @transform_4(%arg0: i32, %arg1: i32, %arg2: i32, %arg3: i32) -> (i32, i32, i32) {
    %c0_i32 = arith.constant 0 : i32
    return %arg0, %arg2, %arg1 : i32, i32, i32
  }
}

module attributes {stable_mosaic.version = 11 : i64} {
  func.func @_mm_bias_act_kernel(%arg0: i32, %arg1: i32, %arg2: i32, %arg3: memref<16x128xbf16, #tpu.memory_space<vmem>>, %arg4: memref<128x128xbf16, #tpu.memory_space<vmem>>, %arg5: memref<1x128xf32, #tpu.memory_space<vmem>>, %arg6: memref<16x128xbf16, #tpu.memory_space<vmem>>, %arg7: memref<16x128xf32, #tpu.memory_space<vmem>>) attributes {dimension_semantics = [#tpu.dimension_semantics<parallel>, #tpu.dimension_semantics<parallel>, #tpu.dimension_semantics<arbitrary>], iteration_bounds = array<i64: 1, 3, 1>, scalar_prefetch = 0 : i64, scratch_operands = 1 : i64, tpu.core_type = #tpu.core_type<tc>, window_params = [{transform_indices = @transform_0, window_bounds = array<i64: 16, 128>}, {transform_indices = @transform_1, window_bounds = array<i64: 128, 128>}, {transform_indices = @transform_2, window_bounds = array<i64: 1, 128>}, {transform_indices = @transform_3, window_bounds = array<i64: 16, 128>}]} {
    %c0_i32 = arith.constant 0 : i32
    %0 = arith.cmpi eq, %arg2, %c0_i32 : i32
    %1 = arith.extui %0 : i1 to i32
    %c0_i32_0 = arith.constant 0 : i32
    %2 = arith.cmpi ne, %1, %c0_i32_0 : i32
    scf.if %2 {
      %cst_10 = arith.constant 0.000000e+00 : f32
      %12 = vector.broadcast %cst_10 : f32 to vector<16x128xf32>
      %c0_11 = arith.constant 0 : index
      %c0_12 = arith.constant 0 : index
      %13 = vector.load %arg7[%c0_11, %c0_12] : memref<16x128xf32, #tpu.memory_space<vmem>>, vector<16x128xf32>
      tpu.vector_store %arg7[%c0_11, %c0_12], %12 {strides = array<i32>} : memref<16x128xf32, #tpu.memory_space<vmem>>, vector<16x128xf32>,
    } else {
    }
    %c0 = arith.constant 0 : index
    %c0_1 = arith.constant 0 : index
    %3 = vector.load %arg7[%c0, %c0_1] : memref<16x128xf32, #tpu.memory_space<vmem>>, vector<16x128xf32>
    %c0_2 = arith.constant 0 : index
    %c0_3 = arith.constant 0 : index
    %4 = vector.load %arg3[%c0_2, %c0_3] : memref<16x128xbf16, #tpu.memory_space<vmem>>, vector<16x128xbf16>
    %c0_4 = arith.constant 0 : index
    %c0_5 = arith.constant 0 : index
    %5 = vector.load %arg4[%c0_4, %c0_5] : memref<128x128xbf16, #tpu.memory_space<vmem>>, vector<128x128xbf16>
    %cst = arith.constant dense<0.000000e+00> : vector<16x128xf32>
    %6 = tpu.matmul %4, %5, %cst {dimension_numbers = #tpu.dot_dimension_numbers<[1], [0], [0], [1], [0, 0, 1, 1], [], []>} : vector<16x128xbf16>, vector<128x128xbf16>, vector<16x128xf32> -> vector<16x128xf32>
    %7 = arith.addf %3, %6 : vector<16x128xf32>
    %c0_6 = arith.constant 0 : index
    %c0_7 = arith.constant 0 : index
    %8 = vector.load %arg7[%c0_6, %c0_7] : memref<16x128xf32, #tpu.memory_space<vmem>>, vector<16x128xf32>
    tpu.vector_store %arg7[%c0_6, %c0_7], %7 {strides = array<i32>} : memref<16x128xf32, #tpu.memory_space<vmem>>, vector<16x128xf32>,
    %c0_i32_8 = arith.constant 0 : i32
    %9 = arith.cmpi eq, %arg2, %c0_i32_8 : i32
    %10 = arith.extui %9 : i1 to i32
    %c0_i32_9 = arith.constant 0 : i32
    %11 = arith.cmpi ne, %10, %c0_i32_9 : i32
    scf.if %11 {
      %c0_10 = arith.constant 0 : index
      %c0_11 = arith.constant 0 : index
      %12 = vector.load %arg7[%c0_10, %c0_11] : memref<16x128xf32, #tpu.memory_space<vmem>>, vector<16x128xf32>
      %c0_12 = arith.constant 0 : index
      %c0_13 = arith.constant 0 : index
      %13 = vector.load %arg5[%c0_12, %c0_13] : memref<1x128xf32, #tpu.memory_space<vmem>>, vector<1x128xf32>
      %14 = vector.broadcast %13 : vector<1x128xf32> to vector<16x128xf32>
      %15 = arith.addf %12, %14 : vector<16x128xf32>
      %16 = arith.truncf %15 : vector<16x128xf32> to vector<16x128xbf16>
      %c0_14 = arith.constant 0 : index
      %c0_15 = arith.constant 0 : index
      %17 = vector.load %arg6[%c0_14, %c0_15] : memref<16x128xbf16, #tpu.memory_space<vmem>>, vector<16x128xbf16>
      tpu.vector_store %arg6[%c0_14, %c0_15], %16 {strides = array<i32>} : memref<16x128xbf16, #tpu.memory_space<vmem>>, vector<16x128xbf16>,
    } else {
    }
    return
  }
  func.func @transform_0(%arg0: i32, %arg1: i32, %arg2: i32) -> (i32, i32) {
    %c0_i32 = arith.constant 0 : i32
    return %arg0, %arg2 : i32, i32
  }
  func.func @transform_1(%arg0: i32, %arg1: i32, %arg2: i32) -> (i32, i32) {
    %c0_i32 = arith.constant 0 : i32
    return %arg2, %arg1 : i32, i32
  }
  func.func @transform_2(%arg0: i32, %arg1: i32, %arg2: i32) -> (i32, i32) {
    %c0_i32 = arith.constant 0 : i32
    %c0_i32_0 = arith.constant 0 : i32
    return %c0_i32, %arg1 : i32, i32
  }
  func.func @transform_3(%arg0: i32, %arg1: i32, %arg2: i32) -> (i32, i32) {
    %c0_i32 = arith.constant 0 : i32
    return %arg0, %arg1 : i32, i32
  }
}

</mosaic_0001>

<llo_original>
// kernel: bart_decoder_forward.19
$region0: #{bart_decoder_forward.19}
  #allocation0 [shape = 'u32[]', space=smem, size = 0x4, offset = 0x4, fixed_abs, tag = 'smem constant byte address 0x4 - core index']
  #allocation1 [shape = 'u32[144,128]{1,0:T(1,128)}', space=vmem, size = 0x12000, scoped, tag = 'internal scratch']
  %s0 = inlined_call_operand.vmem [shape: f32[16,128], index: 0, kind: input, shape index: {}]
  %s1 = inlined_call_operand.vmem [shape: f32[1,128], index: 1, kind: input, shape index: {}]
  %s2 = inlined_call_operand.vmem [shape: f32[1,128], index: 2, kind: input, shape index: {}]
  %s3 = inlined_call_operand.vmem [shape: bf16[16,128], index: 3, kind: output, shape index: {}]
  %s4 = sld [smem:[#allocation0]]
  $region22: #{bart_decoder_forward.19} parent=0
    _
  %s6 = ssub.s32 1, %s4
  %s7 = scalar_select 0, %s6, %s4
  // Predicated region
  $region2: #{bart_decoder_forward.19} parent=0 // pred_check
    _
  $region3: #{bart_decoder_forward.19} parent=0 // pred_check_branch
    %9 = sbr.rel (0) target = $region5
  $region4: #{bart_decoder_forward.19} parent=0 // pred_region
    _
  $region5: #{bart_decoder_forward.19} parent=0 // pred_fallthru
    _
  // Predicated region
  $region6: #{bart_decoder_forward.19} parent=0 // pred_check
    _
  $region7: #{bart_decoder_forward.19} parent=0 // pred_check_branch
    %11 = sbr.rel (0) target = $region9
  $region8: #{bart_decoder_forward.19} parent=0 // pred_region
    _
  $region9: #{bart_decoder_forward.19} parent=0 // pred_fallthru
    _
  // Predicated region
  $region10: #{bart_decoder_forward.19} parent=0 // pred_check
    _
  $region11: #{bart_decoder_forward.19} parent=0 // pred_check_branch
    %13 = sbr.rel (0) target = $region13
  $region12: #{bart_decoder_forward.19} parent=0 // pred_region
    _
  $region13: #{bart_decoder_forward.19} parent=0 // pred_fallthru
    _
  %v14 = vld [vmem:[%s0] sm:$0xff]
  %v15 = vld [vmem:[%s0 + $0x8] sm:$0xff]
  %16 = vadd.xlane.f32.xlu0 %v14
  %v17 = vpop.xlane.xlu0 %16
  %18 = vadd.xlane.f32.xlu0 %v15
  %v19 = vpop.xlane.xlu0 %18
  %v20 = vrcp.pop 128.0
  %v21 = vmul.f32 %v17, %v20
  %v22 = vmul.f32 %v19, %v20
  %v23 = vsub.f32 %v14, %v21
  %v24 = vsub.f32 %v15, %v22
  %v25 = vmul.f32 %v23, %v23
  %v26 = vmul.f32 %v24, %v24
  %27 = vadd.xlane.f32.xlu0 %v25
  %v28 = vpop.xlane.xlu0 %27
  %29 = vadd.xlane.f32.xlu0 %v26
  %v30 = vpop.xlane.xlu0 %29
  %v31 = vmul.f32 %v28, %v20
  %v32 = vmul.f32 %v30, %v20
  %v33 = vadd.f32 %v31, 1e-05
  %v34 = vadd.f32 %v32, 1e-05
  %v35 = vrsqrt.pop %v33
  %v36 = vrsqrt.pop %v34
  %v37 = vmul.f32 %v23, %v35
  %v38 = vmul.f32 %v24, %v36
  %v39 = vld [vmem:[%s1] sm:$0x1]
  %v41 = vlaneseq
  %v42 = vshrl.u32 %v41, 7
  %v43 = vsub.s32 0, %v42
  %v44 = vrot.slane %v39, %v43
  %v46 = vmul.f32 %v37, %v44
  %v47 = vmul.f32 %v38, %v44
  %v48 = vld [vmem:[%s2] sm:$0x1]
  %v50 = vlaneseq
  %v51 = vshrl.u32 %v50, 7
  %v52 = vsub.s32 0, %v51
  %v53 = vrot.slane %v48, %v52
  %v55 = vadd.f32 %v46, %v53
  %v56 = vadd.f32 %v47, %v53
  %v57 = vpack.c.bf16 %v56, %v55
  %v59 = vunpack.c.l.b16 %v57
  %v60 = vunpack.c.h.b16 %v57
  %v61 = vpack.c.b16 %v59, %v59
  %v62 = vpack.c.b16 %v60, %v60
  %65 = vst [vmem:[%s3] sm:$0xf] %v61
  %66 = vst [vmem:[%s3 + $0x4] sm:$0xf] %v62
  // Predicated region
  $region14: #{bart_decoder_forward.19} parent=0 // pred_check
    _
  $region15: #{bart_decoder_forward.19} parent=0 // pred_check_branch
    %68 = sbr.rel (0) target = $region17
  $region16: #{bart_decoder_forward.19} parent=0 // pred_region
    _
  $region17: #{bart_decoder_forward.19} parent=0 // pred_fallthru
    _
  // Predicated region
  $region18: #{bart_decoder_forward.19} parent=0 // pred_check
    _
  $region19: #{bart_decoder_forward.19} parent=0 // pred_check_branch
    %70 = sbr.rel (0) target = $region21
  $region20: #{bart_decoder_forward.19} parent=0 // pred_region
    _
  $region21: #{bart_decoder_forward.19} parent=0 // pred_fallthru
    _

// kernel: bart_decoder_forward.20
$region0: #{bart_decoder_forward.20}
  #allocation0 [shape = 'u32[]', space=smem, size = 0x4, offset = 0x4, fixed_abs, tag = 'smem constant byte address 0x4 - core index']
  #allocation1 [shape = 'u32[144,128]{1,0:T(1,128)}', space=vmem, size = 0x12000, scoped, tag = 'internal scratch']
  #allocation2 [shape = 'f32[16,128]{1,0:T(8,128)}', space=vmem, size = 0x2000, scoped, tag = 'scratch operand']
  %s0 = inlined_call_operand.vmem [shape: bf16[16,128], index: 0, kind: input, shape index: {}]
  %s1 = inlined_call_operand.hbm [shape: bf16[128,384], index: 1, kind: input, shape index: {}]
  %s2 = inlined_call_operand.vmem [shape: f32[1,384], index: 2, kind: input, shape index: {}]
  %s3 = inlined_call_operand.vmem [shape: bf16[16,384], index: 3, kind: output, shape index: {}]
  %s4 = sld [smem:[#allocation0]]
  $region94: #{bart_decoder_forward.20} parent=0
    _
  %s6 = ssub.s32 1, %s4
  %s7 = scalar_select 0, %s6, %s4
  $region1: #{bart_decoder_forward.20} parent=0
    #allocation3 [shape = 'u8[65536]{0}', space=vmem, size = 0x10000, scoped, tag = 'input window, operand 1']
    #allocation4 [shape = 's32[2]{0}', space=sflag, size = 0x8, scoped, tag = 'scoped memory for bart_decoder_forward.20']
    #allocation5 [shape = 'u8[8192]{0}', space=vmem, size = 0x2000, scoped, tag = 'output window, operand 0']
    %8 = vsyncpa [#allocation4], 0
    %s9 = scalar_lea.sflag [#allocation4], 1
    %10 = vsyncpa %s9, 0
    loop: start=0, step=1, limit=5
    $region2: #{bart_decoder_forward.20} parent=1 // loop_pre_header
      _
    $region3: #{bart_decoder_forward.20} parent=1 // loop_header
      %s12 = sphi 0, %s16
      %p13 = scmp.ge.s32.totalorder %s12, 5
      %s19 = sphi 0, %s38
      %s20 = sphi 0, %s34
      %s21 = sphi 0, %s30
      %s22 = sphi 0, %s19
      %s23 = sphi 0, %s20
      %s24 = sphi 0, %s21
      %s25 = sphi 0, %s22
      %s26 = sphi 0, %s23
      %s27 = sphi 0, %s24
      %s43 = sphi 0, %s45
      %s46 = sphi 0, %s43
      %s47 = sphi 0, %s46
      %s63 = sphi 0, %s47
      %s71 = sphi 0, %s73
      %s74 = sphi 0, %s71
      %s75 = sphi 0, %s74
      %s91 = sphi 0, %s75
      %s97 = sphi 0, %s99
      %s100 = sphi 0, %s97
      %s101 = sphi 0, %s100
      %s117 = sphi 0, %s101
      %s125 = sphi 0, %s127
      %s128 = sphi 0, %s125
      %s129 = sphi 0, %s128
      %s145 = sphi 0, %s129
    $region4: #{bart_decoder_forward.20} parent=1 // loop_header_branch
      %15 = sbr.rel (%p13) target = $region8
    $region5: #{bart_decoder_forward.20} parent=1 // loop_body
      %s17 = ssub.s32 %s12, 1
      %s18 = ssub.s32 %s12, 2
      %s28 = sadd.s32 1, %s21
      %p29 = scmp.ge.s32.totalorder %s28, 1
      %s30 = scalar_select %p29, 0, %s28
      %s31 = sadd.s32 1, %s20
      %s32 = scalar_select %p29, %s31, %s20
      %p33 = scmp.ge.s32.totalorder %s32, 3
      %s34 = scalar_select %p33, 0, %s32
      %s35 = sadd.s32 1, %s19
      %s36 = scalar_select %p33, %s35, %s19
      %p37 = scmp.ge.s32.totalorder %s36, 1
      %s38 = scalar_select %p37, 0, %s36
      %s39 = ssub.s32 %s19, %s38
      %s40 = ssub.s32 %s21, %s30
      %s41 = sor.u32 %s39, %s40
      %p42 = scmp.eq.s32.totalorder %s41, 0
      %s44 = sadd.s32 %s43, 1
      %s45 = scalar_select %p42, %s43, %s44
      %p48 = pneg %p42
      %p49 = scmp.eq.s32.totalorder %s12, 2
      %p50 = por %p48, %p49
      %p51 = scmp.ne.s32.totalorder %s43, %s46
      %p52 = scmp.eq.s32.totalorder %s12, 0
      %p53 = por %p51, %p52
      %p54 = scmp.ne.s32.totalorder %s43, %s46
      %p55 = scmp.eq.s32.totalorder %s17, 2
      %p56 = por %p54, %p55
      %p57 = scmp.ne.s32.totalorder %s46, %s47
      %p58 = scmp.eq.s32.totalorder %s17, 0
      %p59 = por %p57, %p58
      %p60 = scmp.ne.s32.totalorder %s46, %s47
      %p61 = scmp.eq.s32.totalorder %s18, 2
      %p62 = por %p60, %p61
      %p64 = scmp.ne.s32.totalorder %s47, %s63
      %p65 = scmp.eq.s32.totalorder %s18, 0
      %p66 = por %p64, %p65
      %s67 = ssub.s32 %s21, %s30
      %s68 = ssub.s32 %s20, %s34
      %s69 = sor.u32 %s67, %s68
      %p70 = scmp.eq.s32.totalorder %s69, 0
      %s72 = sadd.s32 %s71, 1
      %s73 = scalar_select %p70, %s71, %s72
      %p76 = pneg %p70
      %p77 = scmp.eq.s32.totalorder %s12, 2
      %p78 = por %p76, %p77
      %p79 = scmp.ne.s32.totalorder %s71, %s74
      %p80 = scmp.eq.s32.totalorder %s12, 0
      %p81 = por %p79, %p80
      %p82 = scmp.ne.s32.totalorder %s71, %s74
      %p83 = scmp.eq.s32.totalorder %s17, 2
      %p84 = por %p82, %p83
      %p85 = scmp.ne.s32.totalorder %s74, %s75
      %p86 = scmp.eq.s32.totalorder %s17, 0
      %p87 = por %p85, %p86
      %p88 = scmp.ne.s32.totalorder %s74, %s75
      %p89 = scmp.eq.s32.totalorder %s18, 2
      %p90 = por %p88, %p89
      %p92 = scmp.ne.s32.totalorder %s75, %s91
      %p93 = scmp.eq.s32.totalorder %s18, 0
      %p94 = por %p92, %p93
      %s95 = ssub.s32 %s20, %s34
      %p96 = scmp.eq.s32.totalorder %s95, 0
      %s98 = sadd.s32 %s97, 1
      %s99 = scalar_select %p96, %s97, %s98
      %p102 = pneg %p96
      %p103 = scmp.eq.s32.totalorder %s12, 2
      %p104 = por %p102, %p103
      %p105 = scmp.ne.s32.totalorder %s97, %s100
      %p106 = scmp.eq.s32.totalorder %s12, 0
      %p107 = por %p105, %p106
      %p108 = scmp.ne.s32.totalorder %s97, %s100
      %p109 = scmp.eq.s32.totalorder %s17, 2
      %p110 = por %p108, %p109
      %p111 = scmp.ne.s32.totalorder %s100, %s101
      %p112 = scmp.eq.s32.totalorder %s17, 0
      %p113 = por %p111, %p112
      %p114 = scmp.ne.s32.totalorder %s100, %s101
      %p115 = scmp.eq.s32.totalorder %s18, 2
      %p116 = por %p114, %p115
      %p118 = scmp.ne.s32.totalorder %s101, %s117
      %p119 = scmp.eq.s32.totalorder %s18, 0
      %p120 = por %p118, %p119
      %s121 = ssub.s32 %s19, %s38
      %s122 = ssub.s32 %s20, %s34
      %s123 = sor.u32 %s121, %s122
      %p124 = scmp.eq.s32.totalorder %s123, 0
      %s126 = sadd.s32 %s125, 1
      %s127 = scalar_select %p124, %s125, %s126
      %p130 = pneg %p124
      %p131 = scmp.eq.s32.totalorder %s12, 2
      %p132 = por %p130, %p131
      %p133 = scmp.ne.s32.totalorder %s125, %s128
      %p134 = scmp.eq.s32.totalorder %s12, 0
      %p135 = por %p133, %p134
      %p136 = scmp.ne.s32.totalorder %s125, %s128
      %p137 = scmp.eq.s32.totalorder %s17, 2
      %p138 = por %p136, %p137
      %p139 = scmp.ne.s32.totalorder %s128, %s129
      %p140 = scmp.eq.s32.totalorder %s17, 0
      %p141 = por %p139, %p140
      %p142 = scmp.ne.s32.totalorder %s128, %s129
      %p143 = scmp.eq.s32.totalorder %s18, 2
      %p144 = por %p142, %p143
      %p146 = scmp.ne.s32.totalorder %s129, %s145
      %p147 = scmp.eq.s32.totalorder %s18, 0
      %p148 = por %p146, %p147
      %p149 = scmp.le.s32.totalorder 1, %s12
      %p150 = scmp.lt.s32.totalorder %s12, 4
      %p151 = pnand %p149, %p150
      %p152 = pneg %p151
      // Predicated region
      $region9: #{bart_decoder_forward.20} parent=5 // pred_check
        _
      $region10: #{bart_decoder_forward.20} parent=5 // pred_check_branch
        %154 = sbr.rel (%p151) target = $region12
      $region11: #{bart_decoder_forward.20} parent=5 // pred_region
        %s155 = ssub.s32 %s12, 1
        // Predicated region
        $region13: #{bart_decoder_forward.20} parent=11 // pred_check
          %p156 = pneg %p59
        $region14: #{bart_decoder_forward.20} parent=11 // pred_check_branch
          %158 = sbr.rel (%p156) target = $region16
        $region15: #{bart_decoder_forward.20} parent=11 // pred_region
          %s159 = smul.u32 2, %s22
          %p160 = scmp.lt.s32.totalorder %s159, 1
          %s161 = scalar_select %p160, %s159, 1
          %p162 = scmp.lt.s32.totalorder %s24, 0
          %s163 = scalar_select %p162, %s24, 0
          %s164 = sadd.s32 %s163, %s161
          %s165 = smul.addr %s164, 4
          %s166 = scalar_lea.vmem %s0, %s165
          %s167 = smul.u32 2, %s22
        $region16: #{bart_decoder_forward.20} parent=11 // pred_fallthru
          _
      $region12: #{bart_decoder_forward.20} parent=5 // pred_fallthru
        _
      %p168 = scmp.lt.s32.totalorder %s12, 3
      // Predicated region
      $region17: #{bart_decoder_forward.20} parent=5 // pred_check
        %p169 = pneg %p168
      $region18: #{bart_decoder_forward.20} parent=5 // pred_check_branch
        %171 = sbr.rel (%p169) target = $region20
      $region19: #{bart_decoder_forward.20} parent=5 // pred_region
        // Predicated region
        $region21: #{bart_decoder_forward.20} parent=19 // pred_check
          %p172 = pneg %p81
        $region22: #{bart_decoder_forward.20} parent=19 // pred_check_branch
          %174 = sbr.rel (%p172) target = $region24
        $region23: #{bart_decoder_forward.20} parent=19 // pred_region
          %s175 = sand.u32 %s71, 1
          %s176 = scalar_lea.sflag [#allocation4], %s175
          %s177 = sand.u32 %s71, 1
          %s178 = smul.addr %s177, 64
          %s179 = scalar_lea.vmem [#allocation3], %s178
          %s180 = smul.u32 16, %s21
          %s182 = ssub.s32 1024, 1024
          %183 = vsyncadd %s176, %s182
          %s184 = smul.addr %s180, 3
          %s185 = sadd.s32 %s20, %s184
          %s186 = smul.addr %s185, 64
          %s187 = scalar_lea.hbm %s1, %s186
          %s188 = sshll.u32 %s179, 4
          %s189 = int_to_ptr.vmem [resolvable:$true] %s188
          %194 = dma.hbm_to_vmem [thread:$0]  %s187, 1024, %s189, %s176, 192, 64, 4
        $region24: #{bart_decoder_forward.20} parent=19 // pred_fallthru
          _
        // Predicated region
        $region25: #{bart_decoder_forward.20} parent=19 // pred_check
          %p195 = pneg %p107
        $region26: #{bart_decoder_forward.20} parent=19 // pred_check_branch
          %197 = sbr.rel (%p195) target = $region28
        $region27: #{bart_decoder_forward.20} parent=19 // pred_region
          %p198 = scmp.lt.s32.totalorder %s20, 2
          %s199 = scalar_select %p198, %s20, 2
          %s200 = scalar_lea.vmem %s2, %s199
        $region28: #{bart_decoder_forward.20} parent=19 // pred_fallthru
          _
      $region20: #{bart_decoder_forward.20} parent=5 // pred_fallthru
        _
      %p201 = scmp.le.s32.totalorder 1, %s12
      %p202 = scmp.lt.s32.totalorder %s12, 4
      %p203 = pnand %p201, %p202
      %p204 = pneg %p203
      // Predicated region
      $region29: #{bart_decoder_forward.20} parent=5 // pred_check
        _
      $region30: #{bart_decoder_forward.20} parent=5 // pred_check_branch
        %206 = sbr.rel (%p203) target = $region32
      $region31: #{bart_decoder_forward.20} parent=5 // pred_region
        %s207 = ssub.s32 %s12, 1
        %s208 = sand.u32 %s74, 1
        %s209 = scalar_lea.sflag [#allocation4], %s208
        %s210 = sand.u32 %s74, 1
        %s211 = smul.addr %s210, 64
        %s212 = scalar_lea.vmem [#allocation3], %s211
        // Predicated region
        $region33: #{bart_decoder_forward.20} parent=31 // pred_check
          %p213 = pneg %p87
        $region34: #{bart_decoder_forward.20} parent=31 // pred_check_branch
          %215 = sbr.rel (%p213) target = $region36
        $region35: #{bart_decoder_forward.20} parent=31 // pred_region
          %216 = dma.done %s209, 1024
        $region36: #{bart_decoder_forward.20} parent=31 // pred_fallthru
          _
        %s217 = smul.u32 2, %s22
        %p218 = scmp.lt.s32.totalorder %s217, 1
        %s219 = scalar_select %p218, %s217, 1
        %p220 = scmp.lt.s32.totalorder %s24, 0
        %s221 = scalar_select %p220, %s24, 0
        %s222 = sadd.s32 %s221, %s219
        %s223 = smul.addr %s222, 4
        %s224 = scalar_lea.vmem %s0, %s223
        %p225 = pneg %p59
        %p226 = pneg %p56
        %s227 = sand.u32 %s74, 1
        %s228 = scalar_lea.sflag [#allocation4], %s227
        %s229 = sand.u32 %s74, 1
        %s230 = smul.addr %s229, 64
        %s231 = scalar_lea.vmem [#allocation3], %s230
        %p232 = pneg %p87
        %p233 = pneg %p84
        %p234 = scmp.lt.s32.totalorder %s23, 2
        %s235 = scalar_select %p234, %s23, 2
        %s236 = scalar_lea.vmem %s2, %s235
        %p237 = pneg %p113
        %p238 = pneg %p110
        %p239 = pneg %p141
        %p240 = pneg %p138
        %s241 = sand.u32 %s128, 1
        %s242 = sand.u32 %s128, 1
        %s243 = smul.addr %s242, 8
        %s244 = scalar_lea.vmem [#allocation5], %s243
        %s245 = smul.u32 2, %s22
        %p246 = scmp.lt.s32.totalorder %s245, 1
        %s247 = scalar_select %p246, %s245, 1
        %p248 = scmp.lt.s32.totalorder %s24, 0
        %s249 = scalar_select %p248, %s24, 0
        %s250 = sadd.s32 %s249, %s247
        %s251 = smul.addr %s250, 4
        %s252 = scalar_lea.vmem %s0, %s251
        %s253 = smul.u32 2, %s22
        %s254 = smul.u32 16, %s24
        %p255 = scmp.lt.s32.totalorder %s23, 2
        %s256 = scalar_select %p255, %s23, 2
        %s257 = scalar_lea.vmem %s2, %s256
        %s258 = smul.u32 2, %s22
        %p260 = scmp.eq.s32.totalorder %s24, 0
        // Predicated region
        $region37: #{bart_decoder_forward.20} parent=31 // pred_check
          %p261 = pneg %p260
        $region38: #{bart_decoder_forward.20} parent=31 // pred_check_branch
          %263 = sbr.rel (%p261) target = $region40
        $region39: #{bart_decoder_forward.20} parent=31 // pred_region
          %264 = vst [vmem:[#allocation2] sm:$0xff] 0.0
          %265 = vst [vmem:[#allocation2 + $0x8] sm:$0xff] 0.0
        $region40: #{bart_decoder_forward.20} parent=31 // pred_fallthru
          _
        %v266 = vld [vmem:[#allocation2] sm:$0xff]
        %v267 = vld [vmem:[#allocation2 + $0x8] sm:$0xff]
        %v268 = vld [vmem:[%s252] sm:$0xf]
        %v269 = vld [vmem:[%s252 + $0x4] sm:$0xf]
        %v270 = vld [vmem:[%s212] sm:$0xf]
        %v271 = vld [vmem:[%s212 + $0x4] sm:$0xf]
        %v272 = vld [vmem:[%s212 + $0x8] sm:$0xf]
        %v273 = vld [vmem:[%s212 + $0xc] sm:$0xf]
        %v274 = vld [vmem:[%s212 + $0x10] sm:$0xf]
        %v275 = vld [vmem:[%s212 + $0x14] sm:$0xf]
        %v276 = vld [vmem:[%s212 + $0x18] sm:$0xf]
        %v277 = vld [vmem:[%s212 + $0x1c] sm:$0xf]
        %v278 = vld [vmem:[%s212 + $0x20] sm:$0xf]
        %v279 = vld [vmem:[%s212 + $0x24] sm:$0xf]
        %v280 = vld [vmem:[%s212 + $0x28] sm:$0xf]
        %v281 = vld [vmem:[%s212 + $0x2c] sm:$0xf]
        %v282 = vld [vmem:[%s212 + $0x30] sm:$0xf]
        %v283 = vld [vmem:[%s212 + $0x34] sm:$0xf]
        %v284 = vld [vmem:[%s212 + $0x38] sm:$0xf]
        %v285 = vld [vmem:[%s212 + $0x3c] sm:$0xf]
        %v288 = vunpack.c.l.b16 %v268
        %v289 = vunpack.c.l.b16 %v269
        %v290 = vpack.c.b16 %v289, %v288
        %v308 = vunpack.c.l.b16 %v270
        %v309 = vunpack.c.l.b16 %v271
        %v310 = vunpack.c.l.b16 %v272
        %v311 = vunpack.c.l.b16 %v273
        %v312 = vunpack.c.l.b16 %v274
        %v313 = vunpack.c.l.b16 %v275
        %v314 = vunpack.c.l.b16 %v276
        %v315 = vunpack.c.l.b16 %v277
        %v316 = vunpack.c.l.b16 %v278
        %v317 = vunpack.c.l.b16 %v279
        %v318 = vunpack.c.l.b16 %v280
        %v319 = vunpack.c.l.b16 %v281
        %v320 = vunpack.c.l.b16 %v282
        %v321 = vunpack.c.l.b16 %v283
        %v322 = vunpack.c.l.b16 %v284
        %v323 = vunpack.c.l.b16 %v285
        %v324 = vpack.c.b16 %v309, %v308
        %v325 = vpack.c.b16 %v311, %v310
        %v326 = vpack.c.b16 %v313, %v312
        %v327 = vpack.c.b16 %v315, %v314
        %v328 = vpack.c.b16 %v317, %v316
        %v329 = vpack.c.b16 %v319, %v318
        %v330 = vpack.c.b16 %v321, %v320
        %v331 = vpack.c.b16 %v323, %v322
        %340 = vmatprep.subr.bf16.mxu0 0
        %341 = vmatpush1.bf16.msra.mxu0 %v324
        %342 = vmatprep.subr.bf16.mxu0 0
        %343 = vmatpush1.bf16.msra.mxu0 %v325
        %344 = vmatprep.subr.bf16.mxu0 0
        %345 = vmatpush1.bf16.msra.mxu0 %v326
        %346 = vmatprep.subr.bf16.mxu0 0
        %347 = vmatpush1.bf16.msra.mxu0 %v327
        %348 = vmatprep.subr.bf16.mxu0 0
        %349 = vmatpush1.bf16.msra.mxu0 %v328
        %350 = vmatprep.subr.bf16.mxu0 0
        %351 = vmatpush1.bf16.msra.mxu0 %v329
        %352 = vmatprep.subr.bf16.mxu0 0
        %353 = vmatpush1.bf16.msra.mxu0 %v330
        %354 = vmatprep.subr.bf16.mxu0 0
        %355 = vmatpush1.bf16.msra.mxu0 %v331
        %356 = vmatprep.subr.bf16.mxu0 0
        %357 = vmatpush1.bf16.msra.mxu0 0
        %358 = vmatprep.subr.bf16.mxu0 0
        %359 = vmatpush1.bf16.msra.mxu0 0
        %360 = vmatprep.subr.bf16.mxu0 0
        %361 = vmatpush1.bf16.msra.mxu0 0
        %362 = vmatprep.subr.bf16.mxu0 0
        %363 = vmatpush1.bf16.msra.mxu0 0
        %364 = vmatprep.subr.bf16.mxu0 0
        %365 = vmatpush1.bf16.msra.mxu0 0
        %366 = vmatprep.subr.bf16.mxu0 0
        %367 = vmatpush1.bf16.msra.mxu0 0
        %368 = vmatprep.subr.bf16.mxu0 0
        %369 = vmatpush1.bf16.msra.mxu0 0
        %370 = vmatprep.subr.bf16.mxu0 0
        %371 = vmatpush1.bf16.msra.mxu0 0
        %372 = vmatprep.mubr.bf16.mxu0 0
        %373 = vmatmul.mubr.bf16.gmra.mrb[0].mxu0 %v290
        %v374 = vpop.f32.mrb[0].mxu0
        %v375 = vadd.f32 0.0, %v374
        %v376 = vpop.f32.mrb[0].mxu0
        %v377 = vpop.f32.mrb[0].mxu0
        %v378 = vadd.f32 0.0, %v377
        %v379 = vpop.f32.mrb[0].mxu0
        %380 = vdwg.mxu0
        %v381 = vadd.f32 %v266, %v375
        %v382 = vadd.f32 %v267, %v378
        %383 = vst [vmem:[#allocation2] sm:$0xff] %v381
        %384 = vst [vmem:[#allocation2 + $0x8] sm:$0xff] %v382
        // Predicated region
        $region41: #{bart_decoder_forward.20} parent=31 // pred_check
          %p385 = pneg %p260
        $region42: #{bart_decoder_forward.20} parent=31 // pred_check_branch
          %387 = sbr.rel (%p385) target = $region44
        $region43: #{bart_decoder_forward.20} parent=31 // pred_region
          %v388 = vld [vmem:[#allocation2] sm:$0xff]
          %v389 = vld [vmem:[#allocation2 + $0x8] sm:$0xff]
          %v390 = vld [vmem:[%s257] sm:$0x1]
          %v392 = vlaneseq
          %v393 = vshrl.u32 %v392, 7
          %v394 = vsub.s32 0, %v393
          %v395 = vrot.slane %v390, %v394
          %v397 = vadd.f32 %v388, %v395
          %v398 = vadd.f32 %v389, %v395
          %v399 = vpack.c.bf16 %v398, %v397
          %v401 = vunpack.c.l.b16 %v399
          %v402 = vunpack.c.h.b16 %v399
          %v403 = vpack.c.b16 %v401, %v401
          %v404 = vpack.c.b16 %v402, %v402
          %407 = vst [vmem:[%s244] sm:$0xf] %v403
          %408 = vst [vmem:[%s244 + $0x4] sm:$0xf] %v404
        $region44: #{bart_decoder_forward.20} parent=31 // pred_fallthru
          _
        %s409 = sand.u32 %s128, 1
        %s410 = sand.u32 %s128, 1
        %s411 = smul.addr %s410, 8
        %s412 = scalar_lea.vmem [#allocation5], %s411
        // Predicated region
        $region45: #{bart_decoder_forward.20} parent=31 // pred_check
          %p413 = pneg %p138
        $region46: #{bart_decoder_forward.20} parent=31 // pred_check_branch
          %415 = sbr.rel (%p413) target = $region48
        $region47: #{bart_decoder_forward.20} parent=31 // pred_region
          %s416 = smul.u32 2, %s22
          %s417 = smul.addr %s416, 3
          %s418 = sadd.s32 %s23, %s417
          %s419 = smul.addr %s418, 4
          %s420 = scalar_lea.vmem %s3, %s419
          // Predicated region
          $region49: #{bart_decoder_forward.20} parent=47 // pred_check
            _
          $region50: #{bart_decoder_forward.20} parent=47 // pred_check_branch
            %422 = sbr.rel (0) target = $region52
          $region51: #{bart_decoder_forward.20} parent=47 // pred_region
            // Predicated region
            $region53: #{bart_decoder_forward.20} parent=51 // pred_check
              _
            $region54: #{bart_decoder_forward.20} parent=51 // pred_check_branch
              %424 = sbr.rel target = $region56
            $region55: #{bart_decoder_forward.20} parent=51 // pred_region
              // Predicated region
              $region68: #{bart_decoder_forward.20} parent=55 // pred_check
                _
              $region69: #{bart_decoder_forward.20} parent=55 // pred_check_branch
                %441 = sbr.rel (0) target = $region71
              $region70: #{bart_decoder_forward.20} parent=55 // pred_region
                loop: start=0, step=1, limit=1
                $region72: #{bart_decoder_forward.20} parent=70 // loop_pre_header
                  _
                $region73: #{bart_decoder_forward.20} parent=70 // loop_header
                  %s443 = sphi 0, %s447
                  %p444 = scmp.ge.s32.totalorder %s443, 1
                  %s448 = sphi %s412, %s412
                  %s449 = sphi %s420, %s420
                $region74: #{bart_decoder_forward.20} parent=70 // loop_header_branch
                  %446 = sbr.rel (%p444) target = $region78
                $region75: #{bart_decoder_forward.20} parent=70 // loop_body
                  _
                $region76: #{bart_decoder_forward.20} parent=70 // loop_footer
                  %s447 = sadd.s32 1, %s443
                $region77: #{bart_decoder_forward.20} parent=70 // loop_footer_branch
                  %442 = sbr.rel target = $region73
                $region78: #{bart_decoder_forward.20} parent=70 // loop_exit
                  _
                loop: start=0, step=1, limit=1
                $region79: #{bart_decoder_forward.20} parent=70 // loop_pre_header
                  _
                $region80: #{bart_decoder_forward.20} parent=70 // loop_header
                  %s452 = sphi 0, %s456
                  %p453 = scmp.ge.s32.totalorder %s452, 1
                  %s457 = sphi %s412, %s412
                  %s458 = sphi %s420, %s420
                $region81: #{bart_decoder_forward.20} parent=70 // loop_header_branch
                  %455 = sbr.rel (%p453) target = $region85
                $region82: #{bart_decoder_forward.20} parent=70 // loop_body
                  %v459 = vld [vmem:[%s457] sm:$0xf]
                  %460 = vst [vmem:[%s458] sm:$0xf] %v459
                  %v461 = vld [vmem:[%s457 + $0x4] sm:$0xf]
                  %462 = vst [vmem:[%s458 + $0xc] sm:$0xf] %v461
                $region83: #{bart_decoder_forward.20} parent=70 // loop_footer
                  %s456 = sadd.s32 1, %s452
                $region84: #{bart_decoder_forward.20} parent=70 // loop_footer_branch
                  %451 = sbr.rel target = $region80
                $region85: #{bart_decoder_forward.20} parent=70 // loop_exit
                  _
              $region71: #{bart_decoder_forward.20} parent=55 // pred_fallthru
                _
            $region56: #{bart_decoder_forward.20} parent=51 // pred_fallthru
              _
            // Predicated region
            $region57: #{bart_decoder_forward.20} parent=51 // pred_check
              _
            $region58: #{bart_decoder_forward.20} parent=51 // pred_check_branch
              %426 = sbr.rel (0) target = $region60
            $region59: #{bart_decoder_forward.20} parent=51 // pred_region
              loop: start=0, step=1, limit=1
              $region61: #{bart_decoder_forward.20} parent=59 // loop_pre_header
                _
              $region62: #{bart_decoder_forward.20} parent=59 // loop_header
                %s429 = sphi 0, %s433
                %p430 = scmp.ge.s32.totalorder %s429, 1
                %s434 = sphi %s412, %s412
                %s435 = sphi %s420, %s420
              $region63: #{bart_decoder_forward.20} parent=59 // loop_header_branch
                %432 = sbr.rel (%p430) target = $region67
              $region64: #{bart_decoder_forward.20} parent=59 // loop_body
                %v436 = vld [vmem:[%s434] sm:$0xf]
                %437 = vst [vmem:[%s435] sm:$0xf] %v436
                %v438 = vld [vmem:[%s434 + $0x4] sm:$0xf]
                %439 = vst [vmem:[%s435 + $0xc] sm:$0xf] %v438
              $region65: #{bart_decoder_forward.20} parent=59 // loop_footer
                %s433 = sadd.s32 1, %s429
              $region66: #{bart_decoder_forward.20} parent=59 // loop_footer_branch
                %428 = sbr.rel target = $region62
              $region67: #{bart_decoder_forward.20} parent=59 // loop_exit
                _
            $region60: #{bart_decoder_forward.20} parent=51 // pred_fallthru
              _
          $region52: #{bart_decoder_forward.20} parent=47 // pred_fallthru
            _
          %463 = vnop
        $region48: #{bart_decoder_forward.20} parent=31 // pred_fallthru
          _
      $region32: #{bart_decoder_forward.20} parent=5 // pred_fallthru
        _
      %p464 = scmp.le.s32.totalorder 2, %s12
      // Predicated region
      $region86: #{bart_decoder_forward.20} parent=5 // pred_check
        %p465 = pneg %p464
      $region87: #{bart_decoder_forward.20} parent=5 // pred_check_branch
        %467 = sbr.rel (%p465) target = $region89
      $region88: #{bart_decoder_forward.20} parent=5 // pred_region
        %s468 = ssub.s32 %s12, 2
        // Predicated region
        $region90: #{bart_decoder_forward.20} parent=88 // pred_check
          %p469 = pneg %p144
        $region91: #{bart_decoder_forward.20} parent=88 // pred_check_branch
          %471 = sbr.rel (%p469) target = $region93
        $region92: #{bart_decoder_forward.20} parent=88 // pred_region
          %s472 = sand.u32 %s129, 1
          %s473 = sand.u32 %s129, 1
          %s474 = smul.addr %s473, 8
          %s475 = scalar_lea.vmem [#allocation5], %s474
        $region93: #{bart_decoder_forward.20} parent=88 // pred_fallthru
          _
      $region89: #{bart_decoder_forward.20} parent=5 // pred_fallthru
        _
    $region6: #{bart_decoder_forward.20} parent=1 // loop_footer
      %s16 = sadd.s32 1, %s12
    $region7: #{bart_decoder_forward.20} parent=1 // loop_footer_branch
      %11 = sbr.rel target = $region3
    $region8: #{bart_decoder_forward.20} parent=1 // loop_exit
      _
    %476 = vsyncpa [#allocation4], 1
    %s477 = scalar_lea.sflag [#allocation4], 1
    %478 = vsyncpa %s477, 1

// kernel: bart_decoder_forward.21
$region0: #{bart_decoder_forward.21}
  #allocation0 [shape = 'u32[]', space=smem, size = 0x4, offset = 0x4, fixed_abs, tag = 'smem constant byte address 0x4 - core index']
  #allocation1 [shape = 'u32[144,128]{1,0:T(1,128)}', space=vmem, size = 0x12000, scoped, tag = 'internal scratch']
  #allocation2 [shape = 'f32[4,8,1]{2,1,0:T(8,128)}', space=vmem, size = 0x4000, scoped, tag = 'scratch operand']
  #allocation3 [shape = 'f32[4,8,1]{2,1,0:T(8,128)}', space=vmem, size = 0x4000, scoped, tag = 'scratch operand']
  #allocation4 [shape = 'f32[4,8,32]{2,1,0:T(8,128)}', space=vmem, size = 0x4000, scoped, tag = 'scratch operand']
  %s0 = inlined_call_operand.vmem [shape: bf16[2,8,384], index: 0, kind: input, shape index: {}, may-alias: {0,1,2}]
  %s1 = inlined_call_operand.vmem [shape: bf16[2,8,384], index: 1, kind: input, shape index: {}, may-alias: {0,1,2}]
  %s2 = inlined_call_operand.vmem [shape: bf16[2,8,384], index: 2, kind: input, shape index: {}, may-alias: {0,1,2}]
  %s3 = inlined_call_operand.vmem [shape: f32[2,1,8], index: 3, kind: input, shape index: {}]
  %s4 = inlined_call_operand.vmem [shape: bf16[2,8,128], index: 4, kind: output, shape index: {}]
  %s5 = sld [smem:[#allocation0]]
  $region61: #{bart_decoder_forward.21} parent=0
    _
  %s7 = ssub.s32 1, %s5
  %s8 = scalar_select 0, %s7, %s5
  loop: start=0, step=1, limit=4
  $region2: #{bart_decoder_forward.21} parent=0 // loop_pre_header
    _
  $region3: #{bart_decoder_forward.21} parent=0 // loop_header
    %s10 = sphi 0, %s14
    %p11 = scmp.ge.s32.totalorder %s10, 4
    %s17 = sphi 0, %s43
    %s18 = sphi 0, %s39
    %s19 = sphi 0, %s35
    %s20 = sphi 0, %s31
    %s21 = sphi 0, %s17
    %s22 = sphi 0, %s18
    %s23 = sphi 0, %s19
    %s24 = sphi 0, %s20
    %s25 = sphi 0, %s21
    %s26 = sphi 0, %s22
    %s27 = sphi 0, %s23
    %s28 = sphi 0, %s24
    %s50 = sphi 0, %s52
    %s53 = sphi 0, %s50
    %s54 = sphi 0, %s53
    %s70 = sphi 0, %s54
    %s82 = sphi 0, %s84
    %s85 = sphi 0, %s82
    %s86 = sphi 0, %s85
    %s102 = sphi 0, %s86
    %s114 = sphi 0, %s116
    %s117 = sphi 0, %s114
    %s118 = sphi 0, %s117
    %s134 = sphi 0, %s118
    %s142 = sphi 0, %s144
    %s145 = sphi 0, %s142
    %s146 = sphi 0, %s145
    %s162 = sphi 0, %s146
    %s172 = sphi 0, %s174
    %s175 = sphi 0, %s172
    %s176 = sphi 0, %s175
    %s192 = sphi 0, %s176
  $region4: #{bart_decoder_forward.21} parent=0 // loop_header_branch
    %13 = sbr.rel (%p11) target = $region8
  $region5: #{bart_decoder_forward.21} parent=0 // loop_body
    %s15 = ssub.s32 %s10, 1
    %s16 = ssub.s32 %s10, 2
    %s29 = sadd.s32 1, %s20
    %p30 = scmp.ge.s32.totalorder %s29, 1
    %s31 = scalar_select %p30, 0, %s29
    %s32 = sadd.s32 1, %s19
    %s33 = scalar_select %p30, %s32, %s19
    %p34 = scmp.ge.s32.totalorder %s33, 1
    %s35 = scalar_select %p34, 0, %s33
    %s36 = sadd.s32 1, %s18
    %s37 = scalar_select %p34, %s36, %s18
    %p38 = scmp.ge.s32.totalorder %s37, 1
    %s39 = scalar_select %p38, 0, %s37
    %s40 = sadd.s32 1, %s17
    %s41 = scalar_select %p38, %s40, %s17
    %p42 = scmp.ge.s32.totalorder %s41, 2
    %s43 = scalar_select %p42, 0, %s41
    %s44 = ssub.s32 %s17, %s43
    %s45 = ssub.s32 %s19, %s35
    %s46 = sor.u32 %s44, %s45
    %s47 = ssub.s32 %s18, %s39
    %s48 = sor.u32 %s46, %s47
    %p49 = scmp.eq.s32.totalorder %s48, 0
    %s51 = sadd.s32 %s50, 1
    %s52 = scalar_select %p49, %s50, %s51
    %p55 = pneg %p49
    %p56 = scmp.eq.s32.totalorder %s10, 1
    %p57 = por %p55, %p56
    %p58 = scmp.ne.s32.totalorder %s50, %s53
    %p59 = scmp.eq.s32.totalorder %s10, 0
    %p60 = por %p58, %p59
    %p61 = scmp.ne.s32.totalorder %s50, %s53
    %p62 = scmp.eq.s32.totalorder %s15, 1
    %p63 = por %p61, %p62
    %p64 = scmp.ne.s32.totalorder %s53, %s54
    %p65 = scmp.eq.s32.totalorder %s15, 0
    %p66 = por %p64, %p65
    %p67 = scmp.ne.s32.totalorder %s53, %s54
    %p68 = scmp.eq.s32.totalorder %s16, 1
    %p69 = por %p67, %p68
    %p71 = scmp.ne.s32.totalorder %s54, %s70
    %p72 = scmp.eq.s32.totalorder %s16, 0
    %p73 = por %p71, %p72
    %s74 = sadd.s32 %s18, 1
    %s75 = sadd.s32 %s39, 1
    %s76 = ssub.s32 %s17, %s43
    %s77 = ssub.s32 %s20, %s31
    %s78 = sor.u32 %s76, %s77
    %s79 = ssub.s32 %s74, %s75
    %s80 = sor.u32 %s78, %s79
    %p81 = scmp.eq.s32.totalorder %s80, 0
    %s83 = sadd.s32 %s82, 1
    %s84 = scalar_select %p81, %s82, %s83
    %p87 = pneg %p81
    %p88 = scmp.eq.s32.totalorder %s10, 1
    %p89 = por %p87, %p88
    %p90 = scmp.ne.s32.totalorder %s82, %s85
    %p91 = scmp.eq.s32.totalorder %s10, 0
    %p92 = por %p90, %p91
    %p93 = scmp.ne.s32.totalorder %s82, %s85
    %p94 = scmp.eq.s32.totalorder %s15, 1
    %p95 = por %p93, %p94
    %p96 = scmp.ne.s32.totalorder %s85, %s86
    %p97 = scmp.eq.s32.totalorder %s15, 0
    %p98 = por %p96, %p97
    %p99 = scmp.ne.s32.totalorder %s85, %s86
    %p100 = scmp.eq.s32.totalorder %s16, 1
    %p101 = por %p99, %p100
    %p103 = scmp.ne.s32.totalorder %s86, %s102
    %p104 = scmp.eq.s32.totalorder %s16, 0
    %p105 = por %p103, %p104
    %s106 = sadd.s32 %s18, 2
    %s107 = sadd.s32 %s39, 2
    %s108 = ssub.s32 %s17, %s43
    %s109 = ssub.s32 %s20, %s31
    %s110 = sor.u32 %s108, %s109
    %s111 = ssub.s32 %s106, %s107
    %s112 = sor.u32 %s110, %s111
    %p113 = scmp.eq.s32.totalorder %s112, 0
    %s115 = sadd.s32 %s114, 1
    %s116 = scalar_select %p113, %s114, %s115
    %p119 = pneg %p113
    %p120 = scmp.eq.s32.totalorder %s10, 1
    %p121 = por %p119, %p120
    %p122 = scmp.ne.s32.totalorder %s114, %s117
    %p123 = scmp.eq.s32.totalorder %s10, 0
    %p124 = por %p122, %p123
    %p125 = scmp.ne.s32.totalorder %s114, %s117
    %p126 = scmp.eq.s32.totalorder %s15, 1
    %p127 = por %p125, %p126
    %p128 = scmp.ne.s32.totalorder %s117, %s118
    %p129 = scmp.eq.s32.totalorder %s15, 0
    %p130 = por %p128, %p129
    %p131 = scmp.ne.s32.totalorder %s117, %s118
    %p132 = scmp.eq.s32.totalorder %s16, 1
    %p133 = por %p131, %p132
    %p135 = scmp.ne.s32.totalorder %s118, %s134
    %p136 = scmp.eq.s32.totalorder %s16, 0
    %p137 = por %p135, %p136
    %s138 = ssub.s32 %s17, %s43
    %s139 = ssub.s32 %s20, %s31
    %s140 = sor.u32 %s138, %s139
    %p141 = scmp.eq.s32.totalorder %s140, 0
    %s143 = sadd.s32 %s142, 1
    %s144 = scalar_select %p141, %s142, %s143
    %p147 = pneg %p141
    %p148 = scmp.eq.s32.totalorder %s10, 1
    %p149 = por %p147, %p148
    %p150 = scmp.ne.s32.totalorder %s142, %s145
    %p151 = scmp.eq.s32.totalorder %s10, 0
    %p152 = por %p150, %p151
    %p153 = scmp.ne.s32.totalorder %s142, %s145
    %p154 = scmp.eq.s32.totalorder %s15, 1
    %p155 = por %p153, %p154
    %p156 = scmp.ne.s32.totalorder %s145, %s146
    %p157 = scmp.eq.s32.totalorder %s15, 0
    %p158 = por %p156, %p157
    %p159 = scmp.ne.s32.totalorder %s145, %s146
    %p160 = scmp.eq.s32.totalorder %s16, 1
    %p161 = por %p159, %p160
    %p163 = scmp.ne.s32.totalorder %s146, %s162
    %p164 = scmp.eq.s32.totalorder %s16, 0
    %p165 = por %p163, %p164
    %s166 = ssub.s32 %s17, %s43
    %s167 = ssub.s32 %s19, %s35
    %s168 = sor.u32 %s166, %s167
    %s169 = ssub.s32 %s18, %s39
    %s170 = sor.u32 %s168, %s169
    %p171 = scmp.eq.s32.totalorder %s170, 0
    %s173 = sadd.s32 %s172, 1
    %s174 = scalar_select %p171, %s172, %s173
    %p177 = pneg %p171
    %p178 = scmp.eq.s32.totalorder %s10, 1
    %p179 = por %p177, %p178
    %p180 = scmp.ne.s32.totalorder %s172, %s175
    %p181 = scmp.eq.s32.totalorder %s10, 0
    %p182 = por %p180, %p181
    %p183 = scmp.ne.s32.totalorder %s172, %s175
    %p184 = scmp.eq.s32.totalorder %s15, 1
    %p185 = por %p183, %p184
    %p186 = scmp.ne.s32.totalorder %s175, %s176
    %p187 = scmp.eq.s32.totalorder %s15, 0
    %p188 = por %p186, %p187
    %p189 = scmp.ne.s32.totalorder %s175, %s176
    %p190 = scmp.eq.s32.totalorder %s16, 1
    %p191 = por %p189, %p190
    %p193 = scmp.ne.s32.totalorder %s176, %s192
    %p194 = scmp.eq.s32.totalorder %s16, 0
    %p195 = por %p193, %p194
    %p196 = scmp.le.s32.totalorder 1, %s10
    %p197 = scmp.lt.s32.totalorder %s10, 3
    %p198 = pnand %p196, %p197
    %p199 = pneg %p198
    // Predicated region
    $region9: #{bart_decoder_forward.21} parent=5 // pred_check
      _
    $region10: #{bart_decoder_forward.21} parent=5 // pred_check_branch
      %201 = sbr.rel (%p198) target = $region12
    $region11: #{bart_decoder_forward.21} parent=5 // pred_region
      %s202 = ssub.s32 %s10, 1
    $region12: #{bart_decoder_forward.21} parent=5 // pred_fallthru
      _
    %p203 = scmp.lt.s32.totalorder %s10, 2
    // Predicated region
    $region13: #{bart_decoder_forward.21} parent=5 // pred_check
      %p204 = pneg %p203
    $region14: #{bart_decoder_forward.21} parent=5 // pred_check_branch
      %206 = sbr.rel (%p204) target = $region16
    $region15: #{bart_decoder_forward.21} parent=5 // pred_region
      // Predicated region
      $region17: #{bart_decoder_forward.21} parent=15 // pred_check
        %p207 = pneg %p60
      $region18: #{bart_decoder_forward.21} parent=15 // pred_check_branch
        %209 = sbr.rel (%p207) target = $region20
      $region19: #{bart_decoder_forward.21} parent=15 // pred_region
        %p210 = scmp.lt.s32.totalorder %s17, 1
        %s211 = scalar_select %p210, %s17, 1
        %p212 = scmp.lt.s32.totalorder %s19, 0
        %s213 = scalar_select %p212, %s19, 0
        %p214 = scmp.lt.s32.totalorder %s18, 2
        %s215 = scalar_select %p214, %s18, 2
        %s216 = smul.addr %s213, 3
        %s217 = sadd.s32 %s215, %s216
        %s218 = smul.addr %s211, 3
        %s219 = sadd.s32 %s217, %s218
        %s220 = smul.addr %s219, 4
        %s221 = scalar_lea.vmem %s0, %s220
      $region20: #{bart_decoder_forward.21} parent=15 // pred_fallthru
        _
      // Predicated region
      $region21: #{bart_decoder_forward.21} parent=15 // pred_check
        %p222 = pneg %p92
      $region22: #{bart_decoder_forward.21} parent=15 // pred_check_branch
        %224 = sbr.rel (%p222) target = $region24
      $region23: #{bart_decoder_forward.21} parent=15 // pred_region
        %s225 = sadd.s32 %s18, 1
        %p226 = scmp.lt.s32.totalorder %s17, 1
        %s227 = scalar_select %p226, %s17, 1
        %p228 = scmp.lt.s32.totalorder %s20, 0
        %s229 = scalar_select %p228, %s20, 0
        %p230 = scmp.lt.s32.totalorder %s225, 2
        %s231 = scalar_select %p230, %s225, 2
        %s232 = smul.addr %s229, 3
        %s233 = sadd.s32 %s231, %s232
        %s234 = smul.addr %s227, 3
        %s235 = sadd.s32 %s233, %s234
        %s236 = smul.addr %s235, 4
        %s237 = scalar_lea.vmem %s1, %s236
        %s238 = sadd.s32 %s18, 1
      $region24: #{bart_decoder_forward.21} parent=15 // pred_fallthru
        _
      // Predicated region
      $region25: #{bart_decoder_forward.21} parent=15 // pred_check
        %p239 = pneg %p124
      $region26: #{bart_decoder_forward.21} parent=15 // pred_check_branch
        %241 = sbr.rel (%p239) target = $region28
      $region27: #{bart_decoder_forward.21} parent=15 // pred_region
        %s242 = sadd.s32 %s18, 2
        %p243 = scmp.lt.s32.totalorder %s17, 1
        %s244 = scalar_select %p243, %s17, 1
        %p245 = scmp.lt.s32.totalorder %s20, 0
        %s246 = scalar_select %p245, %s20, 0
        %p247 = scmp.lt.s32.totalorder %s242, 2
        %s248 = scalar_select %p247, %s242, 2
        %s249 = smul.addr %s246, 3
        %s250 = sadd.s32 %s248, %s249
        %s251 = smul.addr %s244, 3
        %s252 = sadd.s32 %s250, %s251
        %s253 = smul.addr %s252, 4
        %s254 = scalar_lea.vmem %s2, %s253
        %s255 = sadd.s32 %s18, 2
      $region28: #{bart_decoder_forward.21} parent=15 // pred_fallthru
        _
      // Predicated region
      $region29: #{bart_decoder_forward.21} parent=15 // pred_check
        %p256 = pneg %p152
      $region30: #{bart_decoder_forward.21} parent=15 // pred_check_branch
        %258 = sbr.rel (%p256) target = $region32
      $region31: #{bart_decoder_forward.21} parent=15 // pred_region
        %p259 = scmp.lt.s32.totalorder %s17, 1
        %s260 = scalar_select %p259, %s17, 1
        %p261 = scmp.lt.s32.totalorder %s20, 0
        %s262 = scalar_select %p261, %s20, 0
        %s263 = sadd.s32 %s262, %s260
        %s264 = scalar_lea.vmem %s3, %s263
      $region32: #{bart_decoder_forward.21} parent=15 // pred_fallthru
        _
    $region16: #{bart_decoder_forward.21} parent=5 // pred_fallthru
      _
    %p265 = scmp.le.s32.totalorder 1, %s10
    %p266 = scmp.lt.s32.totalorder %s10, 3
    %p267 = pnand %p265, %p266
    %p268 = pneg %p267
    // Predicated region
    $region33: #{bart_decoder_forward.21} parent=5 // pred_check
      _
    $region34: #{bart_decoder_forward.21} parent=5 // pred_check_branch
      %270 = sbr.rel (%p267) target = $region36
    $region35: #{bart_decoder_forward.21} parent=5 // pred_region
      %s271 = ssub.s32 %s10, 1
      %p272 = scmp.lt.s32.totalorder %s21, 1
      %s273 = scalar_select %p272, %s21, 1
      %p274 = scmp.lt.s32.totalorder %s23, 0
      %s275 = scalar_select %p274, %s23, 0
      %p276 = scmp.lt.s32.totalorder %s22, 2
      %s277 = scalar_select %p276, %s22, 2
      %s278 = smul.addr %s275, 3
      %s279 = sadd.s32 %s277, %s278
      %s280 = smul.addr %s273, 3
      %s281 = sadd.s32 %s279, %s280
      %s282 = smul.addr %s281, 4
      %s283 = scalar_lea.vmem %s0, %s282
      %p284 = pneg %p66
      %p285 = pneg %p63
      %s286 = sadd.s32 %s22, 1
      %p287 = scmp.lt.s32.totalorder %s21, 1
      %s288 = scalar_select %p287, %s21, 1
      %p289 = scmp.lt.s32.totalorder %s24, 0
      %s290 = scalar_select %p289, %s24, 0
      %p291 = scmp.lt.s32.totalorder %s286, 2
      %s292 = scalar_select %p291, %s286, 2
      %s293 = smul.addr %s290, 3
      %s294 = sadd.s32 %s292, %s293
      %s295 = smul.addr %s288, 3
      %s296 = sadd.s32 %s294, %s295
      %s297 = smul.addr %s296, 4
      %s298 = scalar_lea.vmem %s1, %s297
      %p299 = pneg %p98
      %p300 = pneg %p95
      %s301 = sadd.s32 %s22, 2
      %p302 = scmp.lt.s32.totalorder %s21, 1
      %s303 = scalar_select %p302, %s21, 1
      %p304 = scmp.lt.s32.totalorder %s24, 0
      %s305 = scalar_select %p304, %s24, 0
      %p306 = scmp.lt.s32.totalorder %s301, 2
      %s307 = scalar_select %p306, %s301, 2
      %s308 = smul.addr %s305, 3
      %s309 = sadd.s32 %s307, %s308
      %s310 = smul.addr %s303, 3
      %s311 = sadd.s32 %s309, %s310
      %s312 = smul.addr %s311, 4
      %s313 = scalar_lea.vmem %s2, %s312
      %p314 = pneg %p130
      %p315 = pneg %p127
      %p316 = scmp.lt.s32.totalorder %s21, 1
      %s317 = scalar_select %p316, %s21, 1
      %p318 = scmp.lt.s32.totalorder %s24, 0
      %s319 = scalar_select %p318, %s24, 0
      %s320 = sadd.s32 %s319, %s317
      %s321 = scalar_lea.vmem %s3, %s320
      %p322 = pneg %p158
      %p323 = pneg %p155
      %p324 = pneg %p188
      %p325 = pneg %p185
      %p326 = scmp.lt.s32.totalorder %s21, 1
      %s327 = scalar_select %p326, %s21, 1
      %p328 = scmp.lt.s32.totalorder %s23, 0
      %s329 = scalar_select %p328, %s23, 0
      %p330 = scmp.lt.s32.totalorder %s22, 0
      %s331 = scalar_select %p330, %s22, 0
      %s332 = sadd.s32 %s331, %s329
      %s333 = sadd.s32 %s332, %s327
      %s334 = smul.addr %s333, 4
      %s335 = scalar_lea.vmem %s4, %s334
      %p336 = scmp.lt.s32.totalorder %s21, 1
      %s337 = scalar_select %p336, %s21, 1
      %p338 = scmp.lt.s32.totalorder %s23, 0
      %s339 = scalar_select %p338, %s23, 0
      %p340 = scmp.lt.s32.totalorder %s22, 2
      %s341 = scalar_select %p340, %s22, 2
      %s342 = smul.addr %s339, 3
      %s343 = sadd.s32 %s341, %s342
      %s344 = smul.addr %s337, 3
      %s345 = sadd.s32 %s343, %s344
      %s346 = smul.addr %s345, 4
      %s347 = scalar_lea.vmem %s0, %s346
      %s348 = sadd.s32 %s22, 1
      %p349 = scmp.lt.s32.totalorder %s21, 1
      %s350 = scalar_select %p349, %s21, 1
      %p351 = scmp.lt.s32.totalorder %s24, 0
      %s352 = scalar_select %p351, %s24, 0
      %p353 = scmp.lt.s32.totalorder %s348, 2
      %s354 = scalar_select %p353, %s348, 2
      %s355 = smul.addr %s352, 3
      %s356 = sadd.s32 %s354, %s355
      %s357 = smul.addr %s350, 3
      %s358 = sadd.s32 %s356, %s357
      %s359 = smul.addr %s358, 4
      %s360 = scalar_lea.vmem %s1, %s359
      %s361 = sadd.s32 %s22, 1
      %s362 = sadd.s32 %s22, 2
      %p363 = scmp.lt.s32.totalorder %s21, 1
      %s364 = scalar_select %p363, %s21, 1
      %p365 = scmp.lt.s32.totalorder %s24, 0
      %s366 = scalar_select %p365, %s24, 0
      %p367 = scmp.lt.s32.totalorder %s362, 2
      %s368 = scalar_select %p367, %s362, 2
      %s369 = smul.addr %s366, 3
      %s370 = sadd.s32 %s368, %s369
      %s371 = smul.addr %s364, 3
      %s372 = sadd.s32 %s370, %s371
      %s373 = smul.addr %s372, 4
      %s374 = scalar_lea.vmem %s2, %s373
      %s375 = sadd.s32 %s22, 2
      %p376 = scmp.lt.s32.totalorder %s21, 1
      %s377 = scalar_select %p376, %s21, 1
      %p378 = scmp.lt.s32.totalorder %s24, 0
      %s379 = scalar_select %p378, %s24, 0
      %s380 = sadd.s32 %s379, %s377
      %s381 = scalar_lea.vmem %s3, %s380
      %p382 = scmp.lt.s32.totalorder %s21, 1
      %s383 = scalar_select %p382, %s21, 1
      %p384 = scmp.lt.s32.totalorder %s23, 0
      %s385 = scalar_select %p384, %s23, 0
      %p386 = scmp.lt.s32.totalorder %s22, 0
      %s387 = scalar_select %p386, %s22, 0
      %s388 = sadd.s32 %s387, %s385
      %s389 = sadd.s32 %s388, %s383
      %s390 = smul.addr %s389, 4
      %s391 = scalar_lea.vmem %s4, %s390
      %p393 = scmp.eq.s32.totalorder %s24, 0
      // Predicated region
      $region37: #{bart_decoder_forward.21} parent=35 // pred_check
        %p394 = pneg %p393
      $region38: #{bart_decoder_forward.21} parent=35 // pred_check_branch
        %396 = sbr.rel (%p394) target = $region40
      $region39: #{bart_decoder_forward.21} parent=35 // pred_region
        %vm397 = vcmask 7168
        %398 = vst.msk [vmem:[#allocation2] sm:$0xff] %vm397, -inf
        %399 = vst.msk [vmem:[#allocation2 + $0x8] sm:$0xff] %vm397, -inf
        %400 = vst.msk [vmem:[#allocation2 + $0x10] sm:$0xff] %vm397, -inf
        %401 = vst.msk [vmem:[#allocation2 + $0x18] sm:$0xff] %vm397, -inf
        %402 = vst.msk [vmem:[#allocation3] sm:$0xff] %vm397, 0.0
        %403 = vst.msk [vmem:[#allocation3 + $0x8] sm:$0xff] %vm397, 0.0
        %404 = vst.msk [vmem:[#allocation3 + $0x10] sm:$0xff] %vm397, 0.0
        %405 = vst.msk [vmem:[#allocation3 + $0x18] sm:$0xff] %vm397, 0.0
        %vm406 = vcmask 261120
        %407 = vst.msk [vmem:[#allocation4] sm:$0xff] %vm406, 0.0
        %408 = vst.msk [vmem:[#allocation4 + $0x8] sm:$0xff] %vm406, 0.0
        %409 = vst.msk [vmem:[#allocation4 + $0x10] sm:$0xff] %vm406, 0.0
        %410 = vst.msk [vmem:[#allocation4 + $0x18] sm:$0xff] %vm406, 0.0
      $region40: #{bart_decoder_forward.21} parent=35 // pred_fallthru
        _
      %s411 = smul.u32 %s24, 8
      %s412 = sadd.s32 %s23, 1
      %s413 = smul.u32 %s412, 8
      %s414 = ssub.s32 %s413, 1
      %p415 = scmp.le.s32.totalorder %s411, %s414
      // Predicated region
      $region41: #{bart_decoder_forward.21} parent=35 // pred_check
        %p416 = pneg %p415
      $region42: #{bart_decoder_forward.21} parent=35 // pred_check_branch
        %418 = sbr.rel (%p416) target = $region44
      $region43: #{bart_decoder_forward.21} parent=35 // pred_region
        %v419 = vld [vmem:[%s347] sm:$0xf]
        %v420 = vld [vmem:[%s360] sm:$0xf]
        %v421 = vld [vmem:[%s374] sm:$0xf]
        %v422 = vld [vmem:[%s381] sm:$0x1]
        %s423 = smul.u32 %s23, 8
        %v424 = vlaneseq
        %v425 = vshrl.u32 %v424, 7
        %v426 = vstv %s423
        %v427 = vadd.s32 %v426, %v425
        %v428 = vlaneseq
        %v429 = vand.u32 %v428, 127
        %v430 = vstv %s411
        %v431 = vadd.s32 %v430, %v429
        %vm432 = vcmp.gt.s32.totalorder %v431, %v427
        %v433 = vsel %vm432, -1e+09, 0.0
        %v435 = vlaneseq
        %v436 = vshrl.u32 %v435, 7
        %v437 = vsub.s32 0, %v436
        %v438 = vrot.slane %v422, %v437
        %v440 = vadd.f32 %v438, %v433
        %vm441 = vcmask 261120
        %v443 = vsel %vm441, %v419, 0
        %v446 = vsel %vm441, %v420, 0
        %448 = vmatprep.subr.bf16.mxu0 0
        %449 = vmatpush1.bf16.xpose.msra.mxu0 %v446
        %450 = vmatprep.subr.bf16.mxu0 0
        %451 = vmatpush1.bf16.xpose.msra.mxu0 0
        %452 = vmatprep.subr.bf16.mxu0 0
        %453 = vmatpush1.bf16.xpose.msra.mxu0 0
        %454 = vmatprep.subr.bf16.mxu0 0
        %455 = vmatpush1.bf16.xpose.msra.mxu0 0
        %456 = vmatprep.subr.bf16.mxu0 0
        %457 = vmatpush1.bf16.xpose.msra.mxu0 0
        %458 = vmatprep.subr.bf16.mxu0 0
        %459 = vmatpush1.bf16.xpose.msra.mxu0 0
        %460 = vmatprep.subr.bf16.mxu0 0
        %461 = vmatpush1.bf16.xpose.msra.mxu0 0
        %462 = vmatprep.subr.bf16.mxu0 0
        %463 = vmatpush1.bf16.xpose.msra.mxu0 0
        %464 = vmatprep.subr.bf16.mxu0 0
        %465 = vmatpush1.bf16.xpose.msra.mxu0 0
        %466 = vmatprep.subr.bf16.mxu0 0
        %467 = vmatpush1.bf16.xpose.msra.mxu0 0
        %468 = vmatprep.subr.bf16.mxu0 0
        %469 = vmatpush1.bf16.xpose.msra.mxu0 0
        %470 = vmatprep.subr.bf16.mxu0 0
        %471 = vmatpush1.bf16.xpose.msra.mxu0 0
        %472 = vmatprep.subr.bf16.mxu0 0
        %473 = vmatpush1.bf16.xpose.msra.mxu0 0
        %474 = vmatprep.subr.bf16.mxu0 0
        %475 = vmatpush1.bf16.xpose.msra.mxu0 0
        %476 = vmatprep.subr.bf16.mxu0 0
        %477 = vmatpush1.bf16.xpose.msra.mxu0 0
        %478 = vmatprep.subr.bf16.mxu0 0
        %479 = vmatpush1.bf16.xpose.msra.mxu0 0
        %480 = vmatprep.mubr.bf16.mxu0 0
        %481 = vmatmul.mubr.bf16.gmra.mrb[0].mxu0 %v443
        %v482 = vpop.f32.mrb[0].mxu0
        %v483 = vadd.f32 %v440, %v482
        %v484 = vpop.f32.mrb[0].mxu0
        %v485 = vpop.f32.mrb[0].mxu0
        %v486 = vpop.f32.mrb[0].mxu0
        %487 = vdwg.mxu0
        %v488 = vld [vmem:[#allocation2] sm:$0xff]
        %vm489 = vcmask 64512
        %v490 = vsel %vm489, %v483, -inf
        %491 = vmax.xlane.f32.xlu0 %v490
        %v492 = vpop.xlane.xlu0 %491
        %v493 = vmax.f32 %v488, %v492
        %v494 = vsub.f32 %v488, %v493
        %v495 = vmul.f32 %v494, 1.442695
        %v496 = vpow.pop %v495
        %498 = vset.pattern.permute.xlu0 0
        %499 = vperm.xlu0 %498, %v493
        %v500 = vpop.permute.xlu0 %499
        %v502 = vsub.f32 %v483, %v500
        %v503 = vmul.f32 %v502, 1.442695
        %v504 = vpow.pop %v503
        %v505 = vld [vmem:[#allocation3] sm:$0xff]
        %v506 = vmul.f32 %v496, %v505
        %v507 = vsel %vm489, %v504, 0.0
        %508 = vadd.xlane.f32.xlu0 %v507
        %v509 = vpop.xlane.xlu0 %508
        %v510 = vadd.f32 %v506, %v509
        %vm511 = vcmask 7168
        %512 = vst.msk [vmem:[#allocation3] sm:$0xff] %vm511, %v510
        %v513 = vld [vmem:[#allocation4] sm:$0xff]
        %515 = vset.pattern.permute.xlu0 0
        %516 = vperm.xlu0 %515, %v496
        %v517 = vpop.permute.xlu0 %516
        %v519 = vmul.f32 %v517, %v513
        %v520 = vpack.c.bf16 %v504, %v504
        %v522 = vsel %vm489, %v520, 0
        %vm524 = vcmask 1043456
        %v526 = vsel %vm524, %v421, 0
        %528 = vmatprep.subr.bf16.mxu0 0
        %529 = vmatpush1.bf16.msra.mxu0 %v526
        %530 = vmatprep.subr.bf16.mxu0 0
        %531 = vmatpush1.bf16.msra.mxu0 0
        %532 = vmatprep.subr.bf16.mxu0 0
        %533 = vmatpush1.bf16.msra.mxu0 0
        %534 = vmatprep.subr.bf16.mxu0 0
        %535 = vmatpush1.bf16.msra.mxu0 0
        %536 = vmatprep.subr.bf16.mxu0 0
        %537 = vmatpush1.bf16.msra.mxu0 0
        %538 = vmatprep.subr.bf16.mxu0 0
        %539 = vmatpush1.bf16.msra.mxu0 0
        %540 = vmatprep.subr.bf16.mxu0 0
        %541 = vmatpush1.bf16.msra.mxu0 0
        %542 = vmatprep.subr.bf16.mxu0 0
        %543 = vmatpush1.bf16.msra.mxu0 0
        %544 = vmatprep.subr.bf16.mxu0 0
        %545 = vmatpush1.bf16.msra.mxu0 0
        %546 = vmatprep.subr.bf16.mxu0 0
        %547 = vmatpush1.bf16.msra.mxu0 0
        %548 = vmatprep.subr.bf16.mxu0 0
        %549 = vmatpush1.bf16.msra.mxu0 0
        %550 = vmatprep.subr.bf16.mxu0 0
        %551 = vmatpush1.bf16.msra.mxu0 0
        %552 = vmatprep.subr.bf16.mxu0 0
        %553 = vmatpush1.bf16.msra.mxu0 0
        %554 = vmatprep.subr.bf16.mxu0 0
        %555 = vmatpush1.bf16.msra.mxu0 0
        %556 = vmatprep.subr.bf16.mxu0 0
        %557 = vmatpush1.bf16.msra.mxu0 0
        %558 = vmatprep.subr.bf16.mxu0 0
        %559 = vmatpush1.bf16.msra.mxu0 0
        %560 = vmatprep.mubr.bf16.mxu0 0
        %561 = vmatmul.mubr.bf16.gmra.mrb[0].mxu0 %v522
        %v562 = vpop.f32.mrb[0].mxu0
        %v563 = vadd.f32 0.0, %v562
        %v564 = vpop.f32.mrb[0].mxu0
        %v565 = vpop.f32.mrb[0].mxu0
        %v566 = vpop.f32.mrb[0].mxu0
        %567 = vdwg.mxu0
        %v568 = vadd.f32 %v519, %v563
        %569 = vst.msk [vmem:[#allocation4] sm:$0xff] %vm441, %v568
        %570 = vst.msk [vmem:[#allocation2] sm:$0xff] %vm511, %v493
        %v572 = vunpack.c.l.b16 %v419
        %v573 = vpack.c.b16 %v572, %v572
        %574 = vrot.lane.b32.xlu0 %v573, 96
        %v575 = vpop.permute.xlu0 %574
        %v577 = vunpack.c.l.b16 %v420
        %v578 = vpack.c.b16 %v577, %v577
        %579 = vrot.lane.b32.xlu0 %v578, 96
        %v580 = vpop.permute.xlu0 %579
        %v582 = vsel %vm441, %v575, 0
        %v585 = vsel %vm441, %v580, 0
        %587 = vmatprep.subr.bf16.mxu0 0
        %588 = vmatpush1.bf16.xpose.msra.mxu0 %v585
        %589 = vmatprep.subr.bf16.mxu0 0
        %590 = vmatpush1.bf16.xpose.msra.mxu0 0
        %591 = vmatprep.subr.bf16.mxu0 0
        %592 = vmatpush1.bf16.xpose.msra.mxu0 0
        %593 = vmatprep.subr.bf16.mxu0 0
        %594 = vmatpush1.bf16.xpose.msra.mxu0 0
        %595 = vmatprep.subr.bf16.mxu0 0
        %596 = vmatpush1.bf16.xpose.msra.mxu0 0
        %597 = vmatprep.subr.bf16.mxu0 0
        %598 = vmatpush1.bf16.xpose.msra.mxu0 0
        %599 = vmatprep.subr.bf16.mxu0 0
        %600 = vmatpush1.bf16.xpose.msra.mxu0 0
        %601 = vmatprep.subr.bf16.mxu0 0
        %602 = vmatpush1.bf16.xpose.msra.mxu0 0
        %603 = vmatprep.subr.bf16.mxu0 0
        %604 = vmatpush1.bf16.xpose.msra.mxu0 0
        %605 = vmatprep.subr.bf16.mxu0 0
        %606 = vmatpush1.bf16.xpose.msra.mxu0 0
        %607 = vmatprep.subr.bf16.mxu0 0
        %608 = vmatpush1.bf16.xpose.msra.mxu0 0
        %609 = vmatprep.subr.bf16.mxu0 0
        %610 = vmatpush1.bf16.xpose.msra.mxu0 0
        %611 = vmatprep.subr.bf16.mxu0 0
        %612 = vmatpush1.bf16.xpose.msra.mxu0 0
        %613 = vmatprep.subr.bf16.mxu0 0
        %614 = vmatpush1.bf16.xpose.msra.mxu0 0
        %615 = vmatprep.subr.bf16.mxu0 0
        %616 = vmatpush1.bf16.xpose.msra.mxu0 0
        %617 = vmatprep.subr.bf16.mxu0 0
        %618 = vmatpush1.bf16.xpose.msra.mxu0 0
        %619 = vmatprep.mubr.bf16.mxu0 0
        %620 = vmatmul.mubr.bf16.gmra.mrb[0].mxu0 %v582
        %v621 = vpop.f32.mrb[0].mxu0
        %v622 = vadd.f32 %v440, %v621
        %v623 = vpop.f32.mrb[0].mxu0
        %v624 = vpop.f32.mrb[0].mxu0
        %v625 = vpop.f32.mrb[0].mxu0
        %626 = vdwg.mxu0
        %s627 = scalar_lea.vmem [#allocation2], 8
        %v628 = vld [vmem:[%s627] sm:$0xff]
        %v629 = vsel %vm489, %v622, -inf
        %630 = vmax.xlane.f32.xlu0 %v629
        %v631 = vpop.xlane.xlu0 %630
        %v632 = vmax.f32 %v628, %v631
        %v633 = vsub.f32 %v628, %v632
        %v634 = vmul.f32 %v633, 1.442695
        %v635 = vpow.pop %v634
        %637 = vset.pattern.permute.xlu0 0
        %638 = vperm.xlu0 %637, %v632
        %v639 = vpop.permute.xlu0 %638
        %v641 = vsub.f32 %v622, %v639
        %v642 = vmul.f32 %v641, 1.442695
        %v643 = vpow.pop %v642
        %s644 = scalar_lea.vmem [#allocation3], 8
        %v645 = vld [vmem:[%s644] sm:$0xff]
        %v646 = vmul.f32 %v635, %v645
        %v647 = vsel %vm489, %v643, 0.0
        %648 = vadd.xlane.f32.xlu0 %v647
        %v649 = vpop.xlane.xlu0 %648
        %v650 = vadd.f32 %v646, %v649
        %651 = vst.msk [vmem:[%s644] sm:$0xff] %vm511, %v650
        %s652 = scalar_lea.vmem [#allocation4], 8
        %v653 = vld [vmem:[%s652] sm:$0xff]
        %655 = vset.pattern.permute.xlu0 0
        %656 = vperm.xlu0 %655, %v635
        %v657 = vpop.permute.xlu0 %656
        %v659 = vmul.f32 %v657, %v653
        %v660 = vpack.c.bf16 %v643, %v643
        %v662 = vunpack.c.l.b16 %v421
        %v663 = vpack.c.b16 %v662, %v662
        %664 = vrot.lane.b32.xlu0 %v663, 96
        %v665 = vpop.permute.xlu0 %664
        %v667 = vsel %vm489, %v660, 0
        %v670 = vsel %vm524, %v665, 0
        %672 = vmatprep.subr.bf16.mxu0 0
        %673 = vmatpush1.bf16.msra.mxu0 %v670
        %674 = vmatprep.subr.bf16.mxu0 0
        %675 = vmatpush1.bf16.msra.mxu0 0
        %676 = vmatprep.subr.bf16.mxu0 0
        %677 = vmatpush1.bf16.msra.mxu0 0
        %678 = vmatprep.subr.bf16.mxu0 0
        %679 = vmatpush1.bf16.msra.mxu0 0
        %680 = vmatprep.subr.bf16.mxu0 0
        %681 = vmatpush1.bf16.msra.mxu0 0
        %682 = vmatprep.subr.bf16.mxu0 0
        %683 = vmatpush1.bf16.msra.mxu0 0
        %684 = vmatprep.subr.bf16.mxu0 0
        %685 = vmatpush1.bf16.msra.mxu0 0
        %686 = vmatprep.subr.bf16.mxu0 0
        %687 = vmatpush1.bf16.msra.mxu0 0
        %688 = vmatprep.subr.bf16.mxu0 0
        %689 = vmatpush1.bf16.msra.mxu0 0
        %690 = vmatprep.subr.bf16.mxu0 0
        %691 = vmatpush1.bf16.msra.mxu0 0
        %692 = vmatprep.subr.bf16.mxu0 0
        %693 = vmatpush1.bf16.msra.mxu0 0
        %694 = vmatprep.subr.bf16.mxu0 0
        %695 = vmatpush1.bf16.msra.mxu0 0
        %696 = vmatprep.subr.bf16.mxu0 0
        %697 = vmatpush1.bf16.msra.mxu0 0
        %698 = vmatprep.subr.bf16.mxu0 0
        %699 = vmatpush1.bf16.msra.mxu0 0
        %700 = vmatprep.subr.bf16.mxu0 0
        %701 = vmatpush1.bf16.msra.mxu0 0
        %702 = vmatprep.subr.bf16.mxu0 0
        %703 = vmatpush1.bf16.msra.mxu0 0
        %704 = vmatprep.mubr.bf16.mxu0 0
        %705 = vmatmul.mubr.bf16.gmra.mrb[0].mxu0 %v667
        %v706 = vpop.f32.mrb[0].mxu0
        %v707 = vadd.f32 0.0, %v706
        %v708 = vpop.f32.mrb[0].mxu0
        %v709 = vpop.f32.mrb[0].mxu0
        %v710 = vpop.f32.mrb[0].mxu0
        %711 = vdwg.mxu0
        %v712 = vadd.f32 %v659, %v707
        %713 = vst.msk [vmem:[%s652] sm:$0xff] %vm441, %v712
        %714 = vst.msk [vmem:[%s627] sm:$0xff] %vm511, %v632
        %715 = vrot.lane.b32.xlu0 %v573, 64
        %v716 = vpop.permute.xlu0 %715
        %717 = vrot.lane.b32.xlu0 %v578, 64
        %v718 = vpop.permute.xlu0 %717
        %v720 = vsel %vm441, %v716, 0
        %v723 = vsel %vm441, %v718, 0
        %725 = vmatprep.subr.bf16.mxu0 0
        %726 = vmatpush1.bf16.xpose.msra.mxu0 %v723
        %727 = vmatprep.subr.bf16.mxu0 0
        %728 = vmatpush1.bf16.xpose.msra.mxu0 0
        %729 = vmatprep.subr.bf16.mxu0 0
        %730 = vmatpush1.bf16.xpose.msra.mxu0 0
        %731 = vmatprep.subr.bf16.mxu0 0
        %732 = vmatpush1.bf16.xpose.msra.mxu0 0
        %733 = vmatprep.subr.bf16.mxu0 0
        %734 = vmatpush1.bf16.xpose.msra.mxu0 0
        %735 = vmatprep.subr.bf16.mxu0 0
        %736 = vmatpush1.bf16.xpose.msra.mxu0 0
        %737 = vmatprep.subr.bf16.mxu0 0
        %738 = vmatpush1.bf16.xpose.msra.mxu0 0
        %739 = vmatprep.subr.bf16.mxu0 0
        %740 = vmatpush1.bf16.xpose.msra.mxu0 0
        %741 = vmatprep.subr.bf16.mxu0 0
        %742 = vmatpush1.bf16.xpose.msra.mxu0 0
        %743 = vmatprep.subr.bf16.mxu0 0
        %744 = vmatpush1.bf16.xpose.msra.mxu0 0
        %745 = vmatprep.subr.bf16.mxu0 0
        %746 = vmatpush1.bf16.xpose.msra.mxu0 0
        %747 = vmatprep.subr.bf16.mxu0 0
        %748 = vmatpush1.bf16.xpose.msra.mxu0 0
        %749 = vmatprep.subr.bf16.mxu0 0
        %750 = vmatpush1.bf16.xpose.msra.mxu0 0
        %751 = vmatprep.subr.bf16.mxu0 0
        %752 = vmatpush1.bf16.xpose.msra.mxu0 0
        %753 = vmatprep.subr.bf16.mxu0 0
        %754 = vmatpush1.bf16.xpose.msra.mxu0 0
        %755 = vmatprep.subr.bf16.mxu0 0
        %756 = vmatpush1.bf16.xpose.msra.mxu0 0
        %757 = vmatprep.mubr.bf16.mxu0 0
        %758 = vmatmul.mubr.bf16.gmra.mrb[0].mxu0 %v720
        %v759 = vpop.f32.mrb[0].mxu0
        %v760 = vadd.f32 %v440, %v759
        %v761 = vpop.f32.mrb[0].mxu0
        %v762 = vpop.f32.mrb[0].mxu0
        %v763 = vpop.f32.mrb[0].mxu0
        %764 = vdwg.mxu0
        %s765 = scalar_lea.vmem [#allocation2], 16
        %v766 = vld [vmem:[%s765] sm:$0xff]
        %v767 = vsel %vm489, %v760, -inf
        %768 = vmax.xlane.f32.xlu0 %v767
        %v769 = vpop.xlane.xlu0 %768
        %v770 = vmax.f32 %v766, %v769
        %v771 = vsub.f32 %v766, %v770
        %v772 = vmul.f32 %v771, 1.442695
        %v773 = vpow.pop %v772
        %775 = vset.pattern.permute.xlu0 0
        %776 = vperm.xlu0 %775, %v770
        %v777 = vpop.permute.xlu0 %776
        %v779 = vsub.f32 %v760, %v777
        %v780 = vmul.f32 %v779, 1.442695
        %v781 = vpow.pop %v780
        %s782 = scalar_lea.vmem [#allocation3], 16
        %v783 = vld [vmem:[%s782] sm:$0xff]
        %v784 = vmul.f32 %v773, %v783
        %v785 = vsel %vm489, %v781, 0.0
        %786 = vadd.xlane.f32.xlu0 %v785
        %v787 = vpop.xlane.xlu0 %786
        %v788 = vadd.f32 %v784, %v787
        %789 = vst.msk [vmem:[%s782] sm:$0xff] %vm511, %v788
        %s790 = scalar_lea.vmem [#allocation4], 16
        %v791 = vld [vmem:[%s790] sm:$0xff]
        %793 = vset.pattern.permute.xlu0 0
        %794 = vperm.xlu0 %793, %v773
        %v795 = vpop.permute.xlu0 %794
        %v797 = vmul.f32 %v795, %v791
        %v798 = vpack.c.bf16 %v781, %v781
        %799 = vrot.lane.b32.xlu0 %v663, 64
        %v800 = vpop.permute.xlu0 %799
        %v802 = vsel %vm489, %v798, 0
        %v805 = vsel %vm524, %v800, 0
        %807 = vmatprep.subr.bf16.mxu0 0
        %808 = vmatpush1.bf16.msra.mxu0 %v805
        %809 = vmatprep.subr.bf16.mxu0 0
        %810 = vmatpush1.bf16.msra.mxu0 0
        %811 = vmatprep.subr.bf16.mxu0 0
        %812 = vmatpush1.bf16.msra.mxu0 0
        %813 = vmatprep.subr.bf16.mxu0 0
        %814 = vmatpush1.bf16.msra.mxu0 0
        %815 = vmatprep.subr.bf16.mxu0 0
        %816 = vmatpush1.bf16.msra.mxu0 0
        %817 = vmatprep.subr.bf16.mxu0 0
        %818 = vmatpush1.bf16.msra.mxu0 0
        %819 = vmatprep.subr.bf16.mxu0 0
        %820 = vmatpush1.bf16.msra.mxu0 0
        %821 = vmatprep.subr.bf16.mxu0 0
        %822 = vmatpush1.bf16.msra.mxu0 0
        %823 = vmatprep.subr.bf16.mxu0 0
        %824 = vmatpush1.bf16.msra.mxu0 0
        %825 = vmatprep.subr.bf16.mxu0 0
        %826 = vmatpush1.bf16.msra.mxu0 0
        %827 = vmatprep.subr.bf16.mxu0 0
        %828 = vmatpush1.bf16.msra.mxu0 0
        %829 = vmatprep.subr.bf16.mxu0 0
        %830 = vmatpush1.bf16.msra.mxu0 0
        %831 = vmatprep.subr.bf16.mxu0 0
        %832 = vmatpush1.bf16.msra.mxu0 0
        %833 = vmatprep.subr.bf16.mxu0 0
        %834 = vmatpush1.bf16.msra.mxu0 0
        %835 = vmatprep.subr.bf16.mxu0 0
        %836 = vmatpush1.bf16.msra.mxu0 0
        %837 = vmatprep.subr.bf16.mxu0 0
        %838 = vmatpush1.bf16.msra.mxu0 0
        %839 = vmatprep.mubr.bf16.mxu0 0
        %840 = vmatmul.mubr.bf16.gmra.mrb[0].mxu0 %v802
        %v841 = vpop.f32.mrb[0].mxu0
        %v842 = vadd.f32 0.0, %v841
        %v843 = vpop.f32.mrb[0].mxu0
        %v844 = vpop.f32.mrb[0].mxu0
        %v845 = vpop.f32.mrb[0].mxu0
        %846 = vdwg.mxu0
        %v847 = vadd.f32 %v797, %v842
        %848 = vst.msk [vmem:[%s790] sm:$0xff] %vm441, %v847
        %849 = vst.msk [vmem:[%s765] sm:$0xff] %vm511, %v770
        %850 = vrot.lane.b32.xlu0 %v573, 32
        %v851 = vpop.permute.xlu0 %850
        %852 = vrot.lane.b32.xlu0 %v578, 32
        %v853 = vpop.permute.xlu0 %852
        %v855 = vsel %vm441, %v851, 0
        %v858 = vsel %vm441, %v853, 0
        %860 = vmatprep.subr.bf16.mxu0 0
        %861 = vmatpush1.bf16.xpose.msra.mxu0 %v858
        %862 = vmatprep.subr.bf16.mxu0 0
        %863 = vmatpush1.bf16.xpose.msra.mxu0 0
        %864 = vmatprep.subr.bf16.mxu0 0
        %865 = vmatpush1.bf16.xpose.msra.mxu0 0
        %866 = vmatprep.subr.bf16.mxu0 0
        %867 = vmatpush1.bf16.xpose.msra.mxu0 0
        %868 = vmatprep.subr.bf16.mxu0 0
        %869 = vmatpush1.bf16.xpose.msra.mxu0 0
        %870 = vmatprep.subr.bf16.mxu0 0
        %871 = vmatpush1.bf16.xpose.msra.mxu0 0
        %872 = vmatprep.subr.bf16.mxu0 0
        %873 = vmatpush1.bf16.xpose.msra.mxu0 0
        %874 = vmatprep.subr.bf16.mxu0 0
        %875 = vmatpush1.bf16.xpose.msra.mxu0 0
        %876 = vmatprep.subr.bf16.mxu0 0
        %877 = vmatpush1.bf16.xpose.msra.mxu0 0
        %878 = vmatprep.subr.bf16.mxu0 0
        %879 = vmatpush1.bf16.xpose.msra.mxu0 0
        %880 = vmatprep.subr.bf16.mxu0 0
        %881 = vmatpush1.bf16.xpose.msra.mxu0 0
        %882 = vmatprep.subr.bf16.mxu0 0
        %883 = vmatpush1.bf16.xpose.msra.mxu0 0
        %884 = vmatprep.subr.bf16.mxu0 0
        %885 = vmatpush1.bf16.xpose.msra.mxu0 0
        %886 = vmatprep.subr.bf16.mxu0 0
        %887 = vmatpush1.bf16.xpose.msra.mxu0 0
        %888 = vmatprep.subr.bf16.mxu0 0
        %889 = vmatpush1.bf16.xpose.msra.mxu0 0
        %890 = vmatprep.subr.bf16.mxu0 0
        %891 = vmatpush1.bf16.xpose.msra.mxu0 0
        %892 = vmatprep.mubr.bf16.mxu0 0
        %893 = vmatmul.mubr.bf16.gmra.mrb[0].mxu0 %v855
        %v894 = vpop.f32.mrb[0].mxu0
        %v895 = vadd.f32 %v440, %v894
        %v896 = vpop.f32.mrb[0].mxu0
        %v897 = vpop.f32.mrb[0].mxu0
        %v898 = vpop.f32.mrb[0].mxu0
        %899 = vdwg.mxu0
        %s900 = scalar_lea.vmem [#allocation2], 24
        %v901 = vld [vmem:[%s900] sm:$0xff]
        %v902 = vsel %vm489, %v895, -inf
        %903 = vmax.xlane.f32.xlu0 %v902
        %v904 = vpop.xlane.xlu0 %903
        %v905 = vmax.f32 %v901, %v904
        %v906 = vsub.f32 %v901, %v905
        %v907 = vmul.f32 %v906, 1.442695
        %v908 = vpow.pop %v907
        %910 = vset.pattern.permute.xlu0 0
        %911 = vperm.xlu0 %910, %v905
        %v912 = vpop.permute.xlu0 %911
        %v914 = vsub.f32 %v895, %v912
        %v915 = vmul.f32 %v914, 1.442695
        %v916 = vpow.pop %v915
        %s917 = scalar_lea.vmem [#allocation3], 24
        %v918 = vld [vmem:[%s917] sm:$0xff]
        %v919 = vmul.f32 %v908, %v918
        %v920 = vsel %vm489, %v916, 0.0
        %921 = vadd.xlane.f32.xlu0 %v920
        %v922 = vpop.xlane.xlu0 %921
        %v923 = vadd.f32 %v919, %v922
        %924 = vst.msk [vmem:[%s917] sm:$0xff] %vm511, %v923
        %s925 = scalar_lea.vmem [#allocation4], 24
        %v926 = vld [vmem:[%s925] sm:$0xff]
        %928 = vset.pattern.permute.xlu0 0
        %929 = vperm.xlu0 %928, %v908
        %v930 = vpop.permute.xlu0 %929
        %v932 = vmul.f32 %v930, %v926
        %v933 = vpack.c.bf16 %v916, %v916
        %934 = vrot.lane.b32.xlu0 %v663, 32
        %v935 = vpop.permute.xlu0 %934
        %v937 = vsel %vm489, %v933, 0
        %v940 = vsel %vm524, %v935, 0
        %942 = vmatprep.subr.bf16.mxu0 0
        %943 = vmatpush1.bf16.msra.mxu0 %v940
        %944 = vmatprep.subr.bf16.mxu0 0
        %945 = vmatpush1.bf16.msra.mxu0 0
        %946 = vmatprep.subr.bf16.mxu0 0
        %947 = vmatpush1.bf16.msra.mxu0 0
        %948 = vmatprep.subr.bf16.mxu0 0
        %949 = vmatpush1.bf16.msra.mxu0 0
        %950 = vmatprep.subr.bf16.mxu0 0
        %951 = vmatpush1.bf16.msra.mxu0 0
        %952 = vmatprep.subr.bf16.mxu0 0
        %953 = vmatpush1.bf16.msra.mxu0 0
        %954 = vmatprep.subr.bf16.mxu0 0
        %955 = vmatpush1.bf16.msra.mxu0 0
        %956 = vmatprep.subr.bf16.mxu0 0
        %957 = vmatpush1.bf16.msra.mxu0 0
        %958 = vmatprep.subr.bf16.mxu0 0
        %959 = vmatpush1.bf16.msra.mxu0 0
        %960 = vmatprep.subr.bf16.mxu0 0
        %961 = vmatpush1.bf16.msra.mxu0 0
        %962 = vmatprep.subr.bf16.mxu0 0
        %963 = vmatpush1.bf16.msra.mxu0 0
        %964 = vmatprep.subr.bf16.mxu0 0
        %965 = vmatpush1.bf16.msra.mxu0 0
        %966 = vmatprep.subr.bf16.mxu0 0
        %967 = vmatpush1.bf16.msra.mxu0 0
        %968 = vmatprep.subr.bf16.mxu0 0
        %969 = vmatpush1.bf16.msra.mxu0 0
        %970 = vmatprep.subr.bf16.mxu0 0
        %971 = vmatpush1.bf16.msra.mxu0 0
        %972 = vmatprep.subr.bf16.mxu0 0
        %973 = vmatpush1.bf16.msra.mxu0 0
        %974 = vmatprep.mubr.bf16.mxu0 0
        %975 = vmatmul.mubr.bf16.gmra.mrb[0].mxu0 %v937
        %v976 = vpop.f32.mrb[0].mxu0
        %v977 = vadd.f32 0.0, %v976
        %v978 = vpop.f32.mrb[0].mxu0
        %v979 = vpop.f32.mrb[0].mxu0
        %v980 = vpop.f32.mrb[0].mxu0
        %981 = vdwg.mxu0
        %v982 = vadd.f32 %v932, %v977
        %983 = vst.msk [vmem:[%s925] sm:$0xff] %vm441, %v982
        %984 = vst.msk [vmem:[%s900] sm:$0xff] %vm511, %v905
      $region44: #{bart_decoder_forward.21} parent=35 // pred_fallthru
        _
      // Predicated region
      $region45: #{bart_decoder_forward.21} parent=35 // pred_check
        %p985 = pneg %p393
      $region46: #{bart_decoder_forward.21} parent=35 // pred_check_branch
        %987 = sbr.rel (%p985) target = $region48
      $region47: #{bart_decoder_forward.21} parent=35 // pred_region
        %v988 = vld [vmem:[#allocation3] sm:$0xff]
        %v989 = vrcp.pop %v988
        %v990 = vld [vmem:[#allocation4] sm:$0xff]
        %992 = vset.pattern.permute.xlu0 0
        %993 = vperm.xlu0 %992, %v989
        %v994 = vpop.permute.xlu0 %993
        %v996 = vmul.f32 %v990, %v994
        %v997 = vpack.c.bf16 %v996, %v996
        %vm998 = vcmask 257024
        %999 = vst.msk [vmem:[%s391] sm:$0xf] %vm998, %v997
        %s1000 = scalar_lea.vmem [#allocation3], 8
        %v1001 = vld [vmem:[%s1000] sm:$0xff]
        %v1002 = vrcp.pop %v1001
        %s1003 = scalar_lea.vmem [#allocation4], 8
        %v1004 = vld [vmem:[%s1003] sm:$0xff]
        %1006 = vset.pattern.permute.xlu0 0
        %1007 = vperm.xlu0 %1006, %v1002
        %v1008 = vpop.permute.xlu0 %1007
        %v1010 = vmul.f32 %v1004, %v1008
        %v1011 = vpack.c.bf16 %v1010, %v1010
        %v1013 = vunpack.c.l.b16 %v1011
        %v1014 = vpack.c.b16 %v1013, %v1013
        %1015 = vrot.lane.b32.xlu0 %v1014, 32
        %v1016 = vpop.permute.xlu0 %1015
        %vm1018 = vcmask 519424
        %1019 = vst.msk [vmem:[%s391] sm:$0xf] %vm1018, %v1016
        %s1020 = scalar_lea.vmem [#allocation3], 16
        %v1021 = vld [vmem:[%s1020] sm:$0xff]
        %v1022 = vrcp.pop %v1021
        %s1023 = scalar_lea.vmem [#allocation4], 16
        %v1024 = vld [vmem:[%s1023] sm:$0xff]
        %1026 = vset.pattern.permute.xlu0 0
        %1027 = vperm.xlu0 %1026, %v1022
        %v1028 = vpop.permute.xlu0 %1027
        %v1030 = vmul.f32 %v1024, %v1028
        %v1031 = vpack.c.bf16 %v1030, %v1030
        %v1033 = vunpack.c.l.b16 %v1031
        %v1034 = vpack.c.b16 %v1033, %v1033
        %1035 = vrot.lane.b32.xlu0 %v1034, 64
        %v1036 = vpop.permute.xlu0 %1035
        %vm1038 = vcmask 781824
        %1039 = vst.msk [vmem:[%s391] sm:$0xf] %vm1038, %v1036
        %s1040 = scalar_lea.vmem [#allocation3], 24
        %v1041 = vld [vmem:[%s1040] sm:$0xff]
        %v1042 = vrcp.pop %v1041
        %s1043 = scalar_lea.vmem [#allocation4], 24
        %v1044 = vld [vmem:[%s1043] sm:$0xff]
        %1046 = vset.pattern.permute.xlu0 0
        %1047 = vperm.xlu0 %1046, %v1042
        %v1048 = vpop.permute.xlu0 %1047
        %v1050 = vmul.f32 %v1044, %v1048
        %v1051 = vpack.c.bf16 %v1050, %v1050
        %v1053 = vunpack.c.l.b16 %v1051
        %v1054 = vpack.c.b16 %v1053, %v1053
        %1055 = vrot.lane.b32.xlu0 %v1054, 96
        %v1056 = vpop.permute.xlu0 %1055
        %vm1058 = vcmask 1044224
        %1059 = vst.msk [vmem:[%s391] sm:$0xf] %vm1058, %v1056
      $region48: #{bart_decoder_forward.21} parent=35 // pred_fallthru
        _
      %p1060 = scmp.lt.s32.totalorder %s21, 1
      %s1061 = scalar_select %p1060, %s21, 1
      %p1062 = scmp.lt.s32.totalorder %s23, 0
      %s1063 = scalar_select %p1062, %s23, 0
      %p1064 = scmp.lt.s32.totalorder %s22, 0
      %s1065 = scalar_select %p1064, %s22, 0
      %s1066 = sadd.s32 %s1065, %s1063
      %s1067 = sadd.s32 %s1066, %s1061
      %s1068 = smul.addr %s1067, 4
      %s1069 = scalar_lea.vmem %s4, %s1068
      // Predicated region
      $region49: #{bart_decoder_forward.21} parent=35 // pred_check
        %p1070 = pneg %p185
      $region50: #{bart_decoder_forward.21} parent=35 // pred_check_branch
        %1072 = sbr.rel (%p1070) target = $region52
      $region51: #{bart_decoder_forward.21} parent=35 // pred_region
        _
      $region52: #{bart_decoder_forward.21} parent=35 // pred_fallthru
        _
    $region36: #{bart_decoder_forward.21} parent=5 // pred_fallthru
      _
    %p1073 = scmp.le.s32.totalorder 2, %s10
    // Predicated region
    $region53: #{bart_decoder_forward.21} parent=5 // pred_check
      %p1074 = pneg %p1073
    $region54: #{bart_decoder_forward.21} parent=5 // pred_check_branch
      %1076 = sbr.rel (%p1074) target = $region56
    $region55: #{bart_decoder_forward.21} parent=5 // pred_region
      %s1077 = ssub.s32 %s10, 2
      // Predicated region
      $region57: #{bart_decoder_forward.21} parent=55 // pred_check
        %p1078 = pneg %p191
      $region58: #{bart_decoder_forward.21} parent=55 // pred_check_branch
        %1080 = sbr.rel (%p1078) target = $region60
      $region59: #{bart_decoder_forward.21} parent=55 // pred_region
        %p1081 = scmp.lt.s32.totalorder %s25, 1
        %s1082 = scalar_select %p1081, %s25, 1
        %p1083 = scmp.lt.s32.totalorder %s27, 0
        %s1084 = scalar_select %p1083, %s27, 0
        %p1085 = scmp.lt.s32.totalorder %s26, 0
        %s1086 = scalar_select %p1085, %s26, 0
        %s1087 = sadd.s32 %s1086, %s1084
        %s1088 = sadd.s32 %s1087, %s1082
        %s1089 = smul.addr %s1088, 4
        %s1090 = scalar_lea.vmem %s4, %s1089
      $region60: #{bart_decoder_forward.21} parent=55 // pred_fallthru
        _
    $region56: #{bart_decoder_forward.21} parent=5 // pred_fallthru
      _
  $region6: #{bart_decoder_forward.21} parent=0 // loop_footer
    %s14 = sadd.s32 1, %s10
  $region7: #{bart_decoder_forward.21} parent=0 // loop_footer_branch
    %9 = sbr.rel target = $region3
  $region8: #{bart_decoder_forward.21} parent=0 // loop_exit
    _

// kernel: bart_decoder_forward.22
$region0: #{bart_decoder_forward.22}
  #allocation0 [shape = 'u32[]', space=smem, size = 0x4, offset = 0x4, fixed_abs, tag = 'smem constant byte address 0x4 - core index']
  #allocation1 [shape = 'u32[144,128]{1,0:T(1,128)}', space=vmem, size = 0x12000, scoped, tag = 'internal scratch']
  #allocation2 [shape = 'f32[16,128]{1,0:T(8,128)}', space=vmem, size = 0x2000, scoped, tag = 'scratch operand']
  %s0 = inlined_call_operand.vmem [shape: bf16[16,128], index: 0, kind: input, shape index: {}]
  %s1 = inlined_call_operand.vmem [shape: bf16[128,128], index: 1, kind: input, shape index: {}]
  %s2 = inlined_call_operand.vmem [shape: f32[1,128], index: 2, kind: input, shape index: {}]
  %s3 = inlined_call_operand.vmem [shape: bf16[16,128], index: 3, kind: input, shape index: {}]
  %s4 = inlined_call_operand.vmem [shape: f32[1,128], index: 4, kind: input, shape index: {}]
  %s5 = inlined_call_operand.vmem [shape: f32[1,128], index: 5, kind: input, shape index: {}]
  %s6 = inlined_call_operand.vmem [shape: bf16[16,128], index: 6, kind: output, shape index: {}]
  %s7 = sld [smem:[#allocation0]]
  $region42: #{bart_decoder_forward.22} parent=0
    _
  %s9 = ssub.s32 1, %s7
  %s10 = scalar_select 0, %s9, %s7
  // Predicated region
  $region2: #{bart_decoder_forward.22} parent=0 // pred_check
    _
  $region3: #{bart_decoder_forward.22} parent=0 // pred_check_branch
    %12 = sbr.rel (0) target = $region5
  $region4: #{bart_decoder_forward.22} parent=0 // pred_region
    _
  $region5: #{bart_decoder_forward.22} parent=0 // pred_fallthru
    _
  // Predicated region
  $region6: #{bart_decoder_forward.22} parent=0 // pred_check
    _
  $region7: #{bart_decoder_forward.22} parent=0 // pred_check_branch
    %14 = sbr.rel (0) target = $region9
  $region8: #{bart_decoder_forward.22} parent=0 // pred_region
    _
  $region9: #{bart_decoder_forward.22} parent=0 // pred_fallthru
    _
  // Predicated region
  $region10: #{bart_decoder_forward.22} parent=0 // pred_check
    _
  $region11: #{bart_decoder_forward.22} parent=0 // pred_check_branch
    %16 = sbr.rel (0) target = $region13
  $region12: #{bart_decoder_forward.22} parent=0 // pred_region
    _
  $region13: #{bart_decoder_forward.22} parent=0 // pred_fallthru
    _
  // Predicated region
  $region14: #{bart_decoder_forward.22} parent=0 // pred_check
    _
  $region15: #{bart_decoder_forward.22} parent=0 // pred_check_branch
    %18 = sbr.rel (0) target = $region17
  $region16: #{bart_decoder_forward.22} parent=0 // pred_region
    _
  $region17: #{bart_decoder_forward.22} parent=0 // pred_fallthru
    _
  // Predicated region
  $region18: #{bart_decoder_forward.22} parent=0 // pred_check
    _
  $region19: #{bart_decoder_forward.22} parent=0 // pred_check_branch
    %20 = sbr.rel (0) target = $region21
  $region20: #{bart_decoder_forward.22} parent=0 // pred_region
    _
  $region21: #{bart_decoder_forward.22} parent=0 // pred_fallthru
    _
  // Predicated region
  $region22: #{bart_decoder_forward.22} parent=0 // pred_check
    _
  $region23: #{bart_decoder_forward.22} parent=0 // pred_check_branch
    %22 = sbr.rel (0) target = $region25
  $region24: #{bart_decoder_forward.22} parent=0 // pred_region
    _
  $region25: #{bart_decoder_forward.22} parent=0 // pred_fallthru
    _
  %p24 = scmp.eq.s32.totalorder 0, 0
  // Predicated region
  $region26: #{bart_decoder_forward.22} parent=0 // pred_check
    %p25 = pneg %p24
  $region27: #{bart_decoder_forward.22} parent=0 // pred_check_branch
    %27 = sbr.rel (%p25) target = $region29
  $region28: #{bart_decoder_forward.22} parent=0 // pred_region
    %28 = vst [vmem:[#allocation2] sm:$0xff] 0.0
    %29 = vst [vmem:[#allocation2 + $0x8] sm:$0xff] 0.0
  $region29: #{bart_decoder_forward.22} parent=0 // pred_fallthru
    _
  %v30 = vld [vmem:[#allocation2] sm:$0xff]
  %v31 = vld [vmem:[#allocation2 + $0x8] sm:$0xff]
  %v32 = vld [vmem:[%s0] sm:$0xf]
  %v33 = vld [vmem:[%s0 + $0x4] sm:$0xf]
  %v34 = vld [vmem:[%s1] sm:$0xf]
  %v35 = vld [vmem:[%s1 + $0x4] sm:$0xf]
  %v36 = vld [vmem:[%s1 + $0x8] sm:$0xf]
  %v37 = vld [vmem:[%s1 + $0xc] sm:$0xf]
  %v38 = vld [vmem:[%s1 + $0x10] sm:$0xf]
  %v39 = vld [vmem:[%s1 + $0x14] sm:$0xf]
  %v40 = vld [vmem:[%s1 + $0x18] sm:$0xf]
  %v41 = vld [vmem:[%s1 + $0x1c] sm:$0xf]
  %v42 = vld [vmem:[%s1 + $0x20] sm:$0xf]
  %v43 = vld [vmem:[%s1 + $0x24] sm:$0xf]
  %v44 = vld [vmem:[%s1 + $0x28] sm:$0xf]
  %v45 = vld [vmem:[%s1 + $0x2c] sm:$0xf]
  %v46 = vld [vmem:[%s1 + $0x30] sm:$0xf]
  %v47 = vld [vmem:[%s1 + $0x34] sm:$0xf]
  %v48 = vld [vmem:[%s1 + $0x38] sm:$0xf]
  %v49 = vld [vmem:[%s1 + $0x3c] sm:$0xf]
  %v52 = vunpack.c.l.b16 %v32
  %v53 = vunpack.c.l.b16 %v33
  %v54 = vpack.c.b16 %v53, %v52
  %v72 = vunpack.c.l.b16 %v34
  %v73 = vunpack.c.l.b16 %v35
  %v74 = vunpack.c.l.b16 %v36
  %v75 = vunpack.c.l.b16 %v37
  %v76 = vunpack.c.l.b16 %v38
  %v77 = vunpack.c.l.b16 %v39
  %v78 = vunpack.c.l.b16 %v40
  %v79 = vunpack.c.l.b16 %v41
  %v80 = vunpack.c.l.b16 %v42
  %v81 = vunpack.c.l.b16 %v43
  %v82 = vunpack.c.l.b16 %v44
  %v83 = vunpack.c.l.b16 %v45
  %v84 = vunpack.c.l.b16 %v46
  %v85 = vunpack.c.l.b16 %v47
  %v86 = vunpack.c.l.b16 %v48
  %v87 = vunpack.c.l.b16 %v49
  %v88 = vpack.c.b16 %v73, %v72
  %v89 = vpack.c.b16 %v75, %v74
  %v90 = vpack.c.b16 %v77, %v76
  %v91 = vpack.c.b16 %v79, %v78
  %v92 = vpack.c.b16 %v81, %v80
  %v93 = vpack.c.b16 %v83, %v82
  %v94 = vpack.c.b16 %v85, %v84
  %v95 = vpack.c.b16 %v87, %v86
  %104 = vmatprep.subr.bf16.mxu0 0
  %105 = vmatpush1.bf16.msra.mxu0 %v88
  %106 = vmatprep.subr.bf16.mxu0 0
  %107 = vmatpush1.bf16.msra.mxu0 %v89
  %108 = vmatprep.subr.bf16.mxu0 0
  %109 = vmatpush1.bf16.msra.mxu0 %v90
  %110 = vmatprep.subr.bf16.mxu0 0
  %111 = vmatpush1.bf16.msra.mxu0 %v91
  %112 = vmatprep.subr.bf16.mxu0 0
  %113 = vmatpush1.bf16.msra.mxu0 %v92
  %114 = vmatprep.subr.bf16.mxu0 0
  %115 = vmatpush1.bf16.msra.mxu0 %v93
  %116 = vmatprep.subr.bf16.mxu0 0
  %117 = vmatpush1.bf16.msra.mxu0 %v94
  %118 = vmatprep.subr.bf16.mxu0 0
  %119 = vmatpush1.bf16.msra.mxu0 %v95
  %120 = vmatprep.subr.bf16.mxu0 0
  %121 = vmatpush1.bf16.msra.mxu0 0
  %122 = vmatprep.subr.bf16.mxu0 0
  %123 = vmatpush1.bf16.msra.mxu0 0
  %124 = vmatprep.subr.bf16.mxu0 0
  %125 = vmatpush1.bf16.msra.mxu0 0
  %126 = vmatprep.subr.bf16.mxu0 0
  %127 = vmatpush1.bf16.msra.mxu0 0
  %128 = vmatprep.subr.bf16.mxu0 0
  %129 = vmatpush1.bf16.msra.mxu0 0
  %130 = vmatprep.subr.bf16.mxu0 0
  %131 = vmatpush1.bf16.msra.mxu0 0
  %132 = vmatprep.subr.bf16.mxu0 0
  %133 = vmatpush1.bf16.msra.mxu0 0
  %134 = vmatprep.subr.bf16.mxu0 0
  %135 = vmatpush1.bf16.msra.mxu0 0
  %136 = vmatprep.mubr.bf16.mxu0 0
  %137 = vmatmul.mubr.bf16.gmra.mrb[0].mxu0 %v54
  %v138 = vpop.f32.mrb[0].mxu0
  %v139 = vadd.f32 0.0, %v138
  %v140 = vpop.f32.mrb[0].mxu0
  %v141 = vpop.f32.mrb[0].mxu0
  %v142 = vadd.f32 0.0, %v141
  %v143 = vpop.f32.mrb[0].mxu0
  %144 = vdwg.mxu0
  %v145 = vadd.f32 %v30, %v139
  %v146 = vadd.f32 %v31, %v142
  %147 = vst [vmem:[#allocation2] sm:$0xff] %v145
  %148 = vst [vmem:[#allocation2 + $0x8] sm:$0xff] %v146
  // Predicated region
  $region30: #{bart_decoder_forward.22} parent=0 // pred_check
    %p149 = pneg %p24
  $region31: #{bart_decoder_forward.22} parent=0 // pred_check_branch
    %151 = sbr.rel (%p149) target = $region33
  $region32: #{bart_decoder_forward.22} parent=0 // pred_region
    %v152 = vld [vmem:[#allocation2] sm:$0xff]
    %v153 = vld [vmem:[#allocation2 + $0x8] sm:$0xff]
    %v154 = vld [vmem:[%s2] sm:$0x1]
    %v156 = vlaneseq
    %v157 = vshrl.u32 %v156, 7
    %v158 = vsub.s32 0, %v157
    %v159 = vrot.slane %v154, %v158
    %v161 = vadd.f32 %v152, %v159
    %v162 = vadd.f32 %v153, %v159
    %v163 = vld [vmem:[%s3] sm:$0xf]
    %v164 = vld [vmem:[%s3 + $0x4] sm:$0xf]
    %v165 = vunpack.c.l.bf16 %v163
    %v166 = vunpack.c.l.bf16 %v164
    %v167 = vadd.f32 %v161, %v165
    %v168 = vadd.f32 %v162, %v166
    %169 = vadd.xlane.f32.xlu0 %v167
    %v170 = vpop.xlane.xlu0 %169
    %171 = vadd.xlane.f32.xlu0 %v168
    %v172 = vpop.xlane.xlu0 %171
    %v173 = vrcp.pop 128.0
    %v174 = vmul.f32 %v170, %v173
    %v175 = vmul.f32 %v172, %v173
    %v176 = vsub.f32 %v167, %v174
    %v177 = vsub.f32 %v168, %v175
    %v178 = vmul.f32 %v176, %v176
    %v179 = vmul.f32 %v177, %v177
    %180 = vadd.xlane.f32.xlu0 %v178
    %v181 = vpop.xlane.xlu0 %180
    %182 = vadd.xlane.f32.xlu0 %v179
    %v183 = vpop.xlane.xlu0 %182
    %v184 = vmul.f32 %v181, %v173
    %v185 = vmul.f32 %v183, %v173
    %v186 = vadd.f32 %v184, 1e-05
    %v187 = vadd.f32 %v185, 1e-05
    %v188 = vrsqrt.pop %v186
    %v189 = vrsqrt.pop %v187
    %v190 = vmul.f32 %v176, %v188
    %v191 = vmul.f32 %v177, %v189
    %v192 = vld [vmem:[%s4] sm:$0x1]
    %v194 = vlaneseq
    %v195 = vshrl.u32 %v194, 7
    %v196 = vsub.s32 0, %v195
    %v197 = vrot.slane %v192, %v196
    %v199 = vmul.f32 %v190, %v197
    %v200 = vmul.f32 %v191, %v197
    %v201 = vld [vmem:[%s5] sm:$0x1]
    %v203 = vlaneseq
    %v204 = vshrl.u32 %v203, 7
    %v205 = vsub.s32 0, %v204
    %v206 = vrot.slane %v201, %v205
    %v208 = vadd.f32 %v199, %v206
    %v209 = vadd.f32 %v200, %v206
    %v210 = vpack.c.bf16 %v209, %v208
    %v212 = vunpack.c.l.b16 %v210
    %v213 = vunpack.c.h.b16 %v210
    %v214 = vpack.c.b16 %v212, %v212
    %v215 = vpack.c.b16 %v213, %v213
    %218 = vst [vmem:[%s6] sm:$0xf] %v214
    %219 = vst [vmem:[%s6 + $0x4] sm:$0xf] %v215
  $region33: #{bart_decoder_forward.22} parent=0 // pred_fallthru
    _
  // Predicated region
  $region34: #{bart_decoder_forward.22} parent=0 // pred_check
    _
  $region35: #{bart_decoder_forward.22} parent=0 // pred_check_branch
    %221 = sbr.rel (0) target = $region37
  $region36: #{bart_decoder_forward.22} parent=0 // pred_region
    _
  $region37: #{bart_decoder_forward.22} parent=0 // pred_fallthru
    _
  // Predicated region
  $region38: #{bart_decoder_forward.22} parent=0 // pred_check
    _
  $region39: #{bart_decoder_forward.22} parent=0 // pred_check_branch
    %223 = sbr.rel (0) target = $region41
  $region40: #{bart_decoder_forward.22} parent=0 // pred_region
    _
  $region41: #{bart_decoder_forward.22} parent=0 // pred_fallthru
    _

// kernel: bart_decoder_forward.23
$region0: #{bart_decoder_forward.23}
  #allocation0 [shape = 'u32[]', space=smem, size = 0x4, offset = 0x4, fixed_abs, tag = 'smem constant byte address 0x4 - core index']
  #allocation1 [shape = 'u32[144,128]{1,0:T(1,128)}', space=vmem, size = 0x12000, scoped, tag = 'internal scratch']
  #allocation2 [shape = 'f32[16,128]{1,0:T(8,128)}', space=vmem, size = 0x2000, scoped, tag = 'scratch operand']
  %s0 = inlined_call_operand.vmem [shape: bf16[16,128], index: 0, kind: input, shape index: {}]
  %s1 = inlined_call_operand.vmem [shape: bf16[128,128], index: 1, kind: input, shape index: {}]
  %s2 = inlined_call_operand.vmem [shape: f32[1,128], index: 2, kind: input, shape index: {}]
  %s3 = inlined_call_operand.vmem [shape: bf16[16,128], index: 3, kind: output, shape index: {}]
  %s4 = sld [smem:[#allocation0]]
  $region30: #{bart_decoder_forward.23} parent=0
    _
  %s6 = ssub.s32 1, %s4
  %s7 = scalar_select 0, %s6, %s4
  // Predicated region
  $region2: #{bart_decoder_forward.23} parent=0 // pred_check
    _
  $region3: #{bart_decoder_forward.23} parent=0 // pred_check_branch
    %9 = sbr.rel (0) target = $region5
  $region4: #{bart_decoder_forward.23} parent=0 // pred_region
    _
  $region5: #{bart_decoder_forward.23} parent=0 // pred_fallthru
    _
  // Predicated region
  $region6: #{bart_decoder_forward.23} parent=0 // pred_check
    _
  $region7: #{bart_decoder_forward.23} parent=0 // pred_check_branch
    %11 = sbr.rel (0) target = $region9
  $region8: #{bart_decoder_forward.23} parent=0 // pred_region
    _
  $region9: #{bart_decoder_forward.23} parent=0 // pred_fallthru
    _
  // Predicated region
  $region10: #{bart_decoder_forward.23} parent=0 // pred_check
    _
  $region11: #{bart_decoder_forward.23} parent=0 // pred_check_branch
    %13 = sbr.rel (0) target = $region13
  $region12: #{bart_decoder_forward.23} parent=0 // pred_region
    _
  $region13: #{bart_decoder_forward.23} parent=0 // pred_fallthru
    _
  %p15 = scmp.eq.s32.totalorder 0, 0
  // Predicated region
  $region14: #{bart_decoder_forward.23} parent=0 // pred_check
    %p16 = pneg %p15
  $region15: #{bart_decoder_forward.23} parent=0 // pred_check_branch
    %18 = sbr.rel (%p16) target = $region17
  $region16: #{bart_decoder_forward.23} parent=0 // pred_region
    %19 = vst [vmem:[#allocation2] sm:$0xff] 0.0
    %20 = vst [vmem:[#allocation2 + $0x8] sm:$0xff] 0.0
  $region17: #{bart_decoder_forward.23} parent=0 // pred_fallthru
    _
  %v21 = vld [vmem:[#allocation2] sm:$0xff]
  %v22 = vld [vmem:[#allocation2 + $0x8] sm:$0xff]
  %v23 = vld [vmem:[%s0] sm:$0xf]
  %v24 = vld [vmem:[%s0 + $0x4] sm:$0xf]
  %v25 = vld [vmem:[%s1] sm:$0xf]
  %v26 = vld [vmem:[%s1 + $0x4] sm:$0xf]
  %v27 = vld [vmem:[%s1 + $0x8] sm:$0xf]
  %v28 = vld [vmem:[%s1 + $0xc] sm:$0xf]
  %v29 = vld [vmem:[%s1 + $0x10] sm:$0xf]
  %v30 = vld [vmem:[%s1 + $0x14] sm:$0xf]
  %v31 = vld [vmem:[%s1 + $0x18] sm:$0xf]
  %v32 = vld [vmem:[%s1 + $0x1c] sm:$0xf]
  %v33 = vld [vmem:[%s1 + $0x20] sm:$0xf]
  %v34 = vld [vmem:[%s1 + $0x24] sm:$0xf]
  %v35 = vld [vmem:[%s1 + $0x28] sm:$0xf]
  %v36 = vld [vmem:[%s1 + $0x2c] sm:$0xf]
  %v37 = vld [vmem:[%s1 + $0x30] sm:$0xf]
  %v38 = vld [vmem:[%s1 + $0x34] sm:$0xf]
  %v39 = vld [vmem:[%s1 + $0x38] sm:$0xf]
  %v40 = vld [vmem:[%s1 + $0x3c] sm:$0xf]
  %v43 = vunpack.c.l.b16 %v23
  %v44 = vunpack.c.l.b16 %v24
  %v45 = vpack.c.b16 %v44, %v43
  %v63 = vunpack.c.l.b16 %v25
  %v64 = vunpack.c.l.b16 %v26
  %v65 = vunpack.c.l.b16 %v27
  %v66 = vunpack.c.l.b16 %v28
  %v67 = vunpack.c.l.b16 %v29
  %v68 = vunpack.c.l.b16 %v30
  %v69 = vunpack.c.l.b16 %v31
  %v70 = vunpack.c.l.b16 %v32
  %v71 = vunpack.c.l.b16 %v33
  %v72 = vunpack.c.l.b16 %v34
  %v73 = vunpack.c.l.b16 %v35
  %v74 = vunpack.c.l.b16 %v36
  %v75 = vunpack.c.l.b16 %v37
  %v76 = vunpack.c.l.b16 %v38
  %v77 = vunpack.c.l.b16 %v39
  %v78 = vunpack.c.l.b16 %v40
  %v79 = vpack.c.b16 %v64, %v63
  %v80 = vpack.c.b16 %v66, %v65
  %v81 = vpack.c.b16 %v68, %v67
  %v82 = vpack.c.b16 %v70, %v69
  %v83 = vpack.c.b16 %v72, %v71
  %v84 = vpack.c.b16 %v74, %v73
  %v85 = vpack.c.b16 %v76, %v75
  %v86 = vpack.c.b16 %v78, %v77
  %95 = vmatprep.subr.bf16.mxu0 0
  %96 = vmatpush1.bf16.msra.mxu0 %v79
  %97 = vmatprep.subr.bf16.mxu0 0
  %98 = vmatpush1.bf16.msra.mxu0 %v80
  %99 = vmatprep.subr.bf16.mxu0 0
  %100 = vmatpush1.bf16.msra.mxu0 %v81
  %101 = vmatprep.subr.bf16.mxu0 0
  %102 = vmatpush1.bf16.msra.mxu0 %v82
  %103 = vmatprep.subr.bf16.mxu0 0
  %104 = vmatpush1.bf16.msra.mxu0 %v83
  %105 = vmatprep.subr.bf16.mxu0 0
  %106 = vmatpush1.bf16.msra.mxu0 %v84
  %107 = vmatprep.subr.bf16.mxu0 0
  %108 = vmatpush1.bf16.msra.mxu0 %v85
  %109 = vmatprep.subr.bf16.mxu0 0
  %110 = vmatpush1.bf16.msra.mxu0 %v86
  %111 = vmatprep.subr.bf16.mxu0 0
  %112 = vmatpush1.bf16.msra.mxu0 0
  %113 = vmatprep.subr.bf16.mxu0 0
  %114 = vmatpush1.bf16.msra.mxu0 0
  %115 = vmatprep.subr.bf16.mxu0 0
  %116 = vmatpush1.bf16.msra.mxu0 0
  %117 = vmatprep.subr.bf16.mxu0 0
  %118 = vmatpush1.bf16.msra.mxu0 0
  %119 = vmatprep.subr.bf16.mxu0 0
  %120 = vmatpush1.bf16.msra.mxu0 0
  %121 = vmatprep.subr.bf16.mxu0 0
  %122 = vmatpush1.bf16.msra.mxu0 0
  %123 = vmatprep.subr.bf16.mxu0 0
  %124 = vmatpush1.bf16.msra.mxu0 0
  %125 = vmatprep.subr.bf16.mxu0 0
  %126 = vmatpush1.bf16.msra.mxu0 0
  %127 = vmatprep.mubr.bf16.mxu0 0
  %128 = vmatmul.mubr.bf16.gmra.mrb[0].mxu0 %v45
  %v129 = vpop.f32.mrb[0].mxu0
  %v130 = vadd.f32 0.0, %v129
  %v131 = vpop.f32.mrb[0].mxu0
  %v132 = vpop.f32.mrb[0].mxu0
  %v133 = vadd.f32 0.0, %v132
  %v134 = vpop.f32.mrb[0].mxu0
  %135 = vdwg.mxu0
  %v136 = vadd.f32 %v21, %v130
  %v137 = vadd.f32 %v22, %v133
  %138 = vst [vmem:[#allocation2] sm:$0xff] %v136
  %139 = vst [vmem:[#allocation2 + $0x8] sm:$0xff] %v137
  // Predicated region
  $region18: #{bart_decoder_forward.23} parent=0 // pred_check
    %p140 = pneg %p15
  $region19: #{bart_decoder_forward.23} parent=0 // pred_check_branch
    %142 = sbr.rel (%p140) target = $region21
  $region20: #{bart_decoder_forward.23} parent=0 // pred_region
    %v143 = vld [vmem:[#allocation2] sm:$0xff]
    %v144 = vld [vmem:[#allocation2 + $0x8] sm:$0xff]
    %v145 = vld [vmem:[%s2] sm:$0x1]
    %v147 = vlaneseq
    %v148 = vshrl.u32 %v147, 7
    %v149 = vsub.s32 0, %v148
    %v150 = vrot.slane %v145, %v149
    %v152 = vadd.f32 %v143, %v150
    %v153 = vadd.f32 %v144, %v150
    %v154 = vpack.c.bf16 %v153, %v152
    %v156 = vunpack.c.l.b16 %v154
    %v157 = vunpack.c.h.b16 %v154
    %v158 = vpack.c.b16 %v156, %v156
    %v159 = vpack.c.b16 %v157, %v157
    %162 = vst [vmem:[%s3] sm:$0xf] %v158
    %163 = vst [vmem:[%s3 + $0x4] sm:$0xf] %v159
  $region21: #{bart_decoder_forward.23} parent=0 // pred_fallthru
    _
  // Predicated region
  $region22: #{bart_decoder_forward.23} parent=0 // pred_check
    _
  $region23: #{bart_decoder_forward.23} parent=0 // pred_check_branch
    %165 = sbr.rel (0) target = $region25
  $region24: #{bart_decoder_forward.23} parent=0 // pred_region
    _
  $region25: #{bart_decoder_forward.23} parent=0 // pred_fallthru
    _
  // Predicated region
  $region26: #{bart_decoder_forward.23} parent=0 // pred_check
    _
  $region27: #{bart_decoder_forward.23} parent=0 // pred_check_branch
    %167 = sbr.rel (0) target = $region29
  $region28: #{bart_decoder_forward.23} parent=0 // pred_region
    _
  $region29: #{bart_decoder_forward.23} parent=0 // pred_fallthru
    _

// kernel: bart_decoder_forward.24
$region0: #{bart_decoder_forward.24}
  #allocation0 [shape = 'u32[]', space=smem, size = 0x4, offset = 0x4, fixed_abs, tag = 'smem constant byte address 0x4 - core index']
  #allocation1 [shape = 'u32[144,128]{1,0:T(1,128)}', space=vmem, size = 0x12000, scoped, tag = 'internal scratch']
  #allocation2 [shape = 'f32[32,256]{1,0:T(8,128)}', space=vmem, size = 0x8000, scoped, tag = 'scratch operand']
  %s0 = inlined_call_operand.vmem [shape: bf16[32,128], index: 0, kind: input, shape index: {}]
  %s1 = inlined_call_operand.vmem [shape: bf16[128,256], index: 1, kind: input, shape index: {}]
  %s2 = inlined_call_operand.vmem [shape: f32[1,256], index: 2, kind: input, shape index: {}]
  %s3 = inlined_call_operand.vmem [shape: bf16[32,256], index: 3, kind: output, shape index: {}]
  %s4 = sld [smem:[#allocation0]]
  $region30: #{bart_decoder_forward.24} parent=0
    _
  %s6 = ssub.s32 1, %s4
  %s7 = scalar_select 0, %s6, %s4
  // Predicated region
  $region2: #{bart_decoder_forward.24} parent=0 // pred_check
    _
  $region3: #{bart_decoder_forward.24} parent=0 // pred_check_branch
    %9 = sbr.rel (0) target = $region5
  $region4: #{bart_decoder_forward.24} parent=0 // pred_region
    _
  $region5: #{bart_decoder_forward.24} parent=0 // pred_fallthru
    _
  // Predicated region
  $region6: #{bart_decoder_forward.24} parent=0 // pred_check
    _
  $region7: #{bart_decoder_forward.24} parent=0 // pred_check_branch
    %11 = sbr.rel (0) target = $region9
  $region8: #{bart_decoder_forward.24} parent=0 // pred_region
    _
  $region9: #{bart_decoder_forward.24} parent=0 // pred_fallthru
    _
  // Predicated region
  $region10: #{bart_decoder_forward.24} parent=0 // pred_check
    _
  $region11: #{bart_decoder_forward.24} parent=0 // pred_check_branch
    %13 = sbr.rel (0) target = $region13
  $region12: #{bart_decoder_forward.24} parent=0 // pred_region
    _
  $region13: #{bart_decoder_forward.24} parent=0 // pred_fallthru
    _
  %p15 = scmp.eq.s32.totalorder 0, 0
  // Predicated region
  $region14: #{bart_decoder_forward.24} parent=0 // pred_check
    %p16 = pneg %p15
  $region15: #{bart_decoder_forward.24} parent=0 // pred_check_branch
    %18 = sbr.rel (%p16) target = $region17
  $region16: #{bart_decoder_forward.24} parent=0 // pred_region
    %19 = vst [vmem:[#allocation2] sm:$0xff] 0.0
    %20 = vst [vmem:[#allocation2 + $0x8] sm:$0xff] 0.0
    %21 = vst [vmem:[#allocation2 + $0x10] sm:$0xff] 0.0
    %22 = vst [vmem:[#allocation2 + $0x18] sm:$0xff] 0.0
    %23 = vst [vmem:[#allocation2 + $0x20] sm:$0xff] 0.0
    %24 = vst [vmem:[#allocation2 + $0x28] sm:$0xff] 0.0
    %25 = vst [vmem:[#allocation2 + $0x30] sm:$0xff] 0.0
    %26 = vst [vmem:[#allocation2 + $0x38] sm:$0xff] 0.0
  $region17: #{bart_decoder_forward.24} parent=0 // pred_fallthru
    _
  %v27 = vld [vmem:[#allocation2] sm:$0xff]
  %v28 = vld [vmem:[#allocation2 + $0x8] sm:$0xff]
  %v29 = vld [vmem:[#allocation2 + $0x10] sm:$0xff]
  %v30 = vld [vmem:[#allocation2 + $0x18] sm:$0xff]
  %v31 = vld [vmem:[#allocation2 + $0x20] sm:$0xff]
  %v32 = vld [vmem:[#allocation2 + $0x28] sm:$0xff]
  %v33 = vld [vmem:[#allocation2 + $0x30] sm:$0xff]
  %v34 = vld [vmem:[#allocation2 + $0x38] sm:$0xff]
  %v35 = vld [vmem:[%s0] sm:$0xf]
  %v36 = vld [vmem:[%s0 + $0x4] sm:$0xf]
  %v37 = vld [vmem:[%s0 + $0x8] sm:$0xf]
  %v38 = vld [vmem:[%s0 + $0xc] sm:$0xf]
  %v39 = vld [vmem:[%s1] sm:$0xff]
  %v40 = vld [vmem:[%s1 + $0x8] sm:$0xff]
  %v41 = vld [vmem:[%s1 + $0x10] sm:$0xff]
  %v42 = vld [vmem:[%s1 + $0x18] sm:$0xff]
  %v43 = vld [vmem:[%s1 + $0x20] sm:$0xff]
  %v44 = vld [vmem:[%s1 + $0x28] sm:$0xff]
  %v45 = vld [vmem:[%s1 + $0x30] sm:$0xff]
  %v46 = vld [vmem:[%s1 + $0x38] sm:$0xff]
  %v47 = vld [vmem:[%s1 + $0x40] sm:$0xff]
  %v48 = vld [vmem:[%s1 + $0x48] sm:$0xff]
  %v49 = vld [vmem:[%s1 + $0x50] sm:$0xff]
  %v50 = vld [vmem:[%s1 + $0x58] sm:$0xff]
  %v51 = vld [vmem:[%s1 + $0x60] sm:$0xff]
  %v52 = vld [vmem:[%s1 + $0x68] sm:$0xff]
  %v53 = vld [vmem:[%s1 + $0x70] sm:$0xff]
  %v54 = vld [vmem:[%s1 + $0x78] sm:$0xff]
  %v59 = vunpack.c.l.b16 %v35
  %v60 = vunpack.c.l.b16 %v36
  %v61 = vunpack.c.l.b16 %v37
  %v62 = vunpack.c.l.b16 %v38
  %v63 = vpack.c.b16 %v60, %v59
  %v64 = vpack.c.b16 %v62, %v61
  %v83 = vunpack.c.l.b16 %v39
  %v84 = vunpack.c.h.b16 %v39
  %v85 = vunpack.c.l.b16 %v40
  %v86 = vunpack.c.h.b16 %v40
  %v87 = vunpack.c.l.b16 %v41
  %v88 = vunpack.c.h.b16 %v41
  %v89 = vunpack.c.l.b16 %v42
  %v90 = vunpack.c.h.b16 %v42
  %v91 = vunpack.c.l.b16 %v43
  %v92 = vunpack.c.h.b16 %v43
  %v93 = vunpack.c.l.b16 %v44
  %v94 = vunpack.c.h.b16 %v44
  %v95 = vunpack.c.l.b16 %v45
  %v96 = vunpack.c.h.b16 %v45
  %v97 = vunpack.c.l.b16 %v46
  %v98 = vunpack.c.h.b16 %v46
  %v99 = vunpack.c.l.b16 %v47
  %v100 = vunpack.c.h.b16 %v47
  %v101 = vunpack.c.l.b16 %v48
  %v102 = vunpack.c.h.b16 %v48
  %v103 = vunpack.c.l.b16 %v49
  %v104 = vunpack.c.h.b16 %v49
  %v105 = vunpack.c.l.b16 %v50
  %v106 = vunpack.c.h.b16 %v50
  %v107 = vunpack.c.l.b16 %v51
  %v108 = vunpack.c.h.b16 %v51
  %v109 = vunpack.c.l.b16 %v52
  %v110 = vunpack.c.h.b16 %v52
  %v111 = vunpack.c.l.b16 %v53
  %v112 = vunpack.c.h.b16 %v53
  %v113 = vunpack.c.l.b16 %v54
  %v114 = vunpack.c.h.b16 %v54
  %v115 = vpack.c.b16 %v85, %v83
  %v116 = vpack.c.b16 %v86, %v84
  %v117 = vpack.c.b16 %v89, %v87
  %v118 = vpack.c.b16 %v90, %v88
  %v119 = vpack.c.b16 %v93, %v91
  %v120 = vpack.c.b16 %v94, %v92
  %v121 = vpack.c.b16 %v97, %v95
  %v122 = vpack.c.b16 %v98, %v96
  %v123 = vpack.c.b16 %v101, %v99
  %v124 = vpack.c.b16 %v102, %v100
  %v125 = vpack.c.b16 %v105, %v103
  %v126 = vpack.c.b16 %v106, %v104
  %v127 = vpack.c.b16 %v109, %v107
  %v128 = vpack.c.b16 %v110, %v108
  %v129 = vpack.c.b16 %v113, %v111
  %v130 = vpack.c.b16 %v114, %v112
  %147 = vmatprep.subr.bf16.mxu0 %v116
  %148 = vmatpush1.bf16.msra.mxu0 %v115
  %149 = vmatprep.subr.bf16.mxu0 %v118
  %150 = vmatpush1.bf16.msra.mxu0 %v117
  %151 = vmatprep.subr.bf16.mxu0 %v120
  %152 = vmatpush1.bf16.msra.mxu0 %v119
  %153 = vmatprep.subr.bf16.mxu0 %v122
  %154 = vmatpush1.bf16.msra.mxu0 %v121
  %155 = vmatprep.subr.bf16.mxu0 %v124
  %156 = vmatpush1.bf16.msra.mxu0 %v123
  %157 = vmatprep.subr.bf16.mxu0 %v126
  %158 = vmatpush1.bf16.msra.mxu0 %v125
  %159 = vmatprep.subr.bf16.mxu0 %v128
  %160 = vmatpush1.bf16.msra.mxu0 %v127
  %161 = vmatprep.subr.bf16.mxu0 %v130
  %162 = vmatpush1.bf16.msra.mxu0 %v129
  %163 = vmatprep.subr.bf16.mxu0 0
  %164 = vmatpush1.bf16.msra.mxu0 0
  %165 = vmatprep.subr.bf16.mxu0 0
  %166 = vmatpush1.bf16.msra.mxu0 0
  %167 = vmatprep.subr.bf16.mxu0 0
  %168 = vmatpush1.bf16.msra.mxu0 0
  %169 = vmatprep.subr.bf16.mxu0 0
  %170 = vmatpush1.bf16.msra.mxu0 0
  %171 = vmatprep.subr.bf16.mxu0 0
  %172 = vmatpush1.bf16.msra.mxu0 0
  %173 = vmatprep.subr.bf16.mxu0 0
  %174 = vmatpush1.bf16.msra.mxu0 0
  %175 = vmatprep.subr.bf16.mxu0 0
  %176 = vmatpush1.bf16.msra.mxu0 0
  %177 = vmatprep.subr.bf16.mxu0 0
  %178 = vmatpush1.bf16.msra.mxu0 0
  %179 = vmatprep.mubr.bf16.mxu0 0
  %180 = vmatmul.mubr.bf16.gmra.mrb[0].mxu0 %v63
  %v181 = vpop.f32.mrb[0].mxu0
  %v182 = vadd.f32 0.0, %v181
  %v183 = vpop.f32.mrb[0].mxu0
  %v184 = vadd.f32 0.0, %v183
  %v185 = vpop.f32.mrb[0].mxu0
  %v186 = vadd.f32 0.0, %v185
  %v187 = vpop.f32.mrb[0].mxu0
  %v188 = vadd.f32 0.0, %v187
  %189 = vmatprep.mubr.bf16.mxu0 0
  %190 = vmatmul.mubr.bf16.gmra.mrb[0].mxu0 %v64
  %v191 = vpop.f32.mrb[0].mxu0
  %v192 = vadd.f32 0.0, %v191
  %v193 = vpop.f32.mrb[0].mxu0
  %v194 = vadd.f32 0.0, %v193
  %v195 = vpop.f32.mrb[0].mxu0
  %v196 = vadd.f32 0.0, %v195
  %v197 = vpop.f32.mrb[0].mxu0
  %v198 = vadd.f32 0.0, %v197
  %199 = vdwg.mxu0
  %v200 = vadd.f32 %v27, %v182
  %v201 = vadd.f32 %v28, %v184
  %v202 = vadd.f32 %v29, %v186
  %v203 = vadd.f32 %v30, %v188
  %v204 = vadd.f32 %v31, %v192
  %v205 = vadd.f32 %v32, %v194
  %v206 = vadd.f32 %v33, %v196
  %v207 = vadd.f32 %v34, %v198
  %208 = vst [vmem:[#allocation2] sm:$0xff] %v200
  %209 = vst [vmem:[#allocation2 + $0x8] sm:$0xff] %v201
  %210 = vst [vmem:[#allocation2 + $0x10] sm:$0xff] %v202
  %211 = vst [vmem:[#allocation2 + $0x18] sm:$0xff] %v203
  %212 = vst [vmem:[#allocation2 + $0x20] sm:$0xff] %v204
  %213 = vst [vmem:[#allocation2 + $0x28] sm:$0xff] %v205
  %214 = vst [vmem:[#allocation2 + $0x30] sm:$0xff] %v206
  %215 = vst [vmem:[#allocation2 + $0x38] sm:$0xff] %v207
  // Predicated region
  $region18: #{bart_decoder_forward.24} parent=0 // pred_check
    %p216 = pneg %p15
  $region19: #{bart_decoder_forward.24} parent=0 // pred_check_branch
    %218 = sbr.rel (%p216) target = $region21
  $region20: #{bart_decoder_forward.24} parent=0 // pred_region
    %v219 = vld [vmem:[#allocation2] sm:$0xff]
    %v220 = vld [vmem:[#allocation2 + $0x8] sm:$0xff]
    %v221 = vld [vmem:[#allocation2 + $0x10] sm:$0xff]
    %v222 = vld [vmem:[#allocation2 + $0x18] sm:$0xff]
    %v223 = vld [vmem:[#allocation2 + $0x20] sm:$0xff]
    %v224 = vld [vmem:[#allocation2 + $0x28] sm:$0xff]
    %v225 = vld [vmem:[#allocation2 + $0x30] sm:$0xff]
    %v226 = vld [vmem:[#allocation2 + $0x38] sm:$0xff]
    %v227 = vld [vmem:[%s2] sm:$0x3]
    %v229 = vlaneseq
    %v230 = vshrl.u32 %v229, 7
    %v231 = vsub.s32 0, %v230
    %v232 = vrot.slane %v227, %v231
    %v233 = vlaneseq
    %v234 = vshrl.u32 %v233, 7
    %v235 = vsub.s32 1, %v234
    %v236 = vrot.slane %v227, %v235
    %v239 = vadd.f32 %v219, %v232
    %v240 = vadd.f32 %v220, %v236
    %v241 = vadd.f32 %v221, %v232
    %v242 = vadd.f32 %v222, %v236
    %v243 = vadd.f32 %v223, %v232
    %v244 = vadd.f32 %v224, %v236
    %v245 = vadd.f32 %v225, %v232
    %v246 = vadd.f32 %v226, %v236
    %v247 = vpack.c.bf16 %v241, %v239
    %v248 = vpack.c.bf16 %v242, %v240
    %v249 = vpack.c.bf16 %v245, %v243
    %v250 = vpack.c.bf16 %v246, %v244
    %v255 = vunpack.c.l.b16 %v247
    %v256 = vunpack.c.l.b16 %v248
    %v257 = vunpack.c.h.b16 %v247
    %v258 = vunpack.c.h.b16 %v248
    %v259 = vunpack.c.l.b16 %v249
    %v260 = vunpack.c.l.b16 %v250
    %v261 = vunpack.c.h.b16 %v249
    %v262 = vunpack.c.h.b16 %v250
    %v263 = vpack.c.b16 %v256, %v255
    %v264 = vpack.c.b16 %v258, %v257
    %v265 = vpack.c.b16 %v260, %v259
    %v266 = vpack.c.b16 %v262, %v261
    %271 = vst [vmem:[%s3] sm:$0xff] %v263
    %272 = vst [vmem:[%s3 + $0x8] sm:$0xff] %v264
    %273 = vst [vmem:[%s3 + $0x10] sm:$0xff] %v265
    %274 = vst [vmem:[%s3 + $0x18] sm:$0xff] %v266
  $region21: #{bart_decoder_forward.24} parent=0 // pred_fallthru
    _
  // Predicated region
  $region22: #{bart_decoder_forward.24} parent=0 // pred_check
    _
  $region23: #{bart_decoder_forward.24} parent=0 // pred_check_branch
    %276 = sbr.rel (0) target = $region25
  $region24: #{bart_decoder_forward.24} parent=0 // pred_region
    _
  $region25: #{bart_decoder_forward.24} parent=0 // pred_fallthru
    _
  // Predicated region
  $region26: #{bart_decoder_forward.24} parent=0 // pred_check
    _
  $region27: #{bart_decoder_forward.24} parent=0 // pred_check_branch
    %278 = sbr.rel (0) target = $region29
  $region28: #{bart_decoder_forward.24} parent=0 // pred_region
    _
  $region29: #{bart_decoder_forward.24} parent=0 // pred_fallthru
    _

// kernel: bart_decoder_forward.27
$region0: #{bart_decoder_forward.27}
  #allocation0 [shape = 'u32[]', space=smem, size = 0x4, offset = 0x4, fixed_abs, tag = 'smem constant byte address 0x4 - core index']
  #allocation1 [shape = 'u32[144,128]{1,0:T(1,128)}', space=vmem, size = 0x12000, scoped, tag = 'internal scratch']
  #allocation2 [shape = 'f32[16,256]{1,0:T(8,128)}', space=vmem, size = 0x4000, scoped, tag = 'scratch operand']
  %s0 = inlined_call_operand.vmem [shape: bf16[16,128], index: 0, kind: input, shape index: {}]
  %s1 = inlined_call_operand.vmem [shape: bf16[128,256], index: 1, kind: input, shape index: {}]
  %s2 = inlined_call_operand.vmem [shape: f32[1,256], index: 2, kind: input, shape index: {}]
  %s3 = inlined_call_operand.vmem [shape: bf16[16,256], index: 3, kind: output, shape index: {}]
  %s4 = sld [smem:[#allocation0]]
  $region30: #{bart_decoder_forward.27} parent=0
    _
  %s6 = ssub.s32 1, %s4
  %s7 = scalar_select 0, %s6, %s4
  // Predicated region
  $region2: #{bart_decoder_forward.27} parent=0 // pred_check
    _
  $region3: #{bart_decoder_forward.27} parent=0 // pred_check_branch
    %9 = sbr.rel (0) target = $region5
  $region4: #{bart_decoder_forward.27} parent=0 // pred_region
    _
  $region5: #{bart_decoder_forward.27} parent=0 // pred_fallthru
    _
  // Predicated region
  $region6: #{bart_decoder_forward.27} parent=0 // pred_check
    _
  $region7: #{bart_decoder_forward.27} parent=0 // pred_check_branch
    %11 = sbr.rel (0) target = $region9
  $region8: #{bart_decoder_forward.27} parent=0 // pred_region
    _
  $region9: #{bart_decoder_forward.27} parent=0 // pred_fallthru
    _
  // Predicated region
  $region10: #{bart_decoder_forward.27} parent=0 // pred_check
    _
  $region11: #{bart_decoder_forward.27} parent=0 // pred_check_branch
    %13 = sbr.rel (0) target = $region13
  $region12: #{bart_decoder_forward.27} parent=0 // pred_region
    _
  $region13: #{bart_decoder_forward.27} parent=0 // pred_fallthru
    _
  %p15 = scmp.eq.s32.totalorder 0, 0
  // Predicated region
  $region14: #{bart_decoder_forward.27} parent=0 // pred_check
    %p16 = pneg %p15
  $region15: #{bart_decoder_forward.27} parent=0 // pred_check_branch
    %18 = sbr.rel (%p16) target = $region17
  $region16: #{bart_decoder_forward.27} parent=0 // pred_region
    %19 = vst [vmem:[#allocation2] sm:$0xff] 0.0
    %20 = vst [vmem:[#allocation2 + $0x8] sm:$0xff] 0.0
    %21 = vst [vmem:[#allocation2 + $0x10] sm:$0xff] 0.0
    %22 = vst [vmem:[#allocation2 + $0x18] sm:$0xff] 0.0
  $region17: #{bart_decoder_forward.27} parent=0 // pred_fallthru
    _
  %v23 = vld [vmem:[#allocation2] sm:$0xff]
  %v24 = vld [vmem:[#allocation2 + $0x8] sm:$0xff]
  %v25 = vld [vmem:[#allocation2 + $0x10] sm:$0xff]
  %v26 = vld [vmem:[#allocation2 + $0x18] sm:$0xff]
  %v27 = vld [vmem:[%s0] sm:$0xf]
  %v28 = vld [vmem:[%s0 + $0x4] sm:$0xf]
  %v29 = vld [vmem:[%s1] sm:$0xff]
  %v30 = vld [vmem:[%s1 + $0x8] sm:$0xff]
  %v31 = vld [vmem:[%s1 + $0x10] sm:$0xff]
  %v32 = vld [vmem:[%s1 + $0x18] sm:$0xff]
  %v33 = vld [vmem:[%s1 + $0x20] sm:$0xff]
  %v34 = vld [vmem:[%s1 + $0x28] sm:$0xff]
  %v35 = vld [vmem:[%s1 + $0x30] sm:$0xff]
  %v36 = vld [vmem:[%s1 + $0x38] sm:$0xff]
  %v37 = vld [vmem:[%s1 + $0x40] sm:$0xff]
  %v38 = vld [vmem:[%s1 + $0x48] sm:$0xff]
  %v39 = vld [vmem:[%s1 + $0x50] sm:$0xff]
  %v40 = vld [vmem:[%s1 + $0x58] sm:$0xff]
  %v41 = vld [vmem:[%s1 + $0x60] sm:$0xff]
  %v42 = vld [vmem:[%s1 + $0x68] sm:$0xff]
  %v43 = vld [vmem:[%s1 + $0x70] sm:$0xff]
  %v44 = vld [vmem:[%s1 + $0x78] sm:$0xff]
  %v47 = vunpack.c.l.b16 %v27
  %v48 = vunpack.c.l.b16 %v28
  %v49 = vpack.c.b16 %v48, %v47
  %v67 = vunpack.c.l.b16 %v29
  %v68 = vunpack.c.h.b16 %v29
  %v69 = vunpack.c.l.b16 %v30
  %v70 = vunpack.c.h.b16 %v30
  %v71 = vunpack.c.l.b16 %v31
  %v72 = vunpack.c.h.b16 %v31
  %v73 = vunpack.c.l.b16 %v32
  %v74 = vunpack.c.h.b16 %v32
  %v75 = vunpack.c.l.b16 %v33
  %v76 = vunpack.c.h.b16 %v33
  %v77 = vunpack.c.l.b16 %v34
  %v78 = vunpack.c.h.b16 %v34
  %v79 = vunpack.c.l.b16 %v35
  %v80 = vunpack.c.h.b16 %v35
  %v81 = vunpack.c.l.b16 %v36
  %v82 = vunpack.c.h.b16 %v36
  %v83 = vunpack.c.l.b16 %v37
  %v84 = vunpack.c.h.b16 %v37
  %v85 = vunpack.c.l.b16 %v38
  %v86 = vunpack.c.h.b16 %v38
  %v87 = vunpack.c.l.b16 %v39
  %v88 = vunpack.c.h.b16 %v39
  %v89 = vunpack.c.l.b16 %v40
  %v90 = vunpack.c.h.b16 %v40
  %v91 = vunpack.c.l.b16 %v41
  %v92 = vunpack.c.h.b16 %v41
  %v93 = vunpack.c.l.b16 %v42
  %v94 = vunpack.c.h.b16 %v42
  %v95 = vunpack.c.l.b16 %v43
  %v96 = vunpack.c.h.b16 %v43
  %v97 = vunpack.c.l.b16 %v44
  %v98 = vunpack.c.h.b16 %v44
  %v99 = vpack.c.b16 %v69, %v67
  %v100 = vpack.c.b16 %v70, %v68
  %v101 = vpack.c.b16 %v73, %v71
  %v102 = vpack.c.b16 %v74, %v72
  %v103 = vpack.c.b16 %v77, %v75
  %v104 = vpack.c.b16 %v78, %v76
  %v105 = vpack.c.b16 %v81, %v79
  %v106 = vpack.c.b16 %v82, %v80
  %v107 = vpack.c.b16 %v85, %v83
  %v108 = vpack.c.b16 %v86, %v84
  %v109 = vpack.c.b16 %v89, %v87
  %v110 = vpack.c.b16 %v90, %v88
  %v111 = vpack.c.b16 %v93, %v91
  %v112 = vpack.c.b16 %v94, %v92
  %v113 = vpack.c.b16 %v97, %v95
  %v114 = vpack.c.b16 %v98, %v96
  %131 = vmatprep.subr.bf16.mxu0 %v100
  %132 = vmatpush1.bf16.msra.mxu0 %v99
  %133 = vmatprep.subr.bf16.mxu0 %v102
  %134 = vmatpush1.bf16.msra.mxu0 %v101
  %135 = vmatprep.subr.bf16.mxu0 %v104
  %136 = vmatpush1.bf16.msra.mxu0 %v103
  %137 = vmatprep.subr.bf16.mxu0 %v106
  %138 = vmatpush1.bf16.msra.mxu0 %v105
  %139 = vmatprep.subr.bf16.mxu0 %v108
  %140 = vmatpush1.bf16.msra.mxu0 %v107
  %141 = vmatprep.subr.bf16.mxu0 %v110
  %142 = vmatpush1.bf16.msra.mxu0 %v109
  %143 = vmatprep.subr.bf16.mxu0 %v112
  %144 = vmatpush1.bf16.msra.mxu0 %v111
  %145 = vmatprep.subr.bf16.mxu0 %v114
  %146 = vmatpush1.bf16.msra.mxu0 %v113
  %147 = vmatprep.subr.bf16.mxu0 0
  %148 = vmatpush1.bf16.msra.mxu0 0
  %149 = vmatprep.subr.bf16.mxu0 0
  %150 = vmatpush1.bf16.msra.mxu0 0
  %151 = vmatprep.subr.bf16.mxu0 0
  %152 = vmatpush1.bf16.msra.mxu0 0
  %153 = vmatprep.subr.bf16.mxu0 0
  %154 = vmatpush1.bf16.msra.mxu0 0
  %155 = vmatprep.subr.bf16.mxu0 0
  %156 = vmatpush1.bf16.msra.mxu0 0
  %157 = vmatprep.subr.bf16.mxu0 0
  %158 = vmatpush1.bf16.msra.mxu0 0
  %159 = vmatprep.subr.bf16.mxu0 0
  %160 = vmatpush1.bf16.msra.mxu0 0
  %161 = vmatprep.subr.bf16.mxu0 0
  %162 = vmatpush1.bf16.msra.mxu0 0
  %163 = vmatprep.mubr.bf16.mxu0 0
  %164 = vmatmul.mubr.bf16.gmra.mrb[0].mxu0 %v49
  %v165 = vpop.f32.mrb[0].mxu0
  %v166 = vadd.f32 0.0, %v165
  %v167 = vpop.f32.mrb[0].mxu0
  %v168 = vadd.f32 0.0, %v167
  %v169 = vpop.f32.mrb[0].mxu0
  %v170 = vadd.f32 0.0, %v169
  %v171 = vpop.f32.mrb[0].mxu0
  %v172 = vadd.f32 0.0, %v171
  %173 = vdwg.mxu0
  %v174 = vadd.f32 %v23, %v166
  %v175 = vadd.f32 %v24, %v168
  %v176 = vadd.f32 %v25, %v170
  %v177 = vadd.f32 %v26, %v172
  %178 = vst [vmem:[#allocation2] sm:$0xff] %v174
  %179 = vst [vmem:[#allocation2 + $0x8] sm:$0xff] %v175
  %180 = vst [vmem:[#allocation2 + $0x10] sm:$0xff] %v176
  %181 = vst [vmem:[#allocation2 + $0x18] sm:$0xff] %v177
  // Predicated region
  $region18: #{bart_decoder_forward.27} parent=0 // pred_check
    %p182 = pneg %p15
  $region19: #{bart_decoder_forward.27} parent=0 // pred_check_branch
    %184 = sbr.rel (%p182) target = $region21
  $region20: #{bart_decoder_forward.27} parent=0 // pred_region
    %v185 = vld [vmem:[#allocation2] sm:$0xff]
    %v186 = vld [vmem:[#allocation2 + $0x8] sm:$0xff]
    %v187 = vld [vmem:[#allocation2 + $0x10] sm:$0xff]
    %v188 = vld [vmem:[#allocation2 + $0x18] sm:$0xff]
    %v189 = vld [vmem:[%s2] sm:$0x3]
    %v191 = vlaneseq
    %v192 = vshrl.u32 %v191, 7
    %v193 = vsub.s32 0, %v192
    %v194 = vrot.slane %v189, %v193
    %v195 = vlaneseq
    %v196 = vshrl.u32 %v195, 7
    %v197 = vsub.s32 1, %v196
    %v198 = vrot.slane %v189, %v197
    %v201 = vadd.f32 %v185, %v194
    %v202 = vadd.f32 %v186, %v198
    %v203 = vadd.f32 %v187, %v194
    %v204 = vadd.f32 %v188, %v198
    %v205 = vmul.f32 %v201, %v201
    %v206 = vmul.f32 %v202, %v202
    %v207 = vmul.f32 %v203, %v203
    %v208 = vmul.f32 %v204, %v204
    %v209 = vmul.f32 %v201, %v205
    %v210 = vmul.f32 %v202, %v206
    %v211 = vmul.f32 %v203, %v207
    %v212 = vmul.f32 %v204, %v208
    %v213 = vmul.f32 %v209, 0.044715
    %v214 = vmul.f32 %v210, 0.044715
    %v215 = vmul.f32 %v211, 0.044715
    %v216 = vmul.f32 %v212, 0.044715
    %v217 = vadd.f32 %v201, %v213
    %v218 = vadd.f32 %v202, %v214
    %v219 = vadd.f32 %v203, %v215
    %v220 = vadd.f32 %v204, %v216
    %v221 = vmul.f32 %v217, 0.7978846
    %v222 = vmul.f32 %v218, 0.7978846
    %v223 = vmul.f32 %v219, 0.7978846
    %v224 = vmul.f32 %v220, 0.7978846
    %v225 = vtanh.pop %v221
    %v226 = vtanh.pop %v222
    %v227 = vtanh.pop %v223
    %v228 = vtanh.pop %v224
    %v229 = vadd.f32 %v225, 1.0
    %v230 = vadd.f32 %v226, 1.0
    %v231 = vadd.f32 %v227, 1.0
    %v232 = vadd.f32 %v228, 1.0
    %v233 = vmul.f32 %v229, 0.5
    %v234 = vmul.f32 %v230, 0.5
    %v235 = vmul.f32 %v231, 0.5
    %v236 = vmul.f32 %v232, 0.5
    %v237 = vmul.f32 %v201, %v233
    %v238 = vmul.f32 %v202, %v234
    %v239 = vmul.f32 %v203, %v235
    %v240 = vmul.f32 %v204, %v236
    %v241 = vpack.c.bf16 %v239, %v237
    %v242 = vpack.c.bf16 %v240, %v238
    %v245 = vunpack.c.l.b16 %v241
    %v246 = vunpack.c.l.b16 %v242
    %v247 = vunpack.c.h.b16 %v241
    %v248 = vunpack.c.h.b16 %v242
    %v249 = vpack.c.b16 %v246, %v245
    %v250 = vpack.c.b16 %v248, %v247
    %253 = vst [vmem:[%s3] sm:$0xff] %v249
    %254 = vst [vmem:[%s3 + $0x8] sm:$0xff] %v250
  $region21: #{bart_decoder_forward.27} parent=0 // pred_fallthru
    _
  // Predicated region
  $region22: #{bart_decoder_forward.27} parent=0 // pred_check
    _
  $region23: #{bart_decoder_forward.27} parent=0 // pred_check_branch
    %256 = sbr.rel (0) target = $region25
  $region24: #{bart_decoder_forward.27} parent=0 // pred_region
    _
  $region25: #{bart_decoder_forward.27} parent=0 // pred_fallthru
    _
  // Predicated region
  $region26: #{bart_decoder_forward.27} parent=0 // pred_check
    _
  $region27: #{bart_decoder_forward.27} parent=0 // pred_check_branch
    %258 = sbr.rel (0) target = $region29
  $region28: #{bart_decoder_forward.27} parent=0 // pred_region
    _
  $region29: #{bart_decoder_forward.27} parent=0 // pred_fallthru
    _

// kernel: bart_decoder_forward.28
$region0: #{bart_decoder_forward.28}
  #allocation0 [shape = 'u32[]', space=smem, size = 0x4, offset = 0x4, fixed_abs, tag = 'smem constant byte address 0x4 - core index']
  #allocation1 [shape = 'u32[144,128]{1,0:T(1,128)}', space=vmem, size = 0x12000, scoped, tag = 'internal scratch']
  #allocation2 [shape = 'f32[16,128]{1,0:T(8,128)}', space=vmem, size = 0x2000, scoped, tag = 'scratch operand']
  %s0 = inlined_call_operand.vmem [shape: bf16[16,256], index: 0, kind: input, shape index: {}]
  %s1 = inlined_call_operand.vmem [shape: bf16[256,128], index: 1, kind: input, shape index: {}]
  %s2 = inlined_call_operand.vmem [shape: f32[1,128], index: 2, kind: input, shape index: {}]
  %s3 = inlined_call_operand.vmem [shape: bf16[16,128], index: 3, kind: input, shape index: {}]
  %s4 = inlined_call_operand.vmem [shape: f32[1,128], index: 4, kind: input, shape index: {}]
  %s5 = inlined_call_operand.vmem [shape: f32[1,128], index: 5, kind: input, shape index: {}]
  %s6 = inlined_call_operand.vmem [shape: bf16[16,128], index: 6, kind: output, shape index: {}]
  %s7 = sld [smem:[#allocation0]]
  $region42: #{bart_decoder_forward.28} parent=0
    _
  %s9 = ssub.s32 1, %s7
  %s10 = scalar_select 0, %s9, %s7
  // Predicated region
  $region2: #{bart_decoder_forward.28} parent=0 // pred_check
    _
  $region3: #{bart_decoder_forward.28} parent=0 // pred_check_branch
    %12 = sbr.rel (0) target = $region5
  $region4: #{bart_decoder_forward.28} parent=0 // pred_region
    _
  $region5: #{bart_decoder_forward.28} parent=0 // pred_fallthru
    _
  // Predicated region
  $region6: #{bart_decoder_forward.28} parent=0 // pred_check
    _
  $region7: #{bart_decoder_forward.28} parent=0 // pred_check_branch
    %14 = sbr.rel (0) target = $region9
  $region8: #{bart_decoder_forward.28} parent=0 // pred_region
    _
  $region9: #{bart_decoder_forward.28} parent=0 // pred_fallthru
    _
  // Predicated region
  $region10: #{bart_decoder_forward.28} parent=0 // pred_check
    _
  $region11: #{bart_decoder_forward.28} parent=0 // pred_check_branch
    %16 = sbr.rel (0) target = $region13
  $region12: #{bart_decoder_forward.28} parent=0 // pred_region
    _
  $region13: #{bart_decoder_forward.28} parent=0 // pred_fallthru
    _
  // Predicated region
  $region14: #{bart_decoder_forward.28} parent=0 // pred_check
    _
  $region15: #{bart_decoder_forward.28} parent=0 // pred_check_branch
    %18 = sbr.rel (0) target = $region17
  $region16: #{bart_decoder_forward.28} parent=0 // pred_region
    _
  $region17: #{bart_decoder_forward.28} parent=0 // pred_fallthru
    _
  // Predicated region
  $region18: #{bart_decoder_forward.28} parent=0 // pred_check
    _
  $region19: #{bart_decoder_forward.28} parent=0 // pred_check_branch
    %20 = sbr.rel (0) target = $region21
  $region20: #{bart_decoder_forward.28} parent=0 // pred_region
    _
  $region21: #{bart_decoder_forward.28} parent=0 // pred_fallthru
    _
  // Predicated region
  $region22: #{bart_decoder_forward.28} parent=0 // pred_check
    _
  $region23: #{bart_decoder_forward.28} parent=0 // pred_check_branch
    %22 = sbr.rel (0) target = $region25
  $region24: #{bart_decoder_forward.28} parent=0 // pred_region
    _
  $region25: #{bart_decoder_forward.28} parent=0 // pred_fallthru
    _
  %p24 = scmp.eq.s32.totalorder 0, 0
  // Predicated region
  $region26: #{bart_decoder_forward.28} parent=0 // pred_check
    %p25 = pneg %p24
  $region27: #{bart_decoder_forward.28} parent=0 // pred_check_branch
    %27 = sbr.rel (%p25) target = $region29
  $region28: #{bart_decoder_forward.28} parent=0 // pred_region
    %28 = vst [vmem:[#allocation2] sm:$0xff] 0.0
    %29 = vst [vmem:[#allocation2 + $0x8] sm:$0xff] 0.0
  $region29: #{bart_decoder_forward.28} parent=0 // pred_fallthru
    _
  %v30 = vld [vmem:[#allocation2] sm:$0xff]
  %v31 = vld [vmem:[#allocation2 + $0x8] sm:$0xff]
  %v32 = vld [vmem:[%s0] sm:$0xff]
  %v33 = vld [vmem:[%s0 + $0x8] sm:$0xff]
  %v34 = vld [vmem:[%s1] sm:$0xf]
  %v35 = vld [vmem:[%s1 + $0x4] sm:$0xf]
  %v36 = vld [vmem:[%s1 + $0x8] sm:$0xf]
  %v37 = vld [vmem:[%s1 + $0xc] sm:$0xf]
  %v38 = vld [vmem:[%s1 + $0x10] sm:$0xf]
  %v39 = vld [vmem:[%s1 + $0x14] sm:$0xf]
  %v40 = vld [vmem:[%s1 + $0x18] sm:$0xf]
  %v41 = vld [vmem:[%s1 + $0x1c] sm:$0xf]
  %v42 = vld [vmem:[%s1 + $0x20] sm:$0xf]
  %v43 = vld [vmem:[%s1 + $0x24] sm:$0xf]
  %v44 = vld [vmem:[%s1 + $0x28] sm:$0xf]
  %v45 = vld [vmem:[%s1 + $0x2c] sm:$0xf]
  %v46 = vld [vmem:[%s1 + $0x30] sm:$0xf]
  %v47 = vld [vmem:[%s1 + $0x34] sm:$0xf]
  %v48 = vld [vmem:[%s1 + $0x38] sm:$0xf]
  %v49 = vld [vmem:[%s1 + $0x3c] sm:$0xf]
  %v50 = vld [vmem:[%s1 + $0x40] sm:$0xf]
  %v51 = vld [vmem:[%s1 + $0x44] sm:$0xf]
  %v52 = vld [vmem:[%s1 + $0x48] sm:$0xf]
  %v53 = vld [vmem:[%s1 + $0x4c] sm:$0xf]
  %v54 = vld [vmem:[%s1 + $0x50] sm:$0xf]
  %v55 = vld [vmem:[%s1 + $0x54] sm:$0xf]
  %v56 = vld [vmem:[%s1 + $0x58] sm:$0xf]
  %v57 = vld [vmem:[%s1 + $0x5c] sm:$0xf]
  %v58 = vld [vmem:[%s1 + $0x60] sm:$0xf]
  %v59 = vld [vmem:[%s1 + $0x64] sm:$0xf]
  %v60 = vld [vmem:[%s1 + $0x68] sm:$0xf]
  %v61 = vld [vmem:[%s1 + $0x6c] sm:$0xf]
  %v62 = vld [vmem:[%s1 + $0x70] sm:$0xf]
  %v63 = vld [vmem:[%s1 + $0x74] sm:$0xf]
  %v64 = vld [vmem:[%s1 + $0x78] sm:$0xf]
  %v65 = vld [vmem:[%s1 + $0x7c] sm:$0xf]
  %v68 = vunpack.c.l.b16 %v32
  %v69 = vunpack.c.h.b16 %v32
  %v70 = vunpack.c.l.b16 %v33
  %v71 = vunpack.c.h.b16 %v33
  %v72 = vpack.c.b16 %v70, %v68
  %v73 = vpack.c.b16 %v71, %v69
  %v108 = vunpack.c.l.b16 %v34
  %v109 = vunpack.c.l.b16 %v35
  %v110 = vunpack.c.l.b16 %v36
  %v111 = vunpack.c.l.b16 %v37
  %v112 = vunpack.c.l.b16 %v38
  %v113 = vunpack.c.l.b16 %v39
  %v114 = vunpack.c.l.b16 %v40
  %v115 = vunpack.c.l.b16 %v41
  %v116 = vunpack.c.l.b16 %v42
  %v117 = vunpack.c.l.b16 %v43
  %v118 = vunpack.c.l.b16 %v44
  %v119 = vunpack.c.l.b16 %v45
  %v120 = vunpack.c.l.b16 %v46
  %v121 = vunpack.c.l.b16 %v47
  %v122 = vunpack.c.l.b16 %v48
  %v123 = vunpack.c.l.b16 %v49
  %v124 = vunpack.c.l.b16 %v50
  %v125 = vunpack.c.l.b16 %v51
  %v126 = vunpack.c.l.b16 %v52
  %v127 = vunpack.c.l.b16 %v53
  %v128 = vunpack.c.l.b16 %v54
  %v129 = vunpack.c.l.b16 %v55
  %v130 = vunpack.c.l.b16 %v56
  %v131 = vunpack.c.l.b16 %v57
  %v132 = vunpack.c.l.b16 %v58
  %v133 = vunpack.c.l.b16 %v59
  %v134 = vunpack.c.l.b16 %v60
  %v135 = vunpack.c.l.b16 %v61
  %v136 = vunpack.c.l.b16 %v62
  %v137 = vunpack.c.l.b16 %v63
  %v138 = vunpack.c.l.b16 %v64
  %v139 = vunpack.c.l.b16 %v65
  %v140 = vpack.c.b16 %v109, %v108
  %v141 = vpack.c.b16 %v111, %v110
  %v142 = vpack.c.b16 %v113, %v112
  %v143 = vpack.c.b16 %v115, %v114
  %v144 = vpack.c.b16 %v117, %v116
  %v145 = vpack.c.b16 %v119, %v118
  %v146 = vpack.c.b16 %v121, %v120
  %v147 = vpack.c.b16 %v123, %v122
  %v148 = vpack.c.b16 %v125, %v124
  %v149 = vpack.c.b16 %v127, %v126
  %v150 = vpack.c.b16 %v129, %v128
  %v151 = vpack.c.b16 %v131, %v130
  %v152 = vpack.c.b16 %v133, %v132
  %v153 = vpack.c.b16 %v135, %v134
  %v154 = vpack.c.b16 %v137, %v136
  %v155 = vpack.c.b16 %v139, %v138
  %172 = vmatprep.subr.bf16.mxu0 0
  %173 = vmatpush1.bf16.msra.mxu0 %v140
  %174 = vmatprep.subr.bf16.mxu0 0
  %175 = vmatpush1.bf16.msra.mxu0 %v141
  %176 = vmatprep.subr.bf16.mxu0 0
  %177 = vmatpush1.bf16.msra.mxu0 %v142
  %178 = vmatprep.subr.bf16.mxu0 0
  %179 = vmatpush1.bf16.msra.mxu0 %v143
  %180 = vmatprep.subr.bf16.mxu0 0
  %181 = vmatpush1.bf16.msra.mxu0 %v144
  %182 = vmatprep.subr.bf16.mxu0 0
  %183 = vmatpush1.bf16.msra.mxu0 %v145
  %184 = vmatprep.subr.bf16.mxu0 0
  %185 = vmatpush1.bf16.msra.mxu0 %v146
  %186 = vmatprep.subr.bf16.mxu0 0
  %187 = vmatpush1.bf16.msra.mxu0 %v147
  %188 = vmatprep.subr.bf16.mxu0 0
  %189 = vmatpush1.bf16.msra.mxu0 %v148
  %190 = vmatprep.subr.bf16.mxu0 0
  %191 = vmatpush1.bf16.msra.mxu0 %v149
  %192 = vmatprep.subr.bf16.mxu0 0
  %193 = vmatpush1.bf16.msra.mxu0 %v150
  %194 = vmatprep.subr.bf16.mxu0 0
  %195 = vmatpush1.bf16.msra.mxu0 %v151
  %196 = vmatprep.subr.bf16.mxu0 0
  %197 = vmatpush1.bf16.msra.mxu0 %v152
  %198 = vmatprep.subr.bf16.mxu0 0
  %199 = vmatpush1.bf16.msra.mxu0 %v153
  %200 = vmatprep.subr.bf16.mxu0 0
  %201 = vmatpush1.bf16.msra.mxu0 %v154
  %202 = vmatprep.subr.bf16.mxu0 0
  %203 = vmatpush1.bf16.msra.mxu0 %v155
  %204 = vmatprep.mubr.bf16.mxu0 %v73
  %205 = vmatmul.mubr.bf16.gmra.mrb[0].mxu0 %v72
  %v206 = vpop.f32.mrb[0].mxu0
  %v207 = vadd.f32 0.0, %v206
  %v208 = vpop.f32.mrb[0].mxu0
  %v209 = vpop.f32.mrb[0].mxu0
  %v210 = vadd.f32 0.0, %v209
  %v211 = vpop.f32.mrb[0].mxu0
  %212 = vdwg.mxu0
  %v213 = vadd.f32 %v30, %v207
  %v214 = vadd.f32 %v31, %v210
  %215 = vst [vmem:[#allocation2] sm:$0xff] %v213
  %216 = vst [vmem:[#allocation2 + $0x8] sm:$0xff] %v214
  // Predicated region
  $region30: #{bart_decoder_forward.28} parent=0 // pred_check
    %p217 = pneg %p24
  $region31: #{bart_decoder_forward.28} parent=0 // pred_check_branch
    %219 = sbr.rel (%p217) target = $region33
  $region32: #{bart_decoder_forward.28} parent=0 // pred_region
    %v220 = vld [vmem:[#allocation2] sm:$0xff]
    %v221 = vld [vmem:[#allocation2 + $0x8] sm:$0xff]
    %v222 = vld [vmem:[%s2] sm:$0x1]
    %v224 = vlaneseq
    %v225 = vshrl.u32 %v224, 7
    %v226 = vsub.s32 0, %v225
    %v227 = vrot.slane %v222, %v226
    %v229 = vadd.f32 %v220, %v227
    %v230 = vadd.f32 %v221, %v227
    %v231 = vld [vmem:[%s3] sm:$0xf]
    %v232 = vld [vmem:[%s3 + $0x4] sm:$0xf]
    %v233 = vunpack.c.l.bf16 %v231
    %v234 = vunpack.c.l.bf16 %v232
    %v235 = vadd.f32 %v229, %v233
    %v236 = vadd.f32 %v230, %v234
    %237 = vadd.xlane.f32.xlu0 %v235
    %v238 = vpop.xlane.xlu0 %237
    %239 = vadd.xlane.f32.xlu0 %v236
    %v240 = vpop.xlane.xlu0 %239
    %v241 = vrcp.pop 128.0
    %v242 = vmul.f32 %v238, %v241
    %v243 = vmul.f32 %v240, %v241
    %v244 = vsub.f32 %v235, %v242
    %v245 = vsub.f32 %v236, %v243
    %v246 = vmul.f32 %v244, %v244
    %v247 = vmul.f32 %v245, %v245
    %248 = vadd.xlane.f32.xlu0 %v246
    %v249 = vpop.xlane.xlu0 %248
    %250 = vadd.xlane.f32.xlu0 %v247
    %v251 = vpop.xlane.xlu0 %250
    %v252 = vmul.f32 %v249, %v241
    %v253 = vmul.f32 %v251, %v241
    %v254 = vadd.f32 %v252, 1e-05
    %v255 = vadd.f32 %v253, 1e-05
    %v256 = vrsqrt.pop %v254
    %v257 = vrsqrt.pop %v255
    %v258 = vmul.f32 %v244, %v256
    %v259 = vmul.f32 %v245, %v257
    %v260 = vld [vmem:[%s4] sm:$0x1]
    %v262 = vlaneseq
    %v263 = vshrl.u32 %v262, 7
    %v264 = vsub.s32 0, %v263
    %v265 = vrot.slane %v260, %v264
    %v267 = vmul.f32 %v258, %v265
    %v268 = vmul.f32 %v259, %v265
    %v269 = vld [vmem:[%s5] sm:$0x1]
    %v271 = vlaneseq
    %v272 = vshrl.u32 %v271, 7
    %v273 = vsub.s32 0, %v272
    %v274 = vrot.slane %v269, %v273
    %v276 = vadd.f32 %v267, %v274
    %v277 = vadd.f32 %v268, %v274
    %v278 = vpack.c.bf16 %v277, %v276
    %v280 = vunpack.c.l.b16 %v278
    %v281 = vunpack.c.h.b16 %v278
    %v282 = vpack.c.b16 %v280, %v280
    %v283 = vpack.c.b16 %v281, %v281
    %286 = vst [vmem:[%s6] sm:$0xf] %v282
    %287 = vst [vmem:[%s6 + $0x4] sm:$0xf] %v283
  $region33: #{bart_decoder_forward.28} parent=0 // pred_fallthru
    _
  // Predicated region
  $region34: #{bart_decoder_forward.28} parent=0 // pred_check
    _
  $region35: #{bart_decoder_forward.28} parent=0 // pred_check_branch
    %289 = sbr.rel (0) target = $region37
  $region36: #{bart_decoder_forward.28} parent=0 // pred_region
    _
  $region37: #{bart_decoder_forward.28} parent=0 // pred_fallthru
    _
  // Predicated region
  $region38: #{bart_decoder_forward.28} parent=0 // pred_check
    _
  $region39: #{bart_decoder_forward.28} parent=0 // pred_check_branch
    %291 = sbr.rel (0) target = $region41
  $region40: #{bart_decoder_forward.28} parent=0 // pred_region
    _
  $region41: #{bart_decoder_forward.28} parent=0 // pred_fallthru
    _

// kernel: bart_decoder_forward.25
$region0: #{bart_decoder_forward.25}
  #allocation0 [shape = 'u32[]', space=smem, size = 0x4, offset = 0x4, fixed_abs, tag = 'smem constant byte address 0x4 - core index']
  #allocation1 [shape = 'u32[144,128]{1,0:T(1,128)}', space=vmem, size = 0x12000, scoped, tag = 'internal scratch']
  #allocation2 [shape = 'f32[4,8,1]{2,1,0:T(8,128)}', space=vmem, size = 0x4000, scoped, tag = 'scratch operand']
  #allocation3 [shape = 'f32[4,8,1]{2,1,0:T(8,128)}', space=vmem, size = 0x4000, scoped, tag = 'scratch operand']
  #allocation4 [shape = 'f32[4,8,32]{2,1,0:T(8,128)}', space=vmem, size = 0x4000, scoped, tag = 'scratch operand']
  %s0 = inlined_call_operand.vmem [shape: bf16[2,8,128], index: 0, kind: input, shape index: {}]
  %s1 = inlined_call_operand.vmem [shape: bf16[2,16,256], index: 1, kind: input, shape index: {}, may-alias: {1,2}]
  %s2 = inlined_call_operand.vmem [shape: bf16[2,16,256], index: 2, kind: input, shape index: {}, may-alias: {1,2}]
  %s3 = inlined_call_operand.vmem [shape: f32[2,1,16], index: 3, kind: input, shape index: {}]
  %s4 = inlined_call_operand.vmem [shape: bf16[2,8,128], index: 4, kind: output, shape index: {}]
  %s5 = sld [smem:[#allocation0]]
  $region139: #{bart_decoder_forward.25} parent=0
    _
  %s7 = ssub.s32 1, %s5
  %s8 = scalar_select 0, %s7, %s5
  $region1: #{bart_decoder_forward.25} parent=0
    #allocation5 [shape = 'u8[8192]{0}', space=vmem, size = 0x2000, scoped, tag = 'input window, operand 1']
    #allocation6 [shape = 'u8[8192]{0}', space=vmem, size = 0x2000, scoped, tag = 'input window, operand 2']
    loop: start=0, step=1, limit=4
    $region2: #{bart_decoder_forward.25} parent=1 // loop_pre_header
      _
    $region3: #{bart_decoder_forward.25} parent=1 // loop_header
      %s10 = sphi 0, %s14
      %p11 = scmp.ge.s32.totalorder %s10, 4
      %s17 = sphi 0, %s43
      %s18 = sphi 0, %s39
      %s19 = sphi 0, %s35
      %s20 = sphi 0, %s31
      %s21 = sphi 0, %s17
      %s22 = sphi 0, %s18
      %s23 = sphi 0, %s19
      %s24 = sphi 0, %s20
      %s25 = sphi 0, %s21
      %s26 = sphi 0, %s22
      %s27 = sphi 0, %s23
      %s28 = sphi 0, %s24
      %s50 = sphi 0, %s52
      %s53 = sphi 0, %s50
      %s54 = sphi 0, %s53
      %s70 = sphi 0, %s54
      %s80 = sphi 0, %s82
      %s83 = sphi 0, %s80
      %s84 = sphi 0, %s83
      %s100 = sphi 0, %s84
      %s112 = sphi 0, %s114
      %s115 = sphi 0, %s112
      %s116 = sphi 0, %s115
      %s132 = sphi 0, %s116
      %s140 = sphi 0, %s142
      %s143 = sphi 0, %s140
      %s144 = sphi 0, %s143
      %s160 = sphi 0, %s144
      %s170 = sphi 0, %s172
      %s173 = sphi 0, %s170
      %s174 = sphi 0, %s173
      %s190 = sphi 0, %s174
    $region4: #{bart_decoder_forward.25} parent=1 // loop_header_branch
      %13 = sbr.rel (%p11) target = $region8
    $region5: #{bart_decoder_forward.25} parent=1 // loop_body
      %s15 = ssub.s32 %s10, 1
      %s16 = ssub.s32 %s10, 2
      %s29 = sadd.s32 1, %s20
      %p30 = scmp.ge.s32.totalorder %s29, 1
      %s31 = scalar_select %p30, 0, %s29
      %s32 = sadd.s32 1, %s19
      %s33 = scalar_select %p30, %s32, %s19
      %p34 = scmp.ge.s32.totalorder %s33, 1
      %s35 = scalar_select %p34, 0, %s33
      %s36 = sadd.s32 1, %s18
      %s37 = scalar_select %p34, %s36, %s18
      %p38 = scmp.ge.s32.totalorder %s37, 1
      %s39 = scalar_select %p38, 0, %s37
      %s40 = sadd.s32 1, %s17
      %s41 = scalar_select %p38, %s40, %s17
      %p42 = scmp.ge.s32.totalorder %s41, 2
      %s43 = scalar_select %p42, 0, %s41
      %s44 = ssub.s32 %s17, %s43
      %s45 = ssub.s32 %s19, %s35
      %s46 = sor.u32 %s44, %s45
      %s47 = ssub.s32 %s18, %s39
      %s48 = sor.u32 %s46, %s47
      %p49 = scmp.eq.s32.totalorder %s48, 0
      %s51 = sadd.s32 %s50, 1
      %s52 = scalar_select %p49, %s50, %s51
      %p55 = pneg %p49
      %p56 = scmp.eq.s32.totalorder %s10, 1
      %p57 = por %p55, %p56
      %p58 = scmp.ne.s32.totalorder %s50, %s53
      %p59 = scmp.eq.s32.totalorder %s10, 0
      %p60 = por %p58, %p59
      %p61 = scmp.ne.s32.totalorder %s50, %s53
      %p62 = scmp.eq.s32.totalorder %s15, 1
      %p63 = por %p61, %p62
      %p64 = scmp.ne.s32.totalorder %s53, %s54
      %p65 = scmp.eq.s32.totalorder %s15, 0
      %p66 = por %p64, %p65
      %p67 = scmp.ne.s32.totalorder %s53, %s54
      %p68 = scmp.eq.s32.totalorder %s16, 1
      %p69 = por %p67, %p68
      %p71 = scmp.ne.s32.totalorder %s54, %s70
      %p72 = scmp.eq.s32.totalorder %s16, 0
      %p73 = por %p71, %p72
      %s74 = ssub.s32 %s17, %s43
      %s75 = ssub.s32 %s20, %s31
      %s76 = sor.u32 %s74, %s75
      %s77 = ssub.s32 %s18, %s39
      %s78 = sor.u32 %s76, %s77
      %p79 = scmp.eq.s32.totalorder %s78, 0
      %s81 = sadd.s32 %s80, 1
      %s82 = scalar_select %p79, %s80, %s81
      %p85 = pneg %p79
      %p86 = scmp.eq.s32.totalorder %s10, 1
      %p87 = por %p85, %p86
      %p88 = scmp.ne.s32.totalorder %s80, %s83
      %p89 = scmp.eq.s32.totalorder %s10, 0
      %p90 = por %p88, %p89
      %p91 = scmp.ne.s32.totalorder %s80, %s83
      %p92 = scmp.eq.s32.totalorder %s15, 1
      %p93 = por %p91, %p92
      %p94 = scmp.ne.s32.totalorder %s83, %s84
      %p95 = scmp.eq.s32.totalorder %s15, 0
      %p96 = por %p94, %p95
      %p97 = scmp.ne.s32.totalorder %s83, %s84
      %p98 = scmp.eq.s32.totalorder %s16, 1
      %p99 = por %p97, %p98
      %p101 = scmp.ne.s32.totalorder %s84, %s100
      %p102 = scmp.eq.s32.totalorder %s16, 0
      %p103 = por %p101, %p102
      %s104 = sadd.s32 %s18, 1
      %s105 = sadd.s32 %s39, 1
      %s106 = ssub.s32 %s17, %s43
      %s107 = ssub.s32 %s20, %s31
      %s108 = sor.u32 %s106, %s107
      %s109 = ssub.s32 %s104, %s105
      %s110 = sor.u32 %s108, %s109
      %p111 = scmp.eq.s32.totalorder %s110, 0
      %s113 = sadd.s32 %s112, 1
      %s114 = scalar_select %p111, %s112, %s113
      %p117 = pneg %p111
      %p118 = scmp.eq.s32.totalorder %s10, 1
      %p119 = por %p117, %p118
      %p120 = scmp.ne.s32.totalorder %s112, %s115
      %p121 = scmp.eq.s32.totalorder %s10, 0
      %p122 = por %p120, %p121
      %p123 = scmp.ne.s32.totalorder %s112, %s115
      %p124 = scmp.eq.s32.totalorder %s15, 1
      %p125 = por %p123, %p124
      %p126 = scmp.ne.s32.totalorder %s115, %s116
      %p127 = scmp.eq.s32.totalorder %s15, 0
      %p128 = por %p126, %p127
      %p129 = scmp.ne.s32.totalorder %s115, %s116
      %p130 = scmp.eq.s32.totalorder %s16, 1
      %p131 = por %p129, %p130
      %p133 = scmp.ne.s32.totalorder %s116, %s132
      %p134 = scmp.eq.s32.totalorder %s16, 0
      %p135 = por %p133, %p134
      %s136 = ssub.s32 %s17, %s43
      %s137 = ssub.s32 %s20, %s31
      %s138 = sor.u32 %s136, %s137
      %p139 = scmp.eq.s32.totalorder %s138, 0
      %s141 = sadd.s32 %s140, 1
      %s142 = scalar_select %p139, %s140, %s141
      %p145 = pneg %p139
      %p146 = scmp.eq.s32.totalorder %s10, 1
      %p147 = por %p145, %p146
      %p148 = scmp.ne.s32.totalorder %s140, %s143
      %p149 = scmp.eq.s32.totalorder %s10, 0
      %p150 = por %p148, %p149
      %p151 = scmp.ne.s32.totalorder %s140, %s143
      %p152 = scmp.eq.s32.totalorder %s15, 1
      %p153 = por %p151, %p152
      %p154 = scmp.ne.s32.totalorder %s143, %s144
      %p155 = scmp.eq.s32.totalorder %s15, 0
      %p156 = por %p154, %p155
      %p157 = scmp.ne.s32.totalorder %s143, %s144
      %p158 = scmp.eq.s32.totalorder %s16, 1
      %p159 = por %p157, %p158
      %p161 = scmp.ne.s32.totalorder %s144, %s160
      %p162 = scmp.eq.s32.totalorder %s16, 0
      %p163 = por %p161, %p162
      %s164 = ssub.s32 %s17, %s43
      %s165 = ssub.s32 %s19, %s35
      %s166 = sor.u32 %s164, %s165
      %s167 = ssub.s32 %s18, %s39
      %s168 = sor.u32 %s166, %s167
      %p169 = scmp.eq.s32.totalorder %s168, 0
      %s171 = sadd.s32 %s170, 1
      %s172 = scalar_select %p169, %s170, %s171
      %p175 = pneg %p169
      %p176 = scmp.eq.s32.totalorder %s10, 1
      %p177 = por %p175, %p176
      %p178 = scmp.ne.s32.totalorder %s170, %s173
      %p179 = scmp.eq.s32.totalorder %s10, 0
      %p180 = por %p178, %p179
      %p181 = scmp.ne.s32.totalorder %s170, %s173
      %p182 = scmp.eq.s32.totalorder %s15, 1
      %p183 = por %p181, %p182
      %p184 = scmp.ne.s32.totalorder %s173, %s174
      %p185 = scmp.eq.s32.totalorder %s15, 0
      %p186 = por %p184, %p185
      %p187 = scmp.ne.s32.totalorder %s173, %s174
      %p188 = scmp.eq.s32.totalorder %s16, 1
      %p189 = por %p187, %p188
      %p191 = scmp.ne.s32.totalorder %s174, %s190
      %p192 = scmp.eq.s32.totalorder %s16, 0
      %p193 = por %p191, %p192
      %p194 = scmp.le.s32.totalorder 1, %s10
      %p195 = scmp.lt.s32.totalorder %s10, 3
      %p196 = pnand %p194, %p195
      %p197 = pneg %p196
      // Predicated region
      $region9: #{bart_decoder_forward.25} parent=5 // pred_check
        _
      $region10: #{bart_decoder_forward.25} parent=5 // pred_check_branch
        %199 = sbr.rel (%p196) target = $region12
      $region11: #{bart_decoder_forward.25} parent=5 // pred_region
        %s200 = ssub.s32 %s10, 1
      $region12: #{bart_decoder_forward.25} parent=5 // pred_fallthru
        _
      %p201 = scmp.lt.s32.totalorder %s10, 2
      // Predicated region
      $region13: #{bart_decoder_forward.25} parent=5 // pred_check
        %p202 = pneg %p201
      $region14: #{bart_decoder_forward.25} parent=5 // pred_check_branch
        %204 = sbr.rel (%p202) target = $region16
      $region15: #{bart_decoder_forward.25} parent=5 // pred_region
        // Predicated region
        $region17: #{bart_decoder_forward.25} parent=15 // pred_check
          %p205 = pneg %p60
        $region18: #{bart_decoder_forward.25} parent=15 // pred_check_branch
          %207 = sbr.rel (%p205) target = $region20
        $region19: #{bart_decoder_forward.25} parent=15 // pred_region
          %p208 = scmp.lt.s32.totalorder %s17, 1
          %s209 = scalar_select %p208, %s17, 1
          %p210 = scmp.lt.s32.totalorder %s19, 0
          %s211 = scalar_select %p210, %s19, 0
          %p212 = scmp.lt.s32.totalorder %s18, 0
          %s213 = scalar_select %p212, %s18, 0
          %s214 = sadd.s32 %s213, %s211
          %s215 = sadd.s32 %s214, %s209
          %s216 = smul.addr %s215, 4
          %s217 = scalar_lea.vmem %s0, %s216
        $region20: #{bart_decoder_forward.25} parent=15 // pred_fallthru
          _
        // Predicated region
        $region21: #{bart_decoder_forward.25} parent=15 // pred_check
          %p218 = pneg %p90
        $region22: #{bart_decoder_forward.25} parent=15 // pred_check_branch
          %220 = sbr.rel (%p218) target = $region24
        $region23: #{bart_decoder_forward.25} parent=15 // pred_region
          %s221 = sand.u32 %s80, 1
          %s222 = sand.u32 %s80, 1
          %s223 = smul.addr %s222, 8
          %s224 = scalar_lea.vmem [#allocation5], %s223
          %s225 = smul.u32 2, %s20
          %s226 = smul.addr %s225, 2
          %s227 = sadd.s32 %s18, %s226
          %s228 = smul.addr %s17, 4
          %s229 = sadd.s32 %s227, %s228
          %s230 = smul.addr %s229, 4
          %s231 = scalar_lea.vmem %s1, %s230
          // Predicated region
          $region25: #{bart_decoder_forward.25} parent=23 // pred_check
            _
          $region26: #{bart_decoder_forward.25} parent=23 // pred_check_branch
            %233 = sbr.rel (0) target = $region28
          $region27: #{bart_decoder_forward.25} parent=23 // pred_region
            // Predicated region
            $region29: #{bart_decoder_forward.25} parent=27 // pred_check
              _
            $region30: #{bart_decoder_forward.25} parent=27 // pred_check_branch
              %235 = sbr.rel target = $region32
            $region31: #{bart_decoder_forward.25} parent=27 // pred_region
              // Predicated region
              $region44: #{bart_decoder_forward.25} parent=31 // pred_check
                _
              $region45: #{bart_decoder_forward.25} parent=31 // pred_check_branch
                %252 = sbr.rel (0) target = $region47
              $region46: #{bart_decoder_forward.25} parent=31 // pred_region
                loop: start=0, step=1, limit=1
                $region48: #{bart_decoder_forward.25} parent=46 // loop_pre_header
                  _
                $region49: #{bart_decoder_forward.25} parent=46 // loop_header
                  %s254 = sphi 0, %s258
                  %p255 = scmp.ge.s32.totalorder %s254, 1
                  %s259 = sphi %s231, %s231
                  %s260 = sphi %s224, %s224
                $region50: #{bart_decoder_forward.25} parent=46 // loop_header_branch
                  %257 = sbr.rel (%p255) target = $region54
                $region51: #{bart_decoder_forward.25} parent=46 // loop_body
                  _
                $region52: #{bart_decoder_forward.25} parent=46 // loop_footer
                  %s258 = sadd.s32 1, %s254
                $region53: #{bart_decoder_forward.25} parent=46 // loop_footer_branch
                  %253 = sbr.rel target = $region49
                $region54: #{bart_decoder_forward.25} parent=46 // loop_exit
                  _
                loop: start=0, step=1, limit=1
                $region55: #{bart_decoder_forward.25} parent=46 // loop_pre_header
                  _
                $region56: #{bart_decoder_forward.25} parent=46 // loop_header
                  %s263 = sphi 0, %s267
                  %p264 = scmp.ge.s32.totalorder %s263, 1
                  %s268 = sphi %s231, %s231
                  %s269 = sphi %s224, %s224
                $region57: #{bart_decoder_forward.25} parent=46 // loop_header_branch
                  %266 = sbr.rel (%p264) target = $region61
                $region58: #{bart_decoder_forward.25} parent=46 // loop_body
                  %v270 = vld [vmem:[%s268] sm:$0xf]
                  %271 = vst [vmem:[%s269] sm:$0xf] %v270
                  %v272 = vld [vmem:[%s268 + $0x8] sm:$0xf]
                  %273 = vst [vmem:[%s269 + $0x4] sm:$0xf] %v272
                $region59: #{bart_decoder_forward.25} parent=46 // loop_footer
                  %s267 = sadd.s32 1, %s263
                $region60: #{bart_decoder_forward.25} parent=46 // loop_footer_branch
                  %262 = sbr.rel target = $region56
                $region61: #{bart_decoder_forward.25} parent=46 // loop_exit
                  _
              $region47: #{bart_decoder_forward.25} parent=31 // pred_fallthru
                _
            $region32: #{bart_decoder_forward.25} parent=27 // pred_fallthru
              _
            // Predicated region
            $region33: #{bart_decoder_forward.25} parent=27 // pred_check
              _
            $region34: #{bart_decoder_forward.25} parent=27 // pred_check_branch
              %237 = sbr.rel (0) target = $region36
            $region35: #{bart_decoder_forward.25} parent=27 // pred_region
              loop: start=0, step=1, limit=1
              $region37: #{bart_decoder_forward.25} parent=35 // loop_pre_header
                _
              $region38: #{bart_decoder_forward.25} parent=35 // loop_header
                %s240 = sphi 0, %s244
                %p241 = scmp.ge.s32.totalorder %s240, 1
                %s245 = sphi %s231, %s231
                %s246 = sphi %s224, %s224
              $region39: #{bart_decoder_forward.25} parent=35 // loop_header_branch
                %243 = sbr.rel (%p241) target = $region43
              $region40: #{bart_decoder_forward.25} parent=35 // loop_body
                %v247 = vld [vmem:[%s245] sm:$0xf]
                %248 = vst [vmem:[%s246] sm:$0xf] %v247
                %v249 = vld [vmem:[%s245 + $0x8] sm:$0xf]
                %250 = vst [vmem:[%s246 + $0x4] sm:$0xf] %v249
              $region41: #{bart_decoder_forward.25} parent=35 // loop_footer
                %s244 = sadd.s32 1, %s240
              $region42: #{bart_decoder_forward.25} parent=35 // loop_footer_branch
                %239 = sbr.rel target = $region38
              $region43: #{bart_decoder_forward.25} parent=35 // loop_exit
                _
            $region36: #{bart_decoder_forward.25} parent=27 // pred_fallthru
              _
          $region28: #{bart_decoder_forward.25} parent=23 // pred_fallthru
            _
          %274 = vnop
        $region24: #{bart_decoder_forward.25} parent=15 // pred_fallthru
          _
        // Predicated region
        $region62: #{bart_decoder_forward.25} parent=15 // pred_check
          %p275 = pneg %p122
        $region63: #{bart_decoder_forward.25} parent=15 // pred_check_branch
          %277 = sbr.rel (%p275) target = $region65
        $region64: #{bart_decoder_forward.25} parent=15 // pred_region
          %s278 = sand.u32 %s112, 1
          %s279 = sand.u32 %s112, 1
          %s280 = smul.addr %s279, 8
          %s281 = scalar_lea.vmem [#allocation6], %s280
          %s282 = sadd.s32 %s18, 1
          %s283 = smul.u32 2, %s20
          %s284 = smul.addr %s283, 2
          %s285 = sadd.s32 %s282, %s284
          %s286 = smul.addr %s17, 4
          %s287 = sadd.s32 %s285, %s286
          %s288 = smul.addr %s287, 4
          %s289 = scalar_lea.vmem %s2, %s288
          // Predicated region
          $region66: #{bart_decoder_forward.25} parent=64 // pred_check
            _
          $region67: #{bart_decoder_forward.25} parent=64 // pred_check_branch
            %291 = sbr.rel (0) target = $region69
          $region68: #{bart_decoder_forward.25} parent=64 // pred_region
            // Predicated region
            $region70: #{bart_decoder_forward.25} parent=68 // pred_check
              _
            $region71: #{bart_decoder_forward.25} parent=68 // pred_check_branch
              %293 = sbr.rel target = $region73
            $region72: #{bart_decoder_forward.25} parent=68 // pred_region
              // Predicated region
              $region85: #{bart_decoder_forward.25} parent=72 // pred_check
                _
              $region86: #{bart_decoder_forward.25} parent=72 // pred_check_branch
                %310 = sbr.rel (0) target = $region88
              $region87: #{bart_decoder_forward.25} parent=72 // pred_region
                loop: start=0, step=1, limit=1
                $region89: #{bart_decoder_forward.25} parent=87 // loop_pre_header
                  _
                $region90: #{bart_decoder_forward.25} parent=87 // loop_header
                  %s312 = sphi 0, %s316
                  %p313 = scmp.ge.s32.totalorder %s312, 1
                  %s317 = sphi %s289, %s289
                  %s318 = sphi %s281, %s281
                $region91: #{bart_decoder_forward.25} parent=87 // loop_header_branch
                  %315 = sbr.rel (%p313) target = $region95
                $region92: #{bart_decoder_forward.25} parent=87 // loop_body
                  _
                $region93: #{bart_decoder_forward.25} parent=87 // loop_footer
                  %s316 = sadd.s32 1, %s312
                $region94: #{bart_decoder_forward.25} parent=87 // loop_footer_branch
                  %311 = sbr.rel target = $region90
                $region95: #{bart_decoder_forward.25} parent=87 // loop_exit
                  _
                loop: start=0, step=1, limit=1
                $region96: #{bart_decoder_forward.25} parent=87 // loop_pre_header
                  _
                $region97: #{bart_decoder_forward.25} parent=87 // loop_header
                  %s321 = sphi 0, %s325
                  %p322 = scmp.ge.s32.totalorder %s321, 1
                  %s326 = sphi %s289, %s289
                  %s327 = sphi %s281, %s281
                $region98: #{bart_decoder_forward.25} parent=87 // loop_header_branch
                  %324 = sbr.rel (%p322) target = $region102
                $region99: #{bart_decoder_forward.25} parent=87 // loop_body
                  %v328 = vld [vmem:[%s326] sm:$0xf]
                  %329 = vst [vmem:[%s327] sm:$0xf] %v328
                  %v330 = vld [vmem:[%s326 + $0x8] sm:$0xf]
                  %331 = vst [vmem:[%s327 + $0x4] sm:$0xf] %v330
                $region100: #{bart_decoder_forward.25} parent=87 // loop_footer
                  %s325 = sadd.s32 1, %s321
                $region101: #{bart_decoder_forward.25} parent=87 // loop_footer_branch
                  %320 = sbr.rel target = $region97
                $region102: #{bart_decoder_forward.25} parent=87 // loop_exit
                  _
              $region88: #{bart_decoder_forward.25} parent=72 // pred_fallthru
                _
            $region73: #{bart_decoder_forward.25} parent=68 // pred_fallthru
              _
            // Predicated region
            $region74: #{bart_decoder_forward.25} parent=68 // pred_check
              _
            $region75: #{bart_decoder_forward.25} parent=68 // pred_check_branch
              %295 = sbr.rel (0) target = $region77
            $region76: #{bart_decoder_forward.25} parent=68 // pred_region
              loop: start=0, step=1, limit=1
              $region78: #{bart_decoder_forward.25} parent=76 // loop_pre_header
                _
              $region79: #{bart_decoder_forward.25} parent=76 // loop_header
                %s298 = sphi 0, %s302
                %p299 = scmp.ge.s32.totalorder %s298, 1
                %s303 = sphi %s289, %s289
                %s304 = sphi %s281, %s281
              $region80: #{bart_decoder_forward.25} parent=76 // loop_header_branch
                %301 = sbr.rel (%p299) target = $region84
              $region81: #{bart_decoder_forward.25} parent=76 // loop_body
                %v305 = vld [vmem:[%s303] sm:$0xf]
                %306 = vst [vmem:[%s304] sm:$0xf] %v305
                %v307 = vld [vmem:[%s303 + $0x8] sm:$0xf]
                %308 = vst [vmem:[%s304 + $0x4] sm:$0xf] %v307
              $region82: #{bart_decoder_forward.25} parent=76 // loop_footer
                %s302 = sadd.s32 1, %s298
              $region83: #{bart_decoder_forward.25} parent=76 // loop_footer_branch
                %297 = sbr.rel target = $region79
              $region84: #{bart_decoder_forward.25} parent=76 // loop_exit
                _
            $region77: #{bart_decoder_forward.25} parent=68 // pred_fallthru
              _
          $region69: #{bart_decoder_forward.25} parent=64 // pred_fallthru
            _
          %332 = vnop
        $region65: #{bart_decoder_forward.25} parent=15 // pred_fallthru
          _
        // Predicated region
        $region103: #{bart_decoder_forward.25} parent=15 // pred_check
          %p333 = pneg %p150
        $region104: #{bart_decoder_forward.25} parent=15 // pred_check_branch
          %335 = sbr.rel (%p333) target = $region106
        $region105: #{bart_decoder_forward.25} parent=15 // pred_region
          %p336 = scmp.lt.s32.totalorder %s17, 1
          %s337 = scalar_select %p336, %s17, 1
          %p338 = scmp.lt.s32.totalorder %s20, 0
          %s339 = scalar_select %p338, %s20, 0
          %s340 = sadd.s32 %s339, %s337
          %s341 = scalar_lea.vmem %s3, %s340
        $region106: #{bart_decoder_forward.25} parent=15 // pred_fallthru
          _
      $region16: #{bart_decoder_forward.25} parent=5 // pred_fallthru
        _
      %p342 = scmp.le.s32.totalorder 1, %s10
      %p343 = scmp.lt.s32.totalorder %s10, 3
      %p344 = pnand %p342, %p343
      %p345 = pneg %p344
      // Predicated region
      $region107: #{bart_decoder_forward.25} parent=5 // pred_check
        _
      $region108: #{bart_decoder_forward.25} parent=5 // pred_check_branch
        %347 = sbr.rel (%p344) target = $region110
      $region109: #{bart_decoder_forward.25} parent=5 // pred_region
        %s348 = ssub.s32 %s10, 1
        %s349 = sand.u32 %s83, 1
        %s350 = sand.u32 %s83, 1
        %s351 = smul.addr %s350, 8
        %s352 = scalar_lea.vmem [#allocation5], %s351
        // Predicated region
        $region111: #{bart_decoder_forward.25} parent=109 // pred_check
          %p353 = pneg %p96
        $region112: #{bart_decoder_forward.25} parent=109 // pred_check_branch
          %355 = sbr.rel (%p353) target = $region114
        $region113: #{bart_decoder_forward.25} parent=109 // pred_region
          _
        $region114: #{bart_decoder_forward.25} parent=109 // pred_fallthru
          _
        %s356 = sand.u32 %s115, 1
        %s357 = sand.u32 %s115, 1
        %s358 = smul.addr %s357, 8
        %s359 = scalar_lea.vmem [#allocation6], %s358
        // Predicated region
        $region115: #{bart_decoder_forward.25} parent=109 // pred_check
          %p360 = pneg %p128
        $region116: #{bart_decoder_forward.25} parent=109 // pred_check_branch
          %362 = sbr.rel (%p360) target = $region118
        $region117: #{bart_decoder_forward.25} parent=109 // pred_region
          _
        $region118: #{bart_decoder_forward.25} parent=109 // pred_fallthru
          _
        %p363 = scmp.lt.s32.totalorder %s21, 1
        %s364 = scalar_select %p363, %s21, 1
        %p365 = scmp.lt.s32.totalorder %s23, 0
        %s366 = scalar_select %p365, %s23, 0
        %p367 = scmp.lt.s32.totalorder %s22, 0
        %s368 = scalar_select %p367, %s22, 0
        %s369 = sadd.s32 %s368, %s366
        %s370 = sadd.s32 %s369, %s364
        %s371 = smul.addr %s370, 4
        %s372 = scalar_lea.vmem %s0, %s371
        %p373 = pneg %p66
        %p374 = pneg %p63
        %s375 = sand.u32 %s83, 1
        %s376 = sand.u32 %s83, 1
        %s377 = smul.addr %s376, 8
        %s378 = scalar_lea.vmem [#allocation5], %s377
        %p379 = pneg %p96
        %p380 = pneg %p93
        %s381 = sand.u32 %s115, 1
        %s382 = sand.u32 %s115, 1
        %s383 = smul.addr %s382, 8
        %s384 = scalar_lea.vmem [#allocation6], %s383
        %p385 = pneg %p128
        %p386 = pneg %p125
        %p387 = scmp.lt.s32.totalorder %s21, 1
        %s388 = scalar_select %p387, %s21, 1
        %p389 = scmp.lt.s32.totalorder %s24, 0
        %s390 = scalar_select %p389, %s24, 0
        %s391 = sadd.s32 %s390, %s388
        %s392 = scalar_lea.vmem %s3, %s391
        %p393 = pneg %p156
        %p394 = pneg %p153
        %p395 = pneg %p186
        %p396 = pneg %p183
        %p397 = scmp.lt.s32.totalorder %s21, 1
        %s398 = scalar_select %p397, %s21, 1
        %p399 = scmp.lt.s32.totalorder %s23, 0
        %s400 = scalar_select %p399, %s23, 0
        %p401 = scmp.lt.s32.totalorder %s22, 0
        %s402 = scalar_select %p401, %s22, 0
        %s403 = sadd.s32 %s402, %s400
        %s404 = sadd.s32 %s403, %s398
        %s405 = smul.addr %s404, 4
        %s406 = scalar_lea.vmem %s4, %s405
        %p407 = scmp.lt.s32.totalorder %s21, 1
        %s408 = scalar_select %p407, %s21, 1
        %p409 = scmp.lt.s32.totalorder %s23, 0
        %s410 = scalar_select %p409, %s23, 0
        %p411 = scmp.lt.s32.totalorder %s22, 0
        %s412 = scalar_select %p411, %s22, 0
        %s413 = sadd.s32 %s412, %s410
        %s414 = sadd.s32 %s413, %s408
        %s415 = smul.addr %s414, 4
        %s416 = scalar_lea.vmem %s0, %s415
        %s417 = smul.u32 2, %s24
        %s418 = sadd.s32 %s22, 1
        %s419 = smul.u32 2, %s24
        %p420 = scmp.lt.s32.totalorder %s21, 1
        %s421 = scalar_select %p420, %s21, 1
        %p422 = scmp.lt.s32.totalorder %s24, 0
        %s423 = scalar_select %p422, %s24, 0
        %s424 = sadd.s32 %s423, %s421
        %s425 = scalar_lea.vmem %s3, %s424
        %p426 = scmp.lt.s32.totalorder %s21, 1
        %s427 = scalar_select %p426, %s21, 1
        %p428 = scmp.lt.s32.totalorder %s23, 0
        %s429 = scalar_select %p428, %s23, 0
        %p430 = scmp.lt.s32.totalorder %s22, 0
        %s431 = scalar_select %p430, %s22, 0
        %s432 = sadd.s32 %s431, %s429
        %s433 = sadd.s32 %s432, %s427
        %s434 = smul.addr %s433, 4
        %s435 = scalar_lea.vmem %s4, %s434
        %p437 = scmp.eq.s32.totalorder %s24, 0
        // Predicated region
        $region119: #{bart_decoder_forward.25} parent=109 // pred_check
          %p438 = pneg %p437
        $region120: #{bart_decoder_forward.25} parent=109 // pred_check_branch
          %440 = sbr.rel (%p438) target = $region122
        $region121: #{bart_decoder_forward.25} parent=109 // pred_region
          %vm441 = vcmask 7168
          %442 = vst.msk [vmem:[#allocation2] sm:$0xff] %vm441, -inf
          %443 = vst.msk [vmem:[#allocation2 + $0x8] sm:$0xff] %vm441, -inf
          %444 = vst.msk [vmem:[#allocation2 + $0x10] sm:$0xff] %vm441, -inf
          %445 = vst.msk [vmem:[#allocation2 + $0x18] sm:$0xff] %vm441, -inf
          %446 = vst.msk [vmem:[#allocation3] sm:$0xff] %vm441, 0.0
          %447 = vst.msk [vmem:[#allocation3 + $0x8] sm:$0xff] %vm441, 0.0
          %448 = vst.msk [vmem:[#allocation3 + $0x10] sm:$0xff] %vm441, 0.0
          %449 = vst.msk [vmem:[#allocation3 + $0x18] sm:$0xff] %vm441, 0.0
          %vm450 = vcmask 261120
          %451 = vst.msk [vmem:[#allocation4] sm:$0xff] %vm450, 0.0
          %452 = vst.msk [vmem:[#allocation4 + $0x8] sm:$0xff] %vm450, 0.0
          %453 = vst.msk [vmem:[#allocation4 + $0x10] sm:$0xff] %vm450, 0.0
          %454 = vst.msk [vmem:[#allocation4 + $0x18] sm:$0xff] %vm450, 0.0
        $region122: #{bart_decoder_forward.25} parent=109 // pred_fallthru
          _
        %v455 = vld [vmem:[%s416] sm:$0xf]
        %v456 = vld [vmem:[%s352] sm:$0xf]
        %v457 = vld [vmem:[%s352 + $0x4] sm:$0xf]
        %v458 = vld [vmem:[%s359] sm:$0xf]
        %v459 = vld [vmem:[%s359 + $0x4] sm:$0xf]
        %v460 = vld [vmem:[%s425] sm:$0x1]
        %v462 = vlaneseq
        %v463 = vshrl.u32 %v462, 7
        %v464 = vsub.s32 0, %v463
        %v465 = vrot.slane %v460, %v464
        %v469 = vunpack.c.l.b16 %v456
        %v470 = vunpack.c.l.b16 %v457
        %v471 = vpack.c.b16 %v470, %v469
        %vm472 = vcmask 261120
        %v474 = vsel %vm472, %v455, 0
        %v477 = vsel %vm472, %v471, 0
        %479 = vmatprep.subr.bf16.mxu0 0
        %480 = vmatpush1.bf16.xpose.msra.mxu0 %v477
        %481 = vmatprep.subr.bf16.mxu0 0
        %482 = vmatpush1.bf16.xpose.msra.mxu0 0
        %483 = vmatprep.subr.bf16.mxu0 0
        %484 = vmatpush1.bf16.xpose.msra.mxu0 0
        %485 = vmatprep.subr.bf16.mxu0 0
        %486 = vmatpush1.bf16.xpose.msra.mxu0 0
        %487 = vmatprep.subr.bf16.mxu0 0
        %488 = vmatpush1.bf16.xpose.msra.mxu0 0
        %489 = vmatprep.subr.bf16.mxu0 0
        %490 = vmatpush1.bf16.xpose.msra.mxu0 0
        %491 = vmatprep.subr.bf16.mxu0 0
        %492 = vmatpush1.bf16.xpose.msra.mxu0 0
        %493 = vmatprep.subr.bf16.mxu0 0
        %494 = vmatpush1.bf16.xpose.msra.mxu0 0
        %495 = vmatprep.subr.bf16.mxu0 0
        %496 = vmatpush1.bf16.xpose.msra.mxu0 0
        %497 = vmatprep.subr.bf16.mxu0 0
        %498 = vmatpush1.bf16.xpose.msra.mxu0 0
        %499 = vmatprep.subr.bf16.mxu0 0
        %500 = vmatpush1.bf16.xpose.msra.mxu0 0
        %501 = vmatprep.subr.bf16.mxu0 0
        %502 = vmatpush1.bf16.xpose.msra.mxu0 0
        %503 = vmatprep.subr.bf16.mxu0 0
        %504 = vmatpush1.bf16.xpose.msra.mxu0 0
        %505 = vmatprep.subr.bf16.mxu0 0
        %506 = vmatpush1.bf16.xpose.msra.mxu0 0
        %507 = vmatprep.subr.bf16.mxu0 0
        %508 = vmatpush1.bf16.xpose.msra.mxu0 0
        %509 = vmatprep.subr.bf16.mxu0 0
        %510 = vmatpush1.bf16.xpose.msra.mxu0 0
        %511 = vmatprep.mubr.bf16.mxu0 0
        %512 = vmatmul.mubr.bf16.gmra.mrb[0].mxu0 %v474
        %v513 = vpop.f32.mrb[0].mxu0
        %v514 = vadd.f32 %v465, %v513
        %v515 = vpop.f32.mrb[0].mxu0
        %v516 = vpop.f32.mrb[0].mxu0
        %v517 = vpop.f32.mrb[0].mxu0
        %518 = vdwg.mxu0
        %v519 = vld [vmem:[#allocation2] sm:$0xff]
        %vm520 = vcmask 130048
        %v521 = vsel %vm520, %v514, -inf
        %522 = vmax.xlane.f32.xlu0 %v521
        %v523 = vpop.xlane.xlu0 %522
        %v524 = vmax.f32 %v519, %v523
        %v525 = vsub.f32 %v519, %v524
        %v526 = vmul.f32 %v525, 1.442695
        %v527 = vpow.pop %v526
        %529 = vset.pattern.permute.xlu0 0
        %530 = vperm.xlu0 %529, %v524
        %v531 = vpop.permute.xlu0 %530
        %v533 = vsub.f32 %v514, %v531
        %v534 = vmul.f32 %v533, 1.442695
        %v535 = vpow.pop %v534
        %v536 = vld [vmem:[#allocation3] sm:$0xff]
        %v537 = vmul.f32 %v527, %v536
        %v538 = vsel %vm520, %v535, 0.0
        %539 = vadd.xlane.f32.xlu0 %v538
        %v540 = vpop.xlane.xlu0 %539
        %v541 = vadd.f32 %v537, %v540
        %vm542 = vcmask 7168
        %543 = vst.msk [vmem:[#allocation3] sm:$0xff] %vm542, %v541
        %v544 = vld [vmem:[#allocation4] sm:$0xff]
        %546 = vset.pattern.permute.xlu0 0
        %547 = vperm.xlu0 %546, %v527
        %v548 = vpop.permute.xlu0 %547
        %v550 = vmul.f32 %v548, %v544
        %v551 = vpack.c.bf16 %v535, %v535
        %v554 = vunpack.c.l.b16 %v458
        %v555 = vunpack.c.l.b16 %v459
        %v556 = vpack.c.b16 %v555, %v554
        %v559 = vsel %vm520, %v551, 0
        %561 = vmatprep.subr.bf16.mxu0 0
        %562 = vmatpush1.bf16.msra.mxu0 %v556
        %563 = vmatprep.subr.bf16.mxu0 0
        %564 = vmatpush1.bf16.msra.mxu0 0
        %565 = vmatprep.subr.bf16.mxu0 0
        %566 = vmatpush1.bf16.msra.mxu0 0
        %567 = vmatprep.subr.bf16.mxu0 0
        %568 = vmatpush1.bf16.msra.mxu0 0
        %569 = vmatprep.subr.bf16.mxu0 0
        %570 = vmatpush1.bf16.msra.mxu0 0
        %571 = vmatprep.subr.bf16.mxu0 0
        %572 = vmatpush1.bf16.msra.mxu0 0
        %573 = vmatprep.subr.bf16.mxu0 0
        %574 = vmatpush1.bf16.msra.mxu0 0
        %575 = vmatprep.subr.bf16.mxu0 0
        %576 = vmatpush1.bf16.msra.mxu0 0
        %577 = vmatprep.subr.bf16.mxu0 0
        %578 = vmatpush1.bf16.msra.mxu0 0
        %579 = vmatprep.subr.bf16.mxu0 0
        %580 = vmatpush1.bf16.msra.mxu0 0
        %581 = vmatprep.subr.bf16.mxu0 0
        %582 = vmatpush1.bf16.msra.mxu0 0
        %583 = vmatprep.subr.bf16.mxu0 0
        %584 = vmatpush1.bf16.msra.mxu0 0
        %585 = vmatprep.subr.bf16.mxu0 0
        %586 = vmatpush1.bf16.msra.mxu0 0
        %587 = vmatprep.subr.bf16.mxu0 0
        %588 = vmatpush1.bf16.msra.mxu0 0
        %589 = vmatprep.subr.bf16.mxu0 0
        %590 = vmatpush1.bf16.msra.mxu0 0
        %591 = vmatprep.subr.bf16.mxu0 0
        %592 = vmatpush1.bf16.msra.mxu0 0
        %593 = vmatprep.mubr.bf16.mxu0 0
        %594 = vmatmul.mubr.bf16.gmra.mrb[0].mxu0 %v559
        %v595 = vpop.f32.mrb[0].mxu0
        %v596 = vadd.f32 0.0, %v595
        %v597 = vpop.f32.mrb[0].mxu0
        %v598 = vpop.f32.mrb[0].mxu0
        %v599 = vpop.f32.mrb[0].mxu0
        %600 = vdwg.mxu0
        %v601 = vadd.f32 %v550, %v596
        %602 = vst.msk [vmem:[#allocation4] sm:$0xff] %vm472, %v601
        %603 = vst.msk [vmem:[#allocation2] sm:$0xff] %vm542, %v524
        %v605 = vunpack.c.l.b16 %v455
        %v606 = vpack.c.b16 %v605, %v605
        %607 = vrot.lane.b32.xlu0 %v606, 96
        %v608 = vpop.permute.xlu0 %607
        %609 = vrot.lane.b32.xlu0 %v471, 96
        %v610 = vpop.permute.xlu0 %609
        %v612 = vsel %vm472, %v608, 0
        %v615 = vsel %vm472, %v610, 0
        %617 = vmatprep.subr.bf16.mxu0 0
        %618 = vmatpush1.bf16.xpose.msra.mxu0 %v615
        %619 = vmatprep.subr.bf16.mxu0 0
        %620 = vmatpush1.bf16.xpose.msra.mxu0 0
        %621 = vmatprep.subr.bf16.mxu0 0
        %622 = vmatpush1.bf16.xpose.msra.mxu0 0
        %623 = vmatprep.subr.bf16.mxu0 0
        %624 = vmatpush1.bf16.xpose.msra.mxu0 0
        %625 = vmatprep.subr.bf16.mxu0 0
        %626 = vmatpush1.bf16.xpose.msra.mxu0 0
        %627 = vmatprep.subr.bf16.mxu0 0
        %628 = vmatpush1.bf16.xpose.msra.mxu0 0
        %629 = vmatprep.subr.bf16.mxu0 0
        %630 = vmatpush1.bf16.xpose.msra.mxu0 0
        %631 = vmatprep.subr.bf16.mxu0 0
        %632 = vmatpush1.bf16.xpose.msra.mxu0 0
        %633 = vmatprep.subr.bf16.mxu0 0
        %634 = vmatpush1.bf16.xpose.msra.mxu0 0
        %635 = vmatprep.subr.bf16.mxu0 0
        %636 = vmatpush1.bf16.xpose.msra.mxu0 0
        %637 = vmatprep.subr.bf16.mxu0 0
        %638 = vmatpush1.bf16.xpose.msra.mxu0 0
        %639 = vmatprep.subr.bf16.mxu0 0
        %640 = vmatpush1.bf16.xpose.msra.mxu0 0
        %641 = vmatprep.subr.bf16.mxu0 0
        %642 = vmatpush1.bf16.xpose.msra.mxu0 0
        %643 = vmatprep.subr.bf16.mxu0 0
        %644 = vmatpush1.bf16.xpose.msra.mxu0 0
        %645 = vmatprep.subr.bf16.mxu0 0
        %646 = vmatpush1.bf16.xpose.msra.mxu0 0
        %647 = vmatprep.subr.bf16.mxu0 0
        %648 = vmatpush1.bf16.xpose.msra.mxu0 0
        %649 = vmatprep.mubr.bf16.mxu0 0
        %650 = vmatmul.mubr.bf16.gmra.mrb[0].mxu0 %v612
        %v651 = vpop.f32.mrb[0].mxu0
        %v652 = vadd.f32 %v465, %v651
        %v653 = vpop.f32.mrb[0].mxu0
        %v654 = vpop.f32.mrb[0].mxu0
        %v655 = vpop.f32.mrb[0].mxu0
        %656 = vdwg.mxu0
        %s657 = scalar_lea.vmem [#allocation2], 8
        %v658 = vld [vmem:[%s657] sm:$0xff]
        %v659 = vsel %vm520, %v652, -inf
        %660 = vmax.xlane.f32.xlu0 %v659
        %v661 = vpop.xlane.xlu0 %660
        %v662 = vmax.f32 %v658, %v661
        %v663 = vsub.f32 %v658, %v662
        %v664 = vmul.f32 %v663, 1.442695
        %v665 = vpow.pop %v664
        %667 = vset.pattern.permute.xlu0 0
        %668 = vperm.xlu0 %667, %v662
        %v669 = vpop.permute.xlu0 %668
        %v671 = vsub.f32 %v652, %v669
        %v672 = vmul.f32 %v671, 1.442695
        %v673 = vpow.pop %v672
        %s674 = scalar_lea.vmem [#allocation3], 8
        %v675 = vld [vmem:[%s674] sm:$0xff]
        %v676 = vmul.f32 %v665, %v675
        %v677 = vsel %vm520, %v673, 0.0
        %678 = vadd.xlane.f32.xlu0 %v677
        %v679 = vpop.xlane.xlu0 %678
        %v680 = vadd.f32 %v676, %v679
        %681 = vst.msk [vmem:[%s674] sm:$0xff] %vm542, %v680
        %s682 = scalar_lea.vmem [#allocation4], 8
        %v683 = vld [vmem:[%s682] sm:$0xff]
        %685 = vset.pattern.permute.xlu0 0
        %686 = vperm.xlu0 %685, %v665
        %v687 = vpop.permute.xlu0 %686
        %v689 = vmul.f32 %v687, %v683
        %v690 = vpack.c.bf16 %v673, %v673
        %691 = vrot.lane.b32.xlu0 %v556, 96
        %v692 = vpop.permute.xlu0 %691
        %v695 = vsel %vm520, %v690, 0
        %697 = vmatprep.subr.bf16.mxu0 0
        %698 = vmatpush1.bf16.msra.mxu0 %v692
        %699 = vmatprep.subr.bf16.mxu0 0
        %700 = vmatpush1.bf16.msra.mxu0 0
        %701 = vmatprep.subr.bf16.mxu0 0
        %702 = vmatpush1.bf16.msra.mxu0 0
        %703 = vmatprep.subr.bf16.mxu0 0
        %704 = vmatpush1.bf16.msra.mxu0 0
        %705 = vmatprep.subr.bf16.mxu0 0
        %706 = vmatpush1.bf16.msra.mxu0 0
        %707 = vmatprep.subr.bf16.mxu0 0
        %708 = vmatpush1.bf16.msra.mxu0 0
        %709 = vmatprep.subr.bf16.mxu0 0
        %710 = vmatpush1.bf16.msra.mxu0 0
        %711 = vmatprep.subr.bf16.mxu0 0
        %712 = vmatpush1.bf16.msra.mxu0 0
        %713 = vmatprep.subr.bf16.mxu0 0
        %714 = vmatpush1.bf16.msra.mxu0 0
        %715 = vmatprep.subr.bf16.mxu0 0
        %716 = vmatpush1.bf16.msra.mxu0 0
        %717 = vmatprep.subr.bf16.mxu0 0
        %718 = vmatpush1.bf16.msra.mxu0 0
        %719 = vmatprep.subr.bf16.mxu0 0
        %720 = vmatpush1.bf16.msra.mxu0 0
        %721 = vmatprep.subr.bf16.mxu0 0
        %722 = vmatpush1.bf16.msra.mxu0 0
        %723 = vmatprep.subr.bf16.mxu0 0
        %724 = vmatpush1.bf16.msra.mxu0 0
        %725 = vmatprep.subr.bf16.mxu0 0
        %726 = vmatpush1.bf16.msra.mxu0 0
        %727 = vmatprep.subr.bf16.mxu0 0
        %728 = vmatpush1.bf16.msra.mxu0 0
        %729 = vmatprep.mubr.bf16.mxu0 0
        %730 = vmatmul.mubr.bf16.gmra.mrb[0].mxu0 %v695
        %v731 = vpop.f32.mrb[0].mxu0
        %v732 = vadd.f32 0.0, %v731
        %v733 = vpop.f32.mrb[0].mxu0
        %v734 = vpop.f32.mrb[0].mxu0
        %v735 = vpop.f32.mrb[0].mxu0
        %736 = vdwg.mxu0
        %v737 = vadd.f32 %v689, %v732
        %738 = vst.msk [vmem:[%s682] sm:$0xff] %vm472, %v737
        %739 = vst.msk [vmem:[%s657] sm:$0xff] %vm542, %v662
        %740 = vrot.lane.b32.xlu0 %v606, 64
        %v741 = vpop.permute.xlu0 %740
        %742 = vrot.lane.b32.xlu0 %v471, 64
        %v743 = vpop.permute.xlu0 %742
        %v745 = vsel %vm472, %v741, 0
        %v748 = vsel %vm472, %v743, 0
        %750 = vmatprep.subr.bf16.mxu0 0
        %751 = vmatpush1.bf16.xpose.msra.mxu0 %v748
        %752 = vmatprep.subr.bf16.mxu0 0
        %753 = vmatpush1.bf16.xpose.msra.mxu0 0
        %754 = vmatprep.subr.bf16.mxu0 0
        %755 = vmatpush1.bf16.xpose.msra.mxu0 0
        %756 = vmatprep.subr.bf16.mxu0 0
        %757 = vmatpush1.bf16.xpose.msra.mxu0 0
        %758 = vmatprep.subr.bf16.mxu0 0
        %759 = vmatpush1.bf16.xpose.msra.mxu0 0
        %760 = vmatprep.subr.bf16.mxu0 0
        %761 = vmatpush1.bf16.xpose.msra.mxu0 0
        %762 = vmatprep.subr.bf16.mxu0 0
        %763 = vmatpush1.bf16.xpose.msra.mxu0 0
        %764 = vmatprep.subr.bf16.mxu0 0
        %765 = vmatpush1.bf16.xpose.msra.mxu0 0
        %766 = vmatprep.subr.bf16.mxu0 0
        %767 = vmatpush1.bf16.xpose.msra.mxu0 0
        %768 = vmatprep.subr.bf16.mxu0 0
        %769 = vmatpush1.bf16.xpose.msra.mxu0 0
        %770 = vmatprep.subr.bf16.mxu0 0
        %771 = vmatpush1.bf16.xpose.msra.mxu0 0
        %772 = vmatprep.subr.bf16.mxu0 0
        %773 = vmatpush1.bf16.xpose.msra.mxu0 0
        %774 = vmatprep.subr.bf16.mxu0 0
        %775 = vmatpush1.bf16.xpose.msra.mxu0 0
        %776 = vmatprep.subr.bf16.mxu0 0
        %777 = vmatpush1.bf16.xpose.msra.mxu0 0
        %778 = vmatprep.subr.bf16.mxu0 0
        %779 = vmatpush1.bf16.xpose.msra.mxu0 0
        %780 = vmatprep.subr.bf16.mxu0 0
        %781 = vmatpush1.bf16.xpose.msra.mxu0 0
        %782 = vmatprep.mubr.bf16.mxu0 0
        %783 = vmatmul.mubr.bf16.gmra.mrb[0].mxu0 %v745
        %v784 = vpop.f32.mrb[0].mxu0
        %v785 = vadd.f32 %v465, %v784
        %v786 = vpop.f32.mrb[0].mxu0
        %v787 = vpop.f32.mrb[0].mxu0
        %v788 = vpop.f32.mrb[0].mxu0
        %789 = vdwg.mxu0
        %s790 = scalar_lea.vmem [#allocation2], 16
        %v791 = vld [vmem:[%s790] sm:$0xff]
        %v792 = vsel %vm520, %v785, -inf
        %793 = vmax.xlane.f32.xlu0 %v792
        %v794 = vpop.xlane.xlu0 %793
        %v795 = vmax.f32 %v791, %v794
        %v796 = vsub.f32 %v791, %v795
        %v797 = vmul.f32 %v796, 1.442695
        %v798 = vpow.pop %v797
        %800 = vset.pattern.permute.xlu0 0
        %801 = vperm.xlu0 %800, %v795
        %v802 = vpop.permute.xlu0 %801
        %v804 = vsub.f32 %v785, %v802
        %v805 = vmul.f32 %v804, 1.442695
        %v806 = vpow.pop %v805
        %s807 = scalar_lea.vmem [#allocation3], 16
        %v808 = vld [vmem:[%s807] sm:$0xff]
        %v809 = vmul.f32 %v798, %v808
        %v810 = vsel %vm520, %v806, 0.0
        %811 = vadd.xlane.f32.xlu0 %v810
        %v812 = vpop.xlane.xlu0 %811
        %v813 = vadd.f32 %v809, %v812
        %814 = vst.msk [vmem:[%s807] sm:$0xff] %vm542, %v813
        %s815 = scalar_lea.vmem [#allocation4], 16
        %v816 = vld [vmem:[%s815] sm:$0xff]
        %818 = vset.pattern.permute.xlu0 0
        %819 = vperm.xlu0 %818, %v798
        %v820 = vpop.permute.xlu0 %819
        %v822 = vmul.f32 %v820, %v816
        %v823 = vpack.c.bf16 %v806, %v806
        %824 = vrot.lane.b32.xlu0 %v556, 64
        %v825 = vpop.permute.xlu0 %824
        %v828 = vsel %vm520, %v823, 0
        %830 = vmatprep.subr.bf16.mxu0 0
        %831 = vmatpush1.bf16.msra.mxu0 %v825
        %832 = vmatprep.subr.bf16.mxu0 0
        %833 = vmatpush1.bf16.msra.mxu0 0
        %834 = vmatprep.subr.bf16.mxu0 0
        %835 = vmatpush1.bf16.msra.mxu0 0
        %836 = vmatprep.subr.bf16.mxu0 0
        %837 = vmatpush1.bf16.msra.mxu0 0
        %838 = vmatprep.subr.bf16.mxu0 0
        %839 = vmatpush1.bf16.msra.mxu0 0
        %840 = vmatprep.subr.bf16.mxu0 0
        %841 = vmatpush1.bf16.msra.mxu0 0
        %842 = vmatprep.subr.bf16.mxu0 0
        %843 = vmatpush1.bf16.msra.mxu0 0
        %844 = vmatprep.subr.bf16.mxu0 0
        %845 = vmatpush1.bf16.msra.mxu0 0
        %846 = vmatprep.subr.bf16.mxu0 0
        %847 = vmatpush1.bf16.msra.mxu0 0
        %848 = vmatprep.subr.bf16.mxu0 0
        %849 = vmatpush1.bf16.msra.mxu0 0
        %850 = vmatprep.subr.bf16.mxu0 0
        %851 = vmatpush1.bf16.msra.mxu0 0
        %852 = vmatprep.subr.bf16.mxu0 0
        %853 = vmatpush1.bf16.msra.mxu0 0
        %854 = vmatprep.subr.bf16.mxu0 0
        %855 = vmatpush1.bf16.msra.mxu0 0
        %856 = vmatprep.subr.bf16.mxu0 0
        %857 = vmatpush1.bf16.msra.mxu0 0
        %858 = vmatprep.subr.bf16.mxu0 0
        %859 = vmatpush1.bf16.msra.mxu0 0
        %860 = vmatprep.subr.bf16.mxu0 0
        %861 = vmatpush1.bf16.msra.mxu0 0
        %862 = vmatprep.mubr.bf16.mxu0 0
        %863 = vmatmul.mubr.bf16.gmra.mrb[0].mxu0 %v828
        %v864 = vpop.f32.mrb[0].mxu0
        %v865 = vadd.f32 0.0, %v864
        %v866 = vpop.f32.mrb[0].mxu0
        %v867 = vpop.f32.mrb[0].mxu0
        %v868 = vpop.f32.mrb[0].mxu0
        %869 = vdwg.mxu0
        %v870 = vadd.f32 %v822, %v865
        %871 = vst.msk [vmem:[%s815] sm:$0xff] %vm472, %v870
        %872 = vst.msk [vmem:[%s790] sm:$0xff] %vm542, %v795
        %873 = vrot.lane.b32.xlu0 %v606, 32
        %v874 = vpop.permute.xlu0 %873
        %875 = vrot.lane.b32.xlu0 %v471, 32
        %v876 = vpop.permute.xlu0 %875
        %v878 = vsel %vm472, %v874, 0
        %v881 = vsel %vm472, %v876, 0
        %883 = vmatprep.subr.bf16.mxu0 0
        %884 = vmatpush1.bf16.xpose.msra.mxu0 %v881
        %885 = vmatprep.subr.bf16.mxu0 0
        %886 = vmatpush1.bf16.xpose.msra.mxu0 0
        %887 = vmatprep.subr.bf16.mxu0 0
        %888 = vmatpush1.bf16.xpose.msra.mxu0 0
        %889 = vmatprep.subr.bf16.mxu0 0
        %890 = vmatpush1.bf16.xpose.msra.mxu0 0
        %891 = vmatprep.subr.bf16.mxu0 0
        %892 = vmatpush1.bf16.xpose.msra.mxu0 0
        %893 = vmatprep.subr.bf16.mxu0 0
        %894 = vmatpush1.bf16.xpose.msra.mxu0 0
        %895 = vmatprep.subr.bf16.mxu0 0
        %896 = vmatpush1.bf16.xpose.msra.mxu0 0
        %897 = vmatprep.subr.bf16.mxu0 0
        %898 = vmatpush1.bf16.xpose.msra.mxu0 0
        %899 = vmatprep.subr.bf16.mxu0 0
        %900 = vmatpush1.bf16.xpose.msra.mxu0 0
        %901 = vmatprep.subr.bf16.mxu0 0
        %902 = vmatpush1.bf16.xpose.msra.mxu0 0
        %903 = vmatprep.subr.bf16.mxu0 0
        %904 = vmatpush1.bf16.xpose.msra.mxu0 0
        %905 = vmatprep.subr.bf16.mxu0 0
        %906 = vmatpush1.bf16.xpose.msra.mxu0 0
        %907 = vmatprep.subr.bf16.mxu0 0
        %908 = vmatpush1.bf16.xpose.msra.mxu0 0
        %909 = vmatprep.subr.bf16.mxu0 0
        %910 = vmatpush1.bf16.xpose.msra.mxu0 0
        %911 = vmatprep.subr.bf16.mxu0 0
        %912 = vmatpush1.bf16.xpose.msra.mxu0 0
        %913 = vmatprep.subr.bf16.mxu0 0
        %914 = vmatpush1.bf16.xpose.msra.mxu0 0
        %915 = vmatprep.mubr.bf16.mxu0 0
        %916 = vmatmul.mubr.bf16.gmra.mrb[0].mxu0 %v878
        %v917 = vpop.f32.mrb[0].mxu0
        %v918 = vadd.f32 %v465, %v917
        %v919 = vpop.f32.mrb[0].mxu0
        %v920 = vpop.f32.mrb[0].mxu0
        %v921 = vpop.f32.mrb[0].mxu0
        %922 = vdwg.mxu0
        %s923 = scalar_lea.vmem [#allocation2], 24
        %v924 = vld [vmem:[%s923] sm:$0xff]
        %v925 = vsel %vm520, %v918, -inf
        %926 = vmax.xlane.f32.xlu0 %v925
        %v927 = vpop.xlane.xlu0 %926
        %v928 = vmax.f32 %v924, %v927
        %v929 = vsub.f32 %v924, %v928
        %v930 = vmul.f32 %v929, 1.442695
        %v931 = vpow.pop %v930
        %933 = vset.pattern.permute.xlu0 0
        %934 = vperm.xlu0 %933, %v928
        %v935 = vpop.permute.xlu0 %934
        %v937 = vsub.f32 %v918, %v935
        %v938 = vmul.f32 %v937, 1.442695
        %v939 = vpow.pop %v938
        %s940 = scalar_lea.vmem [#allocation3], 24
        %v941 = vld [vmem:[%s940] sm:$0xff]
        %v942 = vmul.f32 %v931, %v941
        %v943 = vsel %vm520, %v939, 0.0
        %944 = vadd.xlane.f32.xlu0 %v943
        %v945 = vpop.xlane.xlu0 %944
        %v946 = vadd.f32 %v942, %v945
        %947 = vst.msk [vmem:[%s940] sm:$0xff] %vm542, %v946
        %s948 = scalar_lea.vmem [#allocation4], 24
        %v949 = vld [vmem:[%s948] sm:$0xff]
        %951 = vset.pattern.permute.xlu0 0
        %952 = vperm.xlu0 %951, %v931
        %v953 = vpop.permute.xlu0 %952
        %v955 = vmul.f32 %v953, %v949
        %v956 = vpack.c.bf16 %v939, %v939
        %957 = vrot.lane.b32.xlu0 %v556, 32
        %v958 = vpop.permute.xlu0 %957
        %v961 = vsel %vm520, %v956, 0
        %963 = vmatprep.subr.bf16.mxu0 0
        %964 = vmatpush1.bf16.msra.mxu0 %v958
        %965 = vmatprep.subr.bf16.mxu0 0
        %966 = vmatpush1.bf16.msra.mxu0 0
        %967 = vmatprep.subr.bf16.mxu0 0
        %968 = vmatpush1.bf16.msra.mxu0 0
        %969 = vmatprep.subr.bf16.mxu0 0
        %970 = vmatpush1.bf16.msra.mxu0 0
        %971 = vmatprep.subr.bf16.mxu0 0
        %972 = vmatpush1.bf16.msra.mxu0 0
        %973 = vmatprep.subr.bf16.mxu0 0
        %974 = vmatpush1.bf16.msra.mxu0 0
        %975 = vmatprep.subr.bf16.mxu0 0
        %976 = vmatpush1.bf16.msra.mxu0 0
        %977 = vmatprep.subr.bf16.mxu0 0
        %978 = vmatpush1.bf16.msra.mxu0 0
        %979 = vmatprep.subr.bf16.mxu0 0
        %980 = vmatpush1.bf16.msra.mxu0 0
        %981 = vmatprep.subr.bf16.mxu0 0
        %982 = vmatpush1.bf16.msra.mxu0 0
        %983 = vmatprep.subr.bf16.mxu0 0
        %984 = vmatpush1.bf16.msra.mxu0 0
        %985 = vmatprep.subr.bf16.mxu0 0
        %986 = vmatpush1.bf16.msra.mxu0 0
        %987 = vmatprep.subr.bf16.mxu0 0
        %988 = vmatpush1.bf16.msra.mxu0 0
        %989 = vmatprep.subr.bf16.mxu0 0
        %990 = vmatpush1.bf16.msra.mxu0 0
        %991 = vmatprep.subr.bf16.mxu0 0
        %992 = vmatpush1.bf16.msra.mxu0 0
        %993 = vmatprep.subr.bf16.mxu0 0
        %994 = vmatpush1.bf16.msra.mxu0 0
        %995 = vmatprep.mubr.bf16.mxu0 0
        %996 = vmatmul.mubr.bf16.gmra.mrb[0].mxu0 %v961
        %v997 = vpop.f32.mrb[0].mxu0
        %v998 = vadd.f32 0.0, %v997
        %v999 = vpop.f32.mrb[0].mxu0
        %v1000 = vpop.f32.mrb[0].mxu0
        %v1001 = vpop.f32.mrb[0].mxu0
        %1002 = vdwg.mxu0
        %v1003 = vadd.f32 %v955, %v998
        %1004 = vst.msk [vmem:[%s948] sm:$0xff] %vm472, %v1003
        %1005 = vst.msk [vmem:[%s923] sm:$0xff] %vm542, %v928
        // Predicated region
        $region123: #{bart_decoder_forward.25} parent=109 // pred_check
          %p1006 = pneg %p437
        $region124: #{bart_decoder_forward.25} parent=109 // pred_check_branch
          %1008 = sbr.rel (%p1006) target = $region126
        $region125: #{bart_decoder_forward.25} parent=109 // pred_region
          %v1009 = vld [vmem:[#allocation3] sm:$0xff]
          %v1010 = vrcp.pop %v1009
          %v1011 = vld [vmem:[#allocation4] sm:$0xff]
          %1013 = vset.pattern.permute.xlu0 0
          %1014 = vperm.xlu0 %1013, %v1010
          %v1015 = vpop.permute.xlu0 %1014
          %v1017 = vmul.f32 %v1011, %v1015
          %v1018 = vpack.c.bf16 %v1017, %v1017
          %vm1019 = vcmask 257024
          %1020 = vst.msk [vmem:[%s435] sm:$0xf] %vm1019, %v1018
          %v1021 = vld [vmem:[%s674] sm:$0xff]
          %v1022 = vrcp.pop %v1021
          %v1023 = vld [vmem:[%s682] sm:$0xff]
          %1025 = vset.pattern.permute.xlu0 0
          %1026 = vperm.xlu0 %1025, %v1022
          %v1027 = vpop.permute.xlu0 %1026
          %v1029 = vmul.f32 %v1023, %v1027
          %v1030 = vpack.c.bf16 %v1029, %v1029
          %v1032 = vunpack.c.l.b16 %v1030
          %v1033 = vpack.c.b16 %v1032, %v1032
          %1034 = vrot.lane.b32.xlu0 %v1033, 32
          %v1035 = vpop.permute.xlu0 %1034
          %vm1037 = vcmask 519424
          %1038 = vst.msk [vmem:[%s435] sm:$0xf] %vm1037, %v1035
          %v1039 = vld [vmem:[%s807] sm:$0xff]
          %v1040 = vrcp.pop %v1039
          %v1041 = vld [vmem:[%s815] sm:$0xff]
          %1043 = vset.pattern.permute.xlu0 0
          %1044 = vperm.xlu0 %1043, %v1040
          %v1045 = vpop.permute.xlu0 %1044
          %v1047 = vmul.f32 %v1041, %v1045
          %v1048 = vpack.c.bf16 %v1047, %v1047
          %v1050 = vunpack.c.l.b16 %v1048
          %v1051 = vpack.c.b16 %v1050, %v1050
          %1052 = vrot.lane.b32.xlu0 %v1051, 64
          %v1053 = vpop.permute.xlu0 %1052
          %vm1055 = vcmask 781824
          %1056 = vst.msk [vmem:[%s435] sm:$0xf] %vm1055, %v1053
          %v1057 = vld [vmem:[%s940] sm:$0xff]
          %v1058 = vrcp.pop %v1057
          %v1059 = vld [vmem:[%s948] sm:$0xff]
          %1061 = vset.pattern.permute.xlu0 0
          %1062 = vperm.xlu0 %1061, %v1058
          %v1063 = vpop.permute.xlu0 %1062
          %v1065 = vmul.f32 %v1059, %v1063
          %v1066 = vpack.c.bf16 %v1065, %v1065
          %v1068 = vunpack.c.l.b16 %v1066
          %v1069 = vpack.c.b16 %v1068, %v1068
          %1070 = vrot.lane.b32.xlu0 %v1069, 96
          %v1071 = vpop.permute.xlu0 %1070
          %vm1073 = vcmask 1044224
          %1074 = vst.msk [vmem:[%s435] sm:$0xf] %vm1073, %v1071
        $region126: #{bart_decoder_forward.25} parent=109 // pred_fallthru
          _
        %p1075 = scmp.lt.s32.totalorder %s21, 1
        %s1076 = scalar_select %p1075, %s21, 1
        %p1077 = scmp.lt.s32.totalorder %s23, 0
        %s1078 = scalar_select %p1077, %s23, 0
        %p1079 = scmp.lt.s32.totalorder %s22, 0
        %s1080 = scalar_select %p1079, %s22, 0
        %s1081 = sadd.s32 %s1080, %s1078
        %s1082 = sadd.s32 %s1081, %s1076
        %s1083 = smul.addr %s1082, 4
        %s1084 = scalar_lea.vmem %s4, %s1083
        // Predicated region
        $region127: #{bart_decoder_forward.25} parent=109 // pred_check
          %p1085 = pneg %p183
        $region128: #{bart_decoder_forward.25} parent=109 // pred_check_branch
          %1087 = sbr.rel (%p1085) target = $region130
        $region129: #{bart_decoder_forward.25} parent=109 // pred_region
          _
        $region130: #{bart_decoder_forward.25} parent=109 // pred_fallthru
          _
      $region110: #{bart_decoder_forward.25} parent=5 // pred_fallthru
        _
      %p1088 = scmp.le.s32.totalorder 2, %s10
      // Predicated region
      $region131: #{bart_decoder_forward.25} parent=5 // pred_check
        %p1089 = pneg %p1088
      $region132: #{bart_decoder_forward.25} parent=5 // pred_check_branch
        %1091 = sbr.rel (%p1089) target = $region134
      $region133: #{bart_decoder_forward.25} parent=5 // pred_region
        %s1092 = ssub.s32 %s10, 2
        // Predicated region
        $region135: #{bart_decoder_forward.25} parent=133 // pred_check
          %p1093 = pneg %p189
        $region136: #{bart_decoder_forward.25} parent=133 // pred_check_branch
          %1095 = sbr.rel (%p1093) target = $region138
        $region137: #{bart_decoder_forward.25} parent=133 // pred_region
          %p1096 = scmp.lt.s32.totalorder %s25, 1
          %s1097 = scalar_select %p1096, %s25, 1
          %p1098 = scmp.lt.s32.totalorder %s27, 0
          %s1099 = scalar_select %p1098, %s27, 0
          %p1100 = scmp.lt.s32.totalorder %s26, 0
          %s1101 = scalar_select %p1100, %s26, 0
          %s1102 = sadd.s32 %s1101, %s1099
          %s1103 = sadd.s32 %s1102, %s1097
          %s1104 = smul.addr %s1103, 4
          %s1105 = scalar_lea.vmem %s4, %s1104
        $region138: #{bart_decoder_forward.25} parent=133 // pred_fallthru
          _
      $region134: #{bart_decoder_forward.25} parent=5 // pred_fallthru
        _
    $region6: #{bart_decoder_forward.25} parent=1 // loop_footer
      %s14 = sadd.s32 1, %s10
    $region7: #{bart_decoder_forward.25} parent=1 // loop_footer_branch
      %9 = sbr.rel target = $region3
    $region8: #{bart_decoder_forward.25} parent=1 // loop_exit
      _

// kernel: bart_decoder_forward.29
$region0: #{bart_decoder_forward.29}
  #allocation0 [shape = 'u32[]', space=smem, size = 0x4, offset = 0x4, fixed_abs, tag = 'smem constant byte address 0x4 - core index']
  #allocation1 [shape = 'u32[144,128]{1,0:T(1,128)}', space=vmem, size = 0x12000, scoped, tag = 'internal scratch']
  #allocation2 [shape = 'f32[16,128]{1,0:T(8,128)}', space=vmem, size = 0x2000, scoped, tag = 'scratch operand']
  %s0 = inlined_call_operand.vmem [shape: bf16[16,128], index: 0, kind: input, shape index: {}]
  %s1 = inlined_call_operand.vmem [shape: bf16[128,384], index: 1, kind: input, shape index: {}]
  %s2 = inlined_call_operand.vmem [shape: f32[1,384], index: 2, kind: input, shape index: {}]
  %s3 = inlined_call_operand.vmem [shape: bf16[16,384], index: 3, kind: output, shape index: {}]
  %s4 = sld [smem:[#allocation0]]
  $region131: #{bart_decoder_forward.29} parent=0
    _
  %s6 = ssub.s32 1, %s4
  %s7 = scalar_select 0, %s6, %s4
  $region1: #{bart_decoder_forward.29} parent=0
    #allocation3 [shape = 'u8[65536]{0}', space=vmem, size = 0x10000, scoped, tag = 'input window, operand 1']
    #allocation4 [shape = 'u8[8192]{0}', space=vmem, size = 0x2000, scoped, tag = 'output window, operand 0']
    loop: start=0, step=1, limit=5
    $region2: #{bart_decoder_forward.29} parent=1 // loop_pre_header
      _
    $region3: #{bart_decoder_forward.29} parent=1 // loop_header
      %s9 = sphi 0, %s13
      %p10 = scmp.ge.s32.totalorder %s9, 5
      %s16 = sphi 0, %s35
      %s17 = sphi 0, %s31
      %s18 = sphi 0, %s27
      %s19 = sphi 0, %s16
      %s20 = sphi 0, %s17
      %s21 = sphi 0, %s18
      %s22 = sphi 0, %s19
      %s23 = sphi 0, %s20
      %s24 = sphi 0, %s21
      %s40 = sphi 0, %s42
      %s43 = sphi 0, %s40
      %s44 = sphi 0, %s43
      %s60 = sphi 0, %s44
      %s68 = sphi 0, %s70
      %s71 = sphi 0, %s68
      %s72 = sphi 0, %s71
      %s88 = sphi 0, %s72
      %s94 = sphi 0, %s96
      %s97 = sphi 0, %s94
      %s98 = sphi 0, %s97
      %s114 = sphi 0, %s98
      %s122 = sphi 0, %s124
      %s125 = sphi 0, %s122
      %s126 = sphi 0, %s125
      %s142 = sphi 0, %s126
    $region4: #{bart_decoder_forward.29} parent=1 // loop_header_branch
      %12 = sbr.rel (%p10) target = $region8
    $region5: #{bart_decoder_forward.29} parent=1 // loop_body
      %s14 = ssub.s32 %s9, 1
      %s15 = ssub.s32 %s9, 2
      %s25 = sadd.s32 1, %s18
      %p26 = scmp.ge.s32.totalorder %s25, 1
      %s27 = scalar_select %p26, 0, %s25
      %s28 = sadd.s32 1, %s17
      %s29 = scalar_select %p26, %s28, %s17
      %p30 = scmp.ge.s32.totalorder %s29, 3
      %s31 = scalar_select %p30, 0, %s29
      %s32 = sadd.s32 1, %s16
      %s33 = scalar_select %p30, %s32, %s16
      %p34 = scmp.ge.s32.totalorder %s33, 1
      %s35 = scalar_select %p34, 0, %s33
      %s36 = ssub.s32 %s16, %s35
      %s37 = ssub.s32 %s18, %s27
      %s38 = sor.u32 %s36, %s37
      %p39 = scmp.eq.s32.totalorder %s38, 0
      %s41 = sadd.s32 %s40, 1
      %s42 = scalar_select %p39, %s40, %s41
      %p45 = pneg %p39
      %p46 = scmp.eq.s32.totalorder %s9, 2
      %p47 = por %p45, %p46
      %p48 = scmp.ne.s32.totalorder %s40, %s43
      %p49 = scmp.eq.s32.totalorder %s9, 0
      %p50 = por %p48, %p49
      %p51 = scmp.ne.s32.totalorder %s40, %s43
      %p52 = scmp.eq.s32.totalorder %s14, 2
      %p53 = por %p51, %p52
      %p54 = scmp.ne.s32.totalorder %s43, %s44
      %p55 = scmp.eq.s32.totalorder %s14, 0
      %p56 = por %p54, %p55
      %p57 = scmp.ne.s32.totalorder %s43, %s44
      %p58 = scmp.eq.s32.totalorder %s15, 2
      %p59 = por %p57, %p58
      %p61 = scmp.ne.s32.totalorder %s44, %s60
      %p62 = scmp.eq.s32.totalorder %s15, 0
      %p63 = por %p61, %p62
      %s64 = ssub.s32 %s18, %s27
      %s65 = ssub.s32 %s17, %s31
      %s66 = sor.u32 %s64, %s65
      %p67 = scmp.eq.s32.totalorder %s66, 0
      %s69 = sadd.s32 %s68, 1
      %s70 = scalar_select %p67, %s68, %s69
      %p73 = pneg %p67
      %p74 = scmp.eq.s32.totalorder %s9, 2
      %p75 = por %p73, %p74
      %p76 = scmp.ne.s32.totalorder %s68, %s71
      %p77 = scmp.eq.s32.totalorder %s9, 0
      %p78 = por %p76, %p77
      %p79 = scmp.ne.s32.totalorder %s68, %s71
      %p80 = scmp.eq.s32.totalorder %s14, 2
      %p81 = por %p79, %p80
      %p82 = scmp.ne.s32.totalorder %s71, %s72
      %p83 = scmp.eq.s32.totalorder %s14, 0
      %p84 = por %p82, %p83
      %p85 = scmp.ne.s32.totalorder %s71, %s72
      %p86 = scmp.eq.s32.totalorder %s15, 2
      %p87 = por %p85, %p86
      %p89 = scmp.ne.s32.totalorder %s72, %s88
      %p90 = scmp.eq.s32.totalorder %s15, 0
      %p91 = por %p89, %p90
      %s92 = ssub.s32 %s17, %s31
      %p93 = scmp.eq.s32.totalorder %s92, 0
      %s95 = sadd.s32 %s94, 1
      %s96 = scalar_select %p93, %s94, %s95
      %p99 = pneg %p93
      %p100 = scmp.eq.s32.totalorder %s9, 2
      %p101 = por %p99, %p100
      %p102 = scmp.ne.s32.totalorder %s94, %s97
      %p103 = scmp.eq.s32.totalorder %s9, 0
      %p104 = por %p102, %p103
      %p105 = scmp.ne.s32.totalorder %s94, %s97
      %p106 = scmp.eq.s32.totalorder %s14, 2
      %p107 = por %p105, %p106
      %p108 = scmp.ne.s32.totalorder %s97, %s98
      %p109 = scmp.eq.s32.totalorder %s14, 0
      %p110 = por %p108, %p109
      %p111 = scmp.ne.s32.totalorder %s97, %s98
      %p112 = scmp.eq.s32.totalorder %s15, 2
      %p113 = por %p111, %p112
      %p115 = scmp.ne.s32.totalorder %s98, %s114
      %p116 = scmp.eq.s32.totalorder %s15, 0
      %p117 = por %p115, %p116
      %s118 = ssub.s32 %s16, %s35
      %s119 = ssub.s32 %s17, %s31
      %s120 = sor.u32 %s118, %s119
      %p121 = scmp.eq.s32.totalorder %s120, 0
      %s123 = sadd.s32 %s122, 1
      %s124 = scalar_select %p121, %s122, %s123
      %p127 = pneg %p121
      %p128 = scmp.eq.s32.totalorder %s9, 2
      %p129 = por %p127, %p128
      %p130 = scmp.ne.s32.totalorder %s122, %s125
      %p131 = scmp.eq.s32.totalorder %s9, 0
      %p132 = por %p130, %p131
      %p133 = scmp.ne.s32.totalorder %s122, %s125
      %p134 = scmp.eq.s32.totalorder %s14, 2
      %p135 = por %p133, %p134
      %p136 = scmp.ne.s32.totalorder %s125, %s126
      %p137 = scmp.eq.s32.totalorder %s14, 0
      %p138 = por %p136, %p137
      %p139 = scmp.ne.s32.totalorder %s125, %s126
      %p140 = scmp.eq.s32.totalorder %s15, 2
      %p141 = por %p139, %p140
      %p143 = scmp.ne.s32.totalorder %s126, %s142
      %p144 = scmp.eq.s32.totalorder %s15, 0
      %p145 = por %p143, %p144
      %p146 = scmp.le.s32.totalorder 1, %s9
      %p147 = scmp.lt.s32.totalorder %s9, 4
      %p148 = pnand %p146, %p147
      %p149 = pneg %p148
      // Predicated region
      $region9: #{bart_decoder_forward.29} parent=5 // pred_check
        _
      $region10: #{bart_decoder_forward.29} parent=5 // pred_check_branch
        %151 = sbr.rel (%p148) target = $region12
      $region11: #{bart_decoder_forward.29} parent=5 // pred_region
        %s152 = ssub.s32 %s9, 1
        // Predicated region
        $region13: #{bart_decoder_forward.29} parent=11 // pred_check
          %p153 = pneg %p56
        $region14: #{bart_decoder_forward.29} parent=11 // pred_check_branch
          %155 = sbr.rel (%p153) target = $region16
        $region15: #{bart_decoder_forward.29} parent=11 // pred_region
          %s156 = smul.u32 2, %s19
          %p157 = scmp.lt.s32.totalorder %s156, 1
          %s158 = scalar_select %p157, %s156, 1
          %p159 = scmp.lt.s32.totalorder %s21, 0
          %s160 = scalar_select %p159, %s21, 0
          %s161 = sadd.s32 %s160, %s158
          %s162 = smul.addr %s161, 4
          %s163 = scalar_lea.vmem %s0, %s162
          %s164 = smul.u32 2, %s19
        $region16: #{bart_decoder_forward.29} parent=11 // pred_fallthru
          _
      $region12: #{bart_decoder_forward.29} parent=5 // pred_fallthru
        _
      %p165 = scmp.lt.s32.totalorder %s9, 3
      // Predicated region
      $region17: #{bart_decoder_forward.29} parent=5 // pred_check
        %p166 = pneg %p165
      $region18: #{bart_decoder_forward.29} parent=5 // pred_check_branch
        %168 = sbr.rel (%p166) target = $region20
      $region19: #{bart_decoder_forward.29} parent=5 // pred_region
        // Predicated region
        $region21: #{bart_decoder_forward.29} parent=19 // pred_check
          %p169 = pneg %p78
        $region22: #{bart_decoder_forward.29} parent=19 // pred_check_branch
          %171 = sbr.rel (%p169) target = $region24
        $region23: #{bart_decoder_forward.29} parent=19 // pred_region
          %s172 = sand.u32 %s68, 1
          %s173 = sand.u32 %s68, 1
          %s174 = smul.addr %s173, 64
          %s175 = scalar_lea.vmem [#allocation3], %s174
          %s176 = smul.u32 16, %s18
          %s177 = smul.addr %s176, 3
          %s178 = sadd.s32 %s17, %s177
          %s179 = smul.addr %s178, 4
          %s180 = scalar_lea.vmem %s1, %s179
          // Predicated region
          $region25: #{bart_decoder_forward.29} parent=23 // pred_check
            _
          $region26: #{bart_decoder_forward.29} parent=23 // pred_check_branch
            %182 = sbr.rel (0) target = $region28
          $region27: #{bart_decoder_forward.29} parent=23 // pred_region
            // Predicated region
            $region29: #{bart_decoder_forward.29} parent=27 // pred_check
              _
            $region30: #{bart_decoder_forward.29} parent=27 // pred_check_branch
              %184 = sbr.rel target = $region32
            $region31: #{bart_decoder_forward.29} parent=27 // pred_region
              // Predicated region
              $region44: #{bart_decoder_forward.29} parent=31 // pred_check
                _
              $region45: #{bart_decoder_forward.29} parent=31 // pred_check_branch
                %229 = sbr.rel (0) target = $region47
              $region46: #{bart_decoder_forward.29} parent=31 // pred_region
                loop: start=0, step=1, limit=1
                $region48: #{bart_decoder_forward.29} parent=46 // loop_pre_header
                  _
                $region49: #{bart_decoder_forward.29} parent=46 // loop_header
                  %s231 = sphi 0, %s235
                  %p232 = scmp.ge.s32.totalorder %s231, 1
                  %s236 = sphi %s180, %s180
                  %s237 = sphi %s175, %s175
                $region50: #{bart_decoder_forward.29} parent=46 // loop_header_branch
                  %234 = sbr.rel (%p232) target = $region54
                $region51: #{bart_decoder_forward.29} parent=46 // loop_body
                  _
                $region52: #{bart_decoder_forward.29} parent=46 // loop_footer
                  %s235 = sadd.s32 1, %s231
                $region53: #{bart_decoder_forward.29} parent=46 // loop_footer_branch
                  %230 = sbr.rel target = $region49
                $region54: #{bart_decoder_forward.29} parent=46 // loop_exit
                  _
                loop: start=0, step=1, limit=1
                $region55: #{bart_decoder_forward.29} parent=46 // loop_pre_header
                  _
                $region56: #{bart_decoder_forward.29} parent=46 // loop_header
                  %s240 = sphi 0, %s244
                  %p241 = scmp.ge.s32.totalorder %s240, 1
                  %s245 = sphi %s180, %s180
                  %s246 = sphi %s175, %s175
                $region57: #{bart_decoder_forward.29} parent=46 // loop_header_branch
                  %243 = sbr.rel (%p241) target = $region61
                $region58: #{bart_decoder_forward.29} parent=46 // loop_body
                  %v247 = vld [vmem:[%s245] sm:$0xf]
                  %248 = vst [vmem:[%s246] sm:$0xf] %v247
                  %v249 = vld [vmem:[%s245 + $0xc] sm:$0xf]
                  %250 = vst [vmem:[%s246 + $0x4] sm:$0xf] %v249
                  %v251 = vld [vmem:[%s245 + $0x18] sm:$0xf]
                  %252 = vst [vmem:[%s246 + $0x8] sm:$0xf] %v251
                  %v253 = vld [vmem:[%s245 + $0x24] sm:$0xf]
                  %254 = vst [vmem:[%s246 + $0xc] sm:$0xf] %v253
                  %v255 = vld [vmem:[%s245 + $0x30] sm:$0xf]
                  %256 = vst [vmem:[%s246 + $0x10] sm:$0xf] %v255
                  %v257 = vld [vmem:[%s245 + $0x3c] sm:$0xf]
                  %258 = vst [vmem:[%s246 + $0x14] sm:$0xf] %v257
                  %v259 = vld [vmem:[%s245 + $0x48] sm:$0xf]
                  %260 = vst [vmem:[%s246 + $0x18] sm:$0xf] %v259
                  %v261 = vld [vmem:[%s245 + $0x54] sm:$0xf]
                  %262 = vst [vmem:[%s246 + $0x1c] sm:$0xf] %v261
                  %v263 = vld [vmem:[%s245 + $0x60] sm:$0xf]
                  %264 = vst [vmem:[%s246 + $0x20] sm:$0xf] %v263
                  %v265 = vld [vmem:[%s245 + $0x6c] sm:$0xf]
                  %266 = vst [vmem:[%s246 + $0x24] sm:$0xf] %v265
                  %v267 = vld [vmem:[%s245 + $0x78] sm:$0xf]
                  %268 = vst [vmem:[%s246 + $0x28] sm:$0xf] %v267
                  %v269 = vld [vmem:[%s245 + $0x84] sm:$0xf]
                  %270 = vst [vmem:[%s246 + $0x2c] sm:$0xf] %v269
                  %v271 = vld [vmem:[%s245 + $0x90] sm:$0xf]
                  %272 = vst [vmem:[%s246 + $0x30] sm:$0xf] %v271
                  %v273 = vld [vmem:[%s245 + $0x9c] sm:$0xf]
                  %274 = vst [vmem:[%s246 + $0x34] sm:$0xf] %v273
                  %v275 = vld [vmem:[%s245 + $0xa8] sm:$0xf]
                  %276 = vst [vmem:[%s246 + $0x38] sm:$0xf] %v275
                  %v277 = vld [vmem:[%s245 + $0xb4] sm:$0xf]
                  %278 = vst [vmem:[%s246 + $0x3c] sm:$0xf] %v277
                $region59: #{bart_decoder_forward.29} parent=46 // loop_footer
                  %s244 = sadd.s32 1, %s240
                $region60: #{bart_decoder_forward.29} parent=46 // loop_footer_branch
                  %239 = sbr.rel target = $region56
                $region61: #{bart_decoder_forward.29} parent=46 // loop_exit
                  _
              $region47: #{bart_decoder_forward.29} parent=31 // pred_fallthru
                _
            $region32: #{bart_decoder_forward.29} parent=27 // pred_fallthru
              _
            // Predicated region
            $region33: #{bart_decoder_forward.29} parent=27 // pred_check
              _
            $region34: #{bart_decoder_forward.29} parent=27 // pred_check_branch
              %186 = sbr.rel (0) target = $region36
            $region35: #{bart_decoder_forward.29} parent=27 // pred_region
              loop: start=0, step=1, limit=1
              $region37: #{bart_decoder_forward.29} parent=35 // loop_pre_header
                _
              $region38: #{bart_decoder_forward.29} parent=35 // loop_header
                %s189 = sphi 0, %s193
                %p190 = scmp.ge.s32.totalorder %s189, 1
                %s194 = sphi %s180, %s180
                %s195 = sphi %s175, %s175
              $region39: #{bart_decoder_forward.29} parent=35 // loop_header_branch
                %192 = sbr.rel (%p190) target = $region43
              $region40: #{bart_decoder_forward.29} parent=35 // loop_body
                %v196 = vld [vmem:[%s194] sm:$0xf]
                %197 = vst [vmem:[%s195] sm:$0xf] %v196
                %v198 = vld [vmem:[%s194 + $0xc] sm:$0xf]
                %199 = vst [vmem:[%s195 + $0x4] sm:$0xf] %v198
                %v200 = vld [vmem:[%s194 + $0x18] sm:$0xf]
                %201 = vst [vmem:[%s195 + $0x8] sm:$0xf] %v200
                %v202 = vld [vmem:[%s194 + $0x24] sm:$0xf]
                %203 = vst [vmem:[%s195 + $0xc] sm:$0xf] %v202
                %v204 = vld [vmem:[%s194 + $0x30] sm:$0xf]
                %205 = vst [vmem:[%s195 + $0x10] sm:$0xf] %v204
                %v206 = vld [vmem:[%s194 + $0x3c] sm:$0xf]
                %207 = vst [vmem:[%s195 + $0x14] sm:$0xf] %v206
                %v208 = vld [vmem:[%s194 + $0x48] sm:$0xf]
                %209 = vst [vmem:[%s195 + $0x18] sm:$0xf] %v208
                %v210 = vld [vmem:[%s194 + $0x54] sm:$0xf]
                %211 = vst [vmem:[%s195 + $0x1c] sm:$0xf] %v210
                %v212 = vld [vmem:[%s194 + $0x60] sm:$0xf]
                %213 = vst [vmem:[%s195 + $0x20] sm:$0xf] %v212
                %v214 = vld [vmem:[%s194 + $0x6c] sm:$0xf]
                %215 = vst [vmem:[%s195 + $0x24] sm:$0xf] %v214
                %v216 = vld [vmem:[%s194 + $0x78] sm:$0xf]
                %217 = vst [vmem:[%s195 + $0x28] sm:$0xf] %v216
                %v218 = vld [vmem:[%s194 + $0x84] sm:$0xf]
                %219 = vst [vmem:[%s195 + $0x2c] sm:$0xf] %v218
                %v220 = vld [vmem:[%s194 + $0x90] sm:$0xf]
                %221 = vst [vmem:[%s195 + $0x30] sm:$0xf] %v220
                %v222 = vld [vmem:[%s194 + $0x9c] sm:$0xf]
                %223 = vst [vmem:[%s195 + $0x34] sm:$0xf] %v222
                %v224 = vld [vmem:[%s194 + $0xa8] sm:$0xf]
                %225 = vst [vmem:[%s195 + $0x38] sm:$0xf] %v224
                %v226 = vld [vmem:[%s194 + $0xb4] sm:$0xf]
                %227 = vst [vmem:[%s195 + $0x3c] sm:$0xf] %v226
              $region41: #{bart_decoder_forward.29} parent=35 // loop_footer
                %s193 = sadd.s32 1, %s189
              $region42: #{bart_decoder_forward.29} parent=35 // loop_footer_branch
                %188 = sbr.rel target = $region38
              $region43: #{bart_decoder_forward.29} parent=35 // loop_exit
                _
            $region36: #{bart_decoder_forward.29} parent=27 // pred_fallthru
              _
          $region28: #{bart_decoder_forward.29} parent=23 // pred_fallthru
            _
          %279 = vnop
        $region24: #{bart_decoder_forward.29} parent=19 // pred_fallthru
          _
        // Predicated region
        $region62: #{bart_decoder_forward.29} parent=19 // pred_check
          %p280 = pneg %p104
        $region63: #{bart_decoder_forward.29} parent=19 // pred_check_branch
          %282 = sbr.rel (%p280) target = $region65
        $region64: #{bart_decoder_forward.29} parent=19 // pred_region
          %p283 = scmp.lt.s32.totalorder %s17, 2
          %s284 = scalar_select %p283, %s17, 2
          %s285 = scalar_lea.vmem %s2, %s284
        $region65: #{bart_decoder_forward.29} parent=19 // pred_fallthru
          _
      $region20: #{bart_decoder_forward.29} parent=5 // pred_fallthru
        _
      %p286 = scmp.le.s32.totalorder 1, %s9
      %p287 = scmp.lt.s32.totalorder %s9, 4
      %p288 = pnand %p286, %p287
      %p289 = pneg %p288
      // Predicated region
      $region66: #{bart_decoder_forward.29} parent=5 // pred_check
        _
      $region67: #{bart_decoder_forward.29} parent=5 // pred_check_branch
        %291 = sbr.rel (%p288) target = $region69
      $region68: #{bart_decoder_forward.29} parent=5 // pred_region
        %s292 = ssub.s32 %s9, 1
        %s293 = sand.u32 %s71, 1
        %s294 = sand.u32 %s71, 1
        %s295 = smul.addr %s294, 64
        %s296 = scalar_lea.vmem [#allocation3], %s295
        // Predicated region
        $region70: #{bart_decoder_forward.29} parent=68 // pred_check
          %p297 = pneg %p84
        $region71: #{bart_decoder_forward.29} parent=68 // pred_check_branch
          %299 = sbr.rel (%p297) target = $region73
        $region72: #{bart_decoder_forward.29} parent=68 // pred_region
          _
        $region73: #{bart_decoder_forward.29} parent=68 // pred_fallthru
          _
        %s300 = smul.u32 2, %s19
        %p301 = scmp.lt.s32.totalorder %s300, 1
        %s302 = scalar_select %p301, %s300, 1
        %p303 = scmp.lt.s32.totalorder %s21, 0
        %s304 = scalar_select %p303, %s21, 0
        %s305 = sadd.s32 %s304, %s302
        %s306 = smul.addr %s305, 4
        %s307 = scalar_lea.vmem %s0, %s306
        %p308 = pneg %p56
        %p309 = pneg %p53
        %s310 = sand.u32 %s71, 1
        %s311 = sand.u32 %s71, 1
        %s312 = smul.addr %s311, 64
        %s313 = scalar_lea.vmem [#allocation3], %s312
        %p314 = pneg %p84
        %p315 = pneg %p81
        %p316 = scmp.lt.s32.totalorder %s20, 2
        %s317 = scalar_select %p316, %s20, 2
        %s318 = scalar_lea.vmem %s2, %s317
        %p319 = pneg %p110
        %p320 = pneg %p107
        %p321 = pneg %p138
        %p322 = pneg %p135
        %s323 = sand.u32 %s125, 1
        %s324 = sand.u32 %s125, 1
        %s325 = smul.addr %s324, 8
        %s326 = scalar_lea.vmem [#allocation4], %s325
        %s327 = smul.u32 2, %s19
        %p328 = scmp.lt.s32.totalorder %s327, 1
        %s329 = scalar_select %p328, %s327, 1
        %p330 = scmp.lt.s32.totalorder %s21, 0
        %s331 = scalar_select %p330, %s21, 0
        %s332 = sadd.s32 %s331, %s329
        %s333 = smul.addr %s332, 4
        %s334 = scalar_lea.vmem %s0, %s333
        %s335 = smul.u32 2, %s19
        %s336 = smul.u32 16, %s21
        %p337 = scmp.lt.s32.totalorder %s20, 2
        %s338 = scalar_select %p337, %s20, 2
        %s339 = scalar_lea.vmem %s2, %s338
        %s340 = smul.u32 2, %s19
        %p342 = scmp.eq.s32.totalorder %s21, 0
        // Predicated region
        $region74: #{bart_decoder_forward.29} parent=68 // pred_check
          %p343 = pneg %p342
        $region75: #{bart_decoder_forward.29} parent=68 // pred_check_branch
          %345 = sbr.rel (%p343) target = $region77
        $region76: #{bart_decoder_forward.29} parent=68 // pred_region
          %346 = vst [vmem:[#allocation2] sm:$0xff] 0.0
          %347 = vst [vmem:[#allocation2 + $0x8] sm:$0xff] 0.0
        $region77: #{bart_decoder_forward.29} parent=68 // pred_fallthru
          _
        %v348 = vld [vmem:[#allocation2] sm:$0xff]
        %v349 = vld [vmem:[#allocation2 + $0x8] sm:$0xff]
        %v350 = vld [vmem:[%s334] sm:$0xf]
        %v351 = vld [vmem:[%s334 + $0x4] sm:$0xf]
        %v352 = vld [vmem:[%s296] sm:$0xf]
        %v353 = vld [vmem:[%s296 + $0x4] sm:$0xf]
        %v354 = vld [vmem:[%s296 + $0x8] sm:$0xf]
        %v355 = vld [vmem:[%s296 + $0xc] sm:$0xf]
        %v356 = vld [vmem:[%s296 + $0x10] sm:$0xf]
        %v357 = vld [vmem:[%s296 + $0x14] sm:$0xf]
        %v358 = vld [vmem:[%s296 + $0x18] sm:$0xf]
        %v359 = vld [vmem:[%s296 + $0x1c] sm:$0xf]
        %v360 = vld [vmem:[%s296 + $0x20] sm:$0xf]
        %v361 = vld [vmem:[%s296 + $0x24] sm:$0xf]
        %v362 = vld [vmem:[%s296 + $0x28] sm:$0xf]
        %v363 = vld [vmem:[%s296 + $0x2c] sm:$0xf]
        %v364 = vld [vmem:[%s296 + $0x30] sm:$0xf]
        %v365 = vld [vmem:[%s296 + $0x34] sm:$0xf]
        %v366 = vld [vmem:[%s296 + $0x38] sm:$0xf]
        %v367 = vld [vmem:[%s296 + $0x3c] sm:$0xf]
        %v370 = vunpack.c.l.b16 %v350
        %v371 = vunpack.c.l.b16 %v351
        %v372 = vpack.c.b16 %v371, %v370
        %v390 = vunpack.c.l.b16 %v352
        %v391 = vunpack.c.l.b16 %v353
        %v392 = vunpack.c.l.b16 %v354
        %v393 = vunpack.c.l.b16 %v355
        %v394 = vunpack.c.l.b16 %v356
        %v395 = vunpack.c.l.b16 %v357
        %v396 = vunpack.c.l.b16 %v358
        %v397 = vunpack.c.l.b16 %v359
        %v398 = vunpack.c.l.b16 %v360
        %v399 = vunpack.c.l.b16 %v361
        %v400 = vunpack.c.l.b16 %v362
        %v401 = vunpack.c.l.b16 %v363
        %v402 = vunpack.c.l.b16 %v364
        %v403 = vunpack.c.l.b16 %v365
        %v404 = vunpack.c.l.b16 %v366
        %v405 = vunpack.c.l.b16 %v367
        %v406 = vpack.c.b16 %v391, %v390
        %v407 = vpack.c.b16 %v393, %v392
        %v408 = vpack.c.b16 %v395, %v394
        %v409 = vpack.c.b16 %v397, %v396
        %v410 = vpack.c.b16 %v399, %v398
        %v411 = vpack.c.b16 %v401, %v400
        %v412 = vpack.c.b16 %v403, %v402
        %v413 = vpack.c.b16 %v405, %v404
        %422 = vmatprep.subr.bf16.mxu0 0
        %423 = vmatpush1.bf16.msra.mxu0 %v406
        %424 = vmatprep.subr.bf16.mxu0 0
        %425 = vmatpush1.bf16.msra.mxu0 %v407
        %426 = vmatprep.subr.bf16.mxu0 0
        %427 = vmatpush1.bf16.msra.mxu0 %v408
        %428 = vmatprep.subr.bf16.mxu0 0
        %429 = vmatpush1.bf16.msra.mxu0 %v409
        %430 = vmatprep.subr.bf16.mxu0 0
        %431 = vmatpush1.bf16.msra.mxu0 %v410
        %432 = vmatprep.subr.bf16.mxu0 0
        %433 = vmatpush1.bf16.msra.mxu0 %v411
        %434 = vmatprep.subr.bf16.mxu0 0
        %435 = vmatpush1.bf16.msra.mxu0 %v412
        %436 = vmatprep.subr.bf16.mxu0 0
        %437 = vmatpush1.bf16.msra.mxu0 %v413
        %438 = vmatprep.subr.bf16.mxu0 0
        %439 = vmatpush1.bf16.msra.mxu0 0
        %440 = vmatprep.subr.bf16.mxu0 0
        %441 = vmatpush1.bf16.msra.mxu0 0
        %442 = vmatprep.subr.bf16.mxu0 0
        %443 = vmatpush1.bf16.msra.mxu0 0
        %444 = vmatprep.subr.bf16.mxu0 0
        %445 = vmatpush1.bf16.msra.mxu0 0
        %446 = vmatprep.subr.bf16.mxu0 0
        %447 = vmatpush1.bf16.msra.mxu0 0
        %448 = vmatprep.subr.bf16.mxu0 0
        %449 = vmatpush1.bf16.msra.mxu0 0
        %450 = vmatprep.subr.bf16.mxu0 0
        %451 = vmatpush1.bf16.msra.mxu0 0
        %452 = vmatprep.subr.bf16.mxu0 0
        %453 = vmatpush1.bf16.msra.mxu0 0
        %454 = vmatprep.mubr.bf16.mxu0 0
        %455 = vmatmul.mubr.bf16.gmra.mrb[0].mxu0 %v372
        %v456 = vpop.f32.mrb[0].mxu0
        %v457 = vadd.f32 0.0, %v456
        %v458 = vpop.f32.mrb[0].mxu0
        %v459 = vpop.f32.mrb[0].mxu0
        %v460 = vadd.f32 0.0, %v459
        %v461 = vpop.f32.mrb[0].mxu0
        %462 = vdwg.mxu0
        %v463 = vadd.f32 %v348, %v457
        %v464 = vadd.f32 %v349, %v460
        %465 = vst [vmem:[#allocation2] sm:$0xff] %v463
        %466 = vst [vmem:[#allocation2 + $0x8] sm:$0xff] %v464
        // Predicated region
        $region78: #{bart_decoder_forward.29} parent=68 // pred_check
          %p467 = pneg %p342
        $region79: #{bart_decoder_forward.29} parent=68 // pred_check_branch
          %469 = sbr.rel (%p467) target = $region81
        $region80: #{bart_decoder_forward.29} parent=68 // pred_region
          %v470 = vld [vmem:[#allocation2] sm:$0xff]
          %v471 = vld [vmem:[#allocation2 + $0x8] sm:$0xff]
          %v472 = vld [vmem:[%s339] sm:$0x1]
          %v474 = vlaneseq
          %v475 = vshrl.u32 %v474, 7
          %v476 = vsub.s32 0, %v475
          %v477 = vrot.slane %v472, %v476
          %v479 = vadd.f32 %v470, %v477
          %v480 = vadd.f32 %v471, %v477
          %v481 = vpack.c.bf16 %v480, %v479
          %v483 = vunpack.c.l.b16 %v481
          %v484 = vunpack.c.h.b16 %v481
          %v485 = vpack.c.b16 %v483, %v483
          %v486 = vpack.c.b16 %v484, %v484
          %489 = vst [vmem:[%s326] sm:$0xf] %v485
          %490 = vst [vmem:[%s326 + $0x4] sm:$0xf] %v486
        $region81: #{bart_decoder_forward.29} parent=68 // pred_fallthru
          _
        %s491 = sand.u32 %s125, 1
        %s492 = sand.u32 %s125, 1
        %s493 = smul.addr %s492, 8
        %s494 = scalar_lea.vmem [#allocation4], %s493
        // Predicated region
        $region82: #{bart_decoder_forward.29} parent=68 // pred_check
          %p495 = pneg %p135
        $region83: #{bart_decoder_forward.29} parent=68 // pred_check_branch
          %497 = sbr.rel (%p495) target = $region85
        $region84: #{bart_decoder_forward.29} parent=68 // pred_region
          %s498 = smul.u32 2, %s19
          %s499 = smul.addr %s498, 3
          %s500 = sadd.s32 %s20, %s499
          %s501 = smul.addr %s500, 4
          %s502 = scalar_lea.vmem %s3, %s501
          // Predicated region
          $region86: #{bart_decoder_forward.29} parent=84 // pred_check
            _
          $region87: #{bart_decoder_forward.29} parent=84 // pred_check_branch
            %504 = sbr.rel (0) target = $region89
          $region88: #{bart_decoder_forward.29} parent=84 // pred_region
            // Predicated region
            $region90: #{bart_decoder_forward.29} parent=88 // pred_check
              _
            $region91: #{bart_decoder_forward.29} parent=88 // pred_check_branch
              %506 = sbr.rel target = $region93
            $region92: #{bart_decoder_forward.29} parent=88 // pred_region
              // Predicated region
              $region105: #{bart_decoder_forward.29} parent=92 // pred_check
                _
              $region106: #{bart_decoder_forward.29} parent=92 // pred_check_branch
                %523 = sbr.rel (0) target = $region108
              $region107: #{bart_decoder_forward.29} parent=92 // pred_region
                loop: start=0, step=1, limit=1
                $region109: #{bart_decoder_forward.29} parent=107 // loop_pre_header
                  _
                $region110: #{bart_decoder_forward.29} parent=107 // loop_header
                  %s525 = sphi 0, %s529
                  %p526 = scmp.ge.s32.totalorder %s525, 1
                  %s530 = sphi %s494, %s494
                  %s531 = sphi %s502, %s502
                $region111: #{bart_decoder_forward.29} parent=107 // loop_header_branch
                  %528 = sbr.rel (%p526) target = $region115
                $region112: #{bart_decoder_forward.29} parent=107 // loop_body
                  _
                $region113: #{bart_decoder_forward.29} parent=107 // loop_footer
                  %s529 = sadd.s32 1, %s525
                $region114: #{bart_decoder_forward.29} parent=107 // loop_footer_branch
                  %524 = sbr.rel target = $region110
                $region115: #{bart_decoder_forward.29} parent=107 // loop_exit
                  _
                loop: start=0, step=1, limit=1
                $region116: #{bart_decoder_forward.29} parent=107 // loop_pre_header
                  _
                $region117: #{bart_decoder_forward.29} parent=107 // loop_header
                  %s534 = sphi 0, %s538
                  %p535 = scmp.ge.s32.totalorder %s534, 1
                  %s539 = sphi %s494, %s494
                  %s540 = sphi %s502, %s502
                $region118: #{bart_decoder_forward.29} parent=107 // loop_header_branch
                  %537 = sbr.rel (%p535) target = $region122
                $region119: #{bart_decoder_forward.29} parent=107 // loop_body
                  %v541 = vld [vmem:[%s539] sm:$0xf]
                  %542 = vst [vmem:[%s540] sm:$0xf] %v541
                  %v543 = vld [vmem:[%s539 + $0x4] sm:$0xf]
                  %544 = vst [vmem:[%s540 + $0xc] sm:$0xf] %v543
                $region120: #{bart_decoder_forward.29} parent=107 // loop_footer
                  %s538 = sadd.s32 1, %s534
                $region121: #{bart_decoder_forward.29} parent=107 // loop_footer_branch
                  %533 = sbr.rel target = $region117
                $region122: #{bart_decoder_forward.29} parent=107 // loop_exit
                  _
              $region108: #{bart_decoder_forward.29} parent=92 // pred_fallthru
                _
            $region93: #{bart_decoder_forward.29} parent=88 // pred_fallthru
              _
            // Predicated region
            $region94: #{bart_decoder_forward.29} parent=88 // pred_check
              _
            $region95: #{bart_decoder_forward.29} parent=88 // pred_check_branch
              %508 = sbr.rel (0) target = $region97
            $region96: #{bart_decoder_forward.29} parent=88 // pred_region
              loop: start=0, step=1, limit=1
              $region98: #{bart_decoder_forward.29} parent=96 // loop_pre_header
                _
              $region99: #{bart_decoder_forward.29} parent=96 // loop_header
                %s511 = sphi 0, %s515
                %p512 = scmp.ge.s32.totalorder %s511, 1
                %s516 = sphi %s494, %s494
                %s517 = sphi %s502, %s502
              $region100: #{bart_decoder_forward.29} parent=96 // loop_header_branch
                %514 = sbr.rel (%p512) target = $region104
              $region101: #{bart_decoder_forward.29} parent=96 // loop_body
                %v518 = vld [vmem:[%s516] sm:$0xf]
                %519 = vst [vmem:[%s517] sm:$0xf] %v518
                %v520 = vld [vmem:[%s516 + $0x4] sm:$0xf]
                %521 = vst [vmem:[%s517 + $0xc] sm:$0xf] %v520
              $region102: #{bart_decoder_forward.29} parent=96 // loop_footer
                %s515 = sadd.s32 1, %s511
              $region103: #{bart_decoder_forward.29} parent=96 // loop_footer_branch
                %510 = sbr.rel target = $region99
              $region104: #{bart_decoder_forward.29} parent=96 // loop_exit
                _
            $region97: #{bart_decoder_forward.29} parent=88 // pred_fallthru
              _
          $region89: #{bart_decoder_forward.29} parent=84 // pred_fallthru
            _
          %545 = vnop
        $region85: #{bart_decoder_forward.29} parent=68 // pred_fallthru
          _
      $region69: #{bart_decoder_forward.29} parent=5 // pred_fallthru
        _
      %p546 = scmp.le.s32.totalorder 2, %s9
      // Predicated region
      $region123: #{bart_decoder_forward.29} parent=5 // pred_check
        %p547 = pneg %p546
      $region124: #{bart_decoder_forward.29} parent=5 // pred_check_branch
        %549 = sbr.rel (%p547) target = $region126
      $region125: #{bart_decoder_forward.29} parent=5 // pred_region
        %s550 = ssub.s32 %s9, 2
        // Predicated region
        $region127: #{bart_decoder_forward.29} parent=125 // pred_check
          %p551 = pneg %p141
        $region128: #{bart_decoder_forward.29} parent=125 // pred_check_branch
          %553 = sbr.rel (%p551) target = $region130
        $region129: #{bart_decoder_forward.29} parent=125 // pred_region
          %s554 = sand.u32 %s126, 1
          %s555 = sand.u32 %s126, 1
          %s556 = smul.addr %s555, 8
          %s557 = scalar_lea.vmem [#allocation4], %s556
        $region130: #{bart_decoder_forward.29} parent=125 // pred_fallthru
          _
      $region126: #{bart_decoder_forward.29} parent=5 // pred_fallthru
        _
    $region6: #{bart_decoder_forward.29} parent=1 // loop_footer
      %s13 = sadd.s32 1, %s9
    $region7: #{bart_decoder_forward.29} parent=1 // loop_footer_branch
      %8 = sbr.rel target = $region3
    $region8: #{bart_decoder_forward.29} parent=1 // loop_exit
      _

</llo_original>
